<compile_context>
chip_gen: v5e
topology: v5e:2x2
jax: 0.10.0
libtpu: 0.0.40
codegen_flags: <defaults>
</compile_context>

<pallas_src>
import functools
import math

import jax
import jax.numpy as jnp
from jax.experimental import pallas as pl
from jax.experimental.pallas import tpu as pltpu


def _round_up(x, m):
    return ((x + m - 1) // m) * m


def _sdf_decoder_kernel(*refs, num_pts_layers, negative_slope, input_ch,
                        input_ch_views, output_features):
    """One (tm, :) slab of points through the whole fused decoder MLP."""
    it = iter(refs)
    x_pts_ref = next(it)     # (tm, input_ch)            f32
    x_views_ref = next(it)   # (tm, input_ch_views)      f32
    sty_ref = next(it)       # (tm, S)                   bf16 (matmul dtype)

    w0p_ref = next(it)       # (input_ch, W)  f32   layer-0 weight, pts cols (VPU)
    w0s_ref = next(it)       # (S, W)         bf16  layer-0 weight, style cols
    b0_ref = next(it)        # (1, W)         f32
    hidden_refs = [(next(it), next(it)) for _ in range(num_pts_layers - 1)]
    wvh_ref = next(it)       # (W, W)               bf16  views layer, h cols
    wvv_ref = next(it)       # (input_ch_views, W)  f32   views cols (VPU)
    wvs_ref = next(it)       # (S, W)               bf16  style cols
    bv_ref = next(it)        # (1, W)               f32
    wrgb_ref = next(it)      # (3, W)  f32  rgb head rows, std folded
    wsig_ref = next(it)      # (1, W)  f32  sigma head row, std folded
    bh_ref = next(it)        # (1, 4)  f32  folded head bias [rgb, sdf]

    out_ref = next(it)       # (tm, 4 + W) or (tm, 4)

    mm_dtype = w0s_ref.dtype

    def leaky(v):
        return jnp.where(v >= 0, v, negative_slope * v)

    pts = x_pts_ref[...].astype(jnp.float32)
    views = x_views_ref[...].astype(jnp.float32)
    sty = sty_ref[...]  # stays in matmul dtype; only feeds MXU dots

    # Layer 0: leaky_relu(cat(pts, styles) @ W0^T + b0).
    # Style contraction on the MXU (bf16 x bf16 -> f32 acc); the 3 pts columns
    # become VPU broadcast-FMAs so they never pad an MXU K tile.
    h = jnp.dot(sty, w0s_ref[...], preferred_element_type=jnp.float32)
    h = h + b0_ref[...]
    for k in range(input_ch):
        h = h + pts[:, k:k + 1] * w0p_ref[k:k + 1, :]
    h = leaky(h)

    # Hidden pointwise conv layers (dominant MXU work, bf16 inputs, f32 acc).
    for w_ref, b_ref in hidden_refs:
        h = leaky(
            jnp.dot(h.astype(mm_dtype), w_ref[...],
                    preferred_element_type=jnp.float32)
            + b_ref[...]
        )

    # Views layer: leaky_relu(cat(h, views, styles) @ Wv^T + bv).
    g = jnp.dot(h.astype(mm_dtype), wvh_ref[...],
                preferred_element_type=jnp.float32)
    g = g + jnp.dot(sty, wvs_ref[...], preferred_element_type=jnp.float32)
    g = g + bv_ref[...]
    for k in range(input_ch_views):
        g = g + views[:, k:k + 1] * wvv_ref[k:k + 1, :]
    g = leaky(g)

    # rgb / sigma heads as VPU multiply + lane reduction (keeps the MXU free;
    # std_init / bias_init are folded into wrgb/wsig/b_head in the wrapper).
    rgb_cols = [
        jnp.sum(g * wrgb_ref[c:c + 1, :], axis=-1, keepdims=True)
        for c in range(3)
    ]
    sdf = jnp.sum(h * wsig_ref[0:1, :], axis=-1, keepdims=True)
    head = jnp.concatenate(rgb_cols + [sdf], axis=-1) + bh_ref[...]  # (tm, 4)

    if output_features:
        out = jnp.concatenate([head, g], axis=-1)   # [rgb, sdf, g]
    else:
        out = head
    out_ref[...] = out.astype(out_ref.dtype)


def prepare_sdf_decoder_params(
    params,
    *,
    input_ch=3,
    input_ch_views=3,
    rgb_std_init=1.0,
    rgb_bias_init=0.0,
    sigma_std_init=1.0,
    sigma_bias_init=0.0,
    weight_dtype=jnp.bfloat16,
):
    """One-time weight prep: transpose, split at concat boundaries, fold the
    LinearLayer std/bias into the heads, cast the big matrices to bf16."""
    f32 = jnp.float32
    pts_layers = params["pts"]
    D = len(pts_layers)
    W = pts_layers[0][0].shape[0]

    w0, b0 = pts_layers[0]                               # (W, input_ch + S), (W,)
    prep = {
        "D": D,
        "W": W,
        "input_ch": input_ch,
        "input_ch_views": input_ch_views,
        "weight_dtype": weight_dtype,
        "w0_pts": jnp.asarray(w0[:, :input_ch].T, f32),          # (input_ch, W)
        "w0_sty": jnp.asarray(w0[:, input_ch:].T, weight_dtype), # (S, W)
        "b0": jnp.asarray(b0, f32).reshape(1, W),
        "hidden": [
            (jnp.asarray(w.T, weight_dtype), jnp.asarray(b, f32).reshape(1, W))
            for (w, b) in pts_layers[1:]
        ],
    }

    wv, bv = params["views"]                             # (W, W + views + S)
    prep["wv_h"] = jnp.asarray(wv[:, :W].T, weight_dtype)
    prep["wv_views"] = jnp.asarray(wv[:, W:W + input_ch_views].T, f32)
    prep["wv_sty"] = jnp.asarray(wv[:, W + input_ch_views:].T, weight_dtype)
    prep["bv"] = jnp.asarray(bv, f32).reshape(1, W)

    w_rgb, b_rgb = params["rgb"]                         # (3, W), (3,)
    w_sig, b_sig = params["sigma"]                       # (1, W), (1,)
    prep["w_rgb"] = rgb_std_init * jnp.asarray(w_rgb, f32)     # (3, W)
    prep["w_sig"] = sigma_std_init * jnp.asarray(w_sig, f32)   # (1, W)
    prep["b_head"] = jnp.concatenate(
        [
            rgb_std_init * jnp.asarray(b_rgb, f32) + rgb_bias_init,
            sigma_std_init * jnp.asarray(b_sig, f32) + sigma_bias_init,
        ]
    ).reshape(1, 4)
    return prep


def sdf_decoder_pallas(
    x,
    styles,
    params,
    *,
    input_ch=3,
    input_ch_views=3,
    negative_slope=0.01,
    output_features=True,
    rgb_std_init=1.0,
    rgb_bias_init=0.0,
    sigma_std_init=1.0,
    sigma_bias_init=0.0,
    weight_dtype=jnp.bfloat16,
    tm=512,
):
    """Fused SDFDecoder.forward. x: (B, N, input_ch+input_ch_views), styles: (B, N, S).

    `params` may be raw ({"pts","views","rgb","sigma"}) or already prepared via
    prepare_sdf_decoder_params (preferred: prepare once at load time)."""
    if "pts" in params:
        params = prepare_sdf_decoder_params(
            params, input_ch=input_ch, input_ch_views=input_ch_views,
            rgb_std_init=rgb_std_init, rgb_bias_init=rgb_bias_init,
            sigma_std_init=sigma_std_init, sigma_bias_init=sigma_bias_init,
            weight_dtype=weight_dtype)
    p = params
    W, D = p["W"], p["D"]
    wdt = p["weight_dtype"]
    f32 = jnp.float32

    batch, n_pts, _ = x.shape
    S = styles.shape[-1]

    # ---- flatten points ----
    x2 = x.reshape(-1, x.shape[-1])
    sty2 = styles.reshape(-1, S).astype(wdt)   # only feeds MXU dots -> bf16
    M = x2.shape[0]
    x_pts = x2[:, :input_ch].astype(f32)
    x_views = x2[:, input_ch:input_ch + input_ch_views].astype(f32)

    # ---- tile over M only; pad M to a multiple of tm (no silent drops) ----
    tm = min(tm, _round_up(M, 8))
    M_pad = _round_up(M, tm)
    if M_pad != M:
        pad = M_pad - M
        x_pts = jnp.pad(x_pts, ((0, pad), (0, 0)))
        x_views = jnp.pad(x_views, ((0, pad), (0, 0)))
        sty2 = jnp.pad(sty2, ((0, pad), (0, 0)))
    grid = (M_pad // tm,)

    # ---- BlockSpecs ----
    def row_spec(d):
        return pl.BlockSpec((tm, d), lambda i: (i, 0))

    def resident_spec(shape):
        # Constant block index -> DMA'd once, stays resident in VMEM.
        return pl.BlockSpec(shape, lambda i: (0, 0))

    operands = [x_pts, x_views, sty2, p["w0_pts"], p["w0_sty"], p["b0"]]
    in_specs = [
        row_spec(input_ch),
        row_spec(input_ch_views),
        row_spec(S),
        resident_spec((input_ch, W)),
        resident_spec((S, W)),
        resident_spec((1, W)),
    ]
    for w, b in p["hidden"]:
        operands += [w, b]
        in_specs += [resident_spec((W, W)), resident_spec((1, W))]
    operands += [p["wv_h"], p["wv_views"], p["wv_sty"], p["bv"],
                 p["w_rgb"], p["w_sig"], p["b_head"]]
    in_specs += [
        resident_spec((W, W)),
        resident_spec((input_ch_views, W)),
        resident_spec((S, W)),
        resident_spec((1, W)),
        resident_spec((3, W)),
        resident_spec((1, W)),
        resident_spec((1, 4)),
    ]

    out_dtype = x.dtype
    out_width = (4 + W) if output_features else 4
    out_shape = jax.ShapeDtypeStruct((M_pad, out_width), out_dtype)
    out_specs = pl.BlockSpec((tm, out_width), lambda i: (i, 0))

    # Advisory cost estimate for XLA's scheduler.
    wdt_size = jnp.dtype(wdt).itemsize
    flops = 2 * M_pad * (
        S * W + (D - 1) * W * W + (W + S) * W
        + (input_ch + input_ch_views) * W + 4 * W
    )
    weight_bytes = (
        wdt_size * (2 * S * W + D * W * W)
        + 4 * ((input_ch + input_ch_views) * W + (D + 1) * W + 4 * W + 4)
    )
    bytes_accessed = (
        M_pad * (4 * (input_ch + input_ch_views) + wdt_size * S)
        + weight_bytes
        + M_pad * out_width * jnp.dtype(out_dtype).itemsize
    )

    kernel = functools.partial(
        _sdf_decoder_kernel,
        num_pts_layers=D,
        negative_slope=float(negative_slope),
        input_ch=input_ch,
        input_ch_views=input_ch_views,
        output_features=bool(output_features),
    )

    out = pl.pallas_call(
        kernel,
        out_shape=out_shape,
        grid_spec=pltpu.PrefetchScalarGridSpec(
            num_scalar_prefetch=0,
            grid=grid,
            in_specs=in_specs,
            out_specs=out_specs,
        ),
        compiler_params=pltpu.CompilerParams(
            dimension_semantics=("parallel",),
        ),
        cost_estimate=pl.CostEstimate(
            flops=int(flops), transcendentals=0,
            bytes_accessed=int(bytes_accessed)),
    )(*operands)

    out = out[:M]
    return out.reshape(batch, n_pts, out_width)


# ----------------------------- reference & init ------------------------------


def sdf_decoder_reference(
    x, styles, params, *, input_ch=3, input_ch_views=3, negative_slope=0.01,
    output_features=True, rgb_std_init=1.0, rgb_bias_init=0.0,
    sigma_std_init=1.0, sigma_bias_init=0.0,
):
    pts = x[..., :input_ch]
    views = x[..., input_ch:input_ch + input_ch_views]
    h = jnp.concatenate([pts, styles], axis=-1)
    for w, b in params["pts"]:
        h = h @ w.T + b
        h = jnp.where(h >= 0, h, negative_slope * h)
    w_sig, b_sig = params["sigma"]
    sdf = sigma_std_init * (h @ w_sig.T + b_sig) + sigma_bias_init
    hv = jnp.concatenate([h, views, styles], axis=-1)
    wv, bv = params["views"]
    g = hv @ wv.T + bv
    g = jnp.where(g >= 0, g, negative_slope * g)
    w_rgb, b_rgb = params["rgb"]
    rgb = rgb_std_init * (g @ w_rgb.T + b_rgb) + rgb_bias_init
    out = jnp.concatenate([rgb, sdf], axis=-1)
    if output_features:
        out = jnp.concatenate([out, g], axis=-1)
    return out


def init_sdf_decoder_params(key, *, D=8, W=256, style_dim=256,
                            input_ch=3, input_ch_views=3):
    """Deterministic params mirroring the PyTorch module structure."""
    params = {"pts": []}
    keys = jax.random.split(key, D + 3)
    in_dims = [input_ch + style_dim] + [W] * (D - 1)
    for i, in_dim in enumerate(in_dims):
        kw, kb = jax.random.split(keys[i])
        lim = 1.0 / math.sqrt(in_dim)
        w = jax.random.uniform(kw, (W, in_dim), minval=-lim, maxval=lim, dtype=jnp.float32)
        b = jax.random.uniform(kb, (W,), minval=-lim, maxval=lim, dtype=jnp.float32)
        params["pts"].append((w, b))
    in_dim = input_ch_views + W + style_dim
    kw, kb = jax.random.split(keys[D])
    lim = 1.0 / math.sqrt(in_dim)
    params["views"] = (
        jax.random.uniform(kw, (W, in_dim), minval=-lim, maxval=lim, dtype=jnp.float32),
        jax.random.uniform(kb, (W,), minval=-lim, maxval=lim, dtype=jnp.float32),
    )

    def freq_linear(k, out_dim, in_dim):  # LinearLayer(freq_init=True) init
        kw, kb = jax.random.split(k)
        wlim = math.sqrt(6.0 / in_dim) / 25.0
        blim = math.sqrt(1.0 / in_dim)
        w = jax.random.uniform(kw, (out_dim, in_dim), minval=-wlim, maxval=wlim,
                               dtype=jnp.float32)
        b = jax.random.uniform(kb, (out_dim,), minval=-blim, maxval=blim,
                               dtype=jnp.float32)
        return w, b

    params["rgb"] = freq_linear(keys[D + 1], 3, W)
    params["sigma"] = freq_linear(keys[D + 2], 1, W)
    return params


if __name__ == "__main__":
    key = jax.random.PRNGKey(0)
    k_x, k_s, k_p = jax.random.split(key, 3)

    batch, n_pts = 2, 256
    D, W, style_dim = 4, 64, 64
    input_ch, input_ch_views = 3, 3

    x = jax.random.normal(
        k_x, (batch, n_pts, input_ch + input_ch_views), dtype=jnp.float32)
    styles = jax.random.normal(k_s, (batch, n_pts, style_dim), dtype=jnp.float32)
    params = init_sdf_decoder_params(
        k_p, D=D, W=W, style_dim=style_dim,
        input_ch=input_ch, input_ch_views=input_ch_views)

    # One-time weight preparation (hoisted out of the per-call path).
    prepared = prepare_sdf_decoder_params(
        params, input_ch=input_ch, input_ch_views=input_ch_views,
        weight_dtype=jnp.bfloat16)

    out = sdf_decoder_pallas(
        x, styles, prepared, input_ch=input_ch, input_ch_views=input_ch_views)
    out = jax.block_until_ready(out)

    ref = sdf_decoder_reference(
        x, styles, params, input_ch=input_ch, input_ch_views=input_ch_views)

    assert out.shape == (batch, n_pts, 4 + W), out.shape
    # bf16 matmul datapath (f32 accumulate) vs f32 reference -> loose tolerance.
    assert jnp.allclose(out, ref, atol=3e-2, rtol=3e-2), float(
        jnp.max(jnp.abs(out - ref)))

    print("KERNEL_OK")
</pallas_src>

<mosaic_0001>
module attributes {stable_mosaic.version = 11 : i64} {
  func.func @_sdf_decoder_kernel(%arg0: i32, %arg1: memref<512x3xf32, #tpu.memory_space<vmem>>, %arg2: memref<512x3xf32, #tpu.memory_space<vmem>>, %arg3: memref<512x64xbf16, #tpu.memory_space<vmem>>, %arg4: memref<3x64xf32, #tpu.memory_space<vmem>>, %arg5: memref<64x64xbf16, #tpu.memory_space<vmem>>, %arg6: memref<1x64xf32, #tpu.memory_space<vmem>>, %arg7: memref<64x64xbf16, #tpu.memory_space<vmem>>, %arg8: memref<1x64xf32, #tpu.memory_space<vmem>>, %arg9: memref<64x64xbf16, #tpu.memory_space<vmem>>, %arg10: memref<1x64xf32, #tpu.memory_space<vmem>>, %arg11: memref<64x64xbf16, #tpu.memory_space<vmem>>, %arg12: memref<1x64xf32, #tpu.memory_space<vmem>>, %arg13: memref<64x64xbf16, #tpu.memory_space<vmem>>, %arg14: memref<3x64xf32, #tpu.memory_space<vmem>>, %arg15: memref<64x64xbf16, #tpu.memory_space<vmem>>, %arg16: memref<1x64xf32, #tpu.memory_space<vmem>>, %arg17: memref<3x64xf32, #tpu.memory_space<vmem>>, %arg18: memref<1x64xf32, #tpu.memory_space<vmem>>, %arg19: memref<1x4xf32, #tpu.memory_space<vmem>>, %arg20: memref<512x68xf32, #tpu.memory_space<vmem>>) attributes {dimension_semantics = [#tpu.dimension_semantics<parallel>], iteration_bounds = array<i64: 1>, scalar_prefetch = 0 : i64, scratch_operands = 0 : i64, tpu.core_type = #tpu.core_type<tc>, window_params = [{transform_indices = @transform_0, window_bounds = array<i64: 512, 3>}, {transform_indices = @transform_1, window_bounds = array<i64: 512, 3>}, {transform_indices = @transform_2, window_bounds = array<i64: 512, 64>}, {pipeline_mode = #tpu.pipeline_mode<synchronous>, transform_indices = @transform_3, window_bounds = array<i64: 3, 64>}, {pipeline_mode = #tpu.pipeline_mode<synchronous>, transform_indices = @transform_4, window_bounds = array<i64: 64, 64>}, {pipeline_mode = #tpu.pipeline_mode<synchronous>, transform_indices = @transform_5, window_bounds = array<i64: 1, 64>}, {pipeline_mode = #tpu.pipeline_mode<synchronous>, transform_indices = @transform_6, window_bounds = array<i64: 64, 64>}, {pipeline_mode = #tpu.pipeline_mode<synchronous>, transform_indices = @transform_7, window_bounds = array<i64: 1, 64>}, {pipeline_mode = #tpu.pipeline_mode<synchronous>, transform_indices = @transform_8, window_bounds = array<i64: 64, 64>}, {pipeline_mode = #tpu.pipeline_mode<synchronous>, transform_indices = @transform_9, window_bounds = array<i64: 1, 64>}, {pipeline_mode = #tpu.pipeline_mode<synchronous>, transform_indices = @transform_10, window_bounds = array<i64: 64, 64>}, {pipeline_mode = #tpu.pipeline_mode<synchronous>, transform_indices = @transform_11, window_bounds = array<i64: 1, 64>}, {pipeline_mode = #tpu.pipeline_mode<synchronous>, transform_indices = @transform_12, window_bounds = array<i64: 64, 64>}, {pipeline_mode = #tpu.pipeline_mode<synchronous>, transform_indices = @transform_13, window_bounds = array<i64: 3, 64>}, {pipeline_mode = #tpu.pipeline_mode<synchronous>, transform_indices = @transform_14, window_bounds = array<i64: 64, 64>}, {pipeline_mode = #tpu.pipeline_mode<synchronous>, transform_indices = @transform_15, window_bounds = array<i64: 1, 64>}, {pipeline_mode = #tpu.pipeline_mode<synchronous>, transform_indices = @transform_16, window_bounds = array<i64: 3, 64>}, {pipeline_mode = #tpu.pipeline_mode<synchronous>, transform_indices = @transform_17, window_bounds = array<i64: 1, 64>}, {pipeline_mode = #tpu.pipeline_mode<synchronous>, transform_indices = @transform_18, window_bounds = array<i64: 1, 4>}, {transform_indices = @transform_19, window_bounds = array<i64: 512, 68>}]} {
    %c0 = arith.constant 0 : index
    %c0_0 = arith.constant 0 : index
    %0 = vector.load %arg1[%c0, %c0_0] : memref<512x3xf32, #tpu.memory_space<vmem>>, vector<512x3xf32>
    %c0_1 = arith.constant 0 : index
    %c0_2 = arith.constant 0 : index
    %1 = vector.load %arg2[%c0_1, %c0_2] : memref<512x3xf32, #tpu.memory_space<vmem>>, vector<512x3xf32>
    %c0_3 = arith.constant 0 : index
    %c0_4 = arith.constant 0 : index
    %2 = vector.load %arg3[%c0_3, %c0_4] : memref<512x64xbf16, #tpu.memory_space<vmem>>, vector<512x64xbf16>
    %c0_5 = arith.constant 0 : index
    %c0_6 = arith.constant 0 : index
    %3 = vector.load %arg5[%c0_5, %c0_6] : memref<64x64xbf16, #tpu.memory_space<vmem>>, vector<64x64xbf16>
    %cst = arith.constant dense<0.000000e+00> : vector<512x64xf32>
    %4 = tpu.matmul %2, %3, %cst {dimension_numbers = #tpu.dot_dimension_numbers<[1], [0], [0], [1], [0, 0, 1, 1], [], []>} : vector<512x64xbf16>, vector<64x64xbf16>, vector<512x64xf32> -> vector<512x64xf32>
    %c0_7 = arith.constant 0 : index
    %c0_8 = arith.constant 0 : index
    %5 = vector.load %arg6[%c0_7, %c0_8] : memref<1x64xf32, #tpu.memory_space<vmem>>, vector<1x64xf32>
    %6 = vector.broadcast %5 : vector<1x64xf32> to vector<512x64xf32>
    %7 = arith.addf %4, %6 : vector<512x64xf32>
    %8 = vector.extract_strided_slice %0 {offsets = [0, 0], sizes = [512, 1], strides = [1, 1]} : vector<512x3xf32> to vector<512x1xf32>
    %c0_9 = arith.constant 0 : index
    %c0_10 = arith.constant 0 : index
    %9 = vector.load %arg4[%c0_9, %c0_10] : memref<3x64xf32, #tpu.memory_space<vmem>>, vector<1x64xf32>
    %10 = vector.broadcast %8 : vector<512x1xf32> to vector<512x64xf32>
    %11 = vector.broadcast %9 : vector<1x64xf32> to vector<512x64xf32>
    %12 = arith.mulf %10, %11 : vector<512x64xf32>
    %13 = arith.addf %7, %12 : vector<512x64xf32>
    %14 = vector.extract_strided_slice %0 {offsets = [0, 1], sizes = [512, 1], strides = [1, 1]} : vector<512x3xf32> to vector<512x1xf32>
    %c1 = arith.constant 1 : index
    %c0_11 = arith.constant 0 : index
    %15 = vector.load %arg4[%c1, %c0_11] : memref<3x64xf32, #tpu.memory_space<vmem>>, vector<1x64xf32>
    %16 = vector.broadcast %14 : vector<512x1xf32> to vector<512x64xf32>
    %17 = vector.broadcast %15 : vector<1x64xf32> to vector<512x64xf32>
    %18 = arith.mulf %16, %17 : vector<512x64xf32>
    %19 = arith.addf %13, %18 : vector<512x64xf32>
    %20 = vector.extract_strided_slice %0 {offsets = [0, 2], sizes = [512, 1], strides = [1, 1]} : vector<512x3xf32> to vector<512x1xf32>
    %c2 = arith.constant 2 : index
    %c0_12 = arith.constant 0 : index
    %21 = vector.load %arg4[%c2, %c0_12] : memref<3x64xf32, #tpu.memory_space<vmem>>, vector<1x64xf32>
    %22 = vector.broadcast %20 : vector<512x1xf32> to vector<512x64xf32>
    %23 = vector.broadcast %21 : vector<1x64xf32> to vector<512x64xf32>
    %24 = arith.mulf %22, %23 : vector<512x64xf32>
    %25 = arith.addf %19, %24 : vector<512x64xf32>
    %cst_13 = arith.constant 0.000000e+00 : f32
    %26 = vector.broadcast %cst_13 : f32 to vector<512x64xf32>
    %27 = arith.cmpf oge, %25, %26 : vector<512x64xf32>
    %cst_14 = arith.constant 0.00999999977 : f32
    %28 = vector.broadcast %cst_14 : f32 to vector<512x64xf32>
    %29 = arith.mulf %28, %25 : vector<512x64xf32>
    %30 = arith.select %27, %25, %29 : vector<512x64xi1>, vector<512x64xf32>
    %31 = arith.truncf %30 : vector<512x64xf32> to vector<512x64xbf16>
    %c0_15 = arith.constant 0 : index
    %c0_16 = arith.constant 0 : index
    %32 = vector.load %arg7[%c0_15, %c0_16] : memref<64x64xbf16, #tpu.memory_space<vmem>>, vector<64x64xbf16>
    %cst_17 = arith.constant dense<0.000000e+00> : vector<512x64xf32>
    %33 = tpu.matmul %31, %32, %cst_17 {dimension_numbers = #tpu.dot_dimension_numbers<[1], [0], [0], [1], [0, 0, 1, 1], [], []>} : vector<512x64xbf16>, vector<64x64xbf16>, vector<512x64xf32> -> vector<512x64xf32>
    %c0_18 = arith.constant 0 : index
    %c0_19 = arith.constant 0 : index
    %34 = vector.load %arg8[%c0_18, %c0_19] : memref<1x64xf32, #tpu.memory_space<vmem>>, vector<1x64xf32>
    %35 = vector.broadcast %34 : vector<1x64xf32> to vector<512x64xf32>
    %36 = arith.addf %33, %35 : vector<512x64xf32>
    %cst_20 = arith.constant 0.000000e+00 : f32
    %37 = vector.broadcast %cst_20 : f32 to vector<512x64xf32>
    %38 = arith.cmpf oge, %36, %37 : vector<512x64xf32>
    %cst_21 = arith.constant 0.00999999977 : f32
    %39 = vector.broadcast %cst_21 : f32 to vector<512x64xf32>
    %40 = arith.mulf %39, %36 : vector<512x64xf32>
    %41 = arith.select %38, %36, %40 : vector<512x64xi1>, vector<512x64xf32>
    %42 = arith.truncf %41 : vector<512x64xf32> to vector<512x64xbf16>
    %c0_22 = arith.constant 0 : index
    %c0_23 = arith.constant 0 : index
    %43 = vector.load %arg9[%c0_22, %c0_23] : memref<64x64xbf16, #tpu.memory_space<vmem>>, vector<64x64xbf16>
    %cst_24 = arith.constant dense<0.000000e+00> : vector<512x64xf32>
    %44 = tpu.matmul %42, %43, %cst_24 {dimension_numbers = #tpu.dot_dimension_numbers<[1], [0], [0], [1], [0, 0, 1, 1], [], []>} : vector<512x64xbf16>, vector<64x64xbf16>, vector<512x64xf32> -> vector<512x64xf32>
    %c0_25 = arith.constant 0 : index
    %c0_26 = arith.constant 0 : index
    %45 = vector.load %arg10[%c0_25, %c0_26] : memref<1x64xf32, #tpu.memory_space<vmem>>, vector<1x64xf32>
    %46 = vector.broadcast %45 : vector<1x64xf32> to vector<512x64xf32>
    %47 = arith.addf %44, %46 : vector<512x64xf32>
    %cst_27 = arith.constant 0.000000e+00 : f32
    %48 = vector.broadcast %cst_27 : f32 to vector<512x64xf32>
    %49 = arith.cmpf oge, %47, %48 : vector<512x64xf32>
    %cst_28 = arith.constant 0.00999999977 : f32
    %50 = vector.broadcast %cst_28 : f32 to vector<512x64xf32>
    %51 = arith.mulf %50, %47 : vector<512x64xf32>
    %52 = arith.select %49, %47, %51 : vector<512x64xi1>, vector<512x64xf32>
    %53 = arith.truncf %52 : vector<512x64xf32> to vector<512x64xbf16>
    %c0_29 = arith.constant 0 : index
    %c0_30 = arith.constant 0 : index
    %54 = vector.load %arg11[%c0_29, %c0_30] : memref<64x64xbf16, #tpu.memory_space<vmem>>, vector<64x64xbf16>
    %cst_31 = arith.constant dense<0.000000e+00> : vector<512x64xf32>
    %55 = tpu.matmul %53, %54, %cst_31 {dimension_numbers = #tpu.dot_dimension_numbers<[1], [0], [0], [1], [0, 0, 1, 1], [], []>} : vector<512x64xbf16>, vector<64x64xbf16>, vector<512x64xf32> -> vector<512x64xf32>
    %c0_32 = arith.constant 0 : index
    %c0_33 = arith.constant 0 : index
    %56 = vector.load %arg12[%c0_32, %c0_33] : memref<1x64xf32, #tpu.memory_space<vmem>>, vector<1x64xf32>
    %57 = vector.broadcast %56 : vector<1x64xf32> to vector<512x64xf32>
    %58 = arith.addf %55, %57 : vector<512x64xf32>
    %cst_34 = arith.constant 0.000000e+00 : f32
    %59 = vector.broadcast %cst_34 : f32 to vector<512x64xf32>
    %60 = arith.cmpf oge, %58, %59 : vector<512x64xf32>
    %cst_35 = arith.constant 0.00999999977 : f32
    %61 = vector.broadcast %cst_35 : f32 to vector<512x64xf32>
    %62 = arith.mulf %61, %58 : vector<512x64xf32>
    %63 = arith.select %60, %58, %62 : vector<512x64xi1>, vector<512x64xf32>
    %64 = arith.truncf %63 : vector<512x64xf32> to vector<512x64xbf16>
    %c0_36 = arith.constant 0 : index
    %c0_37 = arith.constant 0 : index
    %65 = vector.load %arg13[%c0_36, %c0_37] : memref<64x64xbf16, #tpu.memory_space<vmem>>, vector<64x64xbf16>
    %cst_38 = arith.constant dense<0.000000e+00> : vector<512x64xf32>
    %66 = tpu.matmul %64, %65, %cst_38 {dimension_numbers = #tpu.dot_dimension_numbers<[1], [0], [0], [1], [0, 0, 1, 1], [], []>} : vector<512x64xbf16>, vector<64x64xbf16>, vector<512x64xf32> -> vector<512x64xf32>
    %c0_39 = arith.constant 0 : index
    %c0_40 = arith.constant 0 : index
    %67 = vector.load %arg15[%c0_39, %c0_40] : memref<64x64xbf16, #tpu.memory_space<vmem>>, vector<64x64xbf16>
    %cst_41 = arith.constant dense<0.000000e+00> : vector<512x64xf32>
    %68 = tpu.matmul %2, %67, %cst_41 {dimension_numbers = #tpu.dot_dimension_numbers<[1], [0], [0], [1], [0, 0, 1, 1], [], []>} : vector<512x64xbf16>, vector<64x64xbf16>, vector<512x64xf32> -> vector<512x64xf32>
    %69 = arith.addf %66, %68 : vector<512x64xf32>
    %c0_42 = arith.constant 0 : index
    %c0_43 = arith.constant 0 : index
    %70 = vector.load %arg16[%c0_42, %c0_43] : memref<1x64xf32, #tpu.memory_space<vmem>>, vector<1x64xf32>
    %71 = vector.broadcast %70 : vector<1x64xf32> to vector<512x64xf32>
    %72 = arith.addf %69, %71 : vector<512x64xf32>
    %73 = vector.extract_strided_slice %1 {offsets = [0, 0], sizes = [512, 1], strides = [1, 1]} : vector<512x3xf32> to vector<512x1xf32>
    %c0_44 = arith.constant 0 : index
    %c0_45 = arith.constant 0 : index
    %74 = vector.load %arg14[%c0_44, %c0_45] : memref<3x64xf32, #tpu.memory_space<vmem>>, vector<1x64xf32>
    %75 = vector.broadcast %73 : vector<512x1xf32> to vector<512x64xf32>
    %76 = vector.broadcast %74 : vector<1x64xf32> to vector<512x64xf32>
    %77 = arith.mulf %75, %76 : vector<512x64xf32>
    %78 = arith.addf %72, %77 : vector<512x64xf32>
    %79 = vector.extract_strided_slice %1 {offsets = [0, 1], sizes = [512, 1], strides = [1, 1]} : vector<512x3xf32> to vector<512x1xf32>
    %c1_46 = arith.constant 1 : index
    %c0_47 = arith.constant 0 : index
    %80 = vector.load %arg14[%c1_46, %c0_47] : memref<3x64xf32, #tpu.memory_space<vmem>>, vector<1x64xf32>
    %81 = vector.broadcast %79 : vector<512x1xf32> to vector<512x64xf32>
    %82 = vector.broadcast %80 : vector<1x64xf32> to vector<512x64xf32>
    %83 = arith.mulf %81, %82 : vector<512x64xf32>
    %84 = arith.addf %78, %83 : vector<512x64xf32>
    %85 = vector.extract_strided_slice %1 {offsets = [0, 2], sizes = [512, 1], strides = [1, 1]} : vector<512x3xf32> to vector<512x1xf32>
    %c2_48 = arith.constant 2 : index
    %c0_49 = arith.constant 0 : index
    %86 = vector.load %arg14[%c2_48, %c0_49] : memref<3x64xf32, #tpu.memory_space<vmem>>, vector<1x64xf32>
    %87 = vector.broadcast %85 : vector<512x1xf32> to vector<512x64xf32>
    %88 = vector.broadcast %86 : vector<1x64xf32> to vector<512x64xf32>
    %89 = arith.mulf %87, %88 : vector<512x64xf32>
    %90 = arith.addf %84, %89 : vector<512x64xf32>
    %cst_50 = arith.constant 0.000000e+00 : f32
    %91 = vector.broadcast %cst_50 : f32 to vector<512x64xf32>
    %92 = arith.cmpf oge, %90, %91 : vector<512x64xf32>
    %cst_51 = arith.constant 0.00999999977 : f32
    %93 = vector.broadcast %cst_51 : f32 to vector<512x64xf32>
    %94 = arith.mulf %93, %90 : vector<512x64xf32>
    %95 = arith.select %92, %90, %94 : vector<512x64xi1>, vector<512x64xf32>
    %c0_52 = arith.constant 0 : index
    %c0_53 = arith.constant 0 : index
    %96 = vector.load %arg17[%c0_52, %c0_53] : memref<3x64xf32, #tpu.memory_space<vmem>>, vector<1x64xf32>
    %97 = vector.broadcast %96 : vector<1x64xf32> to vector<512x64xf32>
    %98 = arith.mulf %95, %97 : vector<512x64xf32>
    %cst_54 = arith.constant dense<0.000000e+00> : vector<512xf32>
    %99 = vector.multi_reduction <add>, %98, %cst_54 [1] : vector<512x64xf32> to vector<512xf32>
    %100 = vector.shape_cast %99 : vector<512xf32> to vector<512x1xf32>
    %c1_55 = arith.constant 1 : index
    %c0_56 = arith.constant 0 : index
    %101 = vector.load %arg17[%c1_55, %c0_56] : memref<3x64xf32, #tpu.memory_space<vmem>>, vector<1x64xf32>
    %102 = vector.broadcast %101 : vector<1x64xf32> to vector<512x64xf32>
    %103 = arith.mulf %95, %102 : vector<512x64xf32>
    %cst_57 = arith.constant dense<0.000000e+00> : vector<512xf32>
    %104 = vector.multi_reduction <add>, %103, %cst_57 [1] : vector<512x64xf32> to vector<512xf32>
    %105 = vector.shape_cast %104 : vector<512xf32> to vector<512x1xf32>
    %c2_58 = arith.constant 2 : index
    %c0_59 = arith.constant 0 : index
    %106 = vector.load %arg17[%c2_58, %c0_59] : memref<3x64xf32, #tpu.memory_space<vmem>>, vector<1x64xf32>
    %107 = vector.broadcast %106 : vector<1x64xf32> to vector<512x64xf32>
    %108 = arith.mulf %95, %107 : vector<512x64xf32>
    %cst_60 = arith.constant dense<0.000000e+00> : vector<512xf32>
    %109 = vector.multi_reduction <add>, %108, %cst_60 [1] : vector<512x64xf32> to vector<512xf32>
    %110 = vector.shape_cast %109 : vector<512xf32> to vector<512x1xf32>
    %c0_61 = arith.constant 0 : index
    %c0_62 = arith.constant 0 : index
    %111 = vector.load %arg18[%c0_61, %c0_62] : memref<1x64xf32, #tpu.memory_space<vmem>>, vector<1x64xf32>
    %112 = vector.broadcast %111 : vector<1x64xf32> to vector<512x64xf32>
    %113 = arith.mulf %63, %112 : vector<512x64xf32>
    %cst_63 = arith.constant dense<0.000000e+00> : vector<512xf32>
    %114 = vector.multi_reduction <add>, %113, %cst_63 [1] : vector<512x64xf32> to vector<512xf32>
    %115 = vector.shape_cast %114 : vector<512xf32> to vector<512x1xf32>
    %116 = tpu.concatenate %100, %105, %110, %115 in 1 : vector<512x1xf32>, vector<512x1xf32>, vector<512x1xf32>, vector<512x1xf32> -> vector<512x4xf32>
    %c0_64 = arith.constant 0 : index
    %c0_65 = arith.constant 0 : index
    %117 = vector.load %arg19[%c0_64, %c0_65] : memref<1x4xf32, #tpu.memory_space<vmem>>, vector<1x4xf32>
    %118 = vector.broadcast %117 : vector<1x4xf32> to vector<512x4xf32>
    %119 = arith.addf %116, %118 : vector<512x4xf32>
    %120 = tpu.concatenate %119, %95 in 1 : vector<512x4xf32>, vector<512x64xf32> -> vector<512x68xf32>
    %c0_66 = arith.constant 0 : index
    %c0_67 = arith.constant 0 : index
    %121 = vector.load %arg20[%c0_66, %c0_67] : memref<512x68xf32, #tpu.memory_space<vmem>>, vector<512x68xf32>
    tpu.vector_store %arg20[%c0_66, %c0_67], %120 {strides = array<i32>} : memref<512x68xf32, #tpu.memory_space<vmem>>, vector<512x68xf32>,
    return
  }
  func.func @transform_0(%arg0: i32) -> (i32, i32) {
    %c0_i32 = arith.constant 0 : i32
    %c0_i32_0 = arith.constant 0 : i32
    return %arg0, %c0_i32 : i32, i32
  }
  func.func @transform_1(%arg0: i32) -> (i32, i32) {
    %c0_i32 = arith.constant 0 : i32
    %c0_i32_0 = arith.constant 0 : i32
    return %arg0, %c0_i32 : i32, i32
  }
  func.func @transform_2(%arg0: i32) -> (i32, i32) {
    %c0_i32 = arith.constant 0 : i32
    %c0_i32_0 = arith.constant 0 : i32
    return %arg0, %c0_i32 : i32, i32
  }
  func.func @transform_3(%arg0: i32) -> (i32, i32) {
    %c0_i32 = arith.constant 0 : i32
    %c0_i32_0 = arith.constant 0 : i32
    %c0_i32_1 = arith.constant 0 : i32
    return %c0_i32, %c0_i32_0 : i32, i32
  }
  func.func @transform_4(%arg0: i32) -> (i32, i32) {
    %c0_i32 = arith.constant 0 : i32
    %c0_i32_0 = arith.constant 0 : i32
    %c0_i32_1 = arith.constant 0 : i32
    return %c0_i32, %c0_i32_0 : i32, i32
  }
  func.func @transform_5(%arg0: i32) -> (i32, i32) {
    %c0_i32 = arith.constant 0 : i32
    %c0_i32_0 = arith.constant 0 : i32
    %c0_i32_1 = arith.constant 0 : i32
    return %c0_i32, %c0_i32_0 : i32, i32
  }
  func.func @transform_6(%arg0: i32) -> (i32, i32) {
    %c0_i32 = arith.constant 0 : i32
    %c0_i32_0 = arith.constant 0 : i32
    %c0_i32_1 = arith.constant 0 : i32
    return %c0_i32, %c0_i32_0 : i32, i32
  }
  func.func @transform_7(%arg0: i32) -> (i32, i32) {
    %c0_i32 = arith.constant 0 : i32
    %c0_i32_0 = arith.constant 0 : i32
    %c0_i32_1 = arith.constant 0 : i32
    return %c0_i32, %c0_i32_0 : i32, i32
  }
  func.func @transform_8(%arg0: i32) -> (i32, i32) {
    %c0_i32 = arith.constant 0 : i32
    %c0_i32_0 = arith.constant 0 : i32
    %c0_i32_1 = arith.constant 0 : i32
    return %c0_i32, %c0_i32_0 : i32, i32
  }
  func.func @transform_9(%arg0: i32) -> (i32, i32) {
    %c0_i32 = arith.constant 0 : i32
    %c0_i32_0 = arith.constant 0 : i32
    %c0_i32_1 = arith.constant 0 : i32
    return %c0_i32, %c0_i32_0 : i32, i32
  }
  func.func @transform_10(%arg0: i32) -> (i32, i32) {
    %c0_i32 = arith.constant 0 : i32
    %c0_i32_0 = arith.constant 0 : i32
    %c0_i32_1 = arith.constant 0 : i32
    return %c0_i32, %c0_i32_0 : i32, i32
  }
  func.func @transform_11(%arg0: i32) -> (i32, i32) {
    %c0_i32 = arith.constant 0 : i32
    %c0_i32_0 = arith.constant 0 : i32
    %c0_i32_1 = arith.constant 0 : i32
    return %c0_i32, %c0_i32_0 : i32, i32
  }
  func.func @transform_12(%arg0: i32) -> (i32, i32) {
    %c0_i32 = arith.constant 0 : i32
    %c0_i32_0 = arith.constant 0 : i32
    %c0_i32_1 = arith.constant 0 : i32
    return %c0_i32, %c0_i32_0 : i32, i32
  }
  func.func @transform_13(%arg0: i32) -> (i32, i32) {
    %c0_i32 = arith.constant 0 : i32
    %c0_i32_0 = arith.constant 0 : i32
    %c0_i32_1 = arith.constant 0 : i32
    return %c0_i32, %c0_i32_0 : i32, i32
  }
  func.func @transform_14(%arg0: i32) -> (i32, i32) {
    %c0_i32 = arith.constant 0 : i32
    %c0_i32_0 = arith.constant 0 : i32
    %c0_i32_1 = arith.constant 0 : i32
    return %c0_i32, %c0_i32_0 : i32, i32
  }
  func.func @transform_15(%arg0: i32) -> (i32, i32) {
    %c0_i32 = arith.constant 0 : i32
    %c0_i32_0 = arith.constant 0 : i32
    %c0_i32_1 = arith.constant 0 : i32
    return %c0_i32, %c0_i32_0 : i32, i32
  }
  func.func @transform_16(%arg0: i32) -> (i32, i32) {
    %c0_i32 = arith.constant 0 : i32
    %c0_i32_0 = arith.constant 0 : i32
    %c0_i32_1 = arith.constant 0 : i32
    return %c0_i32, %c0_i32_0 : i32, i32
  }
  func.func @transform_17(%arg0: i32) -> (i32, i32) {
    %c0_i32 = arith.constant 0 : i32
    %c0_i32_0 = arith.constant 0 : i32
    %c0_i32_1 = arith.constant 0 : i32
    return %c0_i32, %c0_i32_0 : i32, i32
  }
  func.func @transform_18(%arg0: i32) -> (i32, i32) {
    %c0_i32 = arith.constant 0 : i32
    %c0_i32_0 = arith.constant 0 : i32
    %c0_i32_1 = arith.constant 0 : i32
    return %c0_i32, %c0_i32_0 : i32, i32
  }
  func.func @transform_19(%arg0: i32) -> (i32, i32) {
    %c0_i32 = arith.constant 0 : i32
    %c0_i32_0 = arith.constant 0 : i32
    return %arg0, %c0_i32 : i32, i32
  }
}

</mosaic_0001>

<llo_original>
// kernel: tpu_custom_call.1
$region0: #{tpu_custom_call.1}
  #allocation0 [shape = 'u32[]', space=smem, size = 0x4, offset = 0x4, fixed_abs, tag = 'smem constant byte address 0x4 - core index']
  #allocation1 [shape = 'u32[72,128]{1,0:T(1,128)}', space=vmem, size = 0x9000, scoped, tag = 'internal scratch']
  %s0 = inlined_call_operand.vmem [shape: f32[512,3], index: 0, kind: input, shape index: {}]
  %s1 = inlined_call_operand.vmem [shape: f32[512,3], index: 1, kind: input, shape index: {}]
  %s2 = inlined_call_operand.vmem [shape: bf16[512,64], index: 2, kind: input, shape index: {}]
  %s3 = inlined_call_operand.vmem [shape: f32[3,64], index: 3, kind: input, shape index: {}]
  %s4 = inlined_call_operand.vmem [shape: bf16[64,64], index: 4, kind: input, shape index: {}]
  %s5 = inlined_call_operand.vmem [shape: f32[1,64], index: 5, kind: input, shape index: {}]
  %s6 = inlined_call_operand.vmem [shape: bf16[64,64], index: 6, kind: input, shape index: {}]
  %s7 = inlined_call_operand.vmem [shape: f32[1,64], index: 7, kind: input, shape index: {}]
  %s8 = inlined_call_operand.vmem [shape: bf16[64,64], index: 8, kind: input, shape index: {}]
  %s9 = inlined_call_operand.vmem [shape: f32[1,64], index: 9, kind: input, shape index: {}]
  %s10 = inlined_call_operand.vmem [shape: bf16[64,64], index: 10, kind: input, shape index: {}]
  %s11 = inlined_call_operand.vmem [shape: f32[1,64], index: 11, kind: input, shape index: {}]
  %s12 = inlined_call_operand.vmem [shape: bf16[64,64], index: 12, kind: input, shape index: {}]
  %s13 = inlined_call_operand.vmem [shape: f32[3,64], index: 13, kind: input, shape index: {}]
  %s14 = inlined_call_operand.vmem [shape: bf16[64,64], index: 14, kind: input, shape index: {}]
  %s15 = inlined_call_operand.vmem [shape: f32[1,64], index: 15, kind: input, shape index: {}]
  %s16 = inlined_call_operand.vmem [shape: f32[3,64], index: 16, kind: input, shape index: {}]
  %s17 = inlined_call_operand.vmem [shape: f32[1,64], index: 17, kind: input, shape index: {}]
  %s18 = inlined_call_operand.vmem [shape: f32[1,4], index: 18, kind: input, shape index: {}]
  %s19 = inlined_call_operand.vmem [shape: f32[512,68], index: 19, kind: output, shape index: {}]
  %s20 = sld [smem:[#allocation0]]
  $region86: #{tpu_custom_call.1} parent=0
    _
  %s22 = ssub.s32 1, %s20
  %s23 = scalar_select 0, %s22, %s20
  // Predicated region
  $region2: #{tpu_custom_call.1} parent=0 // pred_check
    _
  $region3: #{tpu_custom_call.1} parent=0 // pred_check_branch
    %25 = sbr.rel (0) target = $region5
  $region4: #{tpu_custom_call.1} parent=0 // pred_region
    _
  $region5: #{tpu_custom_call.1} parent=0 // pred_fallthru
    _
  // Predicated region
  $region6: #{tpu_custom_call.1} parent=0 // pred_check
    _
  $region7: #{tpu_custom_call.1} parent=0 // pred_check_branch
    %27 = sbr.rel (0) target = $region9
  $region8: #{tpu_custom_call.1} parent=0 // pred_region
    _
  $region9: #{tpu_custom_call.1} parent=0 // pred_fallthru
    _
  // Predicated region
  $region10: #{tpu_custom_call.1} parent=0 // pred_check
    _
  $region11: #{tpu_custom_call.1} parent=0 // pred_check_branch
    %29 = sbr.rel (0) target = $region13
  $region12: #{tpu_custom_call.1} parent=0 // pred_region
    _
  $region13: #{tpu_custom_call.1} parent=0 // pred_fallthru
    _
  // Predicated region
  $region14: #{tpu_custom_call.1} parent=0 // pred_check
    _
  $region15: #{tpu_custom_call.1} parent=0 // pred_check_branch
    %31 = sbr.rel (0) target = $region17
  $region16: #{tpu_custom_call.1} parent=0 // pred_region
    _
  $region17: #{tpu_custom_call.1} parent=0 // pred_fallthru
    _
  // Predicated region
  $region18: #{tpu_custom_call.1} parent=0 // pred_check
    _
  $region19: #{tpu_custom_call.1} parent=0 // pred_check_branch
    %33 = sbr.rel (0) target = $region21
  $region20: #{tpu_custom_call.1} parent=0 // pred_region
    _
  $region21: #{tpu_custom_call.1} parent=0 // pred_fallthru
    _
  // Predicated region
  $region22: #{tpu_custom_call.1} parent=0 // pred_check
    _
  $region23: #{tpu_custom_call.1} parent=0 // pred_check_branch
    %35 = sbr.rel (0) target = $region25
  $region24: #{tpu_custom_call.1} parent=0 // pred_region
    _
  $region25: #{tpu_custom_call.1} parent=0 // pred_fallthru
    _
  // Predicated region
  $region26: #{tpu_custom_call.1} parent=0 // pred_check
    _
  $region27: #{tpu_custom_call.1} parent=0 // pred_check_branch
    %37 = sbr.rel (0) target = $region29
  $region28: #{tpu_custom_call.1} parent=0 // pred_region
    _
  $region29: #{tpu_custom_call.1} parent=0 // pred_fallthru
    _
  // Predicated region
  $region30: #{tpu_custom_call.1} parent=0 // pred_check
    _
  $region31: #{tpu_custom_call.1} parent=0 // pred_check_branch
    %39 = sbr.rel (0) target = $region33
  $region32: #{tpu_custom_call.1} parent=0 // pred_region
    _
  $region33: #{tpu_custom_call.1} parent=0 // pred_fallthru
    _
  // Predicated region
  $region34: #{tpu_custom_call.1} parent=0 // pred_check
    _
  $region35: #{tpu_custom_call.1} parent=0 // pred_check_branch
    %41 = sbr.rel (0) target = $region37
  $region36: #{tpu_custom_call.1} parent=0 // pred_region
    _
  $region37: #{tpu_custom_call.1} parent=0 // pred_fallthru
    _
  // Predicated region
  $region38: #{tpu_custom_call.1} parent=0 // pred_check
    _
  $region39: #{tpu_custom_call.1} parent=0 // pred_check_branch
    %43 = sbr.rel (0) target = $region41
  $region40: #{tpu_custom_call.1} parent=0 // pred_region
    _
  $region41: #{tpu_custom_call.1} parent=0 // pred_fallthru
    _
  // Predicated region
  $region42: #{tpu_custom_call.1} parent=0 // pred_check
    _
  $region43: #{tpu_custom_call.1} parent=0 // pred_check_branch
    %45 = sbr.rel (0) target = $region45
  $region44: #{tpu_custom_call.1} parent=0 // pred_region
    _
  $region45: #{tpu_custom_call.1} parent=0 // pred_fallthru
    _
  // Predicated region
  $region46: #{tpu_custom_call.1} parent=0 // pred_check
    _
  $region47: #{tpu_custom_call.1} parent=0 // pred_check_branch
    %47 = sbr.rel (0) target = $region49
  $region48: #{tpu_custom_call.1} parent=0 // pred_region
    _
  $region49: #{tpu_custom_call.1} parent=0 // pred_fallthru
    _
  // Predicated region
  $region50: #{tpu_custom_call.1} parent=0 // pred_check
    _
  $region51: #{tpu_custom_call.1} parent=0 // pred_check_branch
    %49 = sbr.rel (0) target = $region53
  $region52: #{tpu_custom_call.1} parent=0 // pred_region
    _
  $region53: #{tpu_custom_call.1} parent=0 // pred_fallthru
    _
  // Predicated region
  $region54: #{tpu_custom_call.1} parent=0 // pred_check
    _
  $region55: #{tpu_custom_call.1} parent=0 // pred_check_branch
    %51 = sbr.rel (0) target = $region57
  $region56: #{tpu_custom_call.1} parent=0 // pred_region
    _
  $region57: #{tpu_custom_call.1} parent=0 // pred_fallthru
    _
  // Predicated region
  $region58: #{tpu_custom_call.1} parent=0 // pred_check
    _
  $region59: #{tpu_custom_call.1} parent=0 // pred_check_branch
    %53 = sbr.rel (0) target = $region61
  $region60: #{tpu_custom_call.1} parent=0 // pred_region
    _
  $region61: #{tpu_custom_call.1} parent=0 // pred_fallthru
    _
  // Predicated region
  $region62: #{tpu_custom_call.1} parent=0 // pred_check
    _
  $region63: #{tpu_custom_call.1} parent=0 // pred_check_branch
    %55 = sbr.rel (0) target = $region65
  $region64: #{tpu_custom_call.1} parent=0 // pred_region
    _
  $region65: #{tpu_custom_call.1} parent=0 // pred_fallthru
    _
  // Predicated region
  $region66: #{tpu_custom_call.1} parent=0 // pred_check
    _
  $region67: #{tpu_custom_call.1} parent=0 // pred_check_branch
    %57 = sbr.rel (0) target = $region69
  $region68: #{tpu_custom_call.1} parent=0 // pred_region
    _
  $region69: #{tpu_custom_call.1} parent=0 // pred_fallthru
    _
  // Predicated region
  $region70: #{tpu_custom_call.1} parent=0 // pred_check
    _
  $region71: #{tpu_custom_call.1} parent=0 // pred_check_branch
    %59 = sbr.rel (0) target = $region73
  $region72: #{tpu_custom_call.1} parent=0 // pred_region
    _
  $region73: #{tpu_custom_call.1} parent=0 // pred_fallthru
    _
  // Predicated region
  $region74: #{tpu_custom_call.1} parent=0 // pred_check
    _
  $region75: #{tpu_custom_call.1} parent=0 // pred_check_branch
    %61 = sbr.rel (0) target = $region77
  $region76: #{tpu_custom_call.1} parent=0 // pred_region
    _
  $region77: #{tpu_custom_call.1} parent=0 // pred_fallthru
    _
  %v63 = vld [vmem:[%s0] sm:$0xff]
  %v64 = vld [vmem:[%s0 + $0x8] sm:$0xff]
  %v65 = vld [vmem:[%s0 + $0x10] sm:$0xff]
  %v66 = vld [vmem:[%s0 + $0x18] sm:$0xff]
  %v67 = vld [vmem:[%s0 + $0x20] sm:$0xff]
  %v68 = vld [vmem:[%s0 + $0x28] sm:$0xff]
  %v69 = vld [vmem:[%s0 + $0x30] sm:$0xff]
  %v70 = vld [vmem:[%s0 + $0x38] sm:$0xff]
  %v71 = vld [vmem:[%s0 + $0x40] sm:$0xff]
  %v72 = vld [vmem:[%s0 + $0x48] sm:$0xff]
  %v73 = vld [vmem:[%s0 + $0x50] sm:$0xff]
  %v74 = vld [vmem:[%s0 + $0x58] sm:$0xff]
  %v75 = vld [vmem:[%s0 + $0x60] sm:$0xff]
  %v76 = vld [vmem:[%s0 + $0x68] sm:$0xff]
  %v77 = vld [vmem:[%s0 + $0x70] sm:$0xff]
  %v78 = vld [vmem:[%s0 + $0x78] sm:$0xff]
  %v79 = vld [vmem:[%s0 + $0x80] sm:$0xff]
  %v80 = vld [vmem:[%s0 + $0x88] sm:$0xff]
  %v81 = vld [vmem:[%s0 + $0x90] sm:$0xff]
  %v82 = vld [vmem:[%s0 + $0x98] sm:$0xff]
  %v83 = vld [vmem:[%s0 + $0xa0] sm:$0xff]
  %v84 = vld [vmem:[%s0 + $0xa8] sm:$0xff]
  %v85 = vld [vmem:[%s0 + $0xb0] sm:$0xff]
  %v86 = vld [vmem:[%s0 + $0xb8] sm:$0xff]
  %v87 = vld [vmem:[%s0 + $0xc0] sm:$0xff]
  %v88 = vld [vmem:[%s0 + $0xc8] sm:$0xff]
  %v89 = vld [vmem:[%s0 + $0xd0] sm:$0xff]
  %v90 = vld [vmem:[%s0 + $0xd8] sm:$0xff]
  %v91 = vld [vmem:[%s0 + $0xe0] sm:$0xff]
  %v92 = vld [vmem:[%s0 + $0xe8] sm:$0xff]
  %v93 = vld [vmem:[%s0 + $0xf0] sm:$0xff]
  %v94 = vld [vmem:[%s0 + $0xf8] sm:$0xff]
  %v95 = vld [vmem:[%s0 + $0x100] sm:$0xff]
  %v96 = vld [vmem:[%s0 + $0x108] sm:$0xff]
  %v97 = vld [vmem:[%s0 + $0x110] sm:$0xff]
  %v98 = vld [vmem:[%s0 + $0x118] sm:$0xff]
  %v99 = vld [vmem:[%s0 + $0x120] sm:$0xff]
  %v100 = vld [vmem:[%s0 + $0x128] sm:$0xff]
  %v101 = vld [vmem:[%s0 + $0x130] sm:$0xff]
  %v102 = vld [vmem:[%s0 + $0x138] sm:$0xff]
  %v103 = vld [vmem:[%s0 + $0x140] sm:$0xff]
  %v104 = vld [vmem:[%s0 + $0x148] sm:$0xff]
  %v105 = vld [vmem:[%s0 + $0x150] sm:$0xff]
  %v106 = vld [vmem:[%s0 + $0x158] sm:$0xff]
  %v107 = vld [vmem:[%s0 + $0x160] sm:$0xff]
  %v108 = vld [vmem:[%s0 + $0x168] sm:$0xff]
  %v109 = vld [vmem:[%s0 + $0x170] sm:$0xff]
  %v110 = vld [vmem:[%s0 + $0x178] sm:$0xff]
  %v111 = vld [vmem:[%s0 + $0x180] sm:$0xff]
  %v112 = vld [vmem:[%s0 + $0x188] sm:$0xff]
  %v113 = vld [vmem:[%s0 + $0x190] sm:$0xff]
  %v114 = vld [vmem:[%s0 + $0x198] sm:$0xff]
  %v115 = vld [vmem:[%s0 + $0x1a0] sm:$0xff]
  %v116 = vld [vmem:[%s0 + $0x1a8] sm:$0xff]
  %v117 = vld [vmem:[%s0 + $0x1b0] sm:$0xff]
  %v118 = vld [vmem:[%s0 + $0x1b8] sm:$0xff]
  %v119 = vld [vmem:[%s0 + $0x1c0] sm:$0xff]
  %v120 = vld [vmem:[%s0 + $0x1c8] sm:$0xff]
  %v121 = vld [vmem:[%s0 + $0x1d0] sm:$0xff]
  %v122 = vld [vmem:[%s0 + $0x1d8] sm:$0xff]
  %v123 = vld [vmem:[%s0 + $0x1e0] sm:$0xff]
  %v124 = vld [vmem:[%s0 + $0x1e8] sm:$0xff]
  %v125 = vld [vmem:[%s0 + $0x1f0] sm:$0xff]
  %v126 = vld [vmem:[%s0 + $0x1f8] sm:$0xff]
  %v127 = vld [vmem:[%s1] sm:$0xff]
  %v128 = vld [vmem:[%s1 + $0x8] sm:$0xff]
  %v129 = vld [vmem:[%s1 + $0x10] sm:$0xff]
  %v130 = vld [vmem:[%s1 + $0x18] sm:$0xff]
  %v131 = vld [vmem:[%s1 + $0x20] sm:$0xff]
  %v132 = vld [vmem:[%s1 + $0x28] sm:$0xff]
  %v133 = vld [vmem:[%s1 + $0x30] sm:$0xff]
  %v134 = vld [vmem:[%s1 + $0x38] sm:$0xff]
  %v135 = vld [vmem:[%s1 + $0x40] sm:$0xff]
  %v136 = vld [vmem:[%s1 + $0x48] sm:$0xff]
  %v137 = vld [vmem:[%s1 + $0x50] sm:$0xff]
  %v138 = vld [vmem:[%s1 + $0x58] sm:$0xff]
  %v139 = vld [vmem:[%s1 + $0x60] sm:$0xff]
  %v140 = vld [vmem:[%s1 + $0x68] sm:$0xff]
  %v141 = vld [vmem:[%s1 + $0x70] sm:$0xff]
  %v142 = vld [vmem:[%s1 + $0x78] sm:$0xff]
  %v143 = vld [vmem:[%s1 + $0x80] sm:$0xff]
  %v144 = vld [vmem:[%s1 + $0x88] sm:$0xff]
  %v145 = vld [vmem:[%s1 + $0x90] sm:$0xff]
  %v146 = vld [vmem:[%s1 + $0x98] sm:$0xff]
  %v147 = vld [vmem:[%s1 + $0xa0] sm:$0xff]
  %v148 = vld [vmem:[%s1 + $0xa8] sm:$0xff]
  %v149 = vld [vmem:[%s1 + $0xb0] sm:$0xff]
  %v150 = vld [vmem:[%s1 + $0xb8] sm:$0xff]
  %v151 = vld [vmem:[%s1 + $0xc0] sm:$0xff]
  %v152 = vld [vmem:[%s1 + $0xc8] sm:$0xff]
  %v153 = vld [vmem:[%s1 + $0xd0] sm:$0xff]
  %v154 = vld [vmem:[%s1 + $0xd8] sm:$0xff]
  %v155 = vld [vmem:[%s1 + $0xe0] sm:$0xff]
  %v156 = vld [vmem:[%s1 + $0xe8] sm:$0xff]
  %v157 = vld [vmem:[%s1 + $0xf0] sm:$0xff]
  %v158 = vld [vmem:[%s1 + $0xf8] sm:$0xff]
  %v159 = vld [vmem:[%s1 + $0x100] sm:$0xff]
  %v160 = vld [vmem:[%s1 + $0x108] sm:$0xff]
  %v161 = vld [vmem:[%s1 + $0x110] sm:$0xff]
  %v162 = vld [vmem:[%s1 + $0x118] sm:$0xff]
  %v163 = vld [vmem:[%s1 + $0x120] sm:$0xff]
  %v164 = vld [vmem:[%s1 + $0x128] sm:$0xff]
  %v165 = vld [vmem:[%s1 + $0x130] sm:$0xff]
  %v166 = vld [vmem:[%s1 + $0x138] sm:$0xff]
  %v167 = vld [vmem:[%s1 + $0x140] sm:$0xff]
  %v168 = vld [vmem:[%s1 + $0x148] sm:$0xff]
  %v169 = vld [vmem:[%s1 + $0x150] sm:$0xff]
  %v170 = vld [vmem:[%s1 + $0x158] sm:$0xff]
  %v171 = vld [vmem:[%s1 + $0x160] sm:$0xff]
  %v172 = vld [vmem:[%s1 + $0x168] sm:$0xff]
  %v173 = vld [vmem:[%s1 + $0x170] sm:$0xff]
  %v174 = vld [vmem:[%s1 + $0x178] sm:$0xff]
  %v175 = vld [vmem:[%s1 + $0x180] sm:$0xff]
  %v176 = vld [vmem:[%s1 + $0x188] sm:$0xff]
  %v177 = vld [vmem:[%s1 + $0x190] sm:$0xff]
  %v178 = vld [vmem:[%s1 + $0x198] sm:$0xff]
  %v179 = vld [vmem:[%s1 + $0x1a0] sm:$0xff]
  %v180 = vld [vmem:[%s1 + $0x1a8] sm:$0xff]
  %v181 = vld [vmem:[%s1 + $0x1b0] sm:$0xff]
  %v182 = vld [vmem:[%s1 + $0x1b8] sm:$0xff]
  %v183 = vld [vmem:[%s1 + $0x1c0] sm:$0xff]
  %v184 = vld [vmem:[%s1 + $0x1c8] sm:$0xff]
  %v185 = vld [vmem:[%s1 + $0x1d0] sm:$0xff]
  %v186 = vld [vmem:[%s1 + $0x1d8] sm:$0xff]
  %v187 = vld [vmem:[%s1 + $0x1e0] sm:$0xff]
  %v188 = vld [vmem:[%s1 + $0x1e8] sm:$0xff]
  %v189 = vld [vmem:[%s1 + $0x1f0] sm:$0xff]
  %v190 = vld [vmem:[%s1 + $0x1f8] sm:$0xff]
  %v191 = vld [vmem:[%s2] sm:$0xf]
  %v192 = vld [vmem:[%s2 + $0x4] sm:$0xf]
  %v193 = vld [vmem:[%s2 + $0x8] sm:$0xf]
  %v194 = vld [vmem:[%s2 + $0xc] sm:$0xf]
  %v195 = vld [vmem:[%s2 + $0x10] sm:$0xf]
  %v196 = vld [vmem:[%s2 + $0x14] sm:$0xf]
  %v197 = vld [vmem:[%s2 + $0x18] sm:$0xf]
  %v198 = vld [vmem:[%s2 + $0x1c] sm:$0xf]
  %v199 = vld [vmem:[%s2 + $0x20] sm:$0xf]
  %v200 = vld [vmem:[%s2 + $0x24] sm:$0xf]
  %v201 = vld [vmem:[%s2 + $0x28] sm:$0xf]
  %v202 = vld [vmem:[%s2 + $0x2c] sm:$0xf]
  %v203 = vld [vmem:[%s2 + $0x30] sm:$0xf]
  %v204 = vld [vmem:[%s2 + $0x34] sm:$0xf]
  %v205 = vld [vmem:[%s2 + $0x38] sm:$0xf]
  %v206 = vld [vmem:[%s2 + $0x3c] sm:$0xf]
  %v207 = vld [vmem:[%s2 + $0x40] sm:$0xf]
  %v208 = vld [vmem:[%s2 + $0x44] sm:$0xf]
  %v209 = vld [vmem:[%s2 + $0x48] sm:$0xf]
  %v210 = vld [vmem:[%s2 + $0x4c] sm:$0xf]
  %v211 = vld [vmem:[%s2 + $0x50] sm:$0xf]
  %v212 = vld [vmem:[%s2 + $0x54] sm:$0xf]
  %v213 = vld [vmem:[%s2 + $0x58] sm:$0xf]
  %v214 = vld [vmem:[%s2 + $0x5c] sm:$0xf]
  %v215 = vld [vmem:[%s2 + $0x60] sm:$0xf]
  %v216 = vld [vmem:[%s2 + $0x64] sm:$0xf]
  %v217 = vld [vmem:[%s2 + $0x68] sm:$0xf]
  %v218 = vld [vmem:[%s2 + $0x6c] sm:$0xf]
  %v219 = vld [vmem:[%s2 + $0x70] sm:$0xf]
  %v220 = vld [vmem:[%s2 + $0x74] sm:$0xf]
  %v221 = vld [vmem:[%s2 + $0x78] sm:$0xf]
  %v222 = vld [vmem:[%s2 + $0x7c] sm:$0xf]
  %v223 = vld [vmem:[%s2 + $0x80] sm:$0xf]
  %v224 = vld [vmem:[%s2 + $0x84] sm:$0xf]
  %v225 = vld [vmem:[%s2 + $0x88] sm:$0xf]
  %v226 = vld [vmem:[%s2 + $0x8c] sm:$0xf]
  %v227 = vld [vmem:[%s2 + $0x90] sm:$0xf]
  %v228 = vld [vmem:[%s2 + $0x94] sm:$0xf]
  %v229 = vld [vmem:[%s2 + $0x98] sm:$0xf]
  %v230 = vld [vmem:[%s2 + $0x9c] sm:$0xf]
  %v231 = vld [vmem:[%s2 + $0xa0] sm:$0xf]
  %v232 = vld [vmem:[%s2 + $0xa4] sm:$0xf]
  %v233 = vld [vmem:[%s2 + $0xa8] sm:$0xf]
  %v234 = vld [vmem:[%s2 + $0xac] sm:$0xf]
  %v235 = vld [vmem:[%s2 + $0xb0] sm:$0xf]
  %v236 = vld [vmem:[%s2 + $0xb4] sm:$0xf]
  %v237 = vld [vmem:[%s2 + $0xb8] sm:$0xf]
  %v238 = vld [vmem:[%s2 + $0xbc] sm:$0xf]
  %v239 = vld [vmem:[%s2 + $0xc0] sm:$0xf]
  %v240 = vld [vmem:[%s2 + $0xc4] sm:$0xf]
  %v241 = vld [vmem:[%s2 + $0xc8] sm:$0xf]
  %v242 = vld [vmem:[%s2 + $0xcc] sm:$0xf]
  %v243 = vld [vmem:[%s2 + $0xd0] sm:$0xf]
  %v244 = vld [vmem:[%s2 + $0xd4] sm:$0xf]
  %v245 = vld [vmem:[%s2 + $0xd8] sm:$0xf]
  %v246 = vld [vmem:[%s2 + $0xdc] sm:$0xf]
  %v247 = vld [vmem:[%s2 + $0xe0] sm:$0xf]
  %v248 = vld [vmem:[%s2 + $0xe4] sm:$0xf]
  %v249 = vld [vmem:[%s2 + $0xe8] sm:$0xf]
  %v250 = vld [vmem:[%s2 + $0xec] sm:$0xf]
  %v251 = vld [vmem:[%s2 + $0xf0] sm:$0xf]
  %v252 = vld [vmem:[%s2 + $0xf4] sm:$0xf]
  %v253 = vld [vmem:[%s2 + $0xf8] sm:$0xf]
  %v254 = vld [vmem:[%s2 + $0xfc] sm:$0xf]
  %v255 = vld [vmem:[%s4] sm:$0xf]
  %v256 = vld [vmem:[%s4 + $0x4] sm:$0xf]
  %v257 = vld [vmem:[%s4 + $0x8] sm:$0xf]
  %v258 = vld [vmem:[%s4 + $0xc] sm:$0xf]
  %v259 = vld [vmem:[%s4 + $0x10] sm:$0xf]
  %v260 = vld [vmem:[%s4 + $0x14] sm:$0xf]
  %v261 = vld [vmem:[%s4 + $0x18] sm:$0xf]
  %v262 = vld [vmem:[%s4 + $0x1c] sm:$0xf]
  %v263 = vld [vmem:[%s5] sm:$0x1]
  %v265 = vperm.slane %v263, 0
  %v331 = vunpack.c.l.b16 %v191
  %v332 = vunpack.c.l.b16 %v192
  %v333 = vunpack.c.l.b16 %v193
  %v334 = vunpack.c.l.b16 %v194
  %v335 = vunpack.c.l.b16 %v195
  %v336 = vunpack.c.l.b16 %v196
  %v337 = vunpack.c.l.b16 %v197
  %v338 = vunpack.c.l.b16 %v198
  %v339 = vunpack.c.l.b16 %v199
  %v340 = vunpack.c.l.b16 %v200
  %v341 = vunpack.c.l.b16 %v201
  %v342 = vunpack.c.l.b16 %v202
  %v343 = vunpack.c.l.b16 %v203
  %v344 = vunpack.c.l.b16 %v204
  %v345 = vunpack.c.l.b16 %v205
  %v346 = vunpack.c.l.b16 %v206
  %v347 = vunpack.c.l.b16 %v207
  %v348 = vunpack.c.l.b16 %v208
  %v349 = vunpack.c.l.b16 %v209
  %v350 = vunpack.c.l.b16 %v210
  %v351 = vunpack.c.l.b16 %v211
  %v352 = vunpack.c.l.b16 %v212
  %v353 = vunpack.c.l.b16 %v213
  %v354 = vunpack.c.l.b16 %v214
  %v355 = vunpack.c.l.b16 %v215
  %v356 = vunpack.c.l.b16 %v216
  %v357 = vunpack.c.l.b16 %v217
  %v358 = vunpack.c.l.b16 %v218
  %v359 = vunpack.c.l.b16 %v219
  %v360 = vunpack.c.l.b16 %v220
  %v361 = vunpack.c.l.b16 %v221
  %v362 = vunpack.c.l.b16 %v222
  %v363 = vunpack.c.l.b16 %v223
  %v364 = vunpack.c.l.b16 %v224
  %v365 = vunpack.c.l.b16 %v225
  %v366 = vunpack.c.l.b16 %v226
  %v367 = vunpack.c.l.b16 %v227
  %v368 = vunpack.c.l.b16 %v228
  %v369 = vunpack.c.l.b16 %v229
  %v370 = vunpack.c.l.b16 %v230
  %v371 = vunpack.c.l.b16 %v231
  %v372 = vunpack.c.l.b16 %v232
  %v373 = vunpack.c.l.b16 %v233
  %v374 = vunpack.c.l.b16 %v234
  %v375 = vunpack.c.l.b16 %v235
  %v376 = vunpack.c.l.b16 %v236
  %v377 = vunpack.c.l.b16 %v237
  %v378 = vunpack.c.l.b16 %v238
  %v379 = vunpack.c.l.b16 %v239
  %v380 = vunpack.c.l.b16 %v240
  %v381 = vunpack.c.l.b16 %v241
  %v382 = vunpack.c.l.b16 %v242
  %v383 = vunpack.c.l.b16 %v243
  %v384 = vunpack.c.l.b16 %v244
  %v385 = vunpack.c.l.b16 %v245
  %v386 = vunpack.c.l.b16 %v246
  %v387 = vunpack.c.l.b16 %v247
  %v388 = vunpack.c.l.b16 %v248
  %v389 = vunpack.c.l.b16 %v249
  %v390 = vunpack.c.l.b16 %v250
  %v391 = vunpack.c.l.b16 %v251
  %v392 = vunpack.c.l.b16 %v252
  %v393 = vunpack.c.l.b16 %v253
  %v394 = vunpack.c.l.b16 %v254
  %v395 = vpack.c.b16 %v332, %v331
  %v396 = vpack.c.b16 %v334, %v333
  %v397 = vpack.c.b16 %v336, %v335
  %v398 = vpack.c.b16 %v338, %v337
  %v399 = vpack.c.b16 %v340, %v339
  %v400 = vpack.c.b16 %v342, %v341
  %v401 = vpack.c.b16 %v344, %v343
  %v402 = vpack.c.b16 %v346, %v345
  %v403 = vpack.c.b16 %v348, %v347
  %v404 = vpack.c.b16 %v350, %v349
  %v405 = vpack.c.b16 %v352, %v351
  %v406 = vpack.c.b16 %v354, %v353
  %v407 = vpack.c.b16 %v356, %v355
  %v408 = vpack.c.b16 %v358, %v357
  %v409 = vpack.c.b16 %v360, %v359
  %v410 = vpack.c.b16 %v362, %v361
  %v411 = vpack.c.b16 %v364, %v363
  %v412 = vpack.c.b16 %v366, %v365
  %v413 = vpack.c.b16 %v368, %v367
  %v414 = vpack.c.b16 %v370, %v369
  %v415 = vpack.c.b16 %v372, %v371
  %v416 = vpack.c.b16 %v374, %v373
  %v417 = vpack.c.b16 %v376, %v375
  %v418 = vpack.c.b16 %v378, %v377
  %v419 = vpack.c.b16 %v380, %v379
  %v420 = vpack.c.b16 %v382, %v381
  %v421 = vpack.c.b16 %v384, %v383
  %v422 = vpack.c.b16 %v386, %v385
  %v423 = vpack.c.b16 %v388, %v387
  %v424 = vpack.c.b16 %v390, %v389
  %v425 = vpack.c.b16 %v392, %v391
  %v426 = vpack.c.b16 %v394, %v393
  %v435 = vunpack.c.l.b16 %v255
  %v436 = vunpack.c.l.b16 %v256
  %v437 = vunpack.c.l.b16 %v257
  %v438 = vunpack.c.l.b16 %v258
  %v439 = vunpack.c.l.b16 %v259
  %v440 = vunpack.c.l.b16 %v260
  %v441 = vunpack.c.l.b16 %v261
  %v442 = vunpack.c.l.b16 %v262
  %v443 = vpack.c.b16 %v436, %v435
  %v444 = vpack.c.b16 %v438, %v437
  %v445 = vpack.c.b16 %v440, %v439
  %v446 = vpack.c.b16 %v442, %v441
  %vm451 = vcmask 523264
  %v453 = vsel %vm451, %v395, 0
  %v456 = vsel %vm451, %v396, 0
  %v459 = vsel %vm451, %v397, 0
  %v462 = vsel %vm451, %v398, 0
  %v465 = vsel %vm451, %v399, 0
  %v468 = vsel %vm451, %v400, 0
  %v471 = vsel %vm451, %v401, 0
  %v474 = vsel %vm451, %v402, 0
  %v477 = vsel %vm451, %v403, 0
  %v480 = vsel %vm451, %v404, 0
  %v483 = vsel %vm451, %v405, 0
  %v486 = vsel %vm451, %v406, 0
  %v489 = vsel %vm451, %v407, 0
  %v492 = vsel %vm451, %v408, 0
  %v495 = vsel %vm451, %v409, 0
  %v498 = vsel %vm451, %v410, 0
  %v501 = vsel %vm451, %v411, 0
  %v504 = vsel %vm451, %v412, 0
  %v507 = vsel %vm451, %v413, 0
  %v510 = vsel %vm451, %v414, 0
  %v513 = vsel %vm451, %v415, 0
  %v516 = vsel %vm451, %v416, 0
  %v519 = vsel %vm451, %v417, 0
  %v522 = vsel %vm451, %v418, 0
  %v525 = vsel %vm451, %v419, 0
  %v528 = vsel %vm451, %v420, 0
  %v531 = vsel %vm451, %v421, 0
  %v534 = vsel %vm451, %v422, 0
  %v537 = vsel %vm451, %v423, 0
  %v540 = vsel %vm451, %v424, 0
  %v543 = vsel %vm451, %v425, 0
  %v546 = vsel %vm451, %v426, 0
  %548 = vmatpush.bf16.msra.mxu0 0
  %549 = vmatpush.bf16.msra.mxu0 0
  %550 = vmatpush.bf16.msra.mxu0 0
  %551 = vmatpush.bf16.msra.mxu0 0
  %552 = vmatpush.bf16.msra.mxu0 %v446
  %553 = vmatpush.bf16.msra.mxu0 %v445
  %554 = vmatpush.bf16.msra.mxu0 %v444
  %555 = vmatpush.bf16.msra.mxu0 %v443
  %556 = vmatmul.bf16.gmra.mxu0 %v453
  %v557 = vpop.f32.mrf.mxu0
  %v558 = vadd.f32 %v265, %v557
  %v559 = vpop.f32.mrf.mxu0
  %v560 = vadd.f32 %v265, %v559
  %561 = vmatmul.bf16.gmra.mxu0 %v456
  %v562 = vpop.f32.mrf.mxu0
  %v563 = vadd.f32 %v265, %v562
  %v564 = vpop.f32.mrf.mxu0
  %v565 = vadd.f32 %v265, %v564
  %566 = vmatmul.bf16.gmra.mxu0 %v459
  %v567 = vpop.f32.mrf.mxu0
  %v568 = vadd.f32 %v265, %v567
  %v569 = vpop.f32.mrf.mxu0
  %v570 = vadd.f32 %v265, %v569
  %571 = vmatmul.bf16.gmra.mxu0 %v462
  %v572 = vpop.f32.mrf.mxu0
  %v573 = vadd.f32 %v265, %v572
  %v574 = vpop.f32.mrf.mxu0
  %v575 = vadd.f32 %v265, %v574
  %576 = vmatmul.bf16.gmra.mxu0 %v465
  %v577 = vpop.f32.mrf.mxu0
  %v578 = vadd.f32 %v265, %v577
  %v579 = vpop.f32.mrf.mxu0
  %v580 = vadd.f32 %v265, %v579
  %581 = vmatmul.bf16.gmra.mxu0 %v468
  %v582 = vpop.f32.mrf.mxu0
  %v583 = vadd.f32 %v265, %v582
  %v584 = vpop.f32.mrf.mxu0
  %v585 = vadd.f32 %v265, %v584
  %586 = vmatmul.bf16.gmra.mxu0 %v471
  %v587 = vpop.f32.mrf.mxu0
  %v588 = vadd.f32 %v265, %v587
  %v589 = vpop.f32.mrf.mxu0
  %v590 = vadd.f32 %v265, %v589
  %591 = vmatmul.bf16.gmra.mxu0 %v474
  %v592 = vpop.f32.mrf.mxu0
  %v593 = vadd.f32 %v265, %v592
  %v594 = vpop.f32.mrf.mxu0
  %v595 = vadd.f32 %v265, %v594
  %596 = vmatmul.bf16.gmra.mxu0 %v477
  %v597 = vpop.f32.mrf.mxu0
  %v598 = vadd.f32 %v265, %v597
  %v599 = vpop.f32.mrf.mxu0
  %v600 = vadd.f32 %v265, %v599
  %601 = vmatmul.bf16.gmra.mxu0 %v480
  %v602 = vpop.f32.mrf.mxu0
  %v603 = vadd.f32 %v265, %v602
  %v604 = vpop.f32.mrf.mxu0
  %v605 = vadd.f32 %v265, %v604
  %606 = vmatmul.bf16.gmra.mxu0 %v483
  %v607 = vpop.f32.mrf.mxu0
  %v608 = vadd.f32 %v265, %v607
  %v609 = vpop.f32.mrf.mxu0
  %v610 = vadd.f32 %v265, %v609
  %611 = vmatmul.bf16.gmra.mxu0 %v486
  %v612 = vpop.f32.mrf.mxu0
  %v613 = vadd.f32 %v265, %v612
  %v614 = vpop.f32.mrf.mxu0
  %v615 = vadd.f32 %v265, %v614
  %616 = vmatmul.bf16.gmra.mxu0 %v489
  %v617 = vpop.f32.mrf.mxu0
  %v618 = vadd.f32 %v265, %v617
  %v619 = vpop.f32.mrf.mxu0
  %v620 = vadd.f32 %v265, %v619
  %621 = vmatmul.bf16.gmra.mxu0 %v492
  %v622 = vpop.f32.mrf.mxu0
  %v623 = vadd.f32 %v265, %v622
  %v624 = vpop.f32.mrf.mxu0
  %v625 = vadd.f32 %v265, %v624
  %626 = vmatmul.bf16.gmra.mxu0 %v495
  %v627 = vpop.f32.mrf.mxu0
  %v628 = vadd.f32 %v265, %v627
  %v629 = vpop.f32.mrf.mxu0
  %v630 = vadd.f32 %v265, %v629
  %631 = vmatmul.bf16.gmra.mxu0 %v498
  %v632 = vpop.f32.mrf.mxu0
  %v633 = vadd.f32 %v265, %v632
  %v634 = vpop.f32.mrf.mxu0
  %v635 = vadd.f32 %v265, %v634
  %636 = vmatmul.bf16.gmra.mxu0 %v501
  %v637 = vpop.f32.mrf.mxu0
  %v638 = vadd.f32 %v265, %v637
  %v639 = vpop.f32.mrf.mxu0
  %v640 = vadd.f32 %v265, %v639
  %641 = vmatmul.bf16.gmra.mxu0 %v504
  %v642 = vpop.f32.mrf.mxu0
  %v643 = vadd.f32 %v265, %v642
  %v644 = vpop.f32.mrf.mxu0
  %v645 = vadd.f32 %v265, %v644
  %646 = vmatmul.bf16.gmra.mxu0 %v507
  %v647 = vpop.f32.mrf.mxu0
  %v648 = vadd.f32 %v265, %v647
  %v649 = vpop.f32.mrf.mxu0
  %v650 = vadd.f32 %v265, %v649
  %651 = vmatmul.bf16.gmra.mxu0 %v510
  %v652 = vpop.f32.mrf.mxu0
  %v653 = vadd.f32 %v265, %v652
  %v654 = vpop.f32.mrf.mxu0
  %v655 = vadd.f32 %v265, %v654
  %656 = vmatmul.bf16.gmra.mxu0 %v513
  %v657 = vpop.f32.mrf.mxu0
  %v658 = vadd.f32 %v265, %v657
  %v659 = vpop.f32.mrf.mxu0
  %v660 = vadd.f32 %v265, %v659
  %661 = vmatmul.bf16.gmra.mxu0 %v516
  %v662 = vpop.f32.mrf.mxu0
  %v663 = vadd.f32 %v265, %v662
  %v664 = vpop.f32.mrf.mxu0
  %v665 = vadd.f32 %v265, %v664
  %666 = vmatmul.bf16.gmra.mxu0 %v519
  %v667 = vpop.f32.mrf.mxu0
  %v668 = vadd.f32 %v265, %v667
  %v669 = vpop.f32.mrf.mxu0
  %v670 = vadd.f32 %v265, %v669
  %671 = vmatmul.bf16.gmra.mxu0 %v522
  %v672 = vpop.f32.mrf.mxu0
  %v673 = vadd.f32 %v265, %v672
  %v674 = vpop.f32.mrf.mxu0
  %v675 = vadd.f32 %v265, %v674
  %676 = vmatmul.bf16.gmra.mxu0 %v525
  %v677 = vpop.f32.mrf.mxu0
  %v678 = vadd.f32 %v265, %v677
  %v679 = vpop.f32.mrf.mxu0
  %v680 = vadd.f32 %v265, %v679
  %681 = vmatmul.bf16.gmra.mxu0 %v528
  %v682 = vpop.f32.mrf.mxu0
  %v683 = vadd.f32 %v265, %v682
  %v684 = vpop.f32.mrf.mxu0
  %v685 = vadd.f32 %v265, %v684
  %686 = vmatmul.bf16.gmra.mxu0 %v531
  %v687 = vpop.f32.mrf.mxu0
  %v688 = vadd.f32 %v265, %v687
  %v689 = vpop.f32.mrf.mxu0
  %v690 = vadd.f32 %v265, %v689
  %691 = vmatmul.bf16.gmra.mxu0 %v534
  %v692 = vpop.f32.mrf.mxu0
  %v693 = vadd.f32 %v265, %v692
  %v694 = vpop.f32.mrf.mxu0
  %v695 = vadd.f32 %v265, %v694
  %696 = vmatmul.bf16.gmra.mxu0 %v537
  %v697 = vpop.f32.mrf.mxu0
  %v698 = vadd.f32 %v265, %v697
  %v699 = vpop.f32.mrf.mxu0
  %v700 = vadd.f32 %v265, %v699
  %701 = vmatmul.bf16.gmra.mxu0 %v540
  %v702 = vpop.f32.mrf.mxu0
  %v703 = vadd.f32 %v265, %v702
  %v704 = vpop.f32.mrf.mxu0
  %v705 = vadd.f32 %v265, %v704
  %706 = vmatmul.bf16.gmra.mxu0 %v543
  %v707 = vpop.f32.mrf.mxu0
  %v708 = vadd.f32 %v265, %v707
  %v709 = vpop.f32.mrf.mxu0
  %v710 = vadd.f32 %v265, %v709
  %711 = vmatmul.bf16.gmra.mxu0 %v546
  %v712 = vpop.f32.mrf.mxu0
  %v713 = vadd.f32 %v265, %v712
  %v714 = vpop.f32.mrf.mxu0
  %v715 = vadd.f32 %v265, %v714
  %716 = vdwg.mxu0
  %v717 = vld [vmem:[%s3] sm:$0x1]
  %719 = vset.pattern.permute.xlu0 0
  %720 = vperm.xlu0 %719, %v63
  %v721 = vpop.permute.xlu0 %720
  %724 = vset.pattern.permute.xlu0 0
  %725 = vperm.xlu0 %724, %v64
  %v726 = vpop.permute.xlu0 %725
  %729 = vset.pattern.permute.xlu0 0
  %730 = vperm.xlu0 %729, %v65
  %v731 = vpop.permute.xlu0 %730
  %734 = vset.pattern.permute.xlu0 0
  %735 = vperm.xlu0 %734, %v66
  %v736 = vpop.permute.xlu0 %735
  %739 = vset.pattern.permute.xlu0 0
  %740 = vperm.xlu0 %739, %v67
  %v741 = vpop.permute.xlu0 %740
  %744 = vset.pattern.permute.xlu0 0
  %745 = vperm.xlu0 %744, %v68
  %v746 = vpop.permute.xlu0 %745
  %749 = vset.pattern.permute.xlu0 0
  %750 = vperm.xlu0 %749, %v69
  %v751 = vpop.permute.xlu0 %750
  %754 = vset.pattern.permute.xlu0 0
  %755 = vperm.xlu0 %754, %v70
  %v756 = vpop.permute.xlu0 %755
  %759 = vset.pattern.permute.xlu0 0
  %760 = vperm.xlu0 %759, %v71
  %v761 = vpop.permute.xlu0 %760
  %764 = vset.pattern.permute.xlu0 0
  %765 = vperm.xlu0 %764, %v72
  %v766 = vpop.permute.xlu0 %765
  %769 = vset.pattern.permute.xlu0 0
  %770 = vperm.xlu0 %769, %v73
  %v771 = vpop.permute.xlu0 %770
  %774 = vset.pattern.permute.xlu0 0
  %775 = vperm.xlu0 %774, %v74
  %v776 = vpop.permute.xlu0 %775
  %779 = vset.pattern.permute.xlu0 0
  %780 = vperm.xlu0 %779, %v75
  %v781 = vpop.permute.xlu0 %780
  %784 = vset.pattern.permute.xlu0 0
  %785 = vperm.xlu0 %784, %v76
  %v786 = vpop.permute.xlu0 %785
  %789 = vset.pattern.permute.xlu0 0
  %790 = vperm.xlu0 %789, %v77
  %v791 = vpop.permute.xlu0 %790
  %794 = vset.pattern.permute.xlu0 0
  %795 = vperm.xlu0 %794, %v78
  %v796 = vpop.permute.xlu0 %795
  %799 = vset.pattern.permute.xlu0 0
  %800 = vperm.xlu0 %799, %v79
  %v801 = vpop.permute.xlu0 %800
  %804 = vset.pattern.permute.xlu0 0
  %805 = vperm.xlu0 %804, %v80
  %v806 = vpop.permute.xlu0 %805
  %809 = vset.pattern.permute.xlu0 0
  %810 = vperm.xlu0 %809, %v81
  %v811 = vpop.permute.xlu0 %810
  %814 = vset.pattern.permute.xlu0 0
  %815 = vperm.xlu0 %814, %v82
  %v816 = vpop.permute.xlu0 %815
  %819 = vset.pattern.permute.xlu0 0
  %820 = vperm.xlu0 %819, %v83
  %v821 = vpop.permute.xlu0 %820
  %824 = vset.pattern.permute.xlu0 0
  %825 = vperm.xlu0 %824, %v84
  %v826 = vpop.permute.xlu0 %825
  %829 = vset.pattern.permute.xlu0 0
  %830 = vperm.xlu0 %829, %v85
  %v831 = vpop.permute.xlu0 %830
  %834 = vset.pattern.permute.xlu0 0
  %835 = vperm.xlu0 %834, %v86
  %v836 = vpop.permute.xlu0 %835
  %839 = vset.pattern.permute.xlu0 0
  %840 = vperm.xlu0 %839, %v87
  %v841 = vpop.permute.xlu0 %840
  %844 = vset.pattern.permute.xlu0 0
  %845 = vperm.xlu0 %844, %v88
  %v846 = vpop.permute.xlu0 %845
  %849 = vset.pattern.permute.xlu0 0
  %850 = vperm.xlu0 %849, %v89
  %v851 = vpop.permute.xlu0 %850
  %854 = vset.pattern.permute.xlu0 0
  %855 = vperm.xlu0 %854, %v90
  %v856 = vpop.permute.xlu0 %855
  %859 = vset.pattern.permute.xlu0 0
  %860 = vperm.xlu0 %859, %v91
  %v861 = vpop.permute.xlu0 %860
  %864 = vset.pattern.permute.xlu0 0
  %865 = vperm.xlu0 %864, %v92
  %v866 = vpop.permute.xlu0 %865
  %869 = vset.pattern.permute.xlu0 0
  %870 = vperm.xlu0 %869, %v93
  %v871 = vpop.permute.xlu0 %870
  %874 = vset.pattern.permute.xlu0 0
  %875 = vperm.xlu0 %874, %v94
  %v876 = vpop.permute.xlu0 %875
  %879 = vset.pattern.permute.xlu0 0
  %880 = vperm.xlu0 %879, %v95
  %v881 = vpop.permute.xlu0 %880
  %884 = vset.pattern.permute.xlu0 0
  %885 = vperm.xlu0 %884, %v96
  %v886 = vpop.permute.xlu0 %885
  %889 = vset.pattern.permute.xlu0 0
  %890 = vperm.xlu0 %889, %v97
  %v891 = vpop.permute.xlu0 %890
  %894 = vset.pattern.permute.xlu0 0
  %895 = vperm.xlu0 %894, %v98
  %v896 = vpop.permute.xlu0 %895
  %899 = vset.pattern.permute.xlu0 0
  %900 = vperm.xlu0 %899, %v99
  %v901 = vpop.permute.xlu0 %900
  %904 = vset.pattern.permute.xlu0 0
  %905 = vperm.xlu0 %904, %v100
  %v906 = vpop.permute.xlu0 %905
  %909 = vset.pattern.permute.xlu0 0
  %910 = vperm.xlu0 %909, %v101
  %v911 = vpop.permute.xlu0 %910
  %914 = vset.pattern.permute.xlu0 0
  %915 = vperm.xlu0 %914, %v102
  %v916 = vpop.permute.xlu0 %915
  %919 = vset.pattern.permute.xlu0 0
  %920 = vperm.xlu0 %919, %v103
  %v921 = vpop.permute.xlu0 %920
  %924 = vset.pattern.permute.xlu0 0
  %925 = vperm.xlu0 %924, %v104
  %v926 = vpop.permute.xlu0 %925
  %929 = vset.pattern.permute.xlu0 0
  %930 = vperm.xlu0 %929, %v105
  %v931 = vpop.permute.xlu0 %930
  %934 = vset.pattern.permute.xlu0 0
  %935 = vperm.xlu0 %934, %v106
  %v936 = vpop.permute.xlu0 %935
  %939 = vset.pattern.permute.xlu0 0
  %940 = vperm.xlu0 %939, %v107
  %v941 = vpop.permute.xlu0 %940
  %944 = vset.pattern.permute.xlu0 0
  %945 = vperm.xlu0 %944, %v108
  %v946 = vpop.permute.xlu0 %945
  %949 = vset.pattern.permute.xlu0 0
  %950 = vperm.xlu0 %949, %v109
  %v951 = vpop.permute.xlu0 %950
  %954 = vset.pattern.permute.xlu0 0
  %955 = vperm.xlu0 %954, %v110
  %v956 = vpop.permute.xlu0 %955
  %959 = vset.pattern.permute.xlu0 0
  %960 = vperm.xlu0 %959, %v111
  %v961 = vpop.permute.xlu0 %960
  %964 = vset.pattern.permute.xlu0 0
  %965 = vperm.xlu0 %964, %v112
  %v966 = vpop.permute.xlu0 %965
  %969 = vset.pattern.permute.xlu0 0
  %970 = vperm.xlu0 %969, %v113
  %v971 = vpop.permute.xlu0 %970
  %974 = vset.pattern.permute.xlu0 0
  %975 = vperm.xlu0 %974, %v114
  %v976 = vpop.permute.xlu0 %975
  %979 = vset.pattern.permute.xlu0 0
  %980 = vperm.xlu0 %979, %v115
  %v981 = vpop.permute.xlu0 %980
  %984 = vset.pattern.permute.xlu0 0
  %985 = vperm.xlu0 %984, %v116
  %v986 = vpop.permute.xlu0 %985
  %989 = vset.pattern.permute.xlu0 0
  %990 = vperm.xlu0 %989, %v117
  %v991 = vpop.permute.xlu0 %990
  %994 = vset.pattern.permute.xlu0 0
  %995 = vperm.xlu0 %994, %v118
  %v996 = vpop.permute.xlu0 %995
  %999 = vset.pattern.permute.xlu0 0
  %1000 = vperm.xlu0 %999, %v119
  %v1001 = vpop.permute.xlu0 %1000
  %1004 = vset.pattern.permute.xlu0 0
  %1005 = vperm.xlu0 %1004, %v120
  %v1006 = vpop.permute.xlu0 %1005
  %1009 = vset.pattern.permute.xlu0 0
  %1010 = vperm.xlu0 %1009, %v121
  %v1011 = vpop.permute.xlu0 %1010
  %1014 = vset.pattern.permute.xlu0 0
  %1015 = vperm.xlu0 %1014, %v122
  %v1016 = vpop.permute.xlu0 %1015
  %1019 = vset.pattern.permute.xlu0 0
  %1020 = vperm.xlu0 %1019, %v123
  %v1021 = vpop.permute.xlu0 %1020
  %1024 = vset.pattern.permute.xlu0 0
  %1025 = vperm.xlu0 %1024, %v124
  %v1026 = vpop.permute.xlu0 %1025
  %1029 = vset.pattern.permute.xlu0 0
  %1030 = vperm.xlu0 %1029, %v125
  %v1031 = vpop.permute.xlu0 %1030
  %1034 = vset.pattern.permute.xlu0 0
  %1035 = vperm.xlu0 %1034, %v126
  %v1036 = vpop.permute.xlu0 %1035
  %v1038 = vperm.slane %v717, 0
  %v1039 = vmul.f32 %v721, %v1038
  %v1040 = vmul.f32 %v726, %v1038
  %v1041 = vmul.f32 %v731, %v1038
  %v1042 = vmul.f32 %v736, %v1038
  %v1043 = vmul.f32 %v741, %v1038
  %v1044 = vmul.f32 %v746, %v1038
  %v1045 = vmul.f32 %v751, %v1038
  %v1046 = vmul.f32 %v756, %v1038
  %v1047 = vmul.f32 %v761, %v1038
  %v1048 = vmul.f32 %v766, %v1038
  %v1049 = vmul.f32 %v771, %v1038
  %v1050 = vmul.f32 %v776, %v1038
  %v1051 = vmul.f32 %v781, %v1038
  %v1052 = vmul.f32 %v786, %v1038
  %v1053 = vmul.f32 %v791, %v1038
  %v1054 = vmul.f32 %v796, %v1038
  %v1055 = vmul.f32 %v801, %v1038
  %v1056 = vmul.f32 %v806, %v1038
  %v1057 = vmul.f32 %v811, %v1038
  %v1058 = vmul.f32 %v816, %v1038
  %v1059 = vmul.f32 %v821, %v1038
  %v1060 = vmul.f32 %v826, %v1038
  %v1061 = vmul.f32 %v831, %v1038
  %v1062 = vmul.f32 %v836, %v1038
  %v1063 = vmul.f32 %v841, %v1038
  %v1064 = vmul.f32 %v846, %v1038
  %v1065 = vmul.f32 %v851, %v1038
  %v1066 = vmul.f32 %v856, %v1038
  %v1067 = vmul.f32 %v861, %v1038
  %v1068 = vmul.f32 %v866, %v1038
  %v1069 = vmul.f32 %v871, %v1038
  %v1070 = vmul.f32 %v876, %v1038
  %v1071 = vmul.f32 %v881, %v1038
  %v1072 = vmul.f32 %v886, %v1038
  %v1073 = vmul.f32 %v891, %v1038
  %v1074 = vmul.f32 %v896, %v1038
  %v1075 = vmul.f32 %v901, %v1038
  %v1076 = vmul.f32 %v906, %v1038
  %v1077 = vmul.f32 %v911, %v1038
  %v1078 = vmul.f32 %v916, %v1038
  %v1079 = vmul.f32 %v921, %v1038
  %v1080 = vmul.f32 %v926, %v1038
  %v1081 = vmul.f32 %v931, %v1038
  %v1082 = vmul.f32 %v936, %v1038
  %v1083 = vmul.f32 %v941, %v1038
  %v1084 = vmul.f32 %v946, %v1038
  %v1085 = vmul.f32 %v951, %v1038
  %v1086 = vmul.f32 %v956, %v1038
  %v1087 = vmul.f32 %v961, %v1038
  %v1088 = vmul.f32 %v966, %v1038
  %v1089 = vmul.f32 %v971, %v1038
  %v1090 = vmul.f32 %v976, %v1038
  %v1091 = vmul.f32 %v981, %v1038
  %v1092 = vmul.f32 %v986, %v1038
  %v1093 = vmul.f32 %v991, %v1038
  %v1094 = vmul.f32 %v996, %v1038
  %v1095 = vmul.f32 %v1001, %v1038
  %v1096 = vmul.f32 %v1006, %v1038
  %v1097 = vmul.f32 %v1011, %v1038
  %v1098 = vmul.f32 %v1016, %v1038
  %v1099 = vmul.f32 %v1021, %v1038
  %v1100 = vmul.f32 %v1026, %v1038
  %v1101 = vmul.f32 %v1031, %v1038
  %v1102 = vmul.f32 %v1036, %v1038
  %v1103 = vadd.f32 %v558, %v1039
  %v1104 = vadd.f32 %v560, %v1040
  %v1105 = vadd.f32 %v563, %v1041
  %v1106 = vadd.f32 %v565, %v1042
  %v1107 = vadd.f32 %v568, %v1043
  %v1108 = vadd.f32 %v570, %v1044
  %v1109 = vadd.f32 %v573, %v1045
  %v1110 = vadd.f32 %v575, %v1046
  %v1111 = vadd.f32 %v578, %v1047
  %v1112 = vadd.f32 %v580, %v1048
  %v1113 = vadd.f32 %v583, %v1049
  %v1114 = vadd.f32 %v585, %v1050
  %v1115 = vadd.f32 %v588, %v1051
  %v1116 = vadd.f32 %v590, %v1052
  %v1117 = vadd.f32 %v593, %v1053
  %v1118 = vadd.f32 %v595, %v1054
  %v1119 = vadd.f32 %v598, %v1055
  %v1120 = vadd.f32 %v600, %v1056
  %v1121 = vadd.f32 %v603, %v1057
  %v1122 = vadd.f32 %v605, %v1058
  %v1123 = vadd.f32 %v608, %v1059
  %v1124 = vadd.f32 %v610, %v1060
  %v1125 = vadd.f32 %v613, %v1061
  %v1126 = vadd.f32 %v615, %v1062
  %v1127 = vadd.f32 %v618, %v1063
  %v1128 = vadd.f32 %v620, %v1064
  %v1129 = vadd.f32 %v623, %v1065
  %v1130 = vadd.f32 %v625, %v1066
  %v1131 = vadd.f32 %v628, %v1067
  %v1132 = vadd.f32 %v630, %v1068
  %v1133 = vadd.f32 %v633, %v1069
  %v1134 = vadd.f32 %v635, %v1070
  %v1135 = vadd.f32 %v638, %v1071
  %v1136 = vadd.f32 %v640, %v1072
  %v1137 = vadd.f32 %v643, %v1073
  %v1138 = vadd.f32 %v645, %v1074
  %v1139 = vadd.f32 %v648, %v1075
  %v1140 = vadd.f32 %v650, %v1076
  %v1141 = vadd.f32 %v653, %v1077
  %v1142 = vadd.f32 %v655, %v1078
  %v1143 = vadd.f32 %v658, %v1079
  %v1144 = vadd.f32 %v660, %v1080
  %v1145 = vadd.f32 %v663, %v1081
  %v1146 = vadd.f32 %v665, %v1082
  %v1147 = vadd.f32 %v668, %v1083
  %v1148 = vadd.f32 %v670, %v1084
  %v1149 = vadd.f32 %v673, %v1085
  %v1150 = vadd.f32 %v675, %v1086
  %v1151 = vadd.f32 %v678, %v1087
  %v1152 = vadd.f32 %v680, %v1088
  %v1153 = vadd.f32 %v683, %v1089
  %v1154 = vadd.f32 %v685, %v1090
  %v1155 = vadd.f32 %v688, %v1091
  %v1156 = vadd.f32 %v690, %v1092
  %v1157 = vadd.f32 %v693, %v1093
  %v1158 = vadd.f32 %v695, %v1094
  %v1159 = vadd.f32 %v698, %v1095
  %v1160 = vadd.f32 %v700, %v1096
  %v1161 = vadd.f32 %v703, %v1097
  %v1162 = vadd.f32 %v705, %v1098
  %v1163 = vadd.f32 %v708, %v1099
  %v1164 = vadd.f32 %v710, %v1100
  %v1165 = vadd.f32 %v713, %v1101
  %v1166 = vadd.f32 %v715, %v1102
  %v1167 = vld [vmem:[%s3 + $0x1] sm:$0x1]
  %1168 = vset.pattern.permute.xlu0 1
  %1169 = vperm.xlu0 %1168, %v63
  %v1170 = vpop.permute.xlu0 %1169
  %1172 = vset.pattern.permute.xlu0 1
  %1173 = vperm.xlu0 %1172, %v64
  %v1174 = vpop.permute.xlu0 %1173
  %1176 = vset.pattern.permute.xlu0 1
  %1177 = vperm.xlu0 %1176, %v65
  %v1178 = vpop.permute.xlu0 %1177
  %1180 = vset.pattern.permute.xlu0 1
  %1181 = vperm.xlu0 %1180, %v66
  %v1182 = vpop.permute.xlu0 %1181
  %1184 = vset.pattern.permute.xlu0 1
  %1185 = vperm.xlu0 %1184, %v67
  %v1186 = vpop.permute.xlu0 %1185
  %1188 = vset.pattern.permute.xlu0 1
  %1189 = vperm.xlu0 %1188, %v68
  %v1190 = vpop.permute.xlu0 %1189
  %1192 = vset.pattern.permute.xlu0 1
  %1193 = vperm.xlu0 %1192, %v69
  %v1194 = vpop.permute.xlu0 %1193
  %1196 = vset.pattern.permute.xlu0 1
  %1197 = vperm.xlu0 %1196, %v70
  %v1198 = vpop.permute.xlu0 %1197
  %1200 = vset.pattern.permute.xlu0 1
  %1201 = vperm.xlu0 %1200, %v71
  %v1202 = vpop.permute.xlu0 %1201
  %1204 = vset.pattern.permute.xlu0 1
  %1205 = vperm.xlu0 %1204, %v72
  %v1206 = vpop.permute.xlu0 %1205
  %1208 = vset.pattern.permute.xlu0 1
  %1209 = vperm.xlu0 %1208, %v73
  %v1210 = vpop.permute.xlu0 %1209
  %1212 = vset.pattern.permute.xlu0 1
  %1213 = vperm.xlu0 %1212, %v74
  %v1214 = vpop.permute.xlu0 %1213
  %1216 = vset.pattern.permute.xlu0 1
  %1217 = vperm.xlu0 %1216, %v75
  %v1218 = vpop.permute.xlu0 %1217
  %1220 = vset.pattern.permute.xlu0 1
  %1221 = vperm.xlu0 %1220, %v76
  %v1222 = vpop.permute.xlu0 %1221
  %1224 = vset.pattern.permute.xlu0 1
  %1225 = vperm.xlu0 %1224, %v77
  %v1226 = vpop.permute.xlu0 %1225
  %1228 = vset.pattern.permute.xlu0 1
  %1229 = vperm.xlu0 %1228, %v78
  %v1230 = vpop.permute.xlu0 %1229
  %1232 = vset.pattern.permute.xlu0 1
  %1233 = vperm.xlu0 %1232, %v79
  %v1234 = vpop.permute.xlu0 %1233
  %1236 = vset.pattern.permute.xlu0 1
  %1237 = vperm.xlu0 %1236, %v80
  %v1238 = vpop.permute.xlu0 %1237
  %1240 = vset.pattern.permute.xlu0 1
  %1241 = vperm.xlu0 %1240, %v81
  %v1242 = vpop.permute.xlu0 %1241
  %1244 = vset.pattern.permute.xlu0 1
  %1245 = vperm.xlu0 %1244, %v82
  %v1246 = vpop.permute.xlu0 %1245
  %1248 = vset.pattern.permute.xlu0 1
  %1249 = vperm.xlu0 %1248, %v83
  %v1250 = vpop.permute.xlu0 %1249
  %1252 = vset.pattern.permute.xlu0 1
  %1253 = vperm.xlu0 %1252, %v84
  %v1254 = vpop.permute.xlu0 %1253
  %1256 = vset.pattern.permute.xlu0 1
  %1257 = vperm.xlu0 %1256, %v85
  %v1258 = vpop.permute.xlu0 %1257
  %1260 = vset.pattern.permute.xlu0 1
  %1261 = vperm.xlu0 %1260, %v86
  %v1262 = vpop.permute.xlu0 %1261
  %1264 = vset.pattern.permute.xlu0 1
  %1265 = vperm.xlu0 %1264, %v87
  %v1266 = vpop.permute.xlu0 %1265
  %1268 = vset.pattern.permute.xlu0 1
  %1269 = vperm.xlu0 %1268, %v88
  %v1270 = vpop.permute.xlu0 %1269
  %1272 = vset.pattern.permute.xlu0 1
  %1273 = vperm.xlu0 %1272, %v89
  %v1274 = vpop.permute.xlu0 %1273
  %1276 = vset.pattern.permute.xlu0 1
  %1277 = vperm.xlu0 %1276, %v90
  %v1278 = vpop.permute.xlu0 %1277
  %1280 = vset.pattern.permute.xlu0 1
  %1281 = vperm.xlu0 %1280, %v91
  %v1282 = vpop.permute.xlu0 %1281
  %1284 = vset.pattern.permute.xlu0 1
  %1285 = vperm.xlu0 %1284, %v92
  %v1286 = vpop.permute.xlu0 %1285
  %1288 = vset.pattern.permute.xlu0 1
  %1289 = vperm.xlu0 %1288, %v93
  %v1290 = vpop.permute.xlu0 %1289
  %1292 = vset.pattern.permute.xlu0 1
  %1293 = vperm.xlu0 %1292, %v94
  %v1294 = vpop.permute.xlu0 %1293
  %1296 = vset.pattern.permute.xlu0 1
  %1297 = vperm.xlu0 %1296, %v95
  %v1298 = vpop.permute.xlu0 %1297
  %1300 = vset.pattern.permute.xlu0 1
  %1301 = vperm.xlu0 %1300, %v96
  %v1302 = vpop.permute.xlu0 %1301
  %1304 = vset.pattern.permute.xlu0 1
  %1305 = vperm.xlu0 %1304, %v97
  %v1306 = vpop.permute.xlu0 %1305
  %1308 = vset.pattern.permute.xlu0 1
  %1309 = vperm.xlu0 %1308, %v98
  %v1310 = vpop.permute.xlu0 %1309
  %1312 = vset.pattern.permute.xlu0 1
  %1313 = vperm.xlu0 %1312, %v99
  %v1314 = vpop.permute.xlu0 %1313
  %1316 = vset.pattern.permute.xlu0 1
  %1317 = vperm.xlu0 %1316, %v100
  %v1318 = vpop.permute.xlu0 %1317
  %1320 = vset.pattern.permute.xlu0 1
  %1321 = vperm.xlu0 %1320, %v101
  %v1322 = vpop.permute.xlu0 %1321
  %1324 = vset.pattern.permute.xlu0 1
  %1325 = vperm.xlu0 %1324, %v102
  %v1326 = vpop.permute.xlu0 %1325
  %1328 = vset.pattern.permute.xlu0 1
  %1329 = vperm.xlu0 %1328, %v103
  %v1330 = vpop.permute.xlu0 %1329
  %1332 = vset.pattern.permute.xlu0 1
  %1333 = vperm.xlu0 %1332, %v104
  %v1334 = vpop.permute.xlu0 %1333
  %1336 = vset.pattern.permute.xlu0 1
  %1337 = vperm.xlu0 %1336, %v105
  %v1338 = vpop.permute.xlu0 %1337
  %1340 = vset.pattern.permute.xlu0 1
  %1341 = vperm.xlu0 %1340, %v106
  %v1342 = vpop.permute.xlu0 %1341
  %1344 = vset.pattern.permute.xlu0 1
  %1345 = vperm.xlu0 %1344, %v107
  %v1346 = vpop.permute.xlu0 %1345
  %1348 = vset.pattern.permute.xlu0 1
  %1349 = vperm.xlu0 %1348, %v108
  %v1350 = vpop.permute.xlu0 %1349
  %1352 = vset.pattern.permute.xlu0 1
  %1353 = vperm.xlu0 %1352, %v109
  %v1354 = vpop.permute.xlu0 %1353
  %1356 = vset.pattern.permute.xlu0 1
  %1357 = vperm.xlu0 %1356, %v110
  %v1358 = vpop.permute.xlu0 %1357
  %1360 = vset.pattern.permute.xlu0 1
  %1361 = vperm.xlu0 %1360, %v111
  %v1362 = vpop.permute.xlu0 %1361
  %1364 = vset.pattern.permute.xlu0 1
  %1365 = vperm.xlu0 %1364, %v112
  %v1366 = vpop.permute.xlu0 %1365
  %1368 = vset.pattern.permute.xlu0 1
  %1369 = vperm.xlu0 %1368, %v113
  %v1370 = vpop.permute.xlu0 %1369
  %1372 = vset.pattern.permute.xlu0 1
  %1373 = vperm.xlu0 %1372, %v114
  %v1374 = vpop.permute.xlu0 %1373
  %1376 = vset.pattern.permute.xlu0 1
  %1377 = vperm.xlu0 %1376, %v115
  %v1378 = vpop.permute.xlu0 %1377
  %1380 = vset.pattern.permute.xlu0 1
  %1381 = vperm.xlu0 %1380, %v116
  %v1382 = vpop.permute.xlu0 %1381
  %1384 = vset.pattern.permute.xlu0 1
  %1385 = vperm.xlu0 %1384, %v117
  %v1386 = vpop.permute.xlu0 %1385
  %1388 = vset.pattern.permute.xlu0 1
  %1389 = vperm.xlu0 %1388, %v118
  %v1390 = vpop.permute.xlu0 %1389
  %1392 = vset.pattern.permute.xlu0 1
  %1393 = vperm.xlu0 %1392, %v119
  %v1394 = vpop.permute.xlu0 %1393
  %1396 = vset.pattern.permute.xlu0 1
  %1397 = vperm.xlu0 %1396, %v120
  %v1398 = vpop.permute.xlu0 %1397
  %1400 = vset.pattern.permute.xlu0 1
  %1401 = vperm.xlu0 %1400, %v121
  %v1402 = vpop.permute.xlu0 %1401
  %1404 = vset.pattern.permute.xlu0 1
  %1405 = vperm.xlu0 %1404, %v122
  %v1406 = vpop.permute.xlu0 %1405
  %1408 = vset.pattern.permute.xlu0 1
  %1409 = vperm.xlu0 %1408, %v123
  %v1410 = vpop.permute.xlu0 %1409
  %1412 = vset.pattern.permute.xlu0 1
  %1413 = vperm.xlu0 %1412, %v124
  %v1414 = vpop.permute.xlu0 %1413
  %1416 = vset.pattern.permute.xlu0 1
  %1417 = vperm.xlu0 %1416, %v125
  %v1418 = vpop.permute.xlu0 %1417
  %1420 = vset.pattern.permute.xlu0 1
  %1421 = vperm.xlu0 %1420, %v126
  %v1422 = vpop.permute.xlu0 %1421
  %v1424 = vperm.slane %v1167, 0
  %v1425 = vmul.f32 %v1170, %v1424
  %v1426 = vmul.f32 %v1174, %v1424
  %v1427 = vmul.f32 %v1178, %v1424
  %v1428 = vmul.f32 %v1182, %v1424
  %v1429 = vmul.f32 %v1186, %v1424
  %v1430 = vmul.f32 %v1190, %v1424
  %v1431 = vmul.f32 %v1194, %v1424
  %v1432 = vmul.f32 %v1198, %v1424
  %v1433 = vmul.f32 %v1202, %v1424
  %v1434 = vmul.f32 %v1206, %v1424
  %v1435 = vmul.f32 %v1210, %v1424
  %v1436 = vmul.f32 %v1214, %v1424
  %v1437 = vmul.f32 %v1218, %v1424
  %v1438 = vmul.f32 %v1222, %v1424
  %v1439 = vmul.f32 %v1226, %v1424
  %v1440 = vmul.f32 %v1230, %v1424
  %v1441 = vmul.f32 %v1234, %v1424
  %v1442 = vmul.f32 %v1238, %v1424
  %v1443 = vmul.f32 %v1242, %v1424
  %v1444 = vmul.f32 %v1246, %v1424
  %v1445 = vmul.f32 %v1250, %v1424
  %v1446 = vmul.f32 %v1254, %v1424
  %v1447 = vmul.f32 %v1258, %v1424
  %v1448 = vmul.f32 %v1262, %v1424
  %v1449 = vmul.f32 %v1266, %v1424
  %v1450 = vmul.f32 %v1270, %v1424
  %v1451 = vmul.f32 %v1274, %v1424
  %v1452 = vmul.f32 %v1278, %v1424
  %v1453 = vmul.f32 %v1282, %v1424
  %v1454 = vmul.f32 %v1286, %v1424
  %v1455 = vmul.f32 %v1290, %v1424
  %v1456 = vmul.f32 %v1294, %v1424
  %v1457 = vmul.f32 %v1298, %v1424
  %v1458 = vmul.f32 %v1302, %v1424
  %v1459 = vmul.f32 %v1306, %v1424
  %v1460 = vmul.f32 %v1310, %v1424
  %v1461 = vmul.f32 %v1314, %v1424
  %v1462 = vmul.f32 %v1318, %v1424
  %v1463 = vmul.f32 %v1322, %v1424
  %v1464 = vmul.f32 %v1326, %v1424
  %v1465 = vmul.f32 %v1330, %v1424
  %v1466 = vmul.f32 %v1334, %v1424
  %v1467 = vmul.f32 %v1338, %v1424
  %v1468 = vmul.f32 %v1342, %v1424
  %v1469 = vmul.f32 %v1346, %v1424
  %v1470 = vmul.f32 %v1350, %v1424
  %v1471 = vmul.f32 %v1354, %v1424
  %v1472 = vmul.f32 %v1358, %v1424
  %v1473 = vmul.f32 %v1362, %v1424
  %v1474 = vmul.f32 %v1366, %v1424
  %v1475 = vmul.f32 %v1370, %v1424
  %v1476 = vmul.f32 %v1374, %v1424
  %v1477 = vmul.f32 %v1378, %v1424
  %v1478 = vmul.f32 %v1382, %v1424
  %v1479 = vmul.f32 %v1386, %v1424
  %v1480 = vmul.f32 %v1390, %v1424
  %v1481 = vmul.f32 %v1394, %v1424
  %v1482 = vmul.f32 %v1398, %v1424
  %v1483 = vmul.f32 %v1402, %v1424
  %v1484 = vmul.f32 %v1406, %v1424
  %v1485 = vmul.f32 %v1410, %v1424
  %v1486 = vmul.f32 %v1414, %v1424
  %v1487 = vmul.f32 %v1418, %v1424
  %v1488 = vmul.f32 %v1422, %v1424
  %v1489 = vadd.f32 %v1103, %v1425
  %v1490 = vadd.f32 %v1104, %v1426
  %v1491 = vadd.f32 %v1105, %v1427
  %v1492 = vadd.f32 %v1106, %v1428
  %v1493 = vadd.f32 %v1107, %v1429
  %v1494 = vadd.f32 %v1108, %v1430
  %v1495 = vadd.f32 %v1109, %v1431
  %v1496 = vadd.f32 %v1110, %v1432
  %v1497 = vadd.f32 %v1111, %v1433
  %v1498 = vadd.f32 %v1112, %v1434
  %v1499 = vadd.f32 %v1113, %v1435
  %v1500 = vadd.f32 %v1114, %v1436
  %v1501 = vadd.f32 %v1115, %v1437
  %v1502 = vadd.f32 %v1116, %v1438
  %v1503 = vadd.f32 %v1117, %v1439
  %v1504 = vadd.f32 %v1118, %v1440
  %v1505 = vadd.f32 %v1119, %v1441
  %v1506 = vadd.f32 %v1120, %v1442
  %v1507 = vadd.f32 %v1121, %v1443
  %v1508 = vadd.f32 %v1122, %v1444
  %v1509 = vadd.f32 %v1123, %v1445
  %v1510 = vadd.f32 %v1124, %v1446
  %v1511 = vadd.f32 %v1125, %v1447
  %v1512 = vadd.f32 %v1126, %v1448
  %v1513 = vadd.f32 %v1127, %v1449
  %v1514 = vadd.f32 %v1128, %v1450
  %v1515 = vadd.f32 %v1129, %v1451
  %v1516 = vadd.f32 %v1130, %v1452
  %v1517 = vadd.f32 %v1131, %v1453
  %v1518 = vadd.f32 %v1132, %v1454
  %v1519 = vadd.f32 %v1133, %v1455
  %v1520 = vadd.f32 %v1134, %v1456
  %v1521 = vadd.f32 %v1135, %v1457
  %v1522 = vadd.f32 %v1136, %v1458
  %v1523 = vadd.f32 %v1137, %v1459
  %v1524 = vadd.f32 %v1138, %v1460
  %v1525 = vadd.f32 %v1139, %v1461
  %v1526 = vadd.f32 %v1140, %v1462
  %v1527 = vadd.f32 %v1141, %v1463
  %v1528 = vadd.f32 %v1142, %v1464
  %v1529 = vadd.f32 %v1143, %v1465
  %v1530 = vadd.f32 %v1144, %v1466
  %v1531 = vadd.f32 %v1145, %v1467
  %v1532 = vadd.f32 %v1146, %v1468
  %v1533 = vadd.f32 %v1147, %v1469
  %v1534 = vadd.f32 %v1148, %v1470
  %v1535 = vadd.f32 %v1149, %v1471
  %v1536 = vadd.f32 %v1150, %v1472
  %v1537 = vadd.f32 %v1151, %v1473
  %v1538 = vadd.f32 %v1152, %v1474
  %v1539 = vadd.f32 %v1153, %v1475
  %v1540 = vadd.f32 %v1154, %v1476
  %v1541 = vadd.f32 %v1155, %v1477
  %v1542 = vadd.f32 %v1156, %v1478
  %v1543 = vadd.f32 %v1157, %v1479
  %v1544 = vadd.f32 %v1158, %v1480
  %v1545 = vadd.f32 %v1159, %v1481
  %v1546 = vadd.f32 %v1160, %v1482
  %v1547 = vadd.f32 %v1161, %v1483
  %v1548 = vadd.f32 %v1162, %v1484
  %v1549 = vadd.f32 %v1163, %v1485
  %v1550 = vadd.f32 %v1164, %v1486
  %v1551 = vadd.f32 %v1165, %v1487
  %v1552 = vadd.f32 %v1166, %v1488
  %v1553 = vld [vmem:[%s3 + $0x2] sm:$0x1]
  %1554 = vset.pattern.permute.xlu0 2
  %1555 = vperm.xlu0 %1554, %v63
  %v1556 = vpop.permute.xlu0 %1555
  %1558 = vset.pattern.permute.xlu0 2
  %1559 = vperm.xlu0 %1558, %v64
  %v1560 = vpop.permute.xlu0 %1559
  %1562 = vset.pattern.permute.xlu0 2
  %1563 = vperm.xlu0 %1562, %v65
  %v1564 = vpop.permute.xlu0 %1563
  %1566 = vset.pattern.permute.xlu0 2
  %1567 = vperm.xlu0 %1566, %v66
  %v1568 = vpop.permute.xlu0 %1567
  %1570 = vset.pattern.permute.xlu0 2
  %1571 = vperm.xlu0 %1570, %v67
  %v1572 = vpop.permute.xlu0 %1571
  %1574 = vset.pattern.permute.xlu0 2
  %1575 = vperm.xlu0 %1574, %v68
  %v1576 = vpop.permute.xlu0 %1575
  %1578 = vset.pattern.permute.xlu0 2
  %1579 = vperm.xlu0 %1578, %v69
  %v1580 = vpop.permute.xlu0 %1579
  %1582 = vset.pattern.permute.xlu0 2
  %1583 = vperm.xlu0 %1582, %v70
  %v1584 = vpop.permute.xlu0 %1583
  %1586 = vset.pattern.permute.xlu0 2
  %1587 = vperm.xlu0 %1586, %v71
  %v1588 = vpop.permute.xlu0 %1587
  %1590 = vset.pattern.permute.xlu0 2
  %1591 = vperm.xlu0 %1590, %v72
  %v1592 = vpop.permute.xlu0 %1591
  %1594 = vset.pattern.permute.xlu0 2
  %1595 = vperm.xlu0 %1594, %v73
  %v1596 = vpop.permute.xlu0 %1595
  %1598 = vset.pattern.permute.xlu0 2
  %1599 = vperm.xlu0 %1598, %v74
  %v1600 = vpop.permute.xlu0 %1599
  %1602 = vset.pattern.permute.xlu0 2
  %1603 = vperm.xlu0 %1602, %v75
  %v1604 = vpop.permute.xlu0 %1603
  %1606 = vset.pattern.permute.xlu0 2
  %1607 = vperm.xlu0 %1606, %v76
  %v1608 = vpop.permute.xlu0 %1607
  %1610 = vset.pattern.permute.xlu0 2
  %1611 = vperm.xlu0 %1610, %v77
  %v1612 = vpop.permute.xlu0 %1611
  %1614 = vset.pattern.permute.xlu0 2
  %1615 = vperm.xlu0 %1614, %v78
  %v1616 = vpop.permute.xlu0 %1615
  %1618 = vset.pattern.permute.xlu0 2
  %1619 = vperm.xlu0 %1618, %v79
  %v1620 = vpop.permute.xlu0 %1619
  %1622 = vset.pattern.permute.xlu0 2
  %1623 = vperm.xlu0 %1622, %v80
  %v1624 = vpop.permute.xlu0 %1623
  %1626 = vset.pattern.permute.xlu0 2
  %1627 = vperm.xlu0 %1626, %v81
  %v1628 = vpop.permute.xlu0 %1627
  %1630 = vset.pattern.permute.xlu0 2
  %1631 = vperm.xlu0 %1630, %v82
  %v1632 = vpop.permute.xlu0 %1631
  %1634 = vset.pattern.permute.xlu0 2
  %1635 = vperm.xlu0 %1634, %v83
  %v1636 = vpop.permute.xlu0 %1635
  %1638 = vset.pattern.permute.xlu0 2
  %1639 = vperm.xlu0 %1638, %v84
  %v1640 = vpop.permute.xlu0 %1639
  %1642 = vset.pattern.permute.xlu0 2
  %1643 = vperm.xlu0 %1642, %v85
  %v1644 = vpop.permute.xlu0 %1643
  %1646 = vset.pattern.permute.xlu0 2
  %1647 = vperm.xlu0 %1646, %v86
  %v1648 = vpop.permute.xlu0 %1647
  %1650 = vset.pattern.permute.xlu0 2
  %1651 = vperm.xlu0 %1650, %v87
  %v1652 = vpop.permute.xlu0 %1651
  %1654 = vset.pattern.permute.xlu0 2
  %1655 = vperm.xlu0 %1654, %v88
  %v1656 = vpop.permute.xlu0 %1655
  %1658 = vset.pattern.permute.xlu0 2
  %1659 = vperm.xlu0 %1658, %v89
  %v1660 = vpop.permute.xlu0 %1659
  %1662 = vset.pattern.permute.xlu0 2
  %1663 = vperm.xlu0 %1662, %v90
  %v1664 = vpop.permute.xlu0 %1663
  %1666 = vset.pattern.permute.xlu0 2
  %1667 = vperm.xlu0 %1666, %v91
  %v1668 = vpop.permute.xlu0 %1667
  %1670 = vset.pattern.permute.xlu0 2
  %1671 = vperm.xlu0 %1670, %v92
  %v1672 = vpop.permute.xlu0 %1671
  %1674 = vset.pattern.permute.xlu0 2
  %1675 = vperm.xlu0 %1674, %v93
  %v1676 = vpop.permute.xlu0 %1675
  %1678 = vset.pattern.permute.xlu0 2
  %1679 = vperm.xlu0 %1678, %v94
  %v1680 = vpop.permute.xlu0 %1679
  %1682 = vset.pattern.permute.xlu0 2
  %1683 = vperm.xlu0 %1682, %v95
  %v1684 = vpop.permute.xlu0 %1683
  %1686 = vset.pattern.permute.xlu0 2
  %1687 = vperm.xlu0 %1686, %v96
  %v1688 = vpop.permute.xlu0 %1687
  %1690 = vset.pattern.permute.xlu0 2
  %1691 = vperm.xlu0 %1690, %v97
  %v1692 = vpop.permute.xlu0 %1691
  %1694 = vset.pattern.permute.xlu0 2
  %1695 = vperm.xlu0 %1694, %v98
  %v1696 = vpop.permute.xlu0 %1695
  %1698 = vset.pattern.permute.xlu0 2
  %1699 = vperm.xlu0 %1698, %v99
  %v1700 = vpop.permute.xlu0 %1699
  %1702 = vset.pattern.permute.xlu0 2
  %1703 = vperm.xlu0 %1702, %v100
  %v1704 = vpop.permute.xlu0 %1703
  %1706 = vset.pattern.permute.xlu0 2
  %1707 = vperm.xlu0 %1706, %v101
  %v1708 = vpop.permute.xlu0 %1707
  %1710 = vset.pattern.permute.xlu0 2
  %1711 = vperm.xlu0 %1710, %v102
  %v1712 = vpop.permute.xlu0 %1711
  %1714 = vset.pattern.permute.xlu0 2
  %1715 = vperm.xlu0 %1714, %v103
  %v1716 = vpop.permute.xlu0 %1715
  %1718 = vset.pattern.permute.xlu0 2
  %1719 = vperm.xlu0 %1718, %v104
  %v1720 = vpop.permute.xlu0 %1719
  %1722 = vset.pattern.permute.xlu0 2
  %1723 = vperm.xlu0 %1722, %v105
  %v1724 = vpop.permute.xlu0 %1723
  %1726 = vset.pattern.permute.xlu0 2
  %1727 = vperm.xlu0 %1726, %v106
  %v1728 = vpop.permute.xlu0 %1727
  %1730 = vset.pattern.permute.xlu0 2
  %1731 = vperm.xlu0 %1730, %v107
  %v1732 = vpop.permute.xlu0 %1731
  %1734 = vset.pattern.permute.xlu0 2
  %1735 = vperm.xlu0 %1734, %v108
  %v1736 = vpop.permute.xlu0 %1735
  %1738 = vset.pattern.permute.xlu0 2
  %1739 = vperm.xlu0 %1738, %v109
  %v1740 = vpop.permute.xlu0 %1739
  %1742 = vset.pattern.permute.xlu0 2
  %1743 = vperm.xlu0 %1742, %v110
  %v1744 = vpop.permute.xlu0 %1743
  %1746 = vset.pattern.permute.xlu0 2
  %1747 = vperm.xlu0 %1746, %v111
  %v1748 = vpop.permute.xlu0 %1747
  %1750 = vset.pattern.permute.xlu0 2
  %1751 = vperm.xlu0 %1750, %v112
  %v1752 = vpop.permute.xlu0 %1751
  %1754 = vset.pattern.permute.xlu0 2
  %1755 = vperm.xlu0 %1754, %v113
  %v1756 = vpop.permute.xlu0 %1755
  %1758 = vset.pattern.permute.xlu0 2
  %1759 = vperm.xlu0 %1758, %v114
  %v1760 = vpop.permute.xlu0 %1759
  %1762 = vset.pattern.permute.xlu0 2
  %1763 = vperm.xlu0 %1762, %v115
  %v1764 = vpop.permute.xlu0 %1763
  %1766 = vset.pattern.permute.xlu0 2
  %1767 = vperm.xlu0 %1766, %v116
  %v1768 = vpop.permute.xlu0 %1767
  %1770 = vset.pattern.permute.xlu0 2
  %1771 = vperm.xlu0 %1770, %v117
  %v1772 = vpop.permute.xlu0 %1771
  %1774 = vset.pattern.permute.xlu0 2
  %1775 = vperm.xlu0 %1774, %v118
  %v1776 = vpop.permute.xlu0 %1775
  %1778 = vset.pattern.permute.xlu0 2
  %1779 = vperm.xlu0 %1778, %v119
  %v1780 = vpop.permute.xlu0 %1779
  %1782 = vset.pattern.permute.xlu0 2
  %1783 = vperm.xlu0 %1782, %v120
  %v1784 = vpop.permute.xlu0 %1783
  %1786 = vset.pattern.permute.xlu0 2
  %1787 = vperm.xlu0 %1786, %v121
  %v1788 = vpop.permute.xlu0 %1787
  %1790 = vset.pattern.permute.xlu0 2
  %1791 = vperm.xlu0 %1790, %v122
  %v1792 = vpop.permute.xlu0 %1791
  %1794 = vset.pattern.permute.xlu0 2
  %1795 = vperm.xlu0 %1794, %v123
  %v1796 = vpop.permute.xlu0 %1795
  %1798 = vset.pattern.permute.xlu0 2
  %1799 = vperm.xlu0 %1798, %v124
  %v1800 = vpop.permute.xlu0 %1799
  %1802 = vset.pattern.permute.xlu0 2
  %1803 = vperm.xlu0 %1802, %v125
  %v1804 = vpop.permute.xlu0 %1803
  %1806 = vset.pattern.permute.xlu0 2
  %1807 = vperm.xlu0 %1806, %v126
  %v1808 = vpop.permute.xlu0 %1807
  %v1810 = vperm.slane %v1553, 0
  %v1811 = vmul.f32 %v1556, %v1810
  %v1812 = vmul.f32 %v1560, %v1810
  %v1813 = vmul.f32 %v1564, %v1810
  %v1814 = vmul.f32 %v1568, %v1810
  %v1815 = vmul.f32 %v1572, %v1810
  %v1816 = vmul.f32 %v1576, %v1810
  %v1817 = vmul.f32 %v1580, %v1810
  %v1818 = vmul.f32 %v1584, %v1810
  %v1819 = vmul.f32 %v1588, %v1810
  %v1820 = vmul.f32 %v1592, %v1810
  %v1821 = vmul.f32 %v1596, %v1810
  %v1822 = vmul.f32 %v1600, %v1810
  %v1823 = vmul.f32 %v1604, %v1810
  %v1824 = vmul.f32 %v1608, %v1810
  %v1825 = vmul.f32 %v1612, %v1810
  %v1826 = vmul.f32 %v1616, %v1810
  %v1827 = vmul.f32 %v1620, %v1810
  %v1828 = vmul.f32 %v1624, %v1810
  %v1829 = vmul.f32 %v1628, %v1810
  %v1830 = vmul.f32 %v1632, %v1810
  %v1831 = vmul.f32 %v1636, %v1810
  %v1832 = vmul.f32 %v1640, %v1810
  %v1833 = vmul.f32 %v1644, %v1810
  %v1834 = vmul.f32 %v1648, %v1810
  %v1835 = vmul.f32 %v1652, %v1810
  %v1836 = vmul.f32 %v1656, %v1810
  %v1837 = vmul.f32 %v1660, %v1810
  %v1838 = vmul.f32 %v1664, %v1810
  %v1839 = vmul.f32 %v1668, %v1810
  %v1840 = vmul.f32 %v1672, %v1810
  %v1841 = vmul.f32 %v1676, %v1810
  %v1842 = vmul.f32 %v1680, %v1810
  %v1843 = vmul.f32 %v1684, %v1810
  %v1844 = vmul.f32 %v1688, %v1810
  %v1845 = vmul.f32 %v1692, %v1810
  %v1846 = vmul.f32 %v1696, %v1810
  %v1847 = vmul.f32 %v1700, %v1810
  %v1848 = vmul.f32 %v1704, %v1810
  %v1849 = vmul.f32 %v1708, %v1810
  %v1850 = vmul.f32 %v1712, %v1810
  %v1851 = vmul.f32 %v1716, %v1810
  %v1852 = vmul.f32 %v1720, %v1810
  %v1853 = vmul.f32 %v1724, %v1810
  %v1854 = vmul.f32 %v1728, %v1810
  %v1855 = vmul.f32 %v1732, %v1810
  %v1856 = vmul.f32 %v1736, %v1810
  %v1857 = vmul.f32 %v1740, %v1810
  %v1858 = vmul.f32 %v1744, %v1810
  %v1859 = vmul.f32 %v1748, %v1810
  %v1860 = vmul.f32 %v1752, %v1810
  %v1861 = vmul.f32 %v1756, %v1810
  %v1862 = vmul.f32 %v1760, %v1810
  %v1863 = vmul.f32 %v1764, %v1810
  %v1864 = vmul.f32 %v1768, %v1810
  %v1865 = vmul.f32 %v1772, %v1810
  %v1866 = vmul.f32 %v1776, %v1810
  %v1867 = vmul.f32 %v1780, %v1810
  %v1868 = vmul.f32 %v1784, %v1810
  %v1869 = vmul.f32 %v1788, %v1810
  %v1870 = vmul.f32 %v1792, %v1810
  %v1871 = vmul.f32 %v1796, %v1810
  %v1872 = vmul.f32 %v1800, %v1810
  %v1873 = vmul.f32 %v1804, %v1810
  %v1874 = vmul.f32 %v1808, %v1810
  %v1875 = vadd.f32 %v1489, %v1811
  %v1876 = vadd.f32 %v1490, %v1812
  %v1877 = vadd.f32 %v1491, %v1813
  %v1878 = vadd.f32 %v1492, %v1814
  %v1879 = vadd.f32 %v1493, %v1815
  %v1880 = vadd.f32 %v1494, %v1816
  %v1881 = vadd.f32 %v1495, %v1817
  %v1882 = vadd.f32 %v1496, %v1818
  %v1883 = vadd.f32 %v1497, %v1819
  %v1884 = vadd.f32 %v1498, %v1820
  %v1885 = vadd.f32 %v1499, %v1821
  %v1886 = vadd.f32 %v1500, %v1822
  %v1887 = vadd.f32 %v1501, %v1823
  %v1888 = vadd.f32 %v1502, %v1824
  %v1889 = vadd.f32 %v1503, %v1825
  %v1890 = vadd.f32 %v1504, %v1826
  %v1891 = vadd.f32 %v1505, %v1827
  %v1892 = vadd.f32 %v1506, %v1828
  %v1893 = vadd.f32 %v1507, %v1829
  %v1894 = vadd.f32 %v1508, %v1830
  %v1895 = vadd.f32 %v1509, %v1831
  %v1896 = vadd.f32 %v1510, %v1832
  %v1897 = vadd.f32 %v1511, %v1833
  %v1898 = vadd.f32 %v1512, %v1834
  %v1899 = vadd.f32 %v1513, %v1835
  %v1900 = vadd.f32 %v1514, %v1836
  %v1901 = vadd.f32 %v1515, %v1837
  %v1902 = vadd.f32 %v1516, %v1838
  %v1903 = vadd.f32 %v1517, %v1839
  %v1904 = vadd.f32 %v1518, %v1840
  %v1905 = vadd.f32 %v1519, %v1841
  %v1906 = vadd.f32 %v1520, %v1842
  %v1907 = vadd.f32 %v1521, %v1843
  %v1908 = vadd.f32 %v1522, %v1844
  %v1909 = vadd.f32 %v1523, %v1845
  %v1910 = vadd.f32 %v1524, %v1846
  %v1911 = vadd.f32 %v1525, %v1847
  %v1912 = vadd.f32 %v1526, %v1848
  %v1913 = vadd.f32 %v1527, %v1849
  %v1914 = vadd.f32 %v1528, %v1850
  %v1915 = vadd.f32 %v1529, %v1851
  %v1916 = vadd.f32 %v1530, %v1852
  %v1917 = vadd.f32 %v1531, %v1853
  %v1918 = vadd.f32 %v1532, %v1854
  %v1919 = vadd.f32 %v1533, %v1855
  %v1920 = vadd.f32 %v1534, %v1856
  %v1921 = vadd.f32 %v1535, %v1857
  %v1922 = vadd.f32 %v1536, %v1858
  %v1923 = vadd.f32 %v1537, %v1859
  %v1924 = vadd.f32 %v1538, %v1860
  %v1925 = vadd.f32 %v1539, %v1861
  %v1926 = vadd.f32 %v1540, %v1862
  %v1927 = vadd.f32 %v1541, %v1863
  %v1928 = vadd.f32 %v1542, %v1864
  %v1929 = vadd.f32 %v1543, %v1865
  %v1930 = vadd.f32 %v1544, %v1866
  %v1931 = vadd.f32 %v1545, %v1867
  %v1932 = vadd.f32 %v1546, %v1868
  %v1933 = vadd.f32 %v1547, %v1869
  %v1934 = vadd.f32 %v1548, %v1870
  %v1935 = vadd.f32 %v1549, %v1871
  %v1936 = vadd.f32 %v1550, %v1872
  %v1937 = vadd.f32 %v1551, %v1873
  %v1938 = vadd.f32 %v1552, %v1874
  %vm1939 = vcmp.ge.f32.partialorder %v1875, 0.0
  %vm1940 = vcmp.ge.f32.partialorder %v1876, 0.0
  %vm1941 = vcmp.ge.f32.partialorder %v1877, 0.0
  %vm1942 = vcmp.ge.f32.partialorder %v1878, 0.0
  %vm1943 = vcmp.ge.f32.partialorder %v1879, 0.0
  %vm1944 = vcmp.ge.f32.partialorder %v1880, 0.0
  %vm1945 = vcmp.ge.f32.partialorder %v1881, 0.0
  %vm1946 = vcmp.ge.f32.partialorder %v1882, 0.0
  %vm1947 = vcmp.ge.f32.partialorder %v1883, 0.0
  %vm1948 = vcmp.ge.f32.partialorder %v1884, 0.0
  %vm1949 = vcmp.ge.f32.partialorder %v1885, 0.0
  %vm1950 = vcmp.ge.f32.partialorder %v1886, 0.0
  %vm1951 = vcmp.ge.f32.partialorder %v1887, 0.0
  %vm1952 = vcmp.ge.f32.partialorder %v1888, 0.0
  %vm1953 = vcmp.ge.f32.partialorder %v1889, 0.0
  %vm1954 = vcmp.ge.f32.partialorder %v1890, 0.0
  %vm1955 = vcmp.ge.f32.partialorder %v1891, 0.0
  %vm1956 = vcmp.ge.f32.partialorder %v1892, 0.0
  %vm1957 = vcmp.ge.f32.partialorder %v1893, 0.0
  %vm1958 = vcmp.ge.f32.partialorder %v1894, 0.0
  %vm1959 = vcmp.ge.f32.partialorder %v1895, 0.0
  %vm1960 = vcmp.ge.f32.partialorder %v1896, 0.0
  %vm1961 = vcmp.ge.f32.partialorder %v1897, 0.0
  %vm1962 = vcmp.ge.f32.partialorder %v1898, 0.0
  %vm1963 = vcmp.ge.f32.partialorder %v1899, 0.0
  %vm1964 = vcmp.ge.f32.partialorder %v1900, 0.0
  %vm1965 = vcmp.ge.f32.partialorder %v1901, 0.0
  %vm1966 = vcmp.ge.f32.partialorder %v1902, 0.0
  %vm1967 = vcmp.ge.f32.partialorder %v1903, 0.0
  %vm1968 = vcmp.ge.f32.partialorder %v1904, 0.0
  %vm1969 = vcmp.ge.f32.partialorder %v1905, 0.0
  %vm1970 = vcmp.ge.f32.partialorder %v1906, 0.0
  %vm1971 = vcmp.ge.f32.partialorder %v1907, 0.0
  %vm1972 = vcmp.ge.f32.partialorder %v1908, 0.0
  %vm1973 = vcmp.ge.f32.partialorder %v1909, 0.0
  %vm1974 = vcmp.ge.f32.partialorder %v1910, 0.0
  %vm1975 = vcmp.ge.f32.partialorder %v1911, 0.0
  %vm1976 = vcmp.ge.f32.partialorder %v1912, 0.0
  %vm1977 = vcmp.ge.f32.partialorder %v1913, 0.0
  %vm1978 = vcmp.ge.f32.partialorder %v1914, 0.0
  %vm1979 = vcmp.ge.f32.partialorder %v1915, 0.0
  %vm1980 = vcmp.ge.f32.partialorder %v1916, 0.0
  %vm1981 = vcmp.ge.f32.partialorder %v1917, 0.0
  %vm1982 = vcmp.ge.f32.partialorder %v1918, 0.0
  %vm1983 = vcmp.ge.f32.partialorder %v1919, 0.0
  %vm1984 = vcmp.ge.f32.partialorder %v1920, 0.0
  %vm1985 = vcmp.ge.f32.partialorder %v1921, 0.0
  %vm1986 = vcmp.ge.f32.partialorder %v1922, 0.0
  %vm1987 = vcmp.ge.f32.partialorder %v1923, 0.0
  %vm1988 = vcmp.ge.f32.partialorder %v1924, 0.0
  %vm1989 = vcmp.ge.f32.partialorder %v1925, 0.0
  %vm1990 = vcmp.ge.f32.partialorder %v1926, 0.0
  %vm1991 = vcmp.ge.f32.partialorder %v1927, 0.0
  %vm1992 = vcmp.ge.f32.partialorder %v1928, 0.0
  %vm1993 = vcmp.ge.f32.partialorder %v1929, 0.0
  %vm1994 = vcmp.ge.f32.partialorder %v1930, 0.0
  %vm1995 = vcmp.ge.f32.partialorder %v1931, 0.0
  %vm1996 = vcmp.ge.f32.partialorder %v1932, 0.0
  %vm1997 = vcmp.ge.f32.partialorder %v1933, 0.0
  %vm1998 = vcmp.ge.f32.partialorder %v1934, 0.0
  %vm1999 = vcmp.ge.f32.partialorder %v1935, 0.0
  %vm2000 = vcmp.ge.f32.partialorder %v1936, 0.0
  %vm2001 = vcmp.ge.f32.partialorder %v1937, 0.0
  %vm2002 = vcmp.ge.f32.partialorder %v1938, 0.0
  %v2003 = vmul.f32 %v1875, 0.01
  %v2004 = vmul.f32 %v1876, 0.01
  %v2005 = vmul.f32 %v1877, 0.01
  %v2006 = vmul.f32 %v1878, 0.01
  %v2007 = vmul.f32 %v1879, 0.01
  %v2008 = vmul.f32 %v1880, 0.01
  %v2009 = vmul.f32 %v1881, 0.01
  %v2010 = vmul.f32 %v1882, 0.01
  %v2011 = vmul.f32 %v1883, 0.01
  %v2012 = vmul.f32 %v1884, 0.01
  %v2013 = vmul.f32 %v1885, 0.01
  %v2014 = vmul.f32 %v1886, 0.01
  %v2015 = vmul.f32 %v1887, 0.01
  %v2016 = vmul.f32 %v1888, 0.01
  %v2017 = vmul.f32 %v1889, 0.01
  %v2018 = vmul.f32 %v1890, 0.01
  %v2019 = vmul.f32 %v1891, 0.01
  %v2020 = vmul.f32 %v1892, 0.01
  %v2021 = vmul.f32 %v1893, 0.01
  %v2022 = vmul.f32 %v1894, 0.01
  %v2023 = vmul.f32 %v1895, 0.01
  %v2024 = vmul.f32 %v1896, 0.01
  %v2025 = vmul.f32 %v1897, 0.01
  %v2026 = vmul.f32 %v1898, 0.01
  %v2027 = vmul.f32 %v1899, 0.01
  %v2028 = vmul.f32 %v1900, 0.01
  %v2029 = vmul.f32 %v1901, 0.01
  %v2030 = vmul.f32 %v1902, 0.01
  %v2031 = vmul.f32 %v1903, 0.01
  %v2032 = vmul.f32 %v1904, 0.01
  %v2033 = vmul.f32 %v1905, 0.01
  %v2034 = vmul.f32 %v1906, 0.01
  %v2035 = vmul.f32 %v1907, 0.01
  %v2036 = vmul.f32 %v1908, 0.01
  %v2037 = vmul.f32 %v1909, 0.01
  %v2038 = vmul.f32 %v1910, 0.01
  %v2039 = vmul.f32 %v1911, 0.01
  %v2040 = vmul.f32 %v1912, 0.01
  %v2041 = vmul.f32 %v1913, 0.01
  %v2042 = vmul.f32 %v1914, 0.01
  %v2043 = vmul.f32 %v1915, 0.01
  %v2044 = vmul.f32 %v1916, 0.01
  %v2045 = vmul.f32 %v1917, 0.01
  %v2046 = vmul.f32 %v1918, 0.01
  %v2047 = vmul.f32 %v1919, 0.01
  %v2048 = vmul.f32 %v1920, 0.01
  %v2049 = vmul.f32 %v1921, 0.01
  %v2050 = vmul.f32 %v1922, 0.01
  %v2051 = vmul.f32 %v1923, 0.01
  %v2052 = vmul.f32 %v1924, 0.01
  %v2053 = vmul.f32 %v1925, 0.01
  %v2054 = vmul.f32 %v1926, 0.01
  %v2055 = vmul.f32 %v1927, 0.01
  %v2056 = vmul.f32 %v1928, 0.01
  %v2057 = vmul.f32 %v1929, 0.01
  %v2058 = vmul.f32 %v1930, 0.01
  %v2059 = vmul.f32 %v1931, 0.01
  %v2060 = vmul.f32 %v1932, 0.01
  %v2061 = vmul.f32 %v1933, 0.01
  %v2062 = vmul.f32 %v1934, 0.01
  %v2063 = vmul.f32 %v1935, 0.01
  %v2064 = vmul.f32 %v1936, 0.01
  %v2065 = vmul.f32 %v1937, 0.01
  %v2066 = vmul.f32 %v1938, 0.01
  %v2067 = vsel %vm1939, %v1875, %v2003
  %v2068 = vsel %vm1940, %v1876, %v2004
  %v2069 = vsel %vm1941, %v1877, %v2005
  %v2070 = vsel %vm1942, %v1878, %v2006
  %v2071 = vsel %vm1943, %v1879, %v2007
  %v2072 = vsel %vm1944, %v1880, %v2008
  %v2073 = vsel %vm1945, %v1881, %v2009
  %v2074 = vsel %vm1946, %v1882, %v2010
  %v2075 = vsel %vm1947, %v1883, %v2011
  %v2076 = vsel %vm1948, %v1884, %v2012
  %v2077 = vsel %vm1949, %v1885, %v2013
  %v2078 = vsel %vm1950, %v1886, %v2014
  %v2079 = vsel %vm1951, %v1887, %v2015
  %v2080 = vsel %vm1952, %v1888, %v2016
  %v2081 = vsel %vm1953, %v1889, %v2017
  %v2082 = vsel %vm1954, %v1890, %v2018
  %v2083 = vsel %vm1955, %v1891, %v2019
  %v2084 = vsel %vm1956, %v1892, %v2020
  %v2085 = vsel %vm1957, %v1893, %v2021
  %v2086 = vsel %vm1958, %v1894, %v2022
  %v2087 = vsel %vm1959, %v1895, %v2023
  %v2088 = vsel %vm1960, %v1896, %v2024
  %v2089 = vsel %vm1961, %v1897, %v2025
  %v2090 = vsel %vm1962, %v1898, %v2026
  %v2091 = vsel %vm1963, %v1899, %v2027
  %v2092 = vsel %vm1964, %v1900, %v2028
  %v2093 = vsel %vm1965, %v1901, %v2029
  %v2094 = vsel %vm1966, %v1902, %v2030
  %v2095 = vsel %vm1967, %v1903, %v2031
  %v2096 = vsel %vm1968, %v1904, %v2032
  %v2097 = vsel %vm1969, %v1905, %v2033
  %v2098 = vsel %vm1970, %v1906, %v2034
  %v2099 = vsel %vm1971, %v1907, %v2035
  %v2100 = vsel %vm1972, %v1908, %v2036
  %v2101 = vsel %vm1973, %v1909, %v2037
  %v2102 = vsel %vm1974, %v1910, %v2038
  %v2103 = vsel %vm1975, %v1911, %v2039
  %v2104 = vsel %vm1976, %v1912, %v2040
  %v2105 = vsel %vm1977, %v1913, %v2041
  %v2106 = vsel %vm1978, %v1914, %v2042
  %v2107 = vsel %vm1979, %v1915, %v2043
  %v2108 = vsel %vm1980, %v1916, %v2044
  %v2109 = vsel %vm1981, %v1917, %v2045
  %v2110 = vsel %vm1982, %v1918, %v2046
  %v2111 = vsel %vm1983, %v1919, %v2047
  %v2112 = vsel %vm1984, %v1920, %v2048
  %v2113 = vsel %vm1985, %v1921, %v2049
  %v2114 = vsel %vm1986, %v1922, %v2050
  %v2115 = vsel %vm1987, %v1923, %v2051
  %v2116 = vsel %vm1988, %v1924, %v2052
  %v2117 = vsel %vm1989, %v1925, %v2053
  %v2118 = vsel %vm1990, %v1926, %v2054
  %v2119 = vsel %vm1991, %v1927, %v2055
  %v2120 = vsel %vm1992, %v1928, %v2056
  %v2121 = vsel %vm1993, %v1929, %v2057
  %v2122 = vsel %vm1994, %v1930, %v2058
  %v2123 = vsel %vm1995, %v1931, %v2059
  %v2124 = vsel %vm1996, %v1932, %v2060
  %v2125 = vsel %vm1997, %v1933, %v2061
  %v2126 = vsel %vm1998, %v1934, %v2062
  %v2127 = vsel %vm1999, %v1935, %v2063
  %v2128 = vsel %vm2000, %v1936, %v2064
  %v2129 = vsel %vm2001, %v1937, %v2065
  %v2130 = vsel %vm2002, %v1938, %v2066
  %v2131 = vpack.c.bf16 %v2068, %v2067
  %v2132 = vpack.c.bf16 %v2070, %v2069
  %v2133 = vpack.c.bf16 %v2072, %v2071
  %v2134 = vpack.c.bf16 %v2074, %v2073
  %v2135 = vpack.c.bf16 %v2076, %v2075
  %v2136 = vpack.c.bf16 %v2078, %v2077
  %v2137 = vpack.c.bf16 %v2080, %v2079
  %v2138 = vpack.c.bf16 %v2082, %v2081
  %v2139 = vpack.c.bf16 %v2084, %v2083
  %v2140 = vpack.c.bf16 %v2086, %v2085
  %v2141 = vpack.c.bf16 %v2088, %v2087
  %v2142 = vpack.c.bf16 %v2090, %v2089
  %v2143 = vpack.c.bf16 %v2092, %v2091
  %v2144 = vpack.c.bf16 %v2094, %v2093
  %v2145 = vpack.c.bf16 %v2096, %v2095
  %v2146 = vpack.c.bf16 %v2098, %v2097
  %v2147 = vpack.c.bf16 %v2100, %v2099
  %v2148 = vpack.c.bf16 %v2102, %v2101
  %v2149 = vpack.c.bf16 %v2104, %v2103
  %v2150 = vpack.c.bf16 %v2106, %v2105
  %v2151 = vpack.c.bf16 %v2108, %v2107
  %v2152 = vpack.c.bf16 %v2110, %v2109
  %v2153 = vpack.c.bf16 %v2112, %v2111
  %v2154 = vpack.c.bf16 %v2114, %v2113
  %v2155 = vpack.c.bf16 %v2116, %v2115
  %v2156 = vpack.c.bf16 %v2118, %v2117
  %v2157 = vpack.c.bf16 %v2120, %v2119
  %v2158 = vpack.c.bf16 %v2122, %v2121
  %v2159 = vpack.c.bf16 %v2124, %v2123
  %v2160 = vpack.c.bf16 %v2126, %v2125
  %v2161 = vpack.c.bf16 %v2128, %v2127
  %v2162 = vpack.c.bf16 %v2130, %v2129
  %v2163 = vld [vmem:[%s6] sm:$0xf]
  %v2164 = vld [vmem:[%s6 + $0x4] sm:$0xf]
  %v2165 = vld [vmem:[%s6 + $0x8] sm:$0xf]
  %v2166 = vld [vmem:[%s6 + $0xc] sm:$0xf]
  %v2167 = vld [vmem:[%s6 + $0x10] sm:$0xf]
  %v2168 = vld [vmem:[%s6 + $0x14] sm:$0xf]
  %v2169 = vld [vmem:[%s6 + $0x18] sm:$0xf]
  %v2170 = vld [vmem:[%s6 + $0x1c] sm:$0xf]
  %v2171 = vld [vmem:[%s7] sm:$0x1]
  %v2173 = vperm.slane %v2171, 0
  %v2183 = vunpack.c.l.b16 %v2163
  %v2184 = vunpack.c.l.b16 %v2164
  %v2185 = vunpack.c.l.b16 %v2165
  %v2186 = vunpack.c.l.b16 %v2166
  %v2187 = vunpack.c.l.b16 %v2167
  %v2188 = vunpack.c.l.b16 %v2168
  %v2189 = vunpack.c.l.b16 %v2169
  %v2190 = vunpack.c.l.b16 %v2170
  %v2191 = vpack.c.b16 %v2184, %v2183
  %v2192 = vpack.c.b16 %v2186, %v2185
  %v2193 = vpack.c.b16 %v2188, %v2187
  %v2194 = vpack.c.b16 %v2190, %v2189
  %v2200 = vsel %vm451, %v2131, 0
  %v2203 = vsel %vm451, %v2132, 0
  %v2206 = vsel %vm451, %v2133, 0
  %v2209 = vsel %vm451, %v2134, 0
  %v2212 = vsel %vm451, %v2135, 0
  %v2215 = vsel %vm451, %v2136, 0
  %v2218 = vsel %vm451, %v2137, 0
  %v2221 = vsel %vm451, %v2138, 0
  %v2224 = vsel %vm451, %v2139, 0
  %v2227 = vsel %vm451, %v2140, 0
  %v2230 = vsel %vm451, %v2141, 0
  %v2233 = vsel %vm451, %v2142, 0
  %v2236 = vsel %vm451, %v2143, 0
  %v2239 = vsel %vm451, %v2144, 0
  %v2242 = vsel %vm451, %v2145, 0
  %v2245 = vsel %vm451, %v2146, 0
  %v2248 = vsel %vm451, %v2147, 0
  %v2251 = vsel %vm451, %v2148, 0
  %v2254 = vsel %vm451, %v2149, 0
  %v2257 = vsel %vm451, %v2150, 0
  %v2260 = vsel %vm451, %v2151, 0
  %v2263 = vsel %vm451, %v2152, 0
  %v2266 = vsel %vm451, %v2153, 0
  %v2269 = vsel %vm451, %v2154, 0
  %v2272 = vsel %vm451, %v2155, 0
  %v2275 = vsel %vm451, %v2156, 0
  %v2278 = vsel %vm451, %v2157, 0
  %v2281 = vsel %vm451, %v2158, 0
  %v2284 = vsel %vm451, %v2159, 0
  %v2287 = vsel %vm451, %v2160, 0
  %v2290 = vsel %vm451, %v2161, 0
  %v2293 = vsel %vm451, %v2162, 0
  %2295 = vmatpush.bf16.msra.mxu0 0
  %2296 = vmatpush.bf16.msra.mxu0 0
  %2297 = vmatpush.bf16.msra.mxu0 0
  %2298 = vmatpush.bf16.msra.mxu0 0
  %2299 = vmatpush.bf16.msra.mxu0 %v2194
  %2300 = vmatpush.bf16.msra.mxu0 %v2193
  %2301 = vmatpush.bf16.msra.mxu0 %v2192
  %2302 = vmatpush.bf16.msra.mxu0 %v2191
  %2303 = vmatmul.bf16.gmra.mxu0 %v2200
  %v2304 = vpop.f32.mrf.mxu0
  %v2305 = vadd.f32 %v2173, %v2304
  %v2306 = vpop.f32.mrf.mxu0
  %v2307 = vadd.f32 %v2173, %v2306
  %2308 = vmatmul.bf16.gmra.mxu0 %v2203
  %v2309 = vpop.f32.mrf.mxu0
  %v2310 = vadd.f32 %v2173, %v2309
  %v2311 = vpop.f32.mrf.mxu0
  %v2312 = vadd.f32 %v2173, %v2311
  %2313 = vmatmul.bf16.gmra.mxu0 %v2206
  %v2314 = vpop.f32.mrf.mxu0
  %v2315 = vadd.f32 %v2173, %v2314
  %v2316 = vpop.f32.mrf.mxu0
  %v2317 = vadd.f32 %v2173, %v2316
  %2318 = vmatmul.bf16.gmra.mxu0 %v2209
  %v2319 = vpop.f32.mrf.mxu0
  %v2320 = vadd.f32 %v2173, %v2319
  %v2321 = vpop.f32.mrf.mxu0
  %v2322 = vadd.f32 %v2173, %v2321
  %2323 = vmatmul.bf16.gmra.mxu0 %v2212
  %v2324 = vpop.f32.mrf.mxu0
  %v2325 = vadd.f32 %v2173, %v2324
  %v2326 = vpop.f32.mrf.mxu0
  %v2327 = vadd.f32 %v2173, %v2326
  %2328 = vmatmul.bf16.gmra.mxu0 %v2215
  %v2329 = vpop.f32.mrf.mxu0
  %v2330 = vadd.f32 %v2173, %v2329
  %v2331 = vpop.f32.mrf.mxu0
  %v2332 = vadd.f32 %v2173, %v2331
  %2333 = vmatmul.bf16.gmra.mxu0 %v2218
  %v2334 = vpop.f32.mrf.mxu0
  %v2335 = vadd.f32 %v2173, %v2334
  %v2336 = vpop.f32.mrf.mxu0
  %v2337 = vadd.f32 %v2173, %v2336
  %2338 = vmatmul.bf16.gmra.mxu0 %v2221
  %v2339 = vpop.f32.mrf.mxu0
  %v2340 = vadd.f32 %v2173, %v2339
  %v2341 = vpop.f32.mrf.mxu0
  %v2342 = vadd.f32 %v2173, %v2341
  %2343 = vmatmul.bf16.gmra.mxu0 %v2224
  %v2344 = vpop.f32.mrf.mxu0
  %v2345 = vadd.f32 %v2173, %v2344
  %v2346 = vpop.f32.mrf.mxu0
  %v2347 = vadd.f32 %v2173, %v2346
  %2348 = vmatmul.bf16.gmra.mxu0 %v2227
  %v2349 = vpop.f32.mrf.mxu0
  %v2350 = vadd.f32 %v2173, %v2349
  %v2351 = vpop.f32.mrf.mxu0
  %v2352 = vadd.f32 %v2173, %v2351
  %2353 = vmatmul.bf16.gmra.mxu0 %v2230
  %v2354 = vpop.f32.mrf.mxu0
  %v2355 = vadd.f32 %v2173, %v2354
  %v2356 = vpop.f32.mrf.mxu0
  %v2357 = vadd.f32 %v2173, %v2356
  %2358 = vmatmul.bf16.gmra.mxu0 %v2233
  %v2359 = vpop.f32.mrf.mxu0
  %v2360 = vadd.f32 %v2173, %v2359
  %v2361 = vpop.f32.mrf.mxu0
  %v2362 = vadd.f32 %v2173, %v2361
  %2363 = vmatmul.bf16.gmra.mxu0 %v2236
  %v2364 = vpop.f32.mrf.mxu0
  %v2365 = vadd.f32 %v2173, %v2364
  %v2366 = vpop.f32.mrf.mxu0
  %v2367 = vadd.f32 %v2173, %v2366
  %2368 = vmatmul.bf16.gmra.mxu0 %v2239
  %v2369 = vpop.f32.mrf.mxu0
  %v2370 = vadd.f32 %v2173, %v2369
  %v2371 = vpop.f32.mrf.mxu0
  %v2372 = vadd.f32 %v2173, %v2371
  %2373 = vmatmul.bf16.gmra.mxu0 %v2242
  %v2374 = vpop.f32.mrf.mxu0
  %v2375 = vadd.f32 %v2173, %v2374
  %v2376 = vpop.f32.mrf.mxu0
  %v2377 = vadd.f32 %v2173, %v2376
  %2378 = vmatmul.bf16.gmra.mxu0 %v2245
  %v2379 = vpop.f32.mrf.mxu0
  %v2380 = vadd.f32 %v2173, %v2379
  %v2381 = vpop.f32.mrf.mxu0
  %v2382 = vadd.f32 %v2173, %v2381
  %2383 = vmatmul.bf16.gmra.mxu0 %v2248
  %v2384 = vpop.f32.mrf.mxu0
  %v2385 = vadd.f32 %v2173, %v2384
  %v2386 = vpop.f32.mrf.mxu0
  %v2387 = vadd.f32 %v2173, %v2386
  %2388 = vmatmul.bf16.gmra.mxu0 %v2251
  %v2389 = vpop.f32.mrf.mxu0
  %v2390 = vadd.f32 %v2173, %v2389
  %v2391 = vpop.f32.mrf.mxu0
  %v2392 = vadd.f32 %v2173, %v2391
  %2393 = vmatmul.bf16.gmra.mxu0 %v2254
  %v2394 = vpop.f32.mrf.mxu0
  %v2395 = vadd.f32 %v2173, %v2394
  %v2396 = vpop.f32.mrf.mxu0
  %v2397 = vadd.f32 %v2173, %v2396
  %2398 = vmatmul.bf16.gmra.mxu0 %v2257
  %v2399 = vpop.f32.mrf.mxu0
  %v2400 = vadd.f32 %v2173, %v2399
  %v2401 = vpop.f32.mrf.mxu0
  %v2402 = vadd.f32 %v2173, %v2401
  %2403 = vmatmul.bf16.gmra.mxu0 %v2260
  %v2404 = vpop.f32.mrf.mxu0
  %v2405 = vadd.f32 %v2173, %v2404
  %v2406 = vpop.f32.mrf.mxu0
  %v2407 = vadd.f32 %v2173, %v2406
  %2408 = vmatmul.bf16.gmra.mxu0 %v2263
  %v2409 = vpop.f32.mrf.mxu0
  %v2410 = vadd.f32 %v2173, %v2409
  %v2411 = vpop.f32.mrf.mxu0
  %v2412 = vadd.f32 %v2173, %v2411
  %2413 = vmatmul.bf16.gmra.mxu0 %v2266
  %v2414 = vpop.f32.mrf.mxu0
  %v2415 = vadd.f32 %v2173, %v2414
  %v2416 = vpop.f32.mrf.mxu0
  %v2417 = vadd.f32 %v2173, %v2416
  %2418 = vmatmul.bf16.gmra.mxu0 %v2269
  %v2419 = vpop.f32.mrf.mxu0
  %v2420 = vadd.f32 %v2173, %v2419
  %v2421 = vpop.f32.mrf.mxu0
  %v2422 = vadd.f32 %v2173, %v2421
  %2423 = vmatmul.bf16.gmra.mxu0 %v2272
  %v2424 = vpop.f32.mrf.mxu0
  %v2425 = vadd.f32 %v2173, %v2424
  %v2426 = vpop.f32.mrf.mxu0
  %v2427 = vadd.f32 %v2173, %v2426
  %2428 = vmatmul.bf16.gmra.mxu0 %v2275
  %v2429 = vpop.f32.mrf.mxu0
  %v2430 = vadd.f32 %v2173, %v2429
  %v2431 = vpop.f32.mrf.mxu0
  %v2432 = vadd.f32 %v2173, %v2431
  %2433 = vmatmul.bf16.gmra.mxu0 %v2278
  %v2434 = vpop.f32.mrf.mxu0
  %v2435 = vadd.f32 %v2173, %v2434
  %v2436 = vpop.f32.mrf.mxu0
  %v2437 = vadd.f32 %v2173, %v2436
  %2438 = vmatmul.bf16.gmra.mxu0 %v2281
  %v2439 = vpop.f32.mrf.mxu0
  %v2440 = vadd.f32 %v2173, %v2439
  %v2441 = vpop.f32.mrf.mxu0
  %v2442 = vadd.f32 %v2173, %v2441
  %2443 = vmatmul.bf16.gmra.mxu0 %v2284
  %v2444 = vpop.f32.mrf.mxu0
  %v2445 = vadd.f32 %v2173, %v2444
  %v2446 = vpop.f32.mrf.mxu0
  %v2447 = vadd.f32 %v2173, %v2446
  %2448 = vmatmul.bf16.gmra.mxu0 %v2287
  %v2449 = vpop.f32.mrf.mxu0
  %v2450 = vadd.f32 %v2173, %v2449
  %v2451 = vpop.f32.mrf.mxu0
  %v2452 = vadd.f32 %v2173, %v2451
  %2453 = vmatmul.bf16.gmra.mxu0 %v2290
  %v2454 = vpop.f32.mrf.mxu0
  %v2455 = vadd.f32 %v2173, %v2454
  %v2456 = vpop.f32.mrf.mxu0
  %v2457 = vadd.f32 %v2173, %v2456
  %2458 = vmatmul.bf16.gmra.mxu0 %v2293
  %v2459 = vpop.f32.mrf.mxu0
  %v2460 = vadd.f32 %v2173, %v2459
  %v2461 = vpop.f32.mrf.mxu0
  %v2462 = vadd.f32 %v2173, %v2461
  %2463 = vdwg.mxu0
  %vm2464 = vcmp.ge.f32.partialorder %v2305, 0.0
  %vm2465 = vcmp.ge.f32.partialorder %v2307, 0.0
  %vm2466 = vcmp.ge.f32.partialorder %v2310, 0.0
  %vm2467 = vcmp.ge.f32.partialorder %v2312, 0.0
  %vm2468 = vcmp.ge.f32.partialorder %v2315, 0.0
  %vm2469 = vcmp.ge.f32.partialorder %v2317, 0.0
  %vm2470 = vcmp.ge.f32.partialorder %v2320, 0.0
  %vm2471 = vcmp.ge.f32.partialorder %v2322, 0.0
  %vm2472 = vcmp.ge.f32.partialorder %v2325, 0.0
  %vm2473 = vcmp.ge.f32.partialorder %v2327, 0.0
  %vm2474 = vcmp.ge.f32.partialorder %v2330, 0.0
  %vm2475 = vcmp.ge.f32.partialorder %v2332, 0.0
  %vm2476 = vcmp.ge.f32.partialorder %v2335, 0.0
  %vm2477 = vcmp.ge.f32.partialorder %v2337, 0.0
  %vm2478 = vcmp.ge.f32.partialorder %v2340, 0.0
  %vm2479 = vcmp.ge.f32.partialorder %v2342, 0.0
  %vm2480 = vcmp.ge.f32.partialorder %v2345, 0.0
  %vm2481 = vcmp.ge.f32.partialorder %v2347, 0.0
  %vm2482 = vcmp.ge.f32.partialorder %v2350, 0.0
  %vm2483 = vcmp.ge.f32.partialorder %v2352, 0.0
  %vm2484 = vcmp.ge.f32.partialorder %v2355, 0.0
  %vm2485 = vcmp.ge.f32.partialorder %v2357, 0.0
  %vm2486 = vcmp.ge.f32.partialorder %v2360, 0.0
  %vm2487 = vcmp.ge.f32.partialorder %v2362, 0.0
  %vm2488 = vcmp.ge.f32.partialorder %v2365, 0.0
  %vm2489 = vcmp.ge.f32.partialorder %v2367, 0.0
  %vm2490 = vcmp.ge.f32.partialorder %v2370, 0.0
  %vm2491 = vcmp.ge.f32.partialorder %v2372, 0.0
  %vm2492 = vcmp.ge.f32.partialorder %v2375, 0.0
  %vm2493 = vcmp.ge.f32.partialorder %v2377, 0.0
  %vm2494 = vcmp.ge.f32.partialorder %v2380, 0.0
  %vm2495 = vcmp.ge.f32.partialorder %v2382, 0.0
  %vm2496 = vcmp.ge.f32.partialorder %v2385, 0.0
  %vm2497 = vcmp.ge.f32.partialorder %v2387, 0.0
  %vm2498 = vcmp.ge.f32.partialorder %v2390, 0.0
  %vm2499 = vcmp.ge.f32.partialorder %v2392, 0.0
  %vm2500 = vcmp.ge.f32.partialorder %v2395, 0.0
  %vm2501 = vcmp.ge.f32.partialorder %v2397, 0.0
  %vm2502 = vcmp.ge.f32.partialorder %v2400, 0.0
  %vm2503 = vcmp.ge.f32.partialorder %v2402, 0.0
  %vm2504 = vcmp.ge.f32.partialorder %v2405, 0.0
  %vm2505 = vcmp.ge.f32.partialorder %v2407, 0.0
  %vm2506 = vcmp.ge.f32.partialorder %v2410, 0.0
  %vm2507 = vcmp.ge.f32.partialorder %v2412, 0.0
  %vm2508 = vcmp.ge.f32.partialorder %v2415, 0.0
  %vm2509 = vcmp.ge.f32.partialorder %v2417, 0.0
  %vm2510 = vcmp.ge.f32.partialorder %v2420, 0.0
  %vm2511 = vcmp.ge.f32.partialorder %v2422, 0.0
  %vm2512 = vcmp.ge.f32.partialorder %v2425, 0.0
  %vm2513 = vcmp.ge.f32.partialorder %v2427, 0.0
  %vm2514 = vcmp.ge.f32.partialorder %v2430, 0.0
  %vm2515 = vcmp.ge.f32.partialorder %v2432, 0.0
  %vm2516 = vcmp.ge.f32.partialorder %v2435, 0.0
  %vm2517 = vcmp.ge.f32.partialorder %v2437, 0.0
  %vm2518 = vcmp.ge.f32.partialorder %v2440, 0.0
  %vm2519 = vcmp.ge.f32.partialorder %v2442, 0.0
  %vm2520 = vcmp.ge.f32.partialorder %v2445, 0.0
  %vm2521 = vcmp.ge.f32.partialorder %v2447, 0.0
  %vm2522 = vcmp.ge.f32.partialorder %v2450, 0.0
  %vm2523 = vcmp.ge.f32.partialorder %v2452, 0.0
  %vm2524 = vcmp.ge.f32.partialorder %v2455, 0.0
  %vm2525 = vcmp.ge.f32.partialorder %v2457, 0.0
  %vm2526 = vcmp.ge.f32.partialorder %v2460, 0.0
  %vm2527 = vcmp.ge.f32.partialorder %v2462, 0.0
  %v2528 = vmul.f32 %v2305, 0.01
  %v2529 = vmul.f32 %v2307, 0.01
  %v2530 = vmul.f32 %v2310, 0.01
  %v2531 = vmul.f32 %v2312, 0.01
  %v2532 = vmul.f32 %v2315, 0.01
  %v2533 = vmul.f32 %v2317, 0.01
  %v2534 = vmul.f32 %v2320, 0.01
  %v2535 = vmul.f32 %v2322, 0.01
  %v2536 = vmul.f32 %v2325, 0.01
  %v2537 = vmul.f32 %v2327, 0.01
  %v2538 = vmul.f32 %v2330, 0.01
  %v2539 = vmul.f32 %v2332, 0.01
  %v2540 = vmul.f32 %v2335, 0.01
  %v2541 = vmul.f32 %v2337, 0.01
  %v2542 = vmul.f32 %v2340, 0.01
  %v2543 = vmul.f32 %v2342, 0.01
  %v2544 = vmul.f32 %v2345, 0.01
  %v2545 = vmul.f32 %v2347, 0.01
  %v2546 = vmul.f32 %v2350, 0.01
  %v2547 = vmul.f32 %v2352, 0.01
  %v2548 = vmul.f32 %v2355, 0.01
  %v2549 = vmul.f32 %v2357, 0.01
  %v2550 = vmul.f32 %v2360, 0.01
  %v2551 = vmul.f32 %v2362, 0.01
  %v2552 = vmul.f32 %v2365, 0.01
  %v2553 = vmul.f32 %v2367, 0.01
  %v2554 = vmul.f32 %v2370, 0.01
  %v2555 = vmul.f32 %v2372, 0.01
  %v2556 = vmul.f32 %v2375, 0.01
  %v2557 = vmul.f32 %v2377, 0.01
  %v2558 = vmul.f32 %v2380, 0.01
  %v2559 = vmul.f32 %v2382, 0.01
  %v2560 = vmul.f32 %v2385, 0.01
  %v2561 = vmul.f32 %v2387, 0.01
  %v2562 = vmul.f32 %v2390, 0.01
  %v2563 = vmul.f32 %v2392, 0.01
  %v2564 = vmul.f32 %v2395, 0.01
  %v2565 = vmul.f32 %v2397, 0.01
  %v2566 = vmul.f32 %v2400, 0.01
  %v2567 = vmul.f32 %v2402, 0.01
  %v2568 = vmul.f32 %v2405, 0.01
  %v2569 = vmul.f32 %v2407, 0.01
  %v2570 = vmul.f32 %v2410, 0.01
  %v2571 = vmul.f32 %v2412, 0.01
  %v2572 = vmul.f32 %v2415, 0.01
  %v2573 = vmul.f32 %v2417, 0.01
  %v2574 = vmul.f32 %v2420, 0.01
  %v2575 = vmul.f32 %v2422, 0.01
  %v2576 = vmul.f32 %v2425, 0.01
  %v2577 = vmul.f32 %v2427, 0.01
  %v2578 = vmul.f32 %v2430, 0.01
  %v2579 = vmul.f32 %v2432, 0.01
  %v2580 = vmul.f32 %v2435, 0.01
  %v2581 = vmul.f32 %v2437, 0.01
  %v2582 = vmul.f32 %v2440, 0.01
  %v2583 = vmul.f32 %v2442, 0.01
  %v2584 = vmul.f32 %v2445, 0.01
  %v2585 = vmul.f32 %v2447, 0.01
  %v2586 = vmul.f32 %v2450, 0.01
  %v2587 = vmul.f32 %v2452, 0.01
  %v2588 = vmul.f32 %v2455, 0.01
  %v2589 = vmul.f32 %v2457, 0.01
  %v2590 = vmul.f32 %v2460, 0.01
  %v2591 = vmul.f32 %v2462, 0.01
  %v2592 = vsel %vm2464, %v2305, %v2528
  %v2593 = vsel %vm2465, %v2307, %v2529
  %v2594 = vsel %vm2466, %v2310, %v2530
  %v2595 = vsel %vm2467, %v2312, %v2531
  %v2596 = vsel %vm2468, %v2315, %v2532
  %v2597 = vsel %vm2469, %v2317, %v2533
  %v2598 = vsel %vm2470, %v2320, %v2534
  %v2599 = vsel %vm2471, %v2322, %v2535
  %v2600 = vsel %vm2472, %v2325, %v2536
  %v2601 = vsel %vm2473, %v2327, %v2537
  %v2602 = vsel %vm2474, %v2330, %v2538
  %v2603 = vsel %vm2475, %v2332, %v2539
  %v2604 = vsel %vm2476, %v2335, %v2540
  %v2605 = vsel %vm2477, %v2337, %v2541
  %v2606 = vsel %vm2478, %v2340, %v2542
  %v2607 = vsel %vm2479, %v2342, %v2543
  %v2608 = vsel %vm2480, %v2345, %v2544
  %v2609 = vsel %vm2481, %v2347, %v2545
  %v2610 = vsel %vm2482, %v2350, %v2546
  %v2611 = vsel %vm2483, %v2352, %v2547
  %v2612 = vsel %vm2484, %v2355, %v2548
  %v2613 = vsel %vm2485, %v2357, %v2549
  %v2614 = vsel %vm2486, %v2360, %v2550
  %v2615 = vsel %vm2487, %v2362, %v2551
  %v2616 = vsel %vm2488, %v2365, %v2552
  %v2617 = vsel %vm2489, %v2367, %v2553
  %v2618 = vsel %vm2490, %v2370, %v2554
  %v2619 = vsel %vm2491, %v2372, %v2555
  %v2620 = vsel %vm2492, %v2375, %v2556
  %v2621 = vsel %vm2493, %v2377, %v2557
  %v2622 = vsel %vm2494, %v2380, %v2558
  %v2623 = vsel %vm2495, %v2382, %v2559
  %v2624 = vsel %vm2496, %v2385, %v2560
  %v2625 = vsel %vm2497, %v2387, %v2561
  %v2626 = vsel %vm2498, %v2390, %v2562
  %v2627 = vsel %vm2499, %v2392, %v2563
  %v2628 = vsel %vm2500, %v2395, %v2564
  %v2629 = vsel %vm2501, %v2397, %v2565
  %v2630 = vsel %vm2502, %v2400, %v2566
  %v2631 = vsel %vm2503, %v2402, %v2567
  %v2632 = vsel %vm2504, %v2405, %v2568
  %v2633 = vsel %vm2505, %v2407, %v2569
  %v2634 = vsel %vm2506, %v2410, %v2570
  %v2635 = vsel %vm2507, %v2412, %v2571
  %v2636 = vsel %vm2508, %v2415, %v2572
  %v2637 = vsel %vm2509, %v2417, %v2573
  %v2638 = vsel %vm2510, %v2420, %v2574
  %v2639 = vsel %vm2511, %v2422, %v2575
  %v2640 = vsel %vm2512, %v2425, %v2576
  %v2641 = vsel %vm2513, %v2427, %v2577
  %v2642 = vsel %vm2514, %v2430, %v2578
  %v2643 = vsel %vm2515, %v2432, %v2579
  %v2644 = vsel %vm2516, %v2435, %v2580
  %v2645 = vsel %vm2517, %v2437, %v2581
  %v2646 = vsel %vm2518, %v2440, %v2582
  %v2647 = vsel %vm2519, %v2442, %v2583
  %v2648 = vsel %vm2520, %v2445, %v2584
  %v2649 = vsel %vm2521, %v2447, %v2585
  %v2650 = vsel %vm2522, %v2450, %v2586
  %v2651 = vsel %vm2523, %v2452, %v2587
  %v2652 = vsel %vm2524, %v2455, %v2588
  %v2653 = vsel %vm2525, %v2457, %v2589
  %v2654 = vsel %vm2526, %v2460, %v2590
  %v2655 = vsel %vm2527, %v2462, %v2591
  %v2656 = vpack.c.bf16 %v2593, %v2592
  %v2657 = vpack.c.bf16 %v2595, %v2594
  %v2658 = vpack.c.bf16 %v2597, %v2596
  %v2659 = vpack.c.bf16 %v2599, %v2598
  %v2660 = vpack.c.bf16 %v2601, %v2600
  %v2661 = vpack.c.bf16 %v2603, %v2602
  %v2662 = vpack.c.bf16 %v2605, %v2604
  %v2663 = vpack.c.bf16 %v2607, %v2606
  %v2664 = vpack.c.bf16 %v2609, %v2608
  %v2665 = vpack.c.bf16 %v2611, %v2610
  %v2666 = vpack.c.bf16 %v2613, %v2612
  %v2667 = vpack.c.bf16 %v2615, %v2614
  %v2668 = vpack.c.bf16 %v2617, %v2616
  %v2669 = vpack.c.bf16 %v2619, %v2618
  %v2670 = vpack.c.bf16 %v2621, %v2620
  %v2671 = vpack.c.bf16 %v2623, %v2622
  %v2672 = vpack.c.bf16 %v2625, %v2624
  %v2673 = vpack.c.bf16 %v2627, %v2626
  %v2674 = vpack.c.bf16 %v2629, %v2628
  %v2675 = vpack.c.bf16 %v2631, %v2630
  %v2676 = vpack.c.bf16 %v2633, %v2632
  %v2677 = vpack.c.bf16 %v2635, %v2634
  %v2678 = vpack.c.bf16 %v2637, %v2636
  %v2679 = vpack.c.bf16 %v2639, %v2638
  %v2680 = vpack.c.bf16 %v2641, %v2640
  %v2681 = vpack.c.bf16 %v2643, %v2642
  %v2682 = vpack.c.bf16 %v2645, %v2644
  %v2683 = vpack.c.bf16 %v2647, %v2646
  %v2684 = vpack.c.bf16 %v2649, %v2648
  %v2685 = vpack.c.bf16 %v2651, %v2650
  %v2686 = vpack.c.bf16 %v2653, %v2652
  %v2687 = vpack.c.bf16 %v2655, %v2654
  %v2688 = vld [vmem:[%s8] sm:$0xf]
  %v2689 = vld [vmem:[%s8 + $0x4] sm:$0xf]
  %v2690 = vld [vmem:[%s8 + $0x8] sm:$0xf]
  %v2691 = vld [vmem:[%s8 + $0xc] sm:$0xf]
  %v2692 = vld [vmem:[%s8 + $0x10] sm:$0xf]
  %v2693 = vld [vmem:[%s8 + $0x14] sm:$0xf]
  %v2694 = vld [vmem:[%s8 + $0x18] sm:$0xf]
  %v2695 = vld [vmem:[%s8 + $0x1c] sm:$0xf]
  %v2696 = vld [vmem:[%s9] sm:$0x1]
  %v2698 = vperm.slane %v2696, 0
  %v2708 = vunpack.c.l.b16 %v2688
  %v2709 = vunpack.c.l.b16 %v2689
  %v2710 = vunpack.c.l.b16 %v2690
  %v2711 = vunpack.c.l.b16 %v2691
  %v2712 = vunpack.c.l.b16 %v2692
  %v2713 = vunpack.c.l.b16 %v2693
  %v2714 = vunpack.c.l.b16 %v2694
  %v2715 = vunpack.c.l.b16 %v2695
  %v2716 = vpack.c.b16 %v2709, %v2708
  %v2717 = vpack.c.b16 %v2711, %v2710
  %v2718 = vpack.c.b16 %v2713, %v2712
  %v2719 = vpack.c.b16 %v2715, %v2714
  %v2725 = vsel %vm451, %v2656, 0
  %v2728 = vsel %vm451, %v2657, 0
  %v2731 = vsel %vm451, %v2658, 0
  %v2734 = vsel %vm451, %v2659, 0
  %v2737 = vsel %vm451, %v2660, 0
  %v2740 = vsel %vm451, %v2661, 0
  %v2743 = vsel %vm451, %v2662, 0
  %v2746 = vsel %vm451, %v2663, 0
  %v2749 = vsel %vm451, %v2664, 0
  %v2752 = vsel %vm451, %v2665, 0
  %v2755 = vsel %vm451, %v2666, 0
  %v2758 = vsel %vm451, %v2667, 0
  %v2761 = vsel %vm451, %v2668, 0
  %v2764 = vsel %vm451, %v2669, 0
  %v2767 = vsel %vm451, %v2670, 0
  %v2770 = vsel %vm451, %v2671, 0
  %v2773 = vsel %vm451, %v2672, 0
  %v2776 = vsel %vm451, %v2673, 0
  %v2779 = vsel %vm451, %v2674, 0
  %v2782 = vsel %vm451, %v2675, 0
  %v2785 = vsel %vm451, %v2676, 0
  %v2788 = vsel %vm451, %v2677, 0
  %v2791 = vsel %vm451, %v2678, 0
  %v2794 = vsel %vm451, %v2679, 0
  %v2797 = vsel %vm451, %v2680, 0
  %v2800 = vsel %vm451, %v2681, 0
  %v2803 = vsel %vm451, %v2682, 0
  %v2806 = vsel %vm451, %v2683, 0
  %v2809 = vsel %vm451, %v2684, 0
  %v2812 = vsel %vm451, %v2685, 0
  %v2815 = vsel %vm451, %v2686, 0
  %v2818 = vsel %vm451, %v2687, 0
  %2820 = vmatpush.bf16.msra.mxu0 0
  %2821 = vmatpush.bf16.msra.mxu0 0
  %2822 = vmatpush.bf16.msra.mxu0 0
  %2823 = vmatpush.bf16.msra.mxu0 0
  %2824 = vmatpush.bf16.msra.mxu0 %v2719
  %2825 = vmatpush.bf16.msra.mxu0 %v2718
  %2826 = vmatpush.bf16.msra.mxu0 %v2717
  %2827 = vmatpush.bf16.msra.mxu0 %v2716
  %2828 = vmatmul.bf16.gmra.mxu0 %v2725
  %v2829 = vpop.f32.mrf.mxu0
  %v2830 = vadd.f32 %v2698, %v2829
  %v2831 = vpop.f32.mrf.mxu0
  %v2832 = vadd.f32 %v2698, %v2831
  %2833 = vmatmul.bf16.gmra.mxu0 %v2728
  %v2834 = vpop.f32.mrf.mxu0
  %v2835 = vadd.f32 %v2698, %v2834
  %v2836 = vpop.f32.mrf.mxu0
  %v2837 = vadd.f32 %v2698, %v2836
  %2838 = vmatmul.bf16.gmra.mxu0 %v2731
  %v2839 = vpop.f32.mrf.mxu0
  %v2840 = vadd.f32 %v2698, %v2839
  %v2841 = vpop.f32.mrf.mxu0
  %v2842 = vadd.f32 %v2698, %v2841
  %2843 = vmatmul.bf16.gmra.mxu0 %v2734
  %v2844 = vpop.f32.mrf.mxu0
  %v2845 = vadd.f32 %v2698, %v2844
  %v2846 = vpop.f32.mrf.mxu0
  %v2847 = vadd.f32 %v2698, %v2846
  %2848 = vmatmul.bf16.gmra.mxu0 %v2737
  %v2849 = vpop.f32.mrf.mxu0
  %v2850 = vadd.f32 %v2698, %v2849
  %v2851 = vpop.f32.mrf.mxu0
  %v2852 = vadd.f32 %v2698, %v2851
  %2853 = vmatmul.bf16.gmra.mxu0 %v2740
  %v2854 = vpop.f32.mrf.mxu0
  %v2855 = vadd.f32 %v2698, %v2854
  %v2856 = vpop.f32.mrf.mxu0
  %v2857 = vadd.f32 %v2698, %v2856
  %2858 = vmatmul.bf16.gmra.mxu0 %v2743
  %v2859 = vpop.f32.mrf.mxu0
  %v2860 = vadd.f32 %v2698, %v2859
  %v2861 = vpop.f32.mrf.mxu0
  %v2862 = vadd.f32 %v2698, %v2861
  %2863 = vmatmul.bf16.gmra.mxu0 %v2746
  %v2864 = vpop.f32.mrf.mxu0
  %v2865 = vadd.f32 %v2698, %v2864
  %v2866 = vpop.f32.mrf.mxu0
  %v2867 = vadd.f32 %v2698, %v2866
  %2868 = vmatmul.bf16.gmra.mxu0 %v2749
  %v2869 = vpop.f32.mrf.mxu0
  %v2870 = vadd.f32 %v2698, %v2869
  %v2871 = vpop.f32.mrf.mxu0
  %v2872 = vadd.f32 %v2698, %v2871
  %2873 = vmatmul.bf16.gmra.mxu0 %v2752
  %v2874 = vpop.f32.mrf.mxu0
  %v2875 = vadd.f32 %v2698, %v2874
  %v2876 = vpop.f32.mrf.mxu0
  %v2877 = vadd.f32 %v2698, %v2876
  %2878 = vmatmul.bf16.gmra.mxu0 %v2755
  %v2879 = vpop.f32.mrf.mxu0
  %v2880 = vadd.f32 %v2698, %v2879
  %v2881 = vpop.f32.mrf.mxu0
  %v2882 = vadd.f32 %v2698, %v2881
  %2883 = vmatmul.bf16.gmra.mxu0 %v2758
  %v2884 = vpop.f32.mrf.mxu0
  %v2885 = vadd.f32 %v2698, %v2884
  %v2886 = vpop.f32.mrf.mxu0
  %v2887 = vadd.f32 %v2698, %v2886
  %2888 = vmatmul.bf16.gmra.mxu0 %v2761
  %v2889 = vpop.f32.mrf.mxu0
  %v2890 = vadd.f32 %v2698, %v2889
  %v2891 = vpop.f32.mrf.mxu0
  %v2892 = vadd.f32 %v2698, %v2891
  %2893 = vmatmul.bf16.gmra.mxu0 %v2764
  %v2894 = vpop.f32.mrf.mxu0
  %v2895 = vadd.f32 %v2698, %v2894
  %v2896 = vpop.f32.mrf.mxu0
  %v2897 = vadd.f32 %v2698, %v2896
  %2898 = vmatmul.bf16.gmra.mxu0 %v2767
  %v2899 = vpop.f32.mrf.mxu0
  %v2900 = vadd.f32 %v2698, %v2899
  %v2901 = vpop.f32.mrf.mxu0
  %v2902 = vadd.f32 %v2698, %v2901
  %2903 = vmatmul.bf16.gmra.mxu0 %v2770
  %v2904 = vpop.f32.mrf.mxu0
  %v2905 = vadd.f32 %v2698, %v2904
  %v2906 = vpop.f32.mrf.mxu0
  %v2907 = vadd.f32 %v2698, %v2906
  %2908 = vmatmul.bf16.gmra.mxu0 %v2773
  %v2909 = vpop.f32.mrf.mxu0
  %v2910 = vadd.f32 %v2698, %v2909
  %v2911 = vpop.f32.mrf.mxu0
  %v2912 = vadd.f32 %v2698, %v2911
  %2913 = vmatmul.bf16.gmra.mxu0 %v2776
  %v2914 = vpop.f32.mrf.mxu0
  %v2915 = vadd.f32 %v2698, %v2914
  %v2916 = vpop.f32.mrf.mxu0
  %v2917 = vadd.f32 %v2698, %v2916
  %2918 = vmatmul.bf16.gmra.mxu0 %v2779
  %v2919 = vpop.f32.mrf.mxu0
  %v2920 = vadd.f32 %v2698, %v2919
  %v2921 = vpop.f32.mrf.mxu0
  %v2922 = vadd.f32 %v2698, %v2921
  %2923 = vmatmul.bf16.gmra.mxu0 %v2782
  %v2924 = vpop.f32.mrf.mxu0
  %v2925 = vadd.f32 %v2698, %v2924
  %v2926 = vpop.f32.mrf.mxu0
  %v2927 = vadd.f32 %v2698, %v2926
  %2928 = vmatmul.bf16.gmra.mxu0 %v2785
  %v2929 = vpop.f32.mrf.mxu0
  %v2930 = vadd.f32 %v2698, %v2929
  %v2931 = vpop.f32.mrf.mxu0
  %v2932 = vadd.f32 %v2698, %v2931
  %2933 = vmatmul.bf16.gmra.mxu0 %v2788
  %v2934 = vpop.f32.mrf.mxu0
  %v2935 = vadd.f32 %v2698, %v2934
  %v2936 = vpop.f32.mrf.mxu0
  %v2937 = vadd.f32 %v2698, %v2936
  %2938 = vmatmul.bf16.gmra.mxu0 %v2791
  %v2939 = vpop.f32.mrf.mxu0
  %v2940 = vadd.f32 %v2698, %v2939
  %v2941 = vpop.f32.mrf.mxu0
  %v2942 = vadd.f32 %v2698, %v2941
  %2943 = vmatmul.bf16.gmra.mxu0 %v2794
  %v2944 = vpop.f32.mrf.mxu0
  %v2945 = vadd.f32 %v2698, %v2944
  %v2946 = vpop.f32.mrf.mxu0
  %v2947 = vadd.f32 %v2698, %v2946
  %2948 = vmatmul.bf16.gmra.mxu0 %v2797
  %v2949 = vpop.f32.mrf.mxu0
  %v2950 = vadd.f32 %v2698, %v2949
  %v2951 = vpop.f32.mrf.mxu0
  %v2952 = vadd.f32 %v2698, %v2951
  %2953 = vmatmul.bf16.gmra.mxu0 %v2800
  %v2954 = vpop.f32.mrf.mxu0
  %v2955 = vadd.f32 %v2698, %v2954
  %v2956 = vpop.f32.mrf.mxu0
  %v2957 = vadd.f32 %v2698, %v2956
  %2958 = vmatmul.bf16.gmra.mxu0 %v2803
  %v2959 = vpop.f32.mrf.mxu0
  %v2960 = vadd.f32 %v2698, %v2959
  %v2961 = vpop.f32.mrf.mxu0
  %v2962 = vadd.f32 %v2698, %v2961
  %2963 = vmatmul.bf16.gmra.mxu0 %v2806
  %v2964 = vpop.f32.mrf.mxu0
  %v2965 = vadd.f32 %v2698, %v2964
  %v2966 = vpop.f32.mrf.mxu0
  %v2967 = vadd.f32 %v2698, %v2966
  %2968 = vmatmul.bf16.gmra.mxu0 %v2809
  %v2969 = vpop.f32.mrf.mxu0
  %v2970 = vadd.f32 %v2698, %v2969
  %v2971 = vpop.f32.mrf.mxu0
  %v2972 = vadd.f32 %v2698, %v2971
  %2973 = vmatmul.bf16.gmra.mxu0 %v2812
  %v2974 = vpop.f32.mrf.mxu0
  %v2975 = vadd.f32 %v2698, %v2974
  %v2976 = vpop.f32.mrf.mxu0
  %v2977 = vadd.f32 %v2698, %v2976
  %2978 = vmatmul.bf16.gmra.mxu0 %v2815
  %v2979 = vpop.f32.mrf.mxu0
  %v2980 = vadd.f32 %v2698, %v2979
  %v2981 = vpop.f32.mrf.mxu0
  %v2982 = vadd.f32 %v2698, %v2981
  %2983 = vmatmul.bf16.gmra.mxu0 %v2818
  %v2984 = vpop.f32.mrf.mxu0
  %v2985 = vadd.f32 %v2698, %v2984
  %v2986 = vpop.f32.mrf.mxu0
  %v2987 = vadd.f32 %v2698, %v2986
  %2988 = vdwg.mxu0
  %vm2989 = vcmp.ge.f32.partialorder %v2830, 0.0
  %vm2990 = vcmp.ge.f32.partialorder %v2832, 0.0
  %vm2991 = vcmp.ge.f32.partialorder %v2835, 0.0
  %vm2992 = vcmp.ge.f32.partialorder %v2837, 0.0
  %vm2993 = vcmp.ge.f32.partialorder %v2840, 0.0
  %vm2994 = vcmp.ge.f32.partialorder %v2842, 0.0
  %vm2995 = vcmp.ge.f32.partialorder %v2845, 0.0
  %vm2996 = vcmp.ge.f32.partialorder %v2847, 0.0
  %vm2997 = vcmp.ge.f32.partialorder %v2850, 0.0
  %vm2998 = vcmp.ge.f32.partialorder %v2852, 0.0
  %vm2999 = vcmp.ge.f32.partialorder %v2855, 0.0
  %vm3000 = vcmp.ge.f32.partialorder %v2857, 0.0
  %vm3001 = vcmp.ge.f32.partialorder %v2860, 0.0
  %vm3002 = vcmp.ge.f32.partialorder %v2862, 0.0
  %vm3003 = vcmp.ge.f32.partialorder %v2865, 0.0
  %vm3004 = vcmp.ge.f32.partialorder %v2867, 0.0
  %vm3005 = vcmp.ge.f32.partialorder %v2870, 0.0
  %vm3006 = vcmp.ge.f32.partialorder %v2872, 0.0
  %vm3007 = vcmp.ge.f32.partialorder %v2875, 0.0
  %vm3008 = vcmp.ge.f32.partialorder %v2877, 0.0
  %vm3009 = vcmp.ge.f32.partialorder %v2880, 0.0
  %vm3010 = vcmp.ge.f32.partialorder %v2882, 0.0
  %vm3011 = vcmp.ge.f32.partialorder %v2885, 0.0
  %vm3012 = vcmp.ge.f32.partialorder %v2887, 0.0
  %vm3013 = vcmp.ge.f32.partialorder %v2890, 0.0
  %vm3014 = vcmp.ge.f32.partialorder %v2892, 0.0
  %vm3015 = vcmp.ge.f32.partialorder %v2895, 0.0
  %vm3016 = vcmp.ge.f32.partialorder %v2897, 0.0
  %vm3017 = vcmp.ge.f32.partialorder %v2900, 0.0
  %vm3018 = vcmp.ge.f32.partialorder %v2902, 0.0
  %vm3019 = vcmp.ge.f32.partialorder %v2905, 0.0
  %vm3020 = vcmp.ge.f32.partialorder %v2907, 0.0
  %vm3021 = vcmp.ge.f32.partialorder %v2910, 0.0
  %vm3022 = vcmp.ge.f32.partialorder %v2912, 0.0
  %vm3023 = vcmp.ge.f32.partialorder %v2915, 0.0
  %vm3024 = vcmp.ge.f32.partialorder %v2917, 0.0
  %vm3025 = vcmp.ge.f32.partialorder %v2920, 0.0
  %vm3026 = vcmp.ge.f32.partialorder %v2922, 0.0
  %vm3027 = vcmp.ge.f32.partialorder %v2925, 0.0
  %vm3028 = vcmp.ge.f32.partialorder %v2927, 0.0
  %vm3029 = vcmp.ge.f32.partialorder %v2930, 0.0
  %vm3030 = vcmp.ge.f32.partialorder %v2932, 0.0
  %vm3031 = vcmp.ge.f32.partialorder %v2935, 0.0
  %vm3032 = vcmp.ge.f32.partialorder %v2937, 0.0
  %vm3033 = vcmp.ge.f32.partialorder %v2940, 0.0
  %vm3034 = vcmp.ge.f32.partialorder %v2942, 0.0
  %vm3035 = vcmp.ge.f32.partialorder %v2945, 0.0
  %vm3036 = vcmp.ge.f32.partialorder %v2947, 0.0
  %vm3037 = vcmp.ge.f32.partialorder %v2950, 0.0
  %vm3038 = vcmp.ge.f32.partialorder %v2952, 0.0
  %vm3039 = vcmp.ge.f32.partialorder %v2955, 0.0
  %vm3040 = vcmp.ge.f32.partialorder %v2957, 0.0
  %vm3041 = vcmp.ge.f32.partialorder %v2960, 0.0
  %vm3042 = vcmp.ge.f32.partialorder %v2962, 0.0
  %vm3043 = vcmp.ge.f32.partialorder %v2965, 0.0
  %vm3044 = vcmp.ge.f32.partialorder %v2967, 0.0
  %vm3045 = vcmp.ge.f32.partialorder %v2970, 0.0
  %vm3046 = vcmp.ge.f32.partialorder %v2972, 0.0
  %vm3047 = vcmp.ge.f32.partialorder %v2975, 0.0
  %vm3048 = vcmp.ge.f32.partialorder %v2977, 0.0
  %vm3049 = vcmp.ge.f32.partialorder %v2980, 0.0
  %vm3050 = vcmp.ge.f32.partialorder %v2982, 0.0
  %vm3051 = vcmp.ge.f32.partialorder %v2985, 0.0
  %vm3052 = vcmp.ge.f32.partialorder %v2987, 0.0
  %v3053 = vmul.f32 %v2830, 0.01
  %v3054 = vmul.f32 %v2832, 0.01
  %v3055 = vmul.f32 %v2835, 0.01
  %v3056 = vmul.f32 %v2837, 0.01
  %v3057 = vmul.f32 %v2840, 0.01
  %v3058 = vmul.f32 %v2842, 0.01
  %v3059 = vmul.f32 %v2845, 0.01
  %v3060 = vmul.f32 %v2847, 0.01
  %v3061 = vmul.f32 %v2850, 0.01
  %v3062 = vmul.f32 %v2852, 0.01
  %v3063 = vmul.f32 %v2855, 0.01
  %v3064 = vmul.f32 %v2857, 0.01
  %v3065 = vmul.f32 %v2860, 0.01
  %v3066 = vmul.f32 %v2862, 0.01
  %v3067 = vmul.f32 %v2865, 0.01
  %v3068 = vmul.f32 %v2867, 0.01
  %v3069 = vmul.f32 %v2870, 0.01
  %v3070 = vmul.f32 %v2872, 0.01
  %v3071 = vmul.f32 %v2875, 0.01
  %v3072 = vmul.f32 %v2877, 0.01
  %v3073 = vmul.f32 %v2880, 0.01
  %v3074 = vmul.f32 %v2882, 0.01
  %v3075 = vmul.f32 %v2885, 0.01
  %v3076 = vmul.f32 %v2887, 0.01
  %v3077 = vmul.f32 %v2890, 0.01
  %v3078 = vmul.f32 %v2892, 0.01
  %v3079 = vmul.f32 %v2895, 0.01
  %v3080 = vmul.f32 %v2897, 0.01
  %v3081 = vmul.f32 %v2900, 0.01
  %v3082 = vmul.f32 %v2902, 0.01
  %v3083 = vmul.f32 %v2905, 0.01
  %v3084 = vmul.f32 %v2907, 0.01
  %v3085 = vmul.f32 %v2910, 0.01
  %v3086 = vmul.f32 %v2912, 0.01
  %v3087 = vmul.f32 %v2915, 0.01
  %v3088 = vmul.f32 %v2917, 0.01
  %v3089 = vmul.f32 %v2920, 0.01
  %v3090 = vmul.f32 %v2922, 0.01
  %v3091 = vmul.f32 %v2925, 0.01
  %v3092 = vmul.f32 %v2927, 0.01
  %v3093 = vmul.f32 %v2930, 0.01
  %v3094 = vmul.f32 %v2932, 0.01
  %v3095 = vmul.f32 %v2935, 0.01
  %v3096 = vmul.f32 %v2937, 0.01
  %v3097 = vmul.f32 %v2940, 0.01
  %v3098 = vmul.f32 %v2942, 0.01
  %v3099 = vmul.f32 %v2945, 0.01
  %v3100 = vmul.f32 %v2947, 0.01
  %v3101 = vmul.f32 %v2950, 0.01
  %v3102 = vmul.f32 %v2952, 0.01
  %v3103 = vmul.f32 %v2955, 0.01
  %v3104 = vmul.f32 %v2957, 0.01
  %v3105 = vmul.f32 %v2960, 0.01
  %v3106 = vmul.f32 %v2962, 0.01
  %v3107 = vmul.f32 %v2965, 0.01
  %v3108 = vmul.f32 %v2967, 0.01
  %v3109 = vmul.f32 %v2970, 0.01
  %v3110 = vmul.f32 %v2972, 0.01
  %v3111 = vmul.f32 %v2975, 0.01
  %v3112 = vmul.f32 %v2977, 0.01
  %v3113 = vmul.f32 %v2980, 0.01
  %v3114 = vmul.f32 %v2982, 0.01
  %v3115 = vmul.f32 %v2985, 0.01
  %v3116 = vmul.f32 %v2987, 0.01
  %v3117 = vsel %vm2989, %v2830, %v3053
  %v3118 = vsel %vm2990, %v2832, %v3054
  %v3119 = vsel %vm2991, %v2835, %v3055
  %v3120 = vsel %vm2992, %v2837, %v3056
  %v3121 = vsel %vm2993, %v2840, %v3057
  %v3122 = vsel %vm2994, %v2842, %v3058
  %v3123 = vsel %vm2995, %v2845, %v3059
  %v3124 = vsel %vm2996, %v2847, %v3060
  %v3125 = vsel %vm2997, %v2850, %v3061
  %v3126 = vsel %vm2998, %v2852, %v3062
  %v3127 = vsel %vm2999, %v2855, %v3063
  %v3128 = vsel %vm3000, %v2857, %v3064
  %v3129 = vsel %vm3001, %v2860, %v3065
  %v3130 = vsel %vm3002, %v2862, %v3066
  %v3131 = vsel %vm3003, %v2865, %v3067
  %v3132 = vsel %vm3004, %v2867, %v3068
  %v3133 = vsel %vm3005, %v2870, %v3069
  %v3134 = vsel %vm3006, %v2872, %v3070
  %v3135 = vsel %vm3007, %v2875, %v3071
  %v3136 = vsel %vm3008, %v2877, %v3072
  %v3137 = vsel %vm3009, %v2880, %v3073
  %v3138 = vsel %vm3010, %v2882, %v3074
  %v3139 = vsel %vm3011, %v2885, %v3075
  %v3140 = vsel %vm3012, %v2887, %v3076
  %v3141 = vsel %vm3013, %v2890, %v3077
  %v3142 = vsel %vm3014, %v2892, %v3078
  %v3143 = vsel %vm3015, %v2895, %v3079
  %v3144 = vsel %vm3016, %v2897, %v3080
  %v3145 = vsel %vm3017, %v2900, %v3081
  %v3146 = vsel %vm3018, %v2902, %v3082
  %v3147 = vsel %vm3019, %v2905, %v3083
  %v3148 = vsel %vm3020, %v2907, %v3084
  %v3149 = vsel %vm3021, %v2910, %v3085
  %v3150 = vsel %vm3022, %v2912, %v3086
  %v3151 = vsel %vm3023, %v2915, %v3087
  %v3152 = vsel %vm3024, %v2917, %v3088
  %v3153 = vsel %vm3025, %v2920, %v3089
  %v3154 = vsel %vm3026, %v2922, %v3090
  %v3155 = vsel %vm3027, %v2925, %v3091
  %v3156 = vsel %vm3028, %v2927, %v3092
  %v3157 = vsel %vm3029, %v2930, %v3093
  %v3158 = vsel %vm3030, %v2932, %v3094
  %v3159 = vsel %vm3031, %v2935, %v3095
  %v3160 = vsel %vm3032, %v2937, %v3096
  %v3161 = vsel %vm3033, %v2940, %v3097
  %v3162 = vsel %vm3034, %v2942, %v3098
  %v3163 = vsel %vm3035, %v2945, %v3099
  %v3164 = vsel %vm3036, %v2947, %v3100
  %v3165 = vsel %vm3037, %v2950, %v3101
  %v3166 = vsel %vm3038, %v2952, %v3102
  %v3167 = vsel %vm3039, %v2955, %v3103
  %v3168 = vsel %vm3040, %v2957, %v3104
  %v3169 = vsel %vm3041, %v2960, %v3105
  %v3170 = vsel %vm3042, %v2962, %v3106
  %v3171 = vsel %vm3043, %v2965, %v3107
  %v3172 = vsel %vm3044, %v2967, %v3108
  %v3173 = vsel %vm3045, %v2970, %v3109
  %v3174 = vsel %vm3046, %v2972, %v3110
  %v3175 = vsel %vm3047, %v2975, %v3111
  %v3176 = vsel %vm3048, %v2977, %v3112
  %v3177 = vsel %vm3049, %v2980, %v3113
  %v3178 = vsel %vm3050, %v2982, %v3114
  %v3179 = vsel %vm3051, %v2985, %v3115
  %v3180 = vsel %vm3052, %v2987, %v3116
  %v3181 = vpack.c.bf16 %v3118, %v3117
  %v3182 = vpack.c.bf16 %v3120, %v3119
  %v3183 = vpack.c.bf16 %v3122, %v3121
  %v3184 = vpack.c.bf16 %v3124, %v3123
  %v3185 = vpack.c.bf16 %v3126, %v3125
  %v3186 = vpack.c.bf16 %v3128, %v3127
  %v3187 = vpack.c.bf16 %v3130, %v3129
  %v3188 = vpack.c.bf16 %v3132, %v3131
  %v3189 = vpack.c.bf16 %v3134, %v3133
  %v3190 = vpack.c.bf16 %v3136, %v3135
  %v3191 = vpack.c.bf16 %v3138, %v3137
  %v3192 = vpack.c.bf16 %v3140, %v3139
  %v3193 = vpack.c.bf16 %v3142, %v3141
  %v3194 = vpack.c.bf16 %v3144, %v3143
  %v3195 = vpack.c.bf16 %v3146, %v3145
  %v3196 = vpack.c.bf16 %v3148, %v3147
  %v3197 = vpack.c.bf16 %v3150, %v3149
  %v3198 = vpack.c.bf16 %v3152, %v3151
  %v3199 = vpack.c.bf16 %v3154, %v3153
  %v3200 = vpack.c.bf16 %v3156, %v3155
  %v3201 = vpack.c.bf16 %v3158, %v3157
  %v3202 = vpack.c.bf16 %v3160, %v3159
  %v3203 = vpack.c.bf16 %v3162, %v3161
  %v3204 = vpack.c.bf16 %v3164, %v3163
  %v3205 = vpack.c.bf16 %v3166, %v3165
  %v3206 = vpack.c.bf16 %v3168, %v3167
  %v3207 = vpack.c.bf16 %v3170, %v3169
  %v3208 = vpack.c.bf16 %v3172, %v3171
  %v3209 = vpack.c.bf16 %v3174, %v3173
  %v3210 = vpack.c.bf16 %v3176, %v3175
  %v3211 = vpack.c.bf16 %v3178, %v3177
  %v3212 = vpack.c.bf16 %v3180, %v3179
  %v3213 = vld [vmem:[%s10] sm:$0xf]
  %v3214 = vld [vmem:[%s10 + $0x4] sm:$0xf]
  %v3215 = vld [vmem:[%s10 + $0x8] sm:$0xf]
  %v3216 = vld [vmem:[%s10 + $0xc] sm:$0xf]
  %v3217 = vld [vmem:[%s10 + $0x10] sm:$0xf]
  %v3218 = vld [vmem:[%s10 + $0x14] sm:$0xf]
  %v3219 = vld [vmem:[%s10 + $0x18] sm:$0xf]
  %v3220 = vld [vmem:[%s10 + $0x1c] sm:$0xf]
  %v3221 = vld [vmem:[%s11] sm:$0x1]
  %v3223 = vperm.slane %v3221, 0
  %v3233 = vunpack.c.l.b16 %v3213
  %v3234 = vunpack.c.l.b16 %v3214
  %v3235 = vunpack.c.l.b16 %v3215
  %v3236 = vunpack.c.l.b16 %v3216
  %v3237 = vunpack.c.l.b16 %v3217
  %v3238 = vunpack.c.l.b16 %v3218
  %v3239 = vunpack.c.l.b16 %v3219
  %v3240 = vunpack.c.l.b16 %v3220
  %v3241 = vpack.c.b16 %v3234, %v3233
  %v3242 = vpack.c.b16 %v3236, %v3235
  %v3243 = vpack.c.b16 %v3238, %v3237
  %v3244 = vpack.c.b16 %v3240, %v3239
  %v3250 = vsel %vm451, %v3181, 0
  %v3253 = vsel %vm451, %v3182, 0
  %v3256 = vsel %vm451, %v3183, 0
  %v3259 = vsel %vm451, %v3184, 0
  %v3262 = vsel %vm451, %v3185, 0
  %v3265 = vsel %vm451, %v3186, 0
  %v3268 = vsel %vm451, %v3187, 0
  %v3271 = vsel %vm451, %v3188, 0
  %v3274 = vsel %vm451, %v3189, 0
  %v3277 = vsel %vm451, %v3190, 0
  %v3280 = vsel %vm451, %v3191, 0
  %v3283 = vsel %vm451, %v3192, 0
  %v3286 = vsel %vm451, %v3193, 0
  %v3289 = vsel %vm451, %v3194, 0
  %v3292 = vsel %vm451, %v3195, 0
  %v3295 = vsel %vm451, %v3196, 0
  %v3298 = vsel %vm451, %v3197, 0
  %v3301 = vsel %vm451, %v3198, 0
  %v3304 = vsel %vm451, %v3199, 0
  %v3307 = vsel %vm451, %v3200, 0
  %v3310 = vsel %vm451, %v3201, 0
  %v3313 = vsel %vm451, %v3202, 0
  %v3316 = vsel %vm451, %v3203, 0
  %v3319 = vsel %vm451, %v3204, 0
  %v3322 = vsel %vm451, %v3205, 0
  %v3325 = vsel %vm451, %v3206, 0
  %v3328 = vsel %vm451, %v3207, 0
  %v3331 = vsel %vm451, %v3208, 0
  %v3334 = vsel %vm451, %v3209, 0
  %v3337 = vsel %vm451, %v3210, 0
  %v3340 = vsel %vm451, %v3211, 0
  %v3343 = vsel %vm451, %v3212, 0
  %3345 = vmatpush.bf16.msra.mxu0 0
  %3346 = vmatpush.bf16.msra.mxu0 0
  %3347 = vmatpush.bf16.msra.mxu0 0
  %3348 = vmatpush.bf16.msra.mxu0 0
  %3349 = vmatpush.bf16.msra.mxu0 %v3244
  %3350 = vmatpush.bf16.msra.mxu0 %v3243
  %3351 = vmatpush.bf16.msra.mxu0 %v3242
  %3352 = vmatpush.bf16.msra.mxu0 %v3241
  %3353 = vmatmul.bf16.gmra.mxu0 %v3250
  %v3354 = vpop.f32.mrf.mxu0
  %v3355 = vadd.f32 %v3223, %v3354
  %v3356 = vpop.f32.mrf.mxu0
  %v3357 = vadd.f32 %v3223, %v3356
  %3358 = vmatmul.bf16.gmra.mxu0 %v3253
  %v3359 = vpop.f32.mrf.mxu0
  %v3360 = vadd.f32 %v3223, %v3359
  %v3361 = vpop.f32.mrf.mxu0
  %v3362 = vadd.f32 %v3223, %v3361
  %3363 = vmatmul.bf16.gmra.mxu0 %v3256
  %v3364 = vpop.f32.mrf.mxu0
  %v3365 = vadd.f32 %v3223, %v3364
  %v3366 = vpop.f32.mrf.mxu0
  %v3367 = vadd.f32 %v3223, %v3366
  %3368 = vmatmul.bf16.gmra.mxu0 %v3259
  %v3369 = vpop.f32.mrf.mxu0
  %v3370 = vadd.f32 %v3223, %v3369
  %v3371 = vpop.f32.mrf.mxu0
  %v3372 = vadd.f32 %v3223, %v3371
  %3373 = vmatmul.bf16.gmra.mxu0 %v3262
  %v3374 = vpop.f32.mrf.mxu0
  %v3375 = vadd.f32 %v3223, %v3374
  %v3376 = vpop.f32.mrf.mxu0
  %v3377 = vadd.f32 %v3223, %v3376
  %3378 = vmatmul.bf16.gmra.mxu0 %v3265
  %v3379 = vpop.f32.mrf.mxu0
  %v3380 = vadd.f32 %v3223, %v3379
  %v3381 = vpop.f32.mrf.mxu0
  %v3382 = vadd.f32 %v3223, %v3381
  %3383 = vmatmul.bf16.gmra.mxu0 %v3268
  %v3384 = vpop.f32.mrf.mxu0
  %v3385 = vadd.f32 %v3223, %v3384
  %v3386 = vpop.f32.mrf.mxu0
  %v3387 = vadd.f32 %v3223, %v3386
  %3388 = vmatmul.bf16.gmra.mxu0 %v3271
  %v3389 = vpop.f32.mrf.mxu0
  %v3390 = vadd.f32 %v3223, %v3389
  %v3391 = vpop.f32.mrf.mxu0
  %v3392 = vadd.f32 %v3223, %v3391
  %3393 = vmatmul.bf16.gmra.mxu0 %v3274
  %v3394 = vpop.f32.mrf.mxu0
  %v3395 = vadd.f32 %v3223, %v3394
  %v3396 = vpop.f32.mrf.mxu0
  %v3397 = vadd.f32 %v3223, %v3396
  %3398 = vmatmul.bf16.gmra.mxu0 %v3277
  %v3399 = vpop.f32.mrf.mxu0
  %v3400 = vadd.f32 %v3223, %v3399
  %v3401 = vpop.f32.mrf.mxu0
  %v3402 = vadd.f32 %v3223, %v3401
  %3403 = vmatmul.bf16.gmra.mxu0 %v3280
  %v3404 = vpop.f32.mrf.mxu0
  %v3405 = vadd.f32 %v3223, %v3404
  %v3406 = vpop.f32.mrf.mxu0
  %v3407 = vadd.f32 %v3223, %v3406
  %3408 = vmatmul.bf16.gmra.mxu0 %v3283
  %v3409 = vpop.f32.mrf.mxu0
  %v3410 = vadd.f32 %v3223, %v3409
  %v3411 = vpop.f32.mrf.mxu0
  %v3412 = vadd.f32 %v3223, %v3411
  %3413 = vmatmul.bf16.gmra.mxu0 %v3286
  %v3414 = vpop.f32.mrf.mxu0
  %v3415 = vadd.f32 %v3223, %v3414
  %v3416 = vpop.f32.mrf.mxu0
  %v3417 = vadd.f32 %v3223, %v3416
  %3418 = vmatmul.bf16.gmra.mxu0 %v3289
  %v3419 = vpop.f32.mrf.mxu0
  %v3420 = vadd.f32 %v3223, %v3419
  %v3421 = vpop.f32.mrf.mxu0
  %v3422 = vadd.f32 %v3223, %v3421
  %3423 = vmatmul.bf16.gmra.mxu0 %v3292
  %v3424 = vpop.f32.mrf.mxu0
  %v3425 = vadd.f32 %v3223, %v3424
  %v3426 = vpop.f32.mrf.mxu0
  %v3427 = vadd.f32 %v3223, %v3426
  %3428 = vmatmul.bf16.gmra.mxu0 %v3295
  %v3429 = vpop.f32.mrf.mxu0
  %v3430 = vadd.f32 %v3223, %v3429
  %v3431 = vpop.f32.mrf.mxu0
  %v3432 = vadd.f32 %v3223, %v3431
  %3433 = vmatmul.bf16.gmra.mxu0 %v3298
  %v3434 = vpop.f32.mrf.mxu0
  %v3435 = vadd.f32 %v3223, %v3434
  %v3436 = vpop.f32.mrf.mxu0
  %v3437 = vadd.f32 %v3223, %v3436
  %3438 = vmatmul.bf16.gmra.mxu0 %v3301
  %v3439 = vpop.f32.mrf.mxu0
  %v3440 = vadd.f32 %v3223, %v3439
  %v3441 = vpop.f32.mrf.mxu0
  %v3442 = vadd.f32 %v3223, %v3441
  %3443 = vmatmul.bf16.gmra.mxu0 %v3304
  %v3444 = vpop.f32.mrf.mxu0
  %v3445 = vadd.f32 %v3223, %v3444
  %v3446 = vpop.f32.mrf.mxu0
  %v3447 = vadd.f32 %v3223, %v3446
  %3448 = vmatmul.bf16.gmra.mxu0 %v3307
  %v3449 = vpop.f32.mrf.mxu0
  %v3450 = vadd.f32 %v3223, %v3449
  %v3451 = vpop.f32.mrf.mxu0
  %v3452 = vadd.f32 %v3223, %v3451
  %3453 = vmatmul.bf16.gmra.mxu0 %v3310
  %v3454 = vpop.f32.mrf.mxu0
  %v3455 = vadd.f32 %v3223, %v3454
  %v3456 = vpop.f32.mrf.mxu0
  %v3457 = vadd.f32 %v3223, %v3456
  %3458 = vmatmul.bf16.gmra.mxu0 %v3313
  %v3459 = vpop.f32.mrf.mxu0
  %v3460 = vadd.f32 %v3223, %v3459
  %v3461 = vpop.f32.mrf.mxu0
  %v3462 = vadd.f32 %v3223, %v3461
  %3463 = vmatmul.bf16.gmra.mxu0 %v3316
  %v3464 = vpop.f32.mrf.mxu0
  %v3465 = vadd.f32 %v3223, %v3464
  %v3466 = vpop.f32.mrf.mxu0
  %v3467 = vadd.f32 %v3223, %v3466
  %3468 = vmatmul.bf16.gmra.mxu0 %v3319
  %v3469 = vpop.f32.mrf.mxu0
  %v3470 = vadd.f32 %v3223, %v3469
  %v3471 = vpop.f32.mrf.mxu0
  %v3472 = vadd.f32 %v3223, %v3471
  %3473 = vmatmul.bf16.gmra.mxu0 %v3322
  %v3474 = vpop.f32.mrf.mxu0
  %v3475 = vadd.f32 %v3223, %v3474
  %v3476 = vpop.f32.mrf.mxu0
  %v3477 = vadd.f32 %v3223, %v3476
  %3478 = vmatmul.bf16.gmra.mxu0 %v3325
  %v3479 = vpop.f32.mrf.mxu0
  %v3480 = vadd.f32 %v3223, %v3479
  %v3481 = vpop.f32.mrf.mxu0
  %v3482 = vadd.f32 %v3223, %v3481
  %3483 = vmatmul.bf16.gmra.mxu0 %v3328
  %v3484 = vpop.f32.mrf.mxu0
  %v3485 = vadd.f32 %v3223, %v3484
  %v3486 = vpop.f32.mrf.mxu0
  %v3487 = vadd.f32 %v3223, %v3486
  %3488 = vmatmul.bf16.gmra.mxu0 %v3331
  %v3489 = vpop.f32.mrf.mxu0
  %v3490 = vadd.f32 %v3223, %v3489
  %v3491 = vpop.f32.mrf.mxu0
  %v3492 = vadd.f32 %v3223, %v3491
  %3493 = vmatmul.bf16.gmra.mxu0 %v3334
  %v3494 = vpop.f32.mrf.mxu0
  %v3495 = vadd.f32 %v3223, %v3494
  %v3496 = vpop.f32.mrf.mxu0
  %v3497 = vadd.f32 %v3223, %v3496
  %3498 = vmatmul.bf16.gmra.mxu0 %v3337
  %v3499 = vpop.f32.mrf.mxu0
  %v3500 = vadd.f32 %v3223, %v3499
  %v3501 = vpop.f32.mrf.mxu0
  %v3502 = vadd.f32 %v3223, %v3501
  %3503 = vmatmul.bf16.gmra.mxu0 %v3340
  %v3504 = vpop.f32.mrf.mxu0
  %v3505 = vadd.f32 %v3223, %v3504
  %v3506 = vpop.f32.mrf.mxu0
  %v3507 = vadd.f32 %v3223, %v3506
  %3508 = vmatmul.bf16.gmra.mxu0 %v3343
  %v3509 = vpop.f32.mrf.mxu0
  %v3510 = vadd.f32 %v3223, %v3509
  %v3511 = vpop.f32.mrf.mxu0
  %v3512 = vadd.f32 %v3223, %v3511
  %3513 = vdwg.mxu0
  %vm3514 = vcmp.ge.f32.partialorder %v3355, 0.0
  %vm3515 = vcmp.ge.f32.partialorder %v3357, 0.0
  %vm3516 = vcmp.ge.f32.partialorder %v3360, 0.0
  %vm3517 = vcmp.ge.f32.partialorder %v3362, 0.0
  %vm3518 = vcmp.ge.f32.partialorder %v3365, 0.0
  %vm3519 = vcmp.ge.f32.partialorder %v3367, 0.0
  %vm3520 = vcmp.ge.f32.partialorder %v3370, 0.0
  %vm3521 = vcmp.ge.f32.partialorder %v3372, 0.0
  %vm3522 = vcmp.ge.f32.partialorder %v3375, 0.0
  %vm3523 = vcmp.ge.f32.partialorder %v3377, 0.0
  %vm3524 = vcmp.ge.f32.partialorder %v3380, 0.0
  %vm3525 = vcmp.ge.f32.partialorder %v3382, 0.0
  %vm3526 = vcmp.ge.f32.partialorder %v3385, 0.0
  %vm3527 = vcmp.ge.f32.partialorder %v3387, 0.0
  %vm3528 = vcmp.ge.f32.partialorder %v3390, 0.0
  %vm3529 = vcmp.ge.f32.partialorder %v3392, 0.0
  %vm3530 = vcmp.ge.f32.partialorder %v3395, 0.0
  %vm3531 = vcmp.ge.f32.partialorder %v3397, 0.0
  %vm3532 = vcmp.ge.f32.partialorder %v3400, 0.0
  %vm3533 = vcmp.ge.f32.partialorder %v3402, 0.0
  %vm3534 = vcmp.ge.f32.partialorder %v3405, 0.0
  %vm3535 = vcmp.ge.f32.partialorder %v3407, 0.0
  %vm3536 = vcmp.ge.f32.partialorder %v3410, 0.0
  %vm3537 = vcmp.ge.f32.partialorder %v3412, 0.0
  %vm3538 = vcmp.ge.f32.partialorder %v3415, 0.0
  %vm3539 = vcmp.ge.f32.partialorder %v3417, 0.0
  %vm3540 = vcmp.ge.f32.partialorder %v3420, 0.0
  %vm3541 = vcmp.ge.f32.partialorder %v3422, 0.0
  %vm3542 = vcmp.ge.f32.partialorder %v3425, 0.0
  %vm3543 = vcmp.ge.f32.partialorder %v3427, 0.0
  %vm3544 = vcmp.ge.f32.partialorder %v3430, 0.0
  %vm3545 = vcmp.ge.f32.partialorder %v3432, 0.0
  %vm3546 = vcmp.ge.f32.partialorder %v3435, 0.0
  %vm3547 = vcmp.ge.f32.partialorder %v3437, 0.0
  %vm3548 = vcmp.ge.f32.partialorder %v3440, 0.0
  %vm3549 = vcmp.ge.f32.partialorder %v3442, 0.0
  %vm3550 = vcmp.ge.f32.partialorder %v3445, 0.0
  %vm3551 = vcmp.ge.f32.partialorder %v3447, 0.0
  %vm3552 = vcmp.ge.f32.partialorder %v3450, 0.0
  %vm3553 = vcmp.ge.f32.partialorder %v3452, 0.0
  %vm3554 = vcmp.ge.f32.partialorder %v3455, 0.0
  %vm3555 = vcmp.ge.f32.partialorder %v3457, 0.0
  %vm3556 = vcmp.ge.f32.partialorder %v3460, 0.0
  %vm3557 = vcmp.ge.f32.partialorder %v3462, 0.0
  %vm3558 = vcmp.ge.f32.partialorder %v3465, 0.0
  %vm3559 = vcmp.ge.f32.partialorder %v3467, 0.0
  %vm3560 = vcmp.ge.f32.partialorder %v3470, 0.0
  %vm3561 = vcmp.ge.f32.partialorder %v3472, 0.0
  %vm3562 = vcmp.ge.f32.partialorder %v3475, 0.0
  %vm3563 = vcmp.ge.f32.partialorder %v3477, 0.0
  %vm3564 = vcmp.ge.f32.partialorder %v3480, 0.0
  %vm3565 = vcmp.ge.f32.partialorder %v3482, 0.0
  %vm3566 = vcmp.ge.f32.partialorder %v3485, 0.0
  %vm3567 = vcmp.ge.f32.partialorder %v3487, 0.0
  %vm3568 = vcmp.ge.f32.partialorder %v3490, 0.0
  %vm3569 = vcmp.ge.f32.partialorder %v3492, 0.0
  %vm3570 = vcmp.ge.f32.partialorder %v3495, 0.0
  %vm3571 = vcmp.ge.f32.partialorder %v3497, 0.0
  %vm3572 = vcmp.ge.f32.partialorder %v3500, 0.0
  %vm3573 = vcmp.ge.f32.partialorder %v3502, 0.0
  %vm3574 = vcmp.ge.f32.partialorder %v3505, 0.0
  %vm3575 = vcmp.ge.f32.partialorder %v3507, 0.0
  %vm3576 = vcmp.ge.f32.partialorder %v3510, 0.0
  %vm3577 = vcmp.ge.f32.partialorder %v3512, 0.0
  %v3578 = vmul.f32 %v3355, 0.01
  %v3579 = vmul.f32 %v3357, 0.01
  %v3580 = vmul.f32 %v3360, 0.01
  %v3581 = vmul.f32 %v3362, 0.01
  %v3582 = vmul.f32 %v3365, 0.01
  %v3583 = vmul.f32 %v3367, 0.01
  %v3584 = vmul.f32 %v3370, 0.01
  %v3585 = vmul.f32 %v3372, 0.01
  %v3586 = vmul.f32 %v3375, 0.01
  %v3587 = vmul.f32 %v3377, 0.01
  %v3588 = vmul.f32 %v3380, 0.01
  %v3589 = vmul.f32 %v3382, 0.01
  %v3590 = vmul.f32 %v3385, 0.01
  %v3591 = vmul.f32 %v3387, 0.01
  %v3592 = vmul.f32 %v3390, 0.01
  %v3593 = vmul.f32 %v3392, 0.01
  %v3594 = vmul.f32 %v3395, 0.01
  %v3595 = vmul.f32 %v3397, 0.01
  %v3596 = vmul.f32 %v3400, 0.01
  %v3597 = vmul.f32 %v3402, 0.01
  %v3598 = vmul.f32 %v3405, 0.01
  %v3599 = vmul.f32 %v3407, 0.01
  %v3600 = vmul.f32 %v3410, 0.01
  %v3601 = vmul.f32 %v3412, 0.01
  %v3602 = vmul.f32 %v3415, 0.01
  %v3603 = vmul.f32 %v3417, 0.01
  %v3604 = vmul.f32 %v3420, 0.01
  %v3605 = vmul.f32 %v3422, 0.01
  %v3606 = vmul.f32 %v3425, 0.01
  %v3607 = vmul.f32 %v3427, 0.01
  %v3608 = vmul.f32 %v3430, 0.01
  %v3609 = vmul.f32 %v3432, 0.01
  %v3610 = vmul.f32 %v3435, 0.01
  %v3611 = vmul.f32 %v3437, 0.01
  %v3612 = vmul.f32 %v3440, 0.01
  %v3613 = vmul.f32 %v3442, 0.01
  %v3614 = vmul.f32 %v3445, 0.01
  %v3615 = vmul.f32 %v3447, 0.01
  %v3616 = vmul.f32 %v3450, 0.01
  %v3617 = vmul.f32 %v3452, 0.01
  %v3618 = vmul.f32 %v3455, 0.01
  %v3619 = vmul.f32 %v3457, 0.01
  %v3620 = vmul.f32 %v3460, 0.01
  %v3621 = vmul.f32 %v3462, 0.01
  %v3622 = vmul.f32 %v3465, 0.01
  %v3623 = vmul.f32 %v3467, 0.01
  %v3624 = vmul.f32 %v3470, 0.01
  %v3625 = vmul.f32 %v3472, 0.01
  %v3626 = vmul.f32 %v3475, 0.01
  %v3627 = vmul.f32 %v3477, 0.01
  %v3628 = vmul.f32 %v3480, 0.01
  %v3629 = vmul.f32 %v3482, 0.01
  %v3630 = vmul.f32 %v3485, 0.01
  %v3631 = vmul.f32 %v3487, 0.01
  %v3632 = vmul.f32 %v3490, 0.01
  %v3633 = vmul.f32 %v3492, 0.01
  %v3634 = vmul.f32 %v3495, 0.01
  %v3635 = vmul.f32 %v3497, 0.01
  %v3636 = vmul.f32 %v3500, 0.01
  %v3637 = vmul.f32 %v3502, 0.01
  %v3638 = vmul.f32 %v3505, 0.01
  %v3639 = vmul.f32 %v3507, 0.01
  %v3640 = vmul.f32 %v3510, 0.01
  %v3641 = vmul.f32 %v3512, 0.01
  %v3642 = vsel %vm3514, %v3355, %v3578
  %v3643 = vsel %vm3515, %v3357, %v3579
  %v3644 = vsel %vm3516, %v3360, %v3580
  %v3645 = vsel %vm3517, %v3362, %v3581
  %v3646 = vsel %vm3518, %v3365, %v3582
  %v3647 = vsel %vm3519, %v3367, %v3583
  %v3648 = vsel %vm3520, %v3370, %v3584
  %v3649 = vsel %vm3521, %v3372, %v3585
  %v3650 = vsel %vm3522, %v3375, %v3586
  %v3651 = vsel %vm3523, %v3377, %v3587
  %v3652 = vsel %vm3524, %v3380, %v3588
  %v3653 = vsel %vm3525, %v3382, %v3589
  %v3654 = vsel %vm3526, %v3385, %v3590
  %v3655 = vsel %vm3527, %v3387, %v3591
  %v3656 = vsel %vm3528, %v3390, %v3592
  %v3657 = vsel %vm3529, %v3392, %v3593
  %v3658 = vsel %vm3530, %v3395, %v3594
  %v3659 = vsel %vm3531, %v3397, %v3595
  %v3660 = vsel %vm3532, %v3400, %v3596
  %v3661 = vsel %vm3533, %v3402, %v3597
  %v3662 = vsel %vm3534, %v3405, %v3598
  %v3663 = vsel %vm3535, %v3407, %v3599
  %v3664 = vsel %vm3536, %v3410, %v3600
  %v3665 = vsel %vm3537, %v3412, %v3601
  %v3666 = vsel %vm3538, %v3415, %v3602
  %v3667 = vsel %vm3539, %v3417, %v3603
  %v3668 = vsel %vm3540, %v3420, %v3604
  %v3669 = vsel %vm3541, %v3422, %v3605
  %v3670 = vsel %vm3542, %v3425, %v3606
  %v3671 = vsel %vm3543, %v3427, %v3607
  %v3672 = vsel %vm3544, %v3430, %v3608
  %v3673 = vsel %vm3545, %v3432, %v3609
  %v3674 = vsel %vm3546, %v3435, %v3610
  %v3675 = vsel %vm3547, %v3437, %v3611
  %v3676 = vsel %vm3548, %v3440, %v3612
  %v3677 = vsel %vm3549, %v3442, %v3613
  %v3678 = vsel %vm3550, %v3445, %v3614
  %v3679 = vsel %vm3551, %v3447, %v3615
  %v3680 = vsel %vm3552, %v3450, %v3616
  %v3681 = vsel %vm3553, %v3452, %v3617
  %v3682 = vsel %vm3554, %v3455, %v3618
  %v3683 = vsel %vm3555, %v3457, %v3619
  %v3684 = vsel %vm3556, %v3460, %v3620
  %v3685 = vsel %vm3557, %v3462, %v3621
  %v3686 = vsel %vm3558, %v3465, %v3622
  %v3687 = vsel %vm3559, %v3467, %v3623
  %v3688 = vsel %vm3560, %v3470, %v3624
  %v3689 = vsel %vm3561, %v3472, %v3625
  %v3690 = vsel %vm3562, %v3475, %v3626
  %v3691 = vsel %vm3563, %v3477, %v3627
  %v3692 = vsel %vm3564, %v3480, %v3628
  %v3693 = vsel %vm3565, %v3482, %v3629
  %v3694 = vsel %vm3566, %v3485, %v3630
  %v3695 = vsel %vm3567, %v3487, %v3631
  %v3696 = vsel %vm3568, %v3490, %v3632
  %v3697 = vsel %vm3569, %v3492, %v3633
  %v3698 = vsel %vm3570, %v3495, %v3634
  %v3699 = vsel %vm3571, %v3497, %v3635
  %v3700 = vsel %vm3572, %v3500, %v3636
  %v3701 = vsel %vm3573, %v3502, %v3637
  %v3702 = vsel %vm3574, %v3505, %v3638
  %v3703 = vsel %vm3575, %v3507, %v3639
  %v3704 = vsel %vm3576, %v3510, %v3640
  %v3705 = vsel %vm3577, %v3512, %v3641
  %v3706 = vpack.c.bf16 %v3643, %v3642
  %v3707 = vpack.c.bf16 %v3645, %v3644
  %v3708 = vpack.c.bf16 %v3647, %v3646
  %v3709 = vpack.c.bf16 %v3649, %v3648
  %v3710 = vpack.c.bf16 %v3651, %v3650
  %v3711 = vpack.c.bf16 %v3653, %v3652
  %v3712 = vpack.c.bf16 %v3655, %v3654
  %v3713 = vpack.c.bf16 %v3657, %v3656
  %v3714 = vpack.c.bf16 %v3659, %v3658
  %v3715 = vpack.c.bf16 %v3661, %v3660
  %v3716 = vpack.c.bf16 %v3663, %v3662
  %v3717 = vpack.c.bf16 %v3665, %v3664
  %v3718 = vpack.c.bf16 %v3667, %v3666
  %v3719 = vpack.c.bf16 %v3669, %v3668
  %v3720 = vpack.c.bf16 %v3671, %v3670
  %v3721 = vpack.c.bf16 %v3673, %v3672
  %v3722 = vpack.c.bf16 %v3675, %v3674
  %v3723 = vpack.c.bf16 %v3677, %v3676
  %v3724 = vpack.c.bf16 %v3679, %v3678
  %v3725 = vpack.c.bf16 %v3681, %v3680
  %v3726 = vpack.c.bf16 %v3683, %v3682
  %v3727 = vpack.c.bf16 %v3685, %v3684
  %v3728 = vpack.c.bf16 %v3687, %v3686
  %v3729 = vpack.c.bf16 %v3689, %v3688
  %v3730 = vpack.c.bf16 %v3691, %v3690
  %v3731 = vpack.c.bf16 %v3693, %v3692
  %v3732 = vpack.c.bf16 %v3695, %v3694
  %v3733 = vpack.c.bf16 %v3697, %v3696
  %v3734 = vpack.c.bf16 %v3699, %v3698
  %v3735 = vpack.c.bf16 %v3701, %v3700
  %v3736 = vpack.c.bf16 %v3703, %v3702
  %v3737 = vpack.c.bf16 %v3705, %v3704
  %v3738 = vld [vmem:[%s12] sm:$0xf]
  %v3739 = vld [vmem:[%s12 + $0x4] sm:$0xf]
  %v3740 = vld [vmem:[%s12 + $0x8] sm:$0xf]
  %v3741 = vld [vmem:[%s12 + $0xc] sm:$0xf]
  %v3742 = vld [vmem:[%s12 + $0x10] sm:$0xf]
  %v3743 = vld [vmem:[%s12 + $0x14] sm:$0xf]
  %v3744 = vld [vmem:[%s12 + $0x18] sm:$0xf]
  %v3745 = vld [vmem:[%s12 + $0x1c] sm:$0xf]
  %v3746 = vld [vmem:[%s14] sm:$0xf]
  %v3747 = vld [vmem:[%s14 + $0x4] sm:$0xf]
  %v3748 = vld [vmem:[%s14 + $0x8] sm:$0xf]
  %v3749 = vld [vmem:[%s14 + $0xc] sm:$0xf]
  %v3750 = vld [vmem:[%s14 + $0x10] sm:$0xf]
  %v3751 = vld [vmem:[%s14 + $0x14] sm:$0xf]
  %v3752 = vld [vmem:[%s14 + $0x18] sm:$0xf]
  %v3753 = vld [vmem:[%s14 + $0x1c] sm:$0xf]
  %v3762 = vunpack.c.l.b16 %v3746
  %v3763 = vunpack.c.l.b16 %v3747
  %v3764 = vunpack.c.l.b16 %v3748
  %v3765 = vunpack.c.l.b16 %v3749
  %v3766 = vunpack.c.l.b16 %v3750
  %v3767 = vunpack.c.l.b16 %v3751
  %v3768 = vunpack.c.l.b16 %v3752
  %v3769 = vunpack.c.l.b16 %v3753
  %v3770 = vpack.c.b16 %v3763, %v3762
  %v3771 = vpack.c.b16 %v3765, %v3764
  %v3772 = vpack.c.b16 %v3767, %v3766
  %v3773 = vpack.c.b16 %v3769, %v3768
  %3778 = vmatpush.bf16.msra.mxu0 0
  %3779 = vmatpush.bf16.msra.mxu0 0
  %3780 = vmatpush.bf16.msra.mxu0 0
  %3781 = vmatpush.bf16.msra.mxu0 0
  %3782 = vmatpush.bf16.msra.mxu0 %v3773
  %3783 = vmatpush.bf16.msra.mxu0 %v3772
  %3784 = vmatpush.bf16.msra.mxu0 %v3771
  %3785 = vmatpush.bf16.msra.mxu0 %v3770
  %3786 = vmatmul.bf16.gmra.mxu0 %v453
  %v3787 = vpop.f32.mrf.mxu0
  %v3788 = vadd.f32 0.0, %v3787
  %v3789 = vpop.f32.mrf.mxu0
  %v3790 = vadd.f32 0.0, %v3789
  %3791 = vmatmul.bf16.gmra.mxu0 %v456
  %v3792 = vpop.f32.mrf.mxu0
  %v3793 = vadd.f32 0.0, %v3792
  %v3794 = vpop.f32.mrf.mxu0
  %v3795 = vadd.f32 0.0, %v3794
  %3796 = vmatmul.bf16.gmra.mxu0 %v459
  %v3797 = vpop.f32.mrf.mxu0
  %v3798 = vadd.f32 0.0, %v3797
  %v3799 = vpop.f32.mrf.mxu0
  %v3800 = vadd.f32 0.0, %v3799
  %3801 = vmatmul.bf16.gmra.mxu0 %v462
  %v3802 = vpop.f32.mrf.mxu0
  %v3803 = vadd.f32 0.0, %v3802
  %v3804 = vpop.f32.mrf.mxu0
  %v3805 = vadd.f32 0.0, %v3804
  %3806 = vmatmul.bf16.gmra.mxu0 %v465
  %v3807 = vpop.f32.mrf.mxu0
  %v3808 = vadd.f32 0.0, %v3807
  %v3809 = vpop.f32.mrf.mxu0
  %v3810 = vadd.f32 0.0, %v3809
  %3811 = vmatmul.bf16.gmra.mxu0 %v468
  %v3812 = vpop.f32.mrf.mxu0
  %v3813 = vadd.f32 0.0, %v3812
  %v3814 = vpop.f32.mrf.mxu0
  %v3815 = vadd.f32 0.0, %v3814
  %3816 = vmatmul.bf16.gmra.mxu0 %v471
  %v3817 = vpop.f32.mrf.mxu0
  %v3818 = vadd.f32 0.0, %v3817
  %v3819 = vpop.f32.mrf.mxu0
  %v3820 = vadd.f32 0.0, %v3819
  %3821 = vmatmul.bf16.gmra.mxu0 %v474
  %v3822 = vpop.f32.mrf.mxu0
  %v3823 = vadd.f32 0.0, %v3822
  %v3824 = vpop.f32.mrf.mxu0
  %v3825 = vadd.f32 0.0, %v3824
  %3826 = vmatmul.bf16.gmra.mxu0 %v477
  %v3827 = vpop.f32.mrf.mxu0
  %v3828 = vadd.f32 0.0, %v3827
  %v3829 = vpop.f32.mrf.mxu0
  %v3830 = vadd.f32 0.0, %v3829
  %3831 = vmatmul.bf16.gmra.mxu0 %v480
  %v3832 = vpop.f32.mrf.mxu0
  %v3833 = vadd.f32 0.0, %v3832
  %v3834 = vpop.f32.mrf.mxu0
  %v3835 = vadd.f32 0.0, %v3834
  %3836 = vmatmul.bf16.gmra.mxu0 %v483
  %v3837 = vpop.f32.mrf.mxu0
  %v3838 = vadd.f32 0.0, %v3837
  %v3839 = vpop.f32.mrf.mxu0
  %v3840 = vadd.f32 0.0, %v3839
  %3841 = vmatmul.bf16.gmra.mxu0 %v486
  %v3842 = vpop.f32.mrf.mxu0
  %v3843 = vadd.f32 0.0, %v3842
  %v3844 = vpop.f32.mrf.mxu0
  %v3845 = vadd.f32 0.0, %v3844
  %3846 = vmatmul.bf16.gmra.mxu0 %v489
  %v3847 = vpop.f32.mrf.mxu0
  %v3848 = vadd.f32 0.0, %v3847
  %v3849 = vpop.f32.mrf.mxu0
  %v3850 = vadd.f32 0.0, %v3849
  %3851 = vmatmul.bf16.gmra.mxu0 %v492
  %v3852 = vpop.f32.mrf.mxu0
  %v3853 = vadd.f32 0.0, %v3852
  %v3854 = vpop.f32.mrf.mxu0
  %v3855 = vadd.f32 0.0, %v3854
  %3856 = vmatmul.bf16.gmra.mxu0 %v495
  %v3857 = vpop.f32.mrf.mxu0
  %v3858 = vadd.f32 0.0, %v3857
  %v3859 = vpop.f32.mrf.mxu0
  %v3860 = vadd.f32 0.0, %v3859
  %3861 = vmatmul.bf16.gmra.mxu0 %v498
  %v3862 = vpop.f32.mrf.mxu0
  %v3863 = vadd.f32 0.0, %v3862
  %v3864 = vpop.f32.mrf.mxu0
  %v3865 = vadd.f32 0.0, %v3864
  %3866 = vmatmul.bf16.gmra.mxu0 %v501
  %v3867 = vpop.f32.mrf.mxu0
  %v3868 = vadd.f32 0.0, %v3867
  %v3869 = vpop.f32.mrf.mxu0
  %v3870 = vadd.f32 0.0, %v3869
  %3871 = vmatmul.bf16.gmra.mxu0 %v504
  %v3872 = vpop.f32.mrf.mxu0
  %v3873 = vadd.f32 0.0, %v3872
  %v3874 = vpop.f32.mrf.mxu0
  %v3875 = vadd.f32 0.0, %v3874
  %3876 = vmatmul.bf16.gmra.mxu0 %v507
  %v3877 = vpop.f32.mrf.mxu0
  %v3878 = vadd.f32 0.0, %v3877
  %v3879 = vpop.f32.mrf.mxu0
  %v3880 = vadd.f32 0.0, %v3879
  %3881 = vmatmul.bf16.gmra.mxu0 %v510
  %v3882 = vpop.f32.mrf.mxu0
  %v3883 = vadd.f32 0.0, %v3882
  %v3884 = vpop.f32.mrf.mxu0
  %v3885 = vadd.f32 0.0, %v3884
  %3886 = vmatmul.bf16.gmra.mxu0 %v513
  %v3887 = vpop.f32.mrf.mxu0
  %v3888 = vadd.f32 0.0, %v3887
  %v3889 = vpop.f32.mrf.mxu0
  %v3890 = vadd.f32 0.0, %v3889
  %3891 = vmatmul.bf16.gmra.mxu0 %v516
  %v3892 = vpop.f32.mrf.mxu0
  %v3893 = vadd.f32 0.0, %v3892
  %v3894 = vpop.f32.mrf.mxu0
  %v3895 = vadd.f32 0.0, %v3894
  %3896 = vmatmul.bf16.gmra.mxu0 %v519
  %v3897 = vpop.f32.mrf.mxu0
  %v3898 = vadd.f32 0.0, %v3897
  %v3899 = vpop.f32.mrf.mxu0
  %v3900 = vadd.f32 0.0, %v3899
  %3901 = vmatmul.bf16.gmra.mxu0 %v522
  %v3902 = vpop.f32.mrf.mxu0
  %v3903 = vadd.f32 0.0, %v3902
  %v3904 = vpop.f32.mrf.mxu0
  %v3905 = vadd.f32 0.0, %v3904
  %3906 = vmatmul.bf16.gmra.mxu0 %v525
  %v3907 = vpop.f32.mrf.mxu0
  %v3908 = vadd.f32 0.0, %v3907
  %v3909 = vpop.f32.mrf.mxu0
  %v3910 = vadd.f32 0.0, %v3909
  %3911 = vmatmul.bf16.gmra.mxu0 %v528
  %v3912 = vpop.f32.mrf.mxu0
  %v3913 = vadd.f32 0.0, %v3912
  %v3914 = vpop.f32.mrf.mxu0
  %v3915 = vadd.f32 0.0, %v3914
  %3916 = vmatmul.bf16.gmra.mxu0 %v531
  %v3917 = vpop.f32.mrf.mxu0
  %v3918 = vadd.f32 0.0, %v3917
  %v3919 = vpop.f32.mrf.mxu0
  %v3920 = vadd.f32 0.0, %v3919
  %3921 = vmatmul.bf16.gmra.mxu0 %v534
  %v3922 = vpop.f32.mrf.mxu0
  %v3923 = vadd.f32 0.0, %v3922
  %v3924 = vpop.f32.mrf.mxu0
  %v3925 = vadd.f32 0.0, %v3924
  %3926 = vmatmul.bf16.gmra.mxu0 %v537
  %v3927 = vpop.f32.mrf.mxu0
  %v3928 = vadd.f32 0.0, %v3927
  %v3929 = vpop.f32.mrf.mxu0
  %v3930 = vadd.f32 0.0, %v3929
  %3931 = vmatmul.bf16.gmra.mxu0 %v540
  %v3932 = vpop.f32.mrf.mxu0
  %v3933 = vadd.f32 0.0, %v3932
  %v3934 = vpop.f32.mrf.mxu0
  %v3935 = vadd.f32 0.0, %v3934
  %3936 = vmatmul.bf16.gmra.mxu0 %v543
  %v3937 = vpop.f32.mrf.mxu0
  %v3938 = vadd.f32 0.0, %v3937
  %v3939 = vpop.f32.mrf.mxu0
  %v3940 = vadd.f32 0.0, %v3939
  %3941 = vmatmul.bf16.gmra.mxu0 %v546
  %v3942 = vpop.f32.mrf.mxu0
  %v3943 = vadd.f32 0.0, %v3942
  %v3944 = vpop.f32.mrf.mxu0
  %v3945 = vadd.f32 0.0, %v3944
  %3946 = vdwg.mxu0
  %v3955 = vunpack.c.l.b16 %v3738
  %v3956 = vunpack.c.l.b16 %v3739
  %v3957 = vunpack.c.l.b16 %v3740
  %v3958 = vunpack.c.l.b16 %v3741
  %v3959 = vunpack.c.l.b16 %v3742
  %v3960 = vunpack.c.l.b16 %v3743
  %v3961 = vunpack.c.l.b16 %v3744
  %v3962 = vunpack.c.l.b16 %v3745
  %v3963 = vpack.c.b16 %v3956, %v3955
  %v3964 = vpack.c.b16 %v3958, %v3957
  %v3965 = vpack.c.b16 %v3960, %v3959
  %v3966 = vpack.c.b16 %v3962, %v3961
  %v3972 = vsel %vm451, %v3706, 0
  %v3975 = vsel %vm451, %v3707, 0
  %v3978 = vsel %vm451, %v3708, 0
  %v3981 = vsel %vm451, %v3709, 0
  %v3984 = vsel %vm451, %v3710, 0
  %v3987 = vsel %vm451, %v3711, 0
  %v3990 = vsel %vm451, %v3712, 0
  %v3993 = vsel %vm451, %v3713, 0
  %v3996 = vsel %vm451, %v3714, 0
  %v3999 = vsel %vm451, %v3715, 0
  %v4002 = vsel %vm451, %v3716, 0
  %v4005 = vsel %vm451, %v3717, 0
  %v4008 = vsel %vm451, %v3718, 0
  %v4011 = vsel %vm451, %v3719, 0
  %v4014 = vsel %vm451, %v3720, 0
  %v4017 = vsel %vm451, %v3721, 0
  %v4020 = vsel %vm451, %v3722, 0
  %v4023 = vsel %vm451, %v3723, 0
  %v4026 = vsel %vm451, %v3724, 0
  %v4029 = vsel %vm451, %v3725, 0
  %v4032 = vsel %vm451, %v3726, 0
  %v4035 = vsel %vm451, %v3727, 0
  %v4038 = vsel %vm451, %v3728, 0
  %v4041 = vsel %vm451, %v3729, 0
  %v4044 = vsel %vm451, %v3730, 0
  %v4047 = vsel %vm451, %v3731, 0
  %v4050 = vsel %vm451, %v3732, 0
  %v4053 = vsel %vm451, %v3733, 0
  %v4056 = vsel %vm451, %v3734, 0
  %v4059 = vsel %vm451, %v3735, 0
  %v4062 = vsel %vm451, %v3736, 0
  %v4065 = vsel %vm451, %v3737, 0
  %4067 = vmatpush.bf16.msra.mxu0 0
  %4068 = vmatpush.bf16.msra.mxu0 0
  %4069 = vmatpush.bf16.msra.mxu0 0
  %4070 = vmatpush.bf16.msra.mxu0 0
  %4071 = vmatpush.bf16.msra.mxu0 %v3966
  %4072 = vmatpush.bf16.msra.mxu0 %v3965
  %4073 = vmatpush.bf16.msra.mxu0 %v3964
  %4074 = vmatpush.bf16.msra.mxu0 %v3963
  %4075 = vmatmul.bf16.gmra.mxu0 %v3972
  %v4076 = vpop.f32.mrf.mxu0
  %v4077 = vadd.f32 %v3788, %v4076
  %v4078 = vpop.f32.mrf.mxu0
  %v4079 = vadd.f32 %v3790, %v4078
  %4080 = vmatmul.bf16.gmra.mxu0 %v3975
  %v4081 = vpop.f32.mrf.mxu0
  %v4082 = vadd.f32 %v3793, %v4081
  %v4083 = vpop.f32.mrf.mxu0
  %v4084 = vadd.f32 %v3795, %v4083
  %4085 = vmatmul.bf16.gmra.mxu0 %v3978
  %v4086 = vpop.f32.mrf.mxu0
  %v4087 = vadd.f32 %v3798, %v4086
  %v4088 = vpop.f32.mrf.mxu0
  %v4089 = vadd.f32 %v3800, %v4088
  %4090 = vmatmul.bf16.gmra.mxu0 %v3981
  %v4091 = vpop.f32.mrf.mxu0
  %v4092 = vadd.f32 %v3803, %v4091
  %v4093 = vpop.f32.mrf.mxu0
  %v4094 = vadd.f32 %v3805, %v4093
  %4095 = vmatmul.bf16.gmra.mxu0 %v3984
  %v4096 = vpop.f32.mrf.mxu0
  %v4097 = vadd.f32 %v3808, %v4096
  %v4098 = vpop.f32.mrf.mxu0
  %v4099 = vadd.f32 %v3810, %v4098
  %4100 = vmatmul.bf16.gmra.mxu0 %v3987
  %v4101 = vpop.f32.mrf.mxu0
  %v4102 = vadd.f32 %v3813, %v4101
  %v4103 = vpop.f32.mrf.mxu0
  %v4104 = vadd.f32 %v3815, %v4103
  %4105 = vmatmul.bf16.gmra.mxu0 %v3990
  %v4106 = vpop.f32.mrf.mxu0
  %v4107 = vadd.f32 %v3818, %v4106
  %v4108 = vpop.f32.mrf.mxu0
  %v4109 = vadd.f32 %v3820, %v4108
  %4110 = vmatmul.bf16.gmra.mxu0 %v3993
  %v4111 = vpop.f32.mrf.mxu0
  %v4112 = vadd.f32 %v3823, %v4111
  %v4113 = vpop.f32.mrf.mxu0
  %v4114 = vadd.f32 %v3825, %v4113
  %4115 = vmatmul.bf16.gmra.mxu0 %v3996
  %v4116 = vpop.f32.mrf.mxu0
  %v4117 = vadd.f32 %v3828, %v4116
  %v4118 = vpop.f32.mrf.mxu0
  %v4119 = vadd.f32 %v3830, %v4118
  %4120 = vmatmul.bf16.gmra.mxu0 %v3999
  %v4121 = vpop.f32.mrf.mxu0
  %v4122 = vadd.f32 %v3833, %v4121
  %v4123 = vpop.f32.mrf.mxu0
  %v4124 = vadd.f32 %v3835, %v4123
  %4125 = vmatmul.bf16.gmra.mxu0 %v4002
  %v4126 = vpop.f32.mrf.mxu0
  %v4127 = vadd.f32 %v3838, %v4126
  %v4128 = vpop.f32.mrf.mxu0
  %v4129 = vadd.f32 %v3840, %v4128
  %4130 = vmatmul.bf16.gmra.mxu0 %v4005
  %v4131 = vpop.f32.mrf.mxu0
  %v4132 = vadd.f32 %v3843, %v4131
  %v4133 = vpop.f32.mrf.mxu0
  %v4134 = vadd.f32 %v3845, %v4133
  %4135 = vmatmul.bf16.gmra.mxu0 %v4008
  %v4136 = vpop.f32.mrf.mxu0
  %v4137 = vadd.f32 %v3848, %v4136
  %v4138 = vpop.f32.mrf.mxu0
  %v4139 = vadd.f32 %v3850, %v4138
  %4140 = vmatmul.bf16.gmra.mxu0 %v4011
  %v4141 = vpop.f32.mrf.mxu0
  %v4142 = vadd.f32 %v3853, %v4141
  %v4143 = vpop.f32.mrf.mxu0
  %v4144 = vadd.f32 %v3855, %v4143
  %4145 = vmatmul.bf16.gmra.mxu0 %v4014
  %v4146 = vpop.f32.mrf.mxu0
  %v4147 = vadd.f32 %v3858, %v4146
  %v4148 = vpop.f32.mrf.mxu0
  %v4149 = vadd.f32 %v3860, %v4148
  %4150 = vmatmul.bf16.gmra.mxu0 %v4017
  %v4151 = vpop.f32.mrf.mxu0
  %v4152 = vadd.f32 %v3863, %v4151
  %v4153 = vpop.f32.mrf.mxu0
  %v4154 = vadd.f32 %v3865, %v4153
  %4155 = vmatmul.bf16.gmra.mxu0 %v4020
  %v4156 = vpop.f32.mrf.mxu0
  %v4157 = vadd.f32 %v3868, %v4156
  %v4158 = vpop.f32.mrf.mxu0
  %v4159 = vadd.f32 %v3870, %v4158
  %4160 = vmatmul.bf16.gmra.mxu0 %v4023
  %v4161 = vpop.f32.mrf.mxu0
  %v4162 = vadd.f32 %v3873, %v4161
  %v4163 = vpop.f32.mrf.mxu0
  %v4164 = vadd.f32 %v3875, %v4163
  %4165 = vmatmul.bf16.gmra.mxu0 %v4026
  %v4166 = vpop.f32.mrf.mxu0
  %v4167 = vadd.f32 %v3878, %v4166
  %v4168 = vpop.f32.mrf.mxu0
  %v4169 = vadd.f32 %v3880, %v4168
  %4170 = vmatmul.bf16.gmra.mxu0 %v4029
  %v4171 = vpop.f32.mrf.mxu0
  %v4172 = vadd.f32 %v3883, %v4171
  %v4173 = vpop.f32.mrf.mxu0
  %v4174 = vadd.f32 %v3885, %v4173
  %4175 = vmatmul.bf16.gmra.mxu0 %v4032
  %v4176 = vpop.f32.mrf.mxu0
  %v4177 = vadd.f32 %v3888, %v4176
  %v4178 = vpop.f32.mrf.mxu0
  %v4179 = vadd.f32 %v3890, %v4178
  %4180 = vmatmul.bf16.gmra.mxu0 %v4035
  %v4181 = vpop.f32.mrf.mxu0
  %v4182 = vadd.f32 %v3893, %v4181
  %v4183 = vpop.f32.mrf.mxu0
  %v4184 = vadd.f32 %v3895, %v4183
  %4185 = vmatmul.bf16.gmra.mxu0 %v4038
  %v4186 = vpop.f32.mrf.mxu0
  %v4187 = vadd.f32 %v3898, %v4186
  %v4188 = vpop.f32.mrf.mxu0
  %v4189 = vadd.f32 %v3900, %v4188
  %4190 = vmatmul.bf16.gmra.mxu0 %v4041
  %v4191 = vpop.f32.mrf.mxu0
  %v4192 = vadd.f32 %v3903, %v4191
  %v4193 = vpop.f32.mrf.mxu0
  %v4194 = vadd.f32 %v3905, %v4193
  %4195 = vmatmul.bf16.gmra.mxu0 %v4044
  %v4196 = vpop.f32.mrf.mxu0
  %v4197 = vadd.f32 %v3908, %v4196
  %v4198 = vpop.f32.mrf.mxu0
  %v4199 = vadd.f32 %v3910, %v4198
  %4200 = vmatmul.bf16.gmra.mxu0 %v4047
  %v4201 = vpop.f32.mrf.mxu0
  %v4202 = vadd.f32 %v3913, %v4201
  %v4203 = vpop.f32.mrf.mxu0
  %v4204 = vadd.f32 %v3915, %v4203
  %4205 = vmatmul.bf16.gmra.mxu0 %v4050
  %v4206 = vpop.f32.mrf.mxu0
  %v4207 = vadd.f32 %v3918, %v4206
  %v4208 = vpop.f32.mrf.mxu0
  %v4209 = vadd.f32 %v3920, %v4208
  %4210 = vmatmul.bf16.gmra.mxu0 %v4053
  %v4211 = vpop.f32.mrf.mxu0
  %v4212 = vadd.f32 %v3923, %v4211
  %v4213 = vpop.f32.mrf.mxu0
  %v4214 = vadd.f32 %v3925, %v4213
  %4215 = vmatmul.bf16.gmra.mxu0 %v4056
  %v4216 = vpop.f32.mrf.mxu0
  %v4217 = vadd.f32 %v3928, %v4216
  %v4218 = vpop.f32.mrf.mxu0
  %v4219 = vadd.f32 %v3930, %v4218
  %4220 = vmatmul.bf16.gmra.mxu0 %v4059
  %v4221 = vpop.f32.mrf.mxu0
  %v4222 = vadd.f32 %v3933, %v4221
  %v4223 = vpop.f32.mrf.mxu0
  %v4224 = vadd.f32 %v3935, %v4223
  %4225 = vmatmul.bf16.gmra.mxu0 %v4062
  %v4226 = vpop.f32.mrf.mxu0
  %v4227 = vadd.f32 %v3938, %v4226
  %v4228 = vpop.f32.mrf.mxu0
  %v4229 = vadd.f32 %v3940, %v4228
  %4230 = vmatmul.bf16.gmra.mxu0 %v4065
  %v4231 = vpop.f32.mrf.mxu0
  %v4232 = vadd.f32 %v3943, %v4231
  %v4233 = vpop.f32.mrf.mxu0
  %v4234 = vadd.f32 %v3945, %v4233
  %4235 = vdwg.mxu0
  %v4236 = vld [vmem:[%s15] sm:$0x1]
  %v4238 = vperm.slane %v4236, 0
  %v4240 = vadd.f32 %v4077, %v4238
  %v4241 = vadd.f32 %v4079, %v4238
  %v4242 = vadd.f32 %v4082, %v4238
  %v4243 = vadd.f32 %v4084, %v4238
  %v4244 = vadd.f32 %v4087, %v4238
  %v4245 = vadd.f32 %v4089, %v4238
  %v4246 = vadd.f32 %v4092, %v4238
  %v4247 = vadd.f32 %v4094, %v4238
  %v4248 = vadd.f32 %v4097, %v4238
  %v4249 = vadd.f32 %v4099, %v4238
  %v4250 = vadd.f32 %v4102, %v4238
  %v4251 = vadd.f32 %v4104, %v4238
  %v4252 = vadd.f32 %v4107, %v4238
  %v4253 = vadd.f32 %v4109, %v4238
  %v4254 = vadd.f32 %v4112, %v4238
  %v4255 = vadd.f32 %v4114, %v4238
  %v4256 = vadd.f32 %v4117, %v4238
  %v4257 = vadd.f32 %v4119, %v4238
  %v4258 = vadd.f32 %v4122, %v4238
  %v4259 = vadd.f32 %v4124, %v4238
  %v4260 = vadd.f32 %v4127, %v4238
  %v4261 = vadd.f32 %v4129, %v4238
  %v4262 = vadd.f32 %v4132, %v4238
  %v4263 = vadd.f32 %v4134, %v4238
  %v4264 = vadd.f32 %v4137, %v4238
  %v4265 = vadd.f32 %v4139, %v4238
  %v4266 = vadd.f32 %v4142, %v4238
  %v4267 = vadd.f32 %v4144, %v4238
  %v4268 = vadd.f32 %v4147, %v4238
  %v4269 = vadd.f32 %v4149, %v4238
  %v4270 = vadd.f32 %v4152, %v4238
  %v4271 = vadd.f32 %v4154, %v4238
  %v4272 = vadd.f32 %v4157, %v4238
  %v4273 = vadd.f32 %v4159, %v4238
  %v4274 = vadd.f32 %v4162, %v4238
  %v4275 = vadd.f32 %v4164, %v4238
  %v4276 = vadd.f32 %v4167, %v4238
  %v4277 = vadd.f32 %v4169, %v4238
  %v4278 = vadd.f32 %v4172, %v4238
  %v4279 = vadd.f32 %v4174, %v4238
  %v4280 = vadd.f32 %v4177, %v4238
  %v4281 = vadd.f32 %v4179, %v4238
  %v4282 = vadd.f32 %v4182, %v4238
  %v4283 = vadd.f32 %v4184, %v4238
  %v4284 = vadd.f32 %v4187, %v4238
  %v4285 = vadd.f32 %v4189, %v4238
  %v4286 = vadd.f32 %v4192, %v4238
  %v4287 = vadd.f32 %v4194, %v4238
  %v4288 = vadd.f32 %v4197, %v4238
  %v4289 = vadd.f32 %v4199, %v4238
  %v4290 = vadd.f32 %v4202, %v4238
  %v4291 = vadd.f32 %v4204, %v4238
  %v4292 = vadd.f32 %v4207, %v4238
  %v4293 = vadd.f32 %v4209, %v4238
  %v4294 = vadd.f32 %v4212, %v4238
  %v4295 = vadd.f32 %v4214, %v4238
  %v4296 = vadd.f32 %v4217, %v4238
  %v4297 = vadd.f32 %v4219, %v4238
  %v4298 = vadd.f32 %v4222, %v4238
  %v4299 = vadd.f32 %v4224, %v4238
  %v4300 = vadd.f32 %v4227, %v4238
  %v4301 = vadd.f32 %v4229, %v4238
  %v4302 = vadd.f32 %v4232, %v4238
  %v4303 = vadd.f32 %v4234, %v4238
  %v4304 = vld [vmem:[%s13] sm:$0x1]
  %4306 = vset.pattern.permute.xlu0 0
  %4307 = vperm.xlu0 %4306, %v127
  %v4308 = vpop.permute.xlu0 %4307
  %4311 = vset.pattern.permute.xlu0 0
  %4312 = vperm.xlu0 %4311, %v128
  %v4313 = vpop.permute.xlu0 %4312
  %4316 = vset.pattern.permute.xlu0 0
  %4317 = vperm.xlu0 %4316, %v129
  %v4318 = vpop.permute.xlu0 %4317
  %4321 = vset.pattern.permute.xlu0 0
  %4322 = vperm.xlu0 %4321, %v130
  %v4323 = vpop.permute.xlu0 %4322
  %4326 = vset.pattern.permute.xlu0 0
  %4327 = vperm.xlu0 %4326, %v131
  %v4328 = vpop.permute.xlu0 %4327
  %4331 = vset.pattern.permute.xlu0 0
  %4332 = vperm.xlu0 %4331, %v132
  %v4333 = vpop.permute.xlu0 %4332
  %4336 = vset.pattern.permute.xlu0 0
  %4337 = vperm.xlu0 %4336, %v133
  %v4338 = vpop.permute.xlu0 %4337
  %4341 = vset.pattern.permute.xlu0 0
  %4342 = vperm.xlu0 %4341, %v134
  %v4343 = vpop.permute.xlu0 %4342
  %4346 = vset.pattern.permute.xlu0 0
  %4347 = vperm.xlu0 %4346, %v135
  %v4348 = vpop.permute.xlu0 %4347
  %4351 = vset.pattern.permute.xlu0 0
  %4352 = vperm.xlu0 %4351, %v136
  %v4353 = vpop.permute.xlu0 %4352
  %4356 = vset.pattern.permute.xlu0 0
  %4357 = vperm.xlu0 %4356, %v137
  %v4358 = vpop.permute.xlu0 %4357
  %4361 = vset.pattern.permute.xlu0 0
  %4362 = vperm.xlu0 %4361, %v138
  %v4363 = vpop.permute.xlu0 %4362
  %4366 = vset.pattern.permute.xlu0 0
  %4367 = vperm.xlu0 %4366, %v139
  %v4368 = vpop.permute.xlu0 %4367
  %4371 = vset.pattern.permute.xlu0 0
  %4372 = vperm.xlu0 %4371, %v140
  %v4373 = vpop.permute.xlu0 %4372
  %4376 = vset.pattern.permute.xlu0 0
  %4377 = vperm.xlu0 %4376, %v141
  %v4378 = vpop.permute.xlu0 %4377
  %4381 = vset.pattern.permute.xlu0 0
  %4382 = vperm.xlu0 %4381, %v142
  %v4383 = vpop.permute.xlu0 %4382
  %4386 = vset.pattern.permute.xlu0 0
  %4387 = vperm.xlu0 %4386, %v143
  %v4388 = vpop.permute.xlu0 %4387
  %4391 = vset.pattern.permute.xlu0 0
  %4392 = vperm.xlu0 %4391, %v144
  %v4393 = vpop.permute.xlu0 %4392
  %4396 = vset.pattern.permute.xlu0 0
  %4397 = vperm.xlu0 %4396, %v145
  %v4398 = vpop.permute.xlu0 %4397
  %4401 = vset.pattern.permute.xlu0 0
  %4402 = vperm.xlu0 %4401, %v146
  %v4403 = vpop.permute.xlu0 %4402
  %4406 = vset.pattern.permute.xlu0 0
  %4407 = vperm.xlu0 %4406, %v147
  %v4408 = vpop.permute.xlu0 %4407
  %4411 = vset.pattern.permute.xlu0 0
  %4412 = vperm.xlu0 %4411, %v148
  %v4413 = vpop.permute.xlu0 %4412
  %4416 = vset.pattern.permute.xlu0 0
  %4417 = vperm.xlu0 %4416, %v149
  %v4418 = vpop.permute.xlu0 %4417
  %4421 = vset.pattern.permute.xlu0 0
  %4422 = vperm.xlu0 %4421, %v150
  %v4423 = vpop.permute.xlu0 %4422
  %4426 = vset.pattern.permute.xlu0 0
  %4427 = vperm.xlu0 %4426, %v151
  %v4428 = vpop.permute.xlu0 %4427
  %4431 = vset.pattern.permute.xlu0 0
  %4432 = vperm.xlu0 %4431, %v152
  %v4433 = vpop.permute.xlu0 %4432
  %4436 = vset.pattern.permute.xlu0 0
  %4437 = vperm.xlu0 %4436, %v153
  %v4438 = vpop.permute.xlu0 %4437
  %4441 = vset.pattern.permute.xlu0 0
  %4442 = vperm.xlu0 %4441, %v154
  %v4443 = vpop.permute.xlu0 %4442
  %4446 = vset.pattern.permute.xlu0 0
  %4447 = vperm.xlu0 %4446, %v155
  %v4448 = vpop.permute.xlu0 %4447
  %4451 = vset.pattern.permute.xlu0 0
  %4452 = vperm.xlu0 %4451, %v156
  %v4453 = vpop.permute.xlu0 %4452
  %4456 = vset.pattern.permute.xlu0 0
  %4457 = vperm.xlu0 %4456, %v157
  %v4458 = vpop.permute.xlu0 %4457
  %4461 = vset.pattern.permute.xlu0 0
  %4462 = vperm.xlu0 %4461, %v158
  %v4463 = vpop.permute.xlu0 %4462
  %4466 = vset.pattern.permute.xlu0 0
  %4467 = vperm.xlu0 %4466, %v159
  %v4468 = vpop.permute.xlu0 %4467
  %4471 = vset.pattern.permute.xlu0 0
  %4472 = vperm.xlu0 %4471, %v160
  %v4473 = vpop.permute.xlu0 %4472
  %4476 = vset.pattern.permute.xlu0 0
  %4477 = vperm.xlu0 %4476, %v161
  %v4478 = vpop.permute.xlu0 %4477
  %4481 = vset.pattern.permute.xlu0 0
  %4482 = vperm.xlu0 %4481, %v162
  %v4483 = vpop.permute.xlu0 %4482
  %4486 = vset.pattern.permute.xlu0 0
  %4487 = vperm.xlu0 %4486, %v163
  %v4488 = vpop.permute.xlu0 %4487
  %4491 = vset.pattern.permute.xlu0 0
  %4492 = vperm.xlu0 %4491, %v164
  %v4493 = vpop.permute.xlu0 %4492
  %4496 = vset.pattern.permute.xlu0 0
  %4497 = vperm.xlu0 %4496, %v165
  %v4498 = vpop.permute.xlu0 %4497
  %4501 = vset.pattern.permute.xlu0 0
  %4502 = vperm.xlu0 %4501, %v166
  %v4503 = vpop.permute.xlu0 %4502
  %4506 = vset.pattern.permute.xlu0 0
  %4507 = vperm.xlu0 %4506, %v167
  %v4508 = vpop.permute.xlu0 %4507
  %4511 = vset.pattern.permute.xlu0 0
  %4512 = vperm.xlu0 %4511, %v168
  %v4513 = vpop.permute.xlu0 %4512
  %4516 = vset.pattern.permute.xlu0 0
  %4517 = vperm.xlu0 %4516, %v169
  %v4518 = vpop.permute.xlu0 %4517
  %4521 = vset.pattern.permute.xlu0 0
  %4522 = vperm.xlu0 %4521, %v170
  %v4523 = vpop.permute.xlu0 %4522
  %4526 = vset.pattern.permute.xlu0 0
  %4527 = vperm.xlu0 %4526, %v171
  %v4528 = vpop.permute.xlu0 %4527
  %4531 = vset.pattern.permute.xlu0 0
  %4532 = vperm.xlu0 %4531, %v172
  %v4533 = vpop.permute.xlu0 %4532
  %4536 = vset.pattern.permute.xlu0 0
  %4537 = vperm.xlu0 %4536, %v173
  %v4538 = vpop.permute.xlu0 %4537
  %4541 = vset.pattern.permute.xlu0 0
  %4542 = vperm.xlu0 %4541, %v174
  %v4543 = vpop.permute.xlu0 %4542
  %4546 = vset.pattern.permute.xlu0 0
  %4547 = vperm.xlu0 %4546, %v175
  %v4548 = vpop.permute.xlu0 %4547
  %4551 = vset.pattern.permute.xlu0 0
  %4552 = vperm.xlu0 %4551, %v176
  %v4553 = vpop.permute.xlu0 %4552
  %4556 = vset.pattern.permute.xlu0 0
  %4557 = vperm.xlu0 %4556, %v177
  %v4558 = vpop.permute.xlu0 %4557
  %4561 = vset.pattern.permute.xlu0 0
  %4562 = vperm.xlu0 %4561, %v178
  %v4563 = vpop.permute.xlu0 %4562
  %4566 = vset.pattern.permute.xlu0 0
  %4567 = vperm.xlu0 %4566, %v179
  %v4568 = vpop.permute.xlu0 %4567
  %4571 = vset.pattern.permute.xlu0 0
  %4572 = vperm.xlu0 %4571, %v180
  %v4573 = vpop.permute.xlu0 %4572
  %4576 = vset.pattern.permute.xlu0 0
  %4577 = vperm.xlu0 %4576, %v181
  %v4578 = vpop.permute.xlu0 %4577
  %4581 = vset.pattern.permute.xlu0 0
  %4582 = vperm.xlu0 %4581, %v182
  %v4583 = vpop.permute.xlu0 %4582
  %4586 = vset.pattern.permute.xlu0 0
  %4587 = vperm.xlu0 %4586, %v183
  %v4588 = vpop.permute.xlu0 %4587
  %4591 = vset.pattern.permute.xlu0 0
  %4592 = vperm.xlu0 %4591, %v184
  %v4593 = vpop.permute.xlu0 %4592
  %4596 = vset.pattern.permute.xlu0 0
  %4597 = vperm.xlu0 %4596, %v185
  %v4598 = vpop.permute.xlu0 %4597
  %4601 = vset.pattern.permute.xlu0 0
  %4602 = vperm.xlu0 %4601, %v186
  %v4603 = vpop.permute.xlu0 %4602
  %4606 = vset.pattern.permute.xlu0 0
  %4607 = vperm.xlu0 %4606, %v187
  %v4608 = vpop.permute.xlu0 %4607
  %4611 = vset.pattern.permute.xlu0 0
  %4612 = vperm.xlu0 %4611, %v188
  %v4613 = vpop.permute.xlu0 %4612
  %4616 = vset.pattern.permute.xlu0 0
  %4617 = vperm.xlu0 %4616, %v189
  %v4618 = vpop.permute.xlu0 %4617
  %4621 = vset.pattern.permute.xlu0 0
  %4622 = vperm.xlu0 %4621, %v190
  %v4623 = vpop.permute.xlu0 %4622
  %v4625 = vperm.slane %v4304, 0
  %v4626 = vmul.f32 %v4308, %v4625
  %v4627 = vmul.f32 %v4313, %v4625
  %v4628 = vmul.f32 %v4318, %v4625
  %v4629 = vmul.f32 %v4323, %v4625
  %v4630 = vmul.f32 %v4328, %v4625
  %v4631 = vmul.f32 %v4333, %v4625
  %v4632 = vmul.f32 %v4338, %v4625
  %v4633 = vmul.f32 %v4343, %v4625
  %v4634 = vmul.f32 %v4348, %v4625
  %v4635 = vmul.f32 %v4353, %v4625
  %v4636 = vmul.f32 %v4358, %v4625
  %v4637 = vmul.f32 %v4363, %v4625
  %v4638 = vmul.f32 %v4368, %v4625
  %v4639 = vmul.f32 %v4373, %v4625
  %v4640 = vmul.f32 %v4378, %v4625
  %v4641 = vmul.f32 %v4383, %v4625
  %v4642 = vmul.f32 %v4388, %v4625
  %v4643 = vmul.f32 %v4393, %v4625
  %v4644 = vmul.f32 %v4398, %v4625
  %v4645 = vmul.f32 %v4403, %v4625
  %v4646 = vmul.f32 %v4408, %v4625
  %v4647 = vmul.f32 %v4413, %v4625
  %v4648 = vmul.f32 %v4418, %v4625
  %v4649 = vmul.f32 %v4423, %v4625
  %v4650 = vmul.f32 %v4428, %v4625
  %v4651 = vmul.f32 %v4433, %v4625
  %v4652 = vmul.f32 %v4438, %v4625
  %v4653 = vmul.f32 %v4443, %v4625
  %v4654 = vmul.f32 %v4448, %v4625
  %v4655 = vmul.f32 %v4453, %v4625
  %v4656 = vmul.f32 %v4458, %v4625
  %v4657 = vmul.f32 %v4463, %v4625
  %v4658 = vmul.f32 %v4468, %v4625
  %v4659 = vmul.f32 %v4473, %v4625
  %v4660 = vmul.f32 %v4478, %v4625
  %v4661 = vmul.f32 %v4483, %v4625
  %v4662 = vmul.f32 %v4488, %v4625
  %v4663 = vmul.f32 %v4493, %v4625
  %v4664 = vmul.f32 %v4498, %v4625
  %v4665 = vmul.f32 %v4503, %v4625
  %v4666 = vmul.f32 %v4508, %v4625
  %v4667 = vmul.f32 %v4513, %v4625
  %v4668 = vmul.f32 %v4518, %v4625
  %v4669 = vmul.f32 %v4523, %v4625
  %v4670 = vmul.f32 %v4528, %v4625
  %v4671 = vmul.f32 %v4533, %v4625
  %v4672 = vmul.f32 %v4538, %v4625
  %v4673 = vmul.f32 %v4543, %v4625
  %v4674 = vmul.f32 %v4548, %v4625
  %v4675 = vmul.f32 %v4553, %v4625
  %v4676 = vmul.f32 %v4558, %v4625
  %v4677 = vmul.f32 %v4563, %v4625
  %v4678 = vmul.f32 %v4568, %v4625
  %v4679 = vmul.f32 %v4573, %v4625
  %v4680 = vmul.f32 %v4578, %v4625
  %v4681 = vmul.f32 %v4583, %v4625
  %v4682 = vmul.f32 %v4588, %v4625
  %v4683 = vmul.f32 %v4593, %v4625
  %v4684 = vmul.f32 %v4598, %v4625
  %v4685 = vmul.f32 %v4603, %v4625
  %v4686 = vmul.f32 %v4608, %v4625
  %v4687 = vmul.f32 %v4613, %v4625
  %v4688 = vmul.f32 %v4618, %v4625
  %v4689 = vmul.f32 %v4623, %v4625
  %v4690 = vadd.f32 %v4240, %v4626
  %v4691 = vadd.f32 %v4241, %v4627
  %v4692 = vadd.f32 %v4242, %v4628
  %v4693 = vadd.f32 %v4243, %v4629
  %v4694 = vadd.f32 %v4244, %v4630
  %v4695 = vadd.f32 %v4245, %v4631
  %v4696 = vadd.f32 %v4246, %v4632
  %v4697 = vadd.f32 %v4247, %v4633
  %v4698 = vadd.f32 %v4248, %v4634
  %v4699 = vadd.f32 %v4249, %v4635
  %v4700 = vadd.f32 %v4250, %v4636
  %v4701 = vadd.f32 %v4251, %v4637
  %v4702 = vadd.f32 %v4252, %v4638
  %v4703 = vadd.f32 %v4253, %v4639
  %v4704 = vadd.f32 %v4254, %v4640
  %v4705 = vadd.f32 %v4255, %v4641
  %v4706 = vadd.f32 %v4256, %v4642
  %v4707 = vadd.f32 %v4257, %v4643
  %v4708 = vadd.f32 %v4258, %v4644
  %v4709 = vadd.f32 %v4259, %v4645
  %v4710 = vadd.f32 %v4260, %v4646
  %v4711 = vadd.f32 %v4261, %v4647
  %v4712 = vadd.f32 %v4262, %v4648
  %v4713 = vadd.f32 %v4263, %v4649
  %v4714 = vadd.f32 %v4264, %v4650
  %v4715 = vadd.f32 %v4265, %v4651
  %v4716 = vadd.f32 %v4266, %v4652
  %v4717 = vadd.f32 %v4267, %v4653
  %v4718 = vadd.f32 %v4268, %v4654
  %v4719 = vadd.f32 %v4269, %v4655
  %v4720 = vadd.f32 %v4270, %v4656
  %v4721 = vadd.f32 %v4271, %v4657
  %v4722 = vadd.f32 %v4272, %v4658
  %v4723 = vadd.f32 %v4273, %v4659
  %v4724 = vadd.f32 %v4274, %v4660
  %v4725 = vadd.f32 %v4275, %v4661
  %v4726 = vadd.f32 %v4276, %v4662
  %v4727 = vadd.f32 %v4277, %v4663
  %v4728 = vadd.f32 %v4278, %v4664
  %v4729 = vadd.f32 %v4279, %v4665
  %v4730 = vadd.f32 %v4280, %v4666
  %v4731 = vadd.f32 %v4281, %v4667
  %v4732 = vadd.f32 %v4282, %v4668
  %v4733 = vadd.f32 %v4283, %v4669
  %v4734 = vadd.f32 %v4284, %v4670
  %v4735 = vadd.f32 %v4285, %v4671
  %v4736 = vadd.f32 %v4286, %v4672
  %v4737 = vadd.f32 %v4287, %v4673
  %v4738 = vadd.f32 %v4288, %v4674
  %v4739 = vadd.f32 %v4289, %v4675
  %v4740 = vadd.f32 %v4290, %v4676
  %v4741 = vadd.f32 %v4291, %v4677
  %v4742 = vadd.f32 %v4292, %v4678
  %v4743 = vadd.f32 %v4293, %v4679
  %v4744 = vadd.f32 %v4294, %v4680
  %v4745 = vadd.f32 %v4295, %v4681
  %v4746 = vadd.f32 %v4296, %v4682
  %v4747 = vadd.f32 %v4297, %v4683
  %v4748 = vadd.f32 %v4298, %v4684
  %v4749 = vadd.f32 %v4299, %v4685
  %v4750 = vadd.f32 %v4300, %v4686
  %v4751 = vadd.f32 %v4301, %v4687
  %v4752 = vadd.f32 %v4302, %v4688
  %v4753 = vadd.f32 %v4303, %v4689
  %v4754 = vld [vmem:[%s13 + $0x1] sm:$0x1]
  %4755 = vset.pattern.permute.xlu0 1
  %4756 = vperm.xlu0 %4755, %v127
  %v4757 = vpop.permute.xlu0 %4756
  %4759 = vset.pattern.permute.xlu0 1
  %4760 = vperm.xlu0 %4759, %v128
  %v4761 = vpop.permute.xlu0 %4760
  %4763 = vset.pattern.permute.xlu0 1
  %4764 = vperm.xlu0 %4763, %v129
  %v4765 = vpop.permute.xlu0 %4764
  %4767 = vset.pattern.permute.xlu0 1
  %4768 = vperm.xlu0 %4767, %v130
  %v4769 = vpop.permute.xlu0 %4768
  %4771 = vset.pattern.permute.xlu0 1
  %4772 = vperm.xlu0 %4771, %v131
  %v4773 = vpop.permute.xlu0 %4772
  %4775 = vset.pattern.permute.xlu0 1
  %4776 = vperm.xlu0 %4775, %v132
  %v4777 = vpop.permute.xlu0 %4776
  %4779 = vset.pattern.permute.xlu0 1
  %4780 = vperm.xlu0 %4779, %v133
  %v4781 = vpop.permute.xlu0 %4780
  %4783 = vset.pattern.permute.xlu0 1
  %4784 = vperm.xlu0 %4783, %v134
  %v4785 = vpop.permute.xlu0 %4784
  %4787 = vset.pattern.permute.xlu0 1
  %4788 = vperm.xlu0 %4787, %v135
  %v4789 = vpop.permute.xlu0 %4788
  %4791 = vset.pattern.permute.xlu0 1
  %4792 = vperm.xlu0 %4791, %v136
  %v4793 = vpop.permute.xlu0 %4792
  %4795 = vset.pattern.permute.xlu0 1
  %4796 = vperm.xlu0 %4795, %v137
  %v4797 = vpop.permute.xlu0 %4796
  %4799 = vset.pattern.permute.xlu0 1
  %4800 = vperm.xlu0 %4799, %v138
  %v4801 = vpop.permute.xlu0 %4800
  %4803 = vset.pattern.permute.xlu0 1
  %4804 = vperm.xlu0 %4803, %v139
  %v4805 = vpop.permute.xlu0 %4804
  %4807 = vset.pattern.permute.xlu0 1
  %4808 = vperm.xlu0 %4807, %v140
  %v4809 = vpop.permute.xlu0 %4808
  %4811 = vset.pattern.permute.xlu0 1
  %4812 = vperm.xlu0 %4811, %v141
  %v4813 = vpop.permute.xlu0 %4812
  %4815 = vset.pattern.permute.xlu0 1
  %4816 = vperm.xlu0 %4815, %v142
  %v4817 = vpop.permute.xlu0 %4816
  %4819 = vset.pattern.permute.xlu0 1
  %4820 = vperm.xlu0 %4819, %v143
  %v4821 = vpop.permute.xlu0 %4820
  %4823 = vset.pattern.permute.xlu0 1
  %4824 = vperm.xlu0 %4823, %v144
  %v4825 = vpop.permute.xlu0 %4824
  %4827 = vset.pattern.permute.xlu0 1
  %4828 = vperm.xlu0 %4827, %v145
  %v4829 = vpop.permute.xlu0 %4828
  %4831 = vset.pattern.permute.xlu0 1
  %4832 = vperm.xlu0 %4831, %v146
  %v4833 = vpop.permute.xlu0 %4832
  %4835 = vset.pattern.permute.xlu0 1
  %4836 = vperm.xlu0 %4835, %v147
  %v4837 = vpop.permute.xlu0 %4836
  %4839 = vset.pattern.permute.xlu0 1
  %4840 = vperm.xlu0 %4839, %v148
  %v4841 = vpop.permute.xlu0 %4840
  %4843 = vset.pattern.permute.xlu0 1
  %4844 = vperm.xlu0 %4843, %v149
  %v4845 = vpop.permute.xlu0 %4844
  %4847 = vset.pattern.permute.xlu0 1
  %4848 = vperm.xlu0 %4847, %v150
  %v4849 = vpop.permute.xlu0 %4848
  %4851 = vset.pattern.permute.xlu0 1
  %4852 = vperm.xlu0 %4851, %v151
  %v4853 = vpop.permute.xlu0 %4852
  %4855 = vset.pattern.permute.xlu0 1
  %4856 = vperm.xlu0 %4855, %v152
  %v4857 = vpop.permute.xlu0 %4856
  %4859 = vset.pattern.permute.xlu0 1
  %4860 = vperm.xlu0 %4859, %v153
  %v4861 = vpop.permute.xlu0 %4860
  %4863 = vset.pattern.permute.xlu0 1
  %4864 = vperm.xlu0 %4863, %v154
  %v4865 = vpop.permute.xlu0 %4864
  %4867 = vset.pattern.permute.xlu0 1
  %4868 = vperm.xlu0 %4867, %v155
  %v4869 = vpop.permute.xlu0 %4868
  %4871 = vset.pattern.permute.xlu0 1
  %4872 = vperm.xlu0 %4871, %v156
  %v4873 = vpop.permute.xlu0 %4872
  %4875 = vset.pattern.permute.xlu0 1
  %4876 = vperm.xlu0 %4875, %v157
  %v4877 = vpop.permute.xlu0 %4876
  %4879 = vset.pattern.permute.xlu0 1
  %4880 = vperm.xlu0 %4879, %v158
  %v4881 = vpop.permute.xlu0 %4880
  %4883 = vset.pattern.permute.xlu0 1
  %4884 = vperm.xlu0 %4883, %v159
  %v4885 = vpop.permute.xlu0 %4884
  %4887 = vset.pattern.permute.xlu0 1
  %4888 = vperm.xlu0 %4887, %v160
  %v4889 = vpop.permute.xlu0 %4888
  %4891 = vset.pattern.permute.xlu0 1
  %4892 = vperm.xlu0 %4891, %v161
  %v4893 = vpop.permute.xlu0 %4892
  %4895 = vset.pattern.permute.xlu0 1
  %4896 = vperm.xlu0 %4895, %v162
  %v4897 = vpop.permute.xlu0 %4896
  %4899 = vset.pattern.permute.xlu0 1
  %4900 = vperm.xlu0 %4899, %v163
  %v4901 = vpop.permute.xlu0 %4900
  %4903 = vset.pattern.permute.xlu0 1
  %4904 = vperm.xlu0 %4903, %v164
  %v4905 = vpop.permute.xlu0 %4904
  %4907 = vset.pattern.permute.xlu0 1
  %4908 = vperm.xlu0 %4907, %v165
  %v4909 = vpop.permute.xlu0 %4908
  %4911 = vset.pattern.permute.xlu0 1
  %4912 = vperm.xlu0 %4911, %v166
  %v4913 = vpop.permute.xlu0 %4912
  %4915 = vset.pattern.permute.xlu0 1
  %4916 = vperm.xlu0 %4915, %v167
  %v4917 = vpop.permute.xlu0 %4916
  %4919 = vset.pattern.permute.xlu0 1
  %4920 = vperm.xlu0 %4919, %v168
  %v4921 = vpop.permute.xlu0 %4920
  %4923 = vset.pattern.permute.xlu0 1
  %4924 = vperm.xlu0 %4923, %v169
  %v4925 = vpop.permute.xlu0 %4924
  %4927 = vset.pattern.permute.xlu0 1
  %4928 = vperm.xlu0 %4927, %v170
  %v4929 = vpop.permute.xlu0 %4928
  %4931 = vset.pattern.permute.xlu0 1
  %4932 = vperm.xlu0 %4931, %v171
  %v4933 = vpop.permute.xlu0 %4932
  %4935 = vset.pattern.permute.xlu0 1
  %4936 = vperm.xlu0 %4935, %v172
  %v4937 = vpop.permute.xlu0 %4936
  %4939 = vset.pattern.permute.xlu0 1
  %4940 = vperm.xlu0 %4939, %v173
  %v4941 = vpop.permute.xlu0 %4940
  %4943 = vset.pattern.permute.xlu0 1
  %4944 = vperm.xlu0 %4943, %v174
  %v4945 = vpop.permute.xlu0 %4944
  %4947 = vset.pattern.permute.xlu0 1
  %4948 = vperm.xlu0 %4947, %v175
  %v4949 = vpop.permute.xlu0 %4948
  %4951 = vset.pattern.permute.xlu0 1
  %4952 = vperm.xlu0 %4951, %v176
  %v4953 = vpop.permute.xlu0 %4952
  %4955 = vset.pattern.permute.xlu0 1
  %4956 = vperm.xlu0 %4955, %v177
  %v4957 = vpop.permute.xlu0 %4956
  %4959 = vset.pattern.permute.xlu0 1
  %4960 = vperm.xlu0 %4959, %v178
  %v4961 = vpop.permute.xlu0 %4960
  %4963 = vset.pattern.permute.xlu0 1
  %4964 = vperm.xlu0 %4963, %v179
  %v4965 = vpop.permute.xlu0 %4964
  %4967 = vset.pattern.permute.xlu0 1
  %4968 = vperm.xlu0 %4967, %v180
  %v4969 = vpop.permute.xlu0 %4968
  %4971 = vset.pattern.permute.xlu0 1
  %4972 = vperm.xlu0 %4971, %v181
  %v4973 = vpop.permute.xlu0 %4972
  %4975 = vset.pattern.permute.xlu0 1
  %4976 = vperm.xlu0 %4975, %v182
  %v4977 = vpop.permute.xlu0 %4976
  %4979 = vset.pattern.permute.xlu0 1
  %4980 = vperm.xlu0 %4979, %v183
  %v4981 = vpop.permute.xlu0 %4980
  %4983 = vset.pattern.permute.xlu0 1
  %4984 = vperm.xlu0 %4983, %v184
  %v4985 = vpop.permute.xlu0 %4984
  %4987 = vset.pattern.permute.xlu0 1
  %4988 = vperm.xlu0 %4987, %v185
  %v4989 = vpop.permute.xlu0 %4988
  %4991 = vset.pattern.permute.xlu0 1
  %4992 = vperm.xlu0 %4991, %v186
  %v4993 = vpop.permute.xlu0 %4992
  %4995 = vset.pattern.permute.xlu0 1
  %4996 = vperm.xlu0 %4995, %v187
  %v4997 = vpop.permute.xlu0 %4996
  %4999 = vset.pattern.permute.xlu0 1
  %5000 = vperm.xlu0 %4999, %v188
  %v5001 = vpop.permute.xlu0 %5000
  %5003 = vset.pattern.permute.xlu0 1
  %5004 = vperm.xlu0 %5003, %v189
  %v5005 = vpop.permute.xlu0 %5004
  %5007 = vset.pattern.permute.xlu0 1
  %5008 = vperm.xlu0 %5007, %v190
  %v5009 = vpop.permute.xlu0 %5008
  %v5011 = vperm.slane %v4754, 0
  %v5012 = vmul.f32 %v4757, %v5011
  %v5013 = vmul.f32 %v4761, %v5011
  %v5014 = vmul.f32 %v4765, %v5011
  %v5015 = vmul.f32 %v4769, %v5011
  %v5016 = vmul.f32 %v4773, %v5011
  %v5017 = vmul.f32 %v4777, %v5011
  %v5018 = vmul.f32 %v4781, %v5011
  %v5019 = vmul.f32 %v4785, %v5011
  %v5020 = vmul.f32 %v4789, %v5011
  %v5021 = vmul.f32 %v4793, %v5011
  %v5022 = vmul.f32 %v4797, %v5011
  %v5023 = vmul.f32 %v4801, %v5011
  %v5024 = vmul.f32 %v4805, %v5011
  %v5025 = vmul.f32 %v4809, %v5011
  %v5026 = vmul.f32 %v4813, %v5011
  %v5027 = vmul.f32 %v4817, %v5011
  %v5028 = vmul.f32 %v4821, %v5011
  %v5029 = vmul.f32 %v4825, %v5011
  %v5030 = vmul.f32 %v4829, %v5011
  %v5031 = vmul.f32 %v4833, %v5011
  %v5032 = vmul.f32 %v4837, %v5011
  %v5033 = vmul.f32 %v4841, %v5011
  %v5034 = vmul.f32 %v4845, %v5011
  %v5035 = vmul.f32 %v4849, %v5011
  %v5036 = vmul.f32 %v4853, %v5011
  %v5037 = vmul.f32 %v4857, %v5011
  %v5038 = vmul.f32 %v4861, %v5011
  %v5039 = vmul.f32 %v4865, %v5011
  %v5040 = vmul.f32 %v4869, %v5011
  %v5041 = vmul.f32 %v4873, %v5011
  %v5042 = vmul.f32 %v4877, %v5011
  %v5043 = vmul.f32 %v4881, %v5011
  %v5044 = vmul.f32 %v4885, %v5011
  %v5045 = vmul.f32 %v4889, %v5011
  %v5046 = vmul.f32 %v4893, %v5011
  %v5047 = vmul.f32 %v4897, %v5011
  %v5048 = vmul.f32 %v4901, %v5011
  %v5049 = vmul.f32 %v4905, %v5011
  %v5050 = vmul.f32 %v4909, %v5011
  %v5051 = vmul.f32 %v4913, %v5011
  %v5052 = vmul.f32 %v4917, %v5011
  %v5053 = vmul.f32 %v4921, %v5011
  %v5054 = vmul.f32 %v4925, %v5011
  %v5055 = vmul.f32 %v4929, %v5011
  %v5056 = vmul.f32 %v4933, %v5011
  %v5057 = vmul.f32 %v4937, %v5011
  %v5058 = vmul.f32 %v4941, %v5011
  %v5059 = vmul.f32 %v4945, %v5011
  %v5060 = vmul.f32 %v4949, %v5011
  %v5061 = vmul.f32 %v4953, %v5011
  %v5062 = vmul.f32 %v4957, %v5011
  %v5063 = vmul.f32 %v4961, %v5011
  %v5064 = vmul.f32 %v4965, %v5011
  %v5065 = vmul.f32 %v4969, %v5011
  %v5066 = vmul.f32 %v4973, %v5011
  %v5067 = vmul.f32 %v4977, %v5011
  %v5068 = vmul.f32 %v4981, %v5011
  %v5069 = vmul.f32 %v4985, %v5011
  %v5070 = vmul.f32 %v4989, %v5011
  %v5071 = vmul.f32 %v4993, %v5011
  %v5072 = vmul.f32 %v4997, %v5011
  %v5073 = vmul.f32 %v5001, %v5011
  %v5074 = vmul.f32 %v5005, %v5011
  %v5075 = vmul.f32 %v5009, %v5011
  %v5076 = vadd.f32 %v4690, %v5012
  %v5077 = vadd.f32 %v4691, %v5013
  %v5078 = vadd.f32 %v4692, %v5014
  %v5079 = vadd.f32 %v4693, %v5015
  %v5080 = vadd.f32 %v4694, %v5016
  %v5081 = vadd.f32 %v4695, %v5017
  %v5082 = vadd.f32 %v4696, %v5018
  %v5083 = vadd.f32 %v4697, %v5019
  %v5084 = vadd.f32 %v4698, %v5020
  %v5085 = vadd.f32 %v4699, %v5021
  %v5086 = vadd.f32 %v4700, %v5022
  %v5087 = vadd.f32 %v4701, %v5023
  %v5088 = vadd.f32 %v4702, %v5024
  %v5089 = vadd.f32 %v4703, %v5025
  %v5090 = vadd.f32 %v4704, %v5026
  %v5091 = vadd.f32 %v4705, %v5027
  %v5092 = vadd.f32 %v4706, %v5028
  %v5093 = vadd.f32 %v4707, %v5029
  %v5094 = vadd.f32 %v4708, %v5030
  %v5095 = vadd.f32 %v4709, %v5031
  %v5096 = vadd.f32 %v4710, %v5032
  %v5097 = vadd.f32 %v4711, %v5033
  %v5098 = vadd.f32 %v4712, %v5034
  %v5099 = vadd.f32 %v4713, %v5035
  %v5100 = vadd.f32 %v4714, %v5036
  %v5101 = vadd.f32 %v4715, %v5037
  %v5102 = vadd.f32 %v4716, %v5038
  %v5103 = vadd.f32 %v4717, %v5039
  %v5104 = vadd.f32 %v4718, %v5040
  %v5105 = vadd.f32 %v4719, %v5041
  %v5106 = vadd.f32 %v4720, %v5042
  %v5107 = vadd.f32 %v4721, %v5043
  %v5108 = vadd.f32 %v4722, %v5044
  %v5109 = vadd.f32 %v4723, %v5045
  %v5110 = vadd.f32 %v4724, %v5046
  %v5111 = vadd.f32 %v4725, %v5047
  %v5112 = vadd.f32 %v4726, %v5048
  %v5113 = vadd.f32 %v4727, %v5049
  %v5114 = vadd.f32 %v4728, %v5050
  %v5115 = vadd.f32 %v4729, %v5051
  %v5116 = vadd.f32 %v4730, %v5052
  %v5117 = vadd.f32 %v4731, %v5053
  %v5118 = vadd.f32 %v4732, %v5054
  %v5119 = vadd.f32 %v4733, %v5055
  %v5120 = vadd.f32 %v4734, %v5056
  %v5121 = vadd.f32 %v4735, %v5057
  %v5122 = vadd.f32 %v4736, %v5058
  %v5123 = vadd.f32 %v4737, %v5059
  %v5124 = vadd.f32 %v4738, %v5060
  %v5125 = vadd.f32 %v4739, %v5061
  %v5126 = vadd.f32 %v4740, %v5062
  %v5127 = vadd.f32 %v4741, %v5063
  %v5128 = vadd.f32 %v4742, %v5064
  %v5129 = vadd.f32 %v4743, %v5065
  %v5130 = vadd.f32 %v4744, %v5066
  %v5131 = vadd.f32 %v4745, %v5067
  %v5132 = vadd.f32 %v4746, %v5068
  %v5133 = vadd.f32 %v4747, %v5069
  %v5134 = vadd.f32 %v4748, %v5070
  %v5135 = vadd.f32 %v4749, %v5071
  %v5136 = vadd.f32 %v4750, %v5072
  %v5137 = vadd.f32 %v4751, %v5073
  %v5138 = vadd.f32 %v4752, %v5074
  %v5139 = vadd.f32 %v4753, %v5075
  %v5140 = vld [vmem:[%s13 + $0x2] sm:$0x1]
  %5141 = vset.pattern.permute.xlu0 2
  %5142 = vperm.xlu0 %5141, %v127
  %v5143 = vpop.permute.xlu0 %5142
  %5145 = vset.pattern.permute.xlu0 2
  %5146 = vperm.xlu0 %5145, %v128
  %v5147 = vpop.permute.xlu0 %5146
  %5149 = vset.pattern.permute.xlu0 2
  %5150 = vperm.xlu0 %5149, %v129
  %v5151 = vpop.permute.xlu0 %5150
  %5153 = vset.pattern.permute.xlu0 2
  %5154 = vperm.xlu0 %5153, %v130
  %v5155 = vpop.permute.xlu0 %5154
  %5157 = vset.pattern.permute.xlu0 2
  %5158 = vperm.xlu0 %5157, %v131
  %v5159 = vpop.permute.xlu0 %5158
  %5161 = vset.pattern.permute.xlu0 2
  %5162 = vperm.xlu0 %5161, %v132
  %v5163 = vpop.permute.xlu0 %5162
  %5165 = vset.pattern.permute.xlu0 2
  %5166 = vperm.xlu0 %5165, %v133
  %v5167 = vpop.permute.xlu0 %5166
  %5169 = vset.pattern.permute.xlu0 2
  %5170 = vperm.xlu0 %5169, %v134
  %v5171 = vpop.permute.xlu0 %5170
  %5173 = vset.pattern.permute.xlu0 2
  %5174 = vperm.xlu0 %5173, %v135
  %v5175 = vpop.permute.xlu0 %5174
  %5177 = vset.pattern.permute.xlu0 2
  %5178 = vperm.xlu0 %5177, %v136
  %v5179 = vpop.permute.xlu0 %5178
  %5181 = vset.pattern.permute.xlu0 2
  %5182 = vperm.xlu0 %5181, %v137
  %v5183 = vpop.permute.xlu0 %5182
  %5185 = vset.pattern.permute.xlu0 2
  %5186 = vperm.xlu0 %5185, %v138
  %v5187 = vpop.permute.xlu0 %5186
  %5189 = vset.pattern.permute.xlu0 2
  %5190 = vperm.xlu0 %5189, %v139
  %v5191 = vpop.permute.xlu0 %5190
  %5193 = vset.pattern.permute.xlu0 2
  %5194 = vperm.xlu0 %5193, %v140
  %v5195 = vpop.permute.xlu0 %5194
  %5197 = vset.pattern.permute.xlu0 2
  %5198 = vperm.xlu0 %5197, %v141
  %v5199 = vpop.permute.xlu0 %5198
  %5201 = vset.pattern.permute.xlu0 2
  %5202 = vperm.xlu0 %5201, %v142
  %v5203 = vpop.permute.xlu0 %5202
  %5205 = vset.pattern.permute.xlu0 2
  %5206 = vperm.xlu0 %5205, %v143
  %v5207 = vpop.permute.xlu0 %5206
  %5209 = vset.pattern.permute.xlu0 2
  %5210 = vperm.xlu0 %5209, %v144
  %v5211 = vpop.permute.xlu0 %5210
  %5213 = vset.pattern.permute.xlu0 2
  %5214 = vperm.xlu0 %5213, %v145
  %v5215 = vpop.permute.xlu0 %5214
  %5217 = vset.pattern.permute.xlu0 2
  %5218 = vperm.xlu0 %5217, %v146
  %v5219 = vpop.permute.xlu0 %5218
  %5221 = vset.pattern.permute.xlu0 2
  %5222 = vperm.xlu0 %5221, %v147
  %v5223 = vpop.permute.xlu0 %5222
  %5225 = vset.pattern.permute.xlu0 2
  %5226 = vperm.xlu0 %5225, %v148
  %v5227 = vpop.permute.xlu0 %5226
  %5229 = vset.pattern.permute.xlu0 2
  %5230 = vperm.xlu0 %5229, %v149
  %v5231 = vpop.permute.xlu0 %5230
  %5233 = vset.pattern.permute.xlu0 2
  %5234 = vperm.xlu0 %5233, %v150
  %v5235 = vpop.permute.xlu0 %5234
  %5237 = vset.pattern.permute.xlu0 2
  %5238 = vperm.xlu0 %5237, %v151
  %v5239 = vpop.permute.xlu0 %5238
  %5241 = vset.pattern.permute.xlu0 2
  %5242 = vperm.xlu0 %5241, %v152
  %v5243 = vpop.permute.xlu0 %5242
  %5245 = vset.pattern.permute.xlu0 2
  %5246 = vperm.xlu0 %5245, %v153
  %v5247 = vpop.permute.xlu0 %5246
  %5249 = vset.pattern.permute.xlu0 2
  %5250 = vperm.xlu0 %5249, %v154
  %v5251 = vpop.permute.xlu0 %5250
  %5253 = vset.pattern.permute.xlu0 2
  %5254 = vperm.xlu0 %5253, %v155
  %v5255 = vpop.permute.xlu0 %5254
  %5257 = vset.pattern.permute.xlu0 2
  %5258 = vperm.xlu0 %5257, %v156
  %v5259 = vpop.permute.xlu0 %5258
  %5261 = vset.pattern.permute.xlu0 2
  %5262 = vperm.xlu0 %5261, %v157
  %v5263 = vpop.permute.xlu0 %5262
  %5265 = vset.pattern.permute.xlu0 2
  %5266 = vperm.xlu0 %5265, %v158
  %v5267 = vpop.permute.xlu0 %5266
  %5269 = vset.pattern.permute.xlu0 2
  %5270 = vperm.xlu0 %5269, %v159
  %v5271 = vpop.permute.xlu0 %5270
  %5273 = vset.pattern.permute.xlu0 2
  %5274 = vperm.xlu0 %5273, %v160
  %v5275 = vpop.permute.xlu0 %5274
  %5277 = vset.pattern.permute.xlu0 2
  %5278 = vperm.xlu0 %5277, %v161
  %v5279 = vpop.permute.xlu0 %5278
  %5281 = vset.pattern.permute.xlu0 2
  %5282 = vperm.xlu0 %5281, %v162
  %v5283 = vpop.permute.xlu0 %5282
  %5285 = vset.pattern.permute.xlu0 2
  %5286 = vperm.xlu0 %5285, %v163
  %v5287 = vpop.permute.xlu0 %5286
  %5289 = vset.pattern.permute.xlu0 2
  %5290 = vperm.xlu0 %5289, %v164
  %v5291 = vpop.permute.xlu0 %5290
  %5293 = vset.pattern.permute.xlu0 2
  %5294 = vperm.xlu0 %5293, %v165
  %v5295 = vpop.permute.xlu0 %5294
  %5297 = vset.pattern.permute.xlu0 2
  %5298 = vperm.xlu0 %5297, %v166
  %v5299 = vpop.permute.xlu0 %5298
  %5301 = vset.pattern.permute.xlu0 2
  %5302 = vperm.xlu0 %5301, %v167
  %v5303 = vpop.permute.xlu0 %5302
  %5305 = vset.pattern.permute.xlu0 2
  %5306 = vperm.xlu0 %5305, %v168
  %v5307 = vpop.permute.xlu0 %5306
  %5309 = vset.pattern.permute.xlu0 2
  %5310 = vperm.xlu0 %5309, %v169
  %v5311 = vpop.permute.xlu0 %5310
  %5313 = vset.pattern.permute.xlu0 2
  %5314 = vperm.xlu0 %5313, %v170
  %v5315 = vpop.permute.xlu0 %5314
  %5317 = vset.pattern.permute.xlu0 2
  %5318 = vperm.xlu0 %5317, %v171
  %v5319 = vpop.permute.xlu0 %5318
  %5321 = vset.pattern.permute.xlu0 2
  %5322 = vperm.xlu0 %5321, %v172
  %v5323 = vpop.permute.xlu0 %5322
  %5325 = vset.pattern.permute.xlu0 2
  %5326 = vperm.xlu0 %5325, %v173
  %v5327 = vpop.permute.xlu0 %5326
  %5329 = vset.pattern.permute.xlu0 2
  %5330 = vperm.xlu0 %5329, %v174
  %v5331 = vpop.permute.xlu0 %5330
  %5333 = vset.pattern.permute.xlu0 2
  %5334 = vperm.xlu0 %5333, %v175
  %v5335 = vpop.permute.xlu0 %5334
  %5337 = vset.pattern.permute.xlu0 2
  %5338 = vperm.xlu0 %5337, %v176
  %v5339 = vpop.permute.xlu0 %5338
  %5341 = vset.pattern.permute.xlu0 2
  %5342 = vperm.xlu0 %5341, %v177
  %v5343 = vpop.permute.xlu0 %5342
  %5345 = vset.pattern.permute.xlu0 2
  %5346 = vperm.xlu0 %5345, %v178
  %v5347 = vpop.permute.xlu0 %5346
  %5349 = vset.pattern.permute.xlu0 2
  %5350 = vperm.xlu0 %5349, %v179
  %v5351 = vpop.permute.xlu0 %5350
  %5353 = vset.pattern.permute.xlu0 2
  %5354 = vperm.xlu0 %5353, %v180
  %v5355 = vpop.permute.xlu0 %5354
  %5357 = vset.pattern.permute.xlu0 2
  %5358 = vperm.xlu0 %5357, %v181
  %v5359 = vpop.permute.xlu0 %5358
  %5361 = vset.pattern.permute.xlu0 2
  %5362 = vperm.xlu0 %5361, %v182
  %v5363 = vpop.permute.xlu0 %5362
  %5365 = vset.pattern.permute.xlu0 2
  %5366 = vperm.xlu0 %5365, %v183
  %v5367 = vpop.permute.xlu0 %5366
  %5369 = vset.pattern.permute.xlu0 2
  %5370 = vperm.xlu0 %5369, %v184
  %v5371 = vpop.permute.xlu0 %5370
  %5373 = vset.pattern.permute.xlu0 2
  %5374 = vperm.xlu0 %5373, %v185
  %v5375 = vpop.permute.xlu0 %5374
  %5377 = vset.pattern.permute.xlu0 2
  %5378 = vperm.xlu0 %5377, %v186
  %v5379 = vpop.permute.xlu0 %5378
  %5381 = vset.pattern.permute.xlu0 2
  %5382 = vperm.xlu0 %5381, %v187
  %v5383 = vpop.permute.xlu0 %5382
  %5385 = vset.pattern.permute.xlu0 2
  %5386 = vperm.xlu0 %5385, %v188
  %v5387 = vpop.permute.xlu0 %5386
  %5389 = vset.pattern.permute.xlu0 2
  %5390 = vperm.xlu0 %5389, %v189
  %v5391 = vpop.permute.xlu0 %5390
  %5393 = vset.pattern.permute.xlu0 2
  %5394 = vperm.xlu0 %5393, %v190
  %v5395 = vpop.permute.xlu0 %5394
  %v5397 = vperm.slane %v5140, 0
  %v5398 = vmul.f32 %v5143, %v5397
  %v5399 = vmul.f32 %v5147, %v5397
  %v5400 = vmul.f32 %v5151, %v5397
  %v5401 = vmul.f32 %v5155, %v5397
  %v5402 = vmul.f32 %v5159, %v5397
  %v5403 = vmul.f32 %v5163, %v5397
  %v5404 = vmul.f32 %v5167, %v5397
  %v5405 = vmul.f32 %v5171, %v5397
  %v5406 = vmul.f32 %v5175, %v5397
  %v5407 = vmul.f32 %v5179, %v5397
  %v5408 = vmul.f32 %v5183, %v5397
  %v5409 = vmul.f32 %v5187, %v5397
  %v5410 = vmul.f32 %v5191, %v5397
  %v5411 = vmul.f32 %v5195, %v5397
  %v5412 = vmul.f32 %v5199, %v5397
  %v5413 = vmul.f32 %v5203, %v5397
  %v5414 = vmul.f32 %v5207, %v5397
  %v5415 = vmul.f32 %v5211, %v5397
  %v5416 = vmul.f32 %v5215, %v5397
  %v5417 = vmul.f32 %v5219, %v5397
  %v5418 = vmul.f32 %v5223, %v5397
  %v5419 = vmul.f32 %v5227, %v5397
  %v5420 = vmul.f32 %v5231, %v5397
  %v5421 = vmul.f32 %v5235, %v5397
  %v5422 = vmul.f32 %v5239, %v5397
  %v5423 = vmul.f32 %v5243, %v5397
  %v5424 = vmul.f32 %v5247, %v5397
  %v5425 = vmul.f32 %v5251, %v5397
  %v5426 = vmul.f32 %v5255, %v5397
  %v5427 = vmul.f32 %v5259, %v5397
  %v5428 = vmul.f32 %v5263, %v5397
  %v5429 = vmul.f32 %v5267, %v5397
  %v5430 = vmul.f32 %v5271, %v5397
  %v5431 = vmul.f32 %v5275, %v5397
  %v5432 = vmul.f32 %v5279, %v5397
  %v5433 = vmul.f32 %v5283, %v5397
  %v5434 = vmul.f32 %v5287, %v5397
  %v5435 = vmul.f32 %v5291, %v5397
  %v5436 = vmul.f32 %v5295, %v5397
  %v5437 = vmul.f32 %v5299, %v5397
  %v5438 = vmul.f32 %v5303, %v5397
  %v5439 = vmul.f32 %v5307, %v5397
  %v5440 = vmul.f32 %v5311, %v5397
  %v5441 = vmul.f32 %v5315, %v5397
  %v5442 = vmul.f32 %v5319, %v5397
  %v5443 = vmul.f32 %v5323, %v5397
  %v5444 = vmul.f32 %v5327, %v5397
  %v5445 = vmul.f32 %v5331, %v5397
  %v5446 = vmul.f32 %v5335, %v5397
  %v5447 = vmul.f32 %v5339, %v5397
  %v5448 = vmul.f32 %v5343, %v5397
  %v5449 = vmul.f32 %v5347, %v5397
  %v5450 = vmul.f32 %v5351, %v5397
  %v5451 = vmul.f32 %v5355, %v5397
  %v5452 = vmul.f32 %v5359, %v5397
  %v5453 = vmul.f32 %v5363, %v5397
  %v5454 = vmul.f32 %v5367, %v5397
  %v5455 = vmul.f32 %v5371, %v5397
  %v5456 = vmul.f32 %v5375, %v5397
  %v5457 = vmul.f32 %v5379, %v5397
  %v5458 = vmul.f32 %v5383, %v5397
  %v5459 = vmul.f32 %v5387, %v5397
  %v5460 = vmul.f32 %v5391, %v5397
  %v5461 = vmul.f32 %v5395, %v5397
  %v5462 = vadd.f32 %v5076, %v5398
  %v5463 = vadd.f32 %v5077, %v5399
  %v5464 = vadd.f32 %v5078, %v5400
  %v5465 = vadd.f32 %v5079, %v5401
  %v5466 = vadd.f32 %v5080, %v5402
  %v5467 = vadd.f32 %v5081, %v5403
  %v5468 = vadd.f32 %v5082, %v5404
  %v5469 = vadd.f32 %v5083, %v5405
  %v5470 = vadd.f32 %v5084, %v5406
  %v5471 = vadd.f32 %v5085, %v5407
  %v5472 = vadd.f32 %v5086, %v5408
  %v5473 = vadd.f32 %v5087, %v5409
  %v5474 = vadd.f32 %v5088, %v5410
  %v5475 = vadd.f32 %v5089, %v5411
  %v5476 = vadd.f32 %v5090, %v5412
  %v5477 = vadd.f32 %v5091, %v5413
  %v5478 = vadd.f32 %v5092, %v5414
  %v5479 = vadd.f32 %v5093, %v5415
  %v5480 = vadd.f32 %v5094, %v5416
  %v5481 = vadd.f32 %v5095, %v5417
  %v5482 = vadd.f32 %v5096, %v5418
  %v5483 = vadd.f32 %v5097, %v5419
  %v5484 = vadd.f32 %v5098, %v5420
  %v5485 = vadd.f32 %v5099, %v5421
  %v5486 = vadd.f32 %v5100, %v5422
  %v5487 = vadd.f32 %v5101, %v5423
  %v5488 = vadd.f32 %v5102, %v5424
  %v5489 = vadd.f32 %v5103, %v5425
  %v5490 = vadd.f32 %v5104, %v5426
  %v5491 = vadd.f32 %v5105, %v5427
  %v5492 = vadd.f32 %v5106, %v5428
  %v5493 = vadd.f32 %v5107, %v5429
  %v5494 = vadd.f32 %v5108, %v5430
  %v5495 = vadd.f32 %v5109, %v5431
  %v5496 = vadd.f32 %v5110, %v5432
  %v5497 = vadd.f32 %v5111, %v5433
  %v5498 = vadd.f32 %v5112, %v5434
  %v5499 = vadd.f32 %v5113, %v5435
  %v5500 = vadd.f32 %v5114, %v5436
  %v5501 = vadd.f32 %v5115, %v5437
  %v5502 = vadd.f32 %v5116, %v5438
  %v5503 = vadd.f32 %v5117, %v5439
  %v5504 = vadd.f32 %v5118, %v5440
  %v5505 = vadd.f32 %v5119, %v5441
  %v5506 = vadd.f32 %v5120, %v5442
  %v5507 = vadd.f32 %v5121, %v5443
  %v5508 = vadd.f32 %v5122, %v5444
  %v5509 = vadd.f32 %v5123, %v5445
  %v5510 = vadd.f32 %v5124, %v5446
  %v5511 = vadd.f32 %v5125, %v5447
  %v5512 = vadd.f32 %v5126, %v5448
  %v5513 = vadd.f32 %v5127, %v5449
  %v5514 = vadd.f32 %v5128, %v5450
  %v5515 = vadd.f32 %v5129, %v5451
  %v5516 = vadd.f32 %v5130, %v5452
  %v5517 = vadd.f32 %v5131, %v5453
  %v5518 = vadd.f32 %v5132, %v5454
  %v5519 = vadd.f32 %v5133, %v5455
  %v5520 = vadd.f32 %v5134, %v5456
  %v5521 = vadd.f32 %v5135, %v5457
  %v5522 = vadd.f32 %v5136, %v5458
  %v5523 = vadd.f32 %v5137, %v5459
  %v5524 = vadd.f32 %v5138, %v5460
  %v5525 = vadd.f32 %v5139, %v5461
  %vm5526 = vcmp.ge.f32.partialorder %v5462, 0.0
  %vm5527 = vcmp.ge.f32.partialorder %v5463, 0.0
  %vm5528 = vcmp.ge.f32.partialorder %v5464, 0.0
  %vm5529 = vcmp.ge.f32.partialorder %v5465, 0.0
  %vm5530 = vcmp.ge.f32.partialorder %v5466, 0.0
  %vm5531 = vcmp.ge.f32.partialorder %v5467, 0.0
  %vm5532 = vcmp.ge.f32.partialorder %v5468, 0.0
  %vm5533 = vcmp.ge.f32.partialorder %v5469, 0.0
  %vm5534 = vcmp.ge.f32.partialorder %v5470, 0.0
  %vm5535 = vcmp.ge.f32.partialorder %v5471, 0.0
  %vm5536 = vcmp.ge.f32.partialorder %v5472, 0.0
  %vm5537 = vcmp.ge.f32.partialorder %v5473, 0.0
  %vm5538 = vcmp.ge.f32.partialorder %v5474, 0.0
  %vm5539 = vcmp.ge.f32.partialorder %v5475, 0.0
  %vm5540 = vcmp.ge.f32.partialorder %v5476, 0.0
  %vm5541 = vcmp.ge.f32.partialorder %v5477, 0.0
  %vm5542 = vcmp.ge.f32.partialorder %v5478, 0.0
  %vm5543 = vcmp.ge.f32.partialorder %v5479, 0.0
  %vm5544 = vcmp.ge.f32.partialorder %v5480, 0.0
  %vm5545 = vcmp.ge.f32.partialorder %v5481, 0.0
  %vm5546 = vcmp.ge.f32.partialorder %v5482, 0.0
  %vm5547 = vcmp.ge.f32.partialorder %v5483, 0.0
  %vm5548 = vcmp.ge.f32.partialorder %v5484, 0.0
  %vm5549 = vcmp.ge.f32.partialorder %v5485, 0.0
  %vm5550 = vcmp.ge.f32.partialorder %v5486, 0.0
  %vm5551 = vcmp.ge.f32.partialorder %v5487, 0.0
  %vm5552 = vcmp.ge.f32.partialorder %v5488, 0.0
  %vm5553 = vcmp.ge.f32.partialorder %v5489, 0.0
  %vm5554 = vcmp.ge.f32.partialorder %v5490, 0.0
  %vm5555 = vcmp.ge.f32.partialorder %v5491, 0.0
  %vm5556 = vcmp.ge.f32.partialorder %v5492, 0.0
  %vm5557 = vcmp.ge.f32.partialorder %v5493, 0.0
  %vm5558 = vcmp.ge.f32.partialorder %v5494, 0.0
  %vm5559 = vcmp.ge.f32.partialorder %v5495, 0.0
  %vm5560 = vcmp.ge.f32.partialorder %v5496, 0.0
  %vm5561 = vcmp.ge.f32.partialorder %v5497, 0.0
  %vm5562 = vcmp.ge.f32.partialorder %v5498, 0.0
  %vm5563 = vcmp.ge.f32.partialorder %v5499, 0.0
  %vm5564 = vcmp.ge.f32.partialorder %v5500, 0.0
  %vm5565 = vcmp.ge.f32.partialorder %v5501, 0.0
  %vm5566 = vcmp.ge.f32.partialorder %v5502, 0.0
  %vm5567 = vcmp.ge.f32.partialorder %v5503, 0.0
  %vm5568 = vcmp.ge.f32.partialorder %v5504, 0.0
  %vm5569 = vcmp.ge.f32.partialorder %v5505, 0.0
  %vm5570 = vcmp.ge.f32.partialorder %v5506, 0.0
  %vm5571 = vcmp.ge.f32.partialorder %v5507, 0.0
  %vm5572 = vcmp.ge.f32.partialorder %v5508, 0.0
  %vm5573 = vcmp.ge.f32.partialorder %v5509, 0.0
  %vm5574 = vcmp.ge.f32.partialorder %v5510, 0.0
  %vm5575 = vcmp.ge.f32.partialorder %v5511, 0.0
  %vm5576 = vcmp.ge.f32.partialorder %v5512, 0.0
  %vm5577 = vcmp.ge.f32.partialorder %v5513, 0.0
  %vm5578 = vcmp.ge.f32.partialorder %v5514, 0.0
  %vm5579 = vcmp.ge.f32.partialorder %v5515, 0.0
  %vm5580 = vcmp.ge.f32.partialorder %v5516, 0.0
  %vm5581 = vcmp.ge.f32.partialorder %v5517, 0.0
  %vm5582 = vcmp.ge.f32.partialorder %v5518, 0.0
  %vm5583 = vcmp.ge.f32.partialorder %v5519, 0.0
  %vm5584 = vcmp.ge.f32.partialorder %v5520, 0.0
  %vm5585 = vcmp.ge.f32.partialorder %v5521, 0.0
  %vm5586 = vcmp.ge.f32.partialorder %v5522, 0.0
  %vm5587 = vcmp.ge.f32.partialorder %v5523, 0.0
  %vm5588 = vcmp.ge.f32.partialorder %v5524, 0.0
  %vm5589 = vcmp.ge.f32.partialorder %v5525, 0.0
  %v5590 = vmul.f32 %v5462, 0.01
  %v5591 = vmul.f32 %v5463, 0.01
  %v5592 = vmul.f32 %v5464, 0.01
  %v5593 = vmul.f32 %v5465, 0.01
  %v5594 = vmul.f32 %v5466, 0.01
  %v5595 = vmul.f32 %v5467, 0.01
  %v5596 = vmul.f32 %v5468, 0.01
  %v5597 = vmul.f32 %v5469, 0.01
  %v5598 = vmul.f32 %v5470, 0.01
  %v5599 = vmul.f32 %v5471, 0.01
  %v5600 = vmul.f32 %v5472, 0.01
  %v5601 = vmul.f32 %v5473, 0.01
  %v5602 = vmul.f32 %v5474, 0.01
  %v5603 = vmul.f32 %v5475, 0.01
  %v5604 = vmul.f32 %v5476, 0.01
  %v5605 = vmul.f32 %v5477, 0.01
  %v5606 = vmul.f32 %v5478, 0.01
  %v5607 = vmul.f32 %v5479, 0.01
  %v5608 = vmul.f32 %v5480, 0.01
  %v5609 = vmul.f32 %v5481, 0.01
  %v5610 = vmul.f32 %v5482, 0.01
  %v5611 = vmul.f32 %v5483, 0.01
  %v5612 = vmul.f32 %v5484, 0.01
  %v5613 = vmul.f32 %v5485, 0.01
  %v5614 = vmul.f32 %v5486, 0.01
  %v5615 = vmul.f32 %v5487, 0.01
  %v5616 = vmul.f32 %v5488, 0.01
  %v5617 = vmul.f32 %v5489, 0.01
  %v5618 = vmul.f32 %v5490, 0.01
  %v5619 = vmul.f32 %v5491, 0.01
  %v5620 = vmul.f32 %v5492, 0.01
  %v5621 = vmul.f32 %v5493, 0.01
  %v5622 = vmul.f32 %v5494, 0.01
  %v5623 = vmul.f32 %v5495, 0.01
  %v5624 = vmul.f32 %v5496, 0.01
  %v5625 = vmul.f32 %v5497, 0.01
  %v5626 = vmul.f32 %v5498, 0.01
  %v5627 = vmul.f32 %v5499, 0.01
  %v5628 = vmul.f32 %v5500, 0.01
  %v5629 = vmul.f32 %v5501, 0.01
  %v5630 = vmul.f32 %v5502, 0.01
  %v5631 = vmul.f32 %v5503, 0.01
  %v5632 = vmul.f32 %v5504, 0.01
  %v5633 = vmul.f32 %v5505, 0.01
  %v5634 = vmul.f32 %v5506, 0.01
  %v5635 = vmul.f32 %v5507, 0.01
  %v5636 = vmul.f32 %v5508, 0.01
  %v5637 = vmul.f32 %v5509, 0.01
  %v5638 = vmul.f32 %v5510, 0.01
  %v5639 = vmul.f32 %v5511, 0.01
  %v5640 = vmul.f32 %v5512, 0.01
  %v5641 = vmul.f32 %v5513, 0.01
  %v5642 = vmul.f32 %v5514, 0.01
  %v5643 = vmul.f32 %v5515, 0.01
  %v5644 = vmul.f32 %v5516, 0.01
  %v5645 = vmul.f32 %v5517, 0.01
  %v5646 = vmul.f32 %v5518, 0.01
  %v5647 = vmul.f32 %v5519, 0.01
  %v5648 = vmul.f32 %v5520, 0.01
  %v5649 = vmul.f32 %v5521, 0.01
  %v5650 = vmul.f32 %v5522, 0.01
  %v5651 = vmul.f32 %v5523, 0.01
  %v5652 = vmul.f32 %v5524, 0.01
  %v5653 = vmul.f32 %v5525, 0.01
  %v5654 = vsel %vm5526, %v5462, %v5590
  %v5655 = vsel %vm5527, %v5463, %v5591
  %v5656 = vsel %vm5528, %v5464, %v5592
  %v5657 = vsel %vm5529, %v5465, %v5593
  %v5658 = vsel %vm5530, %v5466, %v5594
  %v5659 = vsel %vm5531, %v5467, %v5595
  %v5660 = vsel %vm5532, %v5468, %v5596
  %v5661 = vsel %vm5533, %v5469, %v5597
  %v5662 = vsel %vm5534, %v5470, %v5598
  %v5663 = vsel %vm5535, %v5471, %v5599
  %v5664 = vsel %vm5536, %v5472, %v5600
  %v5665 = vsel %vm5537, %v5473, %v5601
  %v5666 = vsel %vm5538, %v5474, %v5602
  %v5667 = vsel %vm5539, %v5475, %v5603
  %v5668 = vsel %vm5540, %v5476, %v5604
  %v5669 = vsel %vm5541, %v5477, %v5605
  %v5670 = vsel %vm5542, %v5478, %v5606
  %v5671 = vsel %vm5543, %v5479, %v5607
  %v5672 = vsel %vm5544, %v5480, %v5608
  %v5673 = vsel %vm5545, %v5481, %v5609
  %v5674 = vsel %vm5546, %v5482, %v5610
  %v5675 = vsel %vm5547, %v5483, %v5611
  %v5676 = vsel %vm5548, %v5484, %v5612
  %v5677 = vsel %vm5549, %v5485, %v5613
  %v5678 = vsel %vm5550, %v5486, %v5614
  %v5679 = vsel %vm5551, %v5487, %v5615
  %v5680 = vsel %vm5552, %v5488, %v5616
  %v5681 = vsel %vm5553, %v5489, %v5617
  %v5682 = vsel %vm5554, %v5490, %v5618
  %v5683 = vsel %vm5555, %v5491, %v5619
  %v5684 = vsel %vm5556, %v5492, %v5620
  %v5685 = vsel %vm5557, %v5493, %v5621
  %v5686 = vsel %vm5558, %v5494, %v5622
  %v5687 = vsel %vm5559, %v5495, %v5623
  %v5688 = vsel %vm5560, %v5496, %v5624
  %v5689 = vsel %vm5561, %v5497, %v5625
  %v5690 = vsel %vm5562, %v5498, %v5626
  %v5691 = vsel %vm5563, %v5499, %v5627
  %v5692 = vsel %vm5564, %v5500, %v5628
  %v5693 = vsel %vm5565, %v5501, %v5629
  %v5694 = vsel %vm5566, %v5502, %v5630
  %v5695 = vsel %vm5567, %v5503, %v5631
  %v5696 = vsel %vm5568, %v5504, %v5632
  %v5697 = vsel %vm5569, %v5505, %v5633
  %v5698 = vsel %vm5570, %v5506, %v5634
  %v5699 = vsel %vm5571, %v5507, %v5635
  %v5700 = vsel %vm5572, %v5508, %v5636
  %v5701 = vsel %vm5573, %v5509, %v5637
  %v5702 = vsel %vm5574, %v5510, %v5638
  %v5703 = vsel %vm5575, %v5511, %v5639
  %v5704 = vsel %vm5576, %v5512, %v5640
  %v5705 = vsel %vm5577, %v5513, %v5641
  %v5706 = vsel %vm5578, %v5514, %v5642
  %v5707 = vsel %vm5579, %v5515, %v5643
  %v5708 = vsel %vm5580, %v5516, %v5644
  %v5709 = vsel %vm5581, %v5517, %v5645
  %v5710 = vsel %vm5582, %v5518, %v5646
  %v5711 = vsel %vm5583, %v5519, %v5647
  %v5712 = vsel %vm5584, %v5520, %v5648
  %v5713 = vsel %vm5585, %v5521, %v5649
  %v5714 = vsel %vm5586, %v5522, %v5650
  %v5715 = vsel %vm5587, %v5523, %v5651
  %v5716 = vsel %vm5588, %v5524, %v5652
  %v5717 = vsel %vm5589, %v5525, %v5653
  %v5718 = vld [vmem:[%s16] sm:$0x1]
  %v5719 = vperm.slane %v5718, 0
  %v5720 = vmul.f32 %v5654, %v5719
  %v5721 = vmul.f32 %v5655, %v5719
  %v5722 = vmul.f32 %v5656, %v5719
  %v5723 = vmul.f32 %v5657, %v5719
  %v5724 = vmul.f32 %v5658, %v5719
  %v5725 = vmul.f32 %v5659, %v5719
  %v5726 = vmul.f32 %v5660, %v5719
  %v5727 = vmul.f32 %v5661, %v5719
  %v5728 = vmul.f32 %v5662, %v5719
  %v5729 = vmul.f32 %v5663, %v5719
  %v5730 = vmul.f32 %v5664, %v5719
  %v5731 = vmul.f32 %v5665, %v5719
  %v5732 = vmul.f32 %v5666, %v5719
  %v5733 = vmul.f32 %v5667, %v5719
  %v5734 = vmul.f32 %v5668, %v5719
  %v5735 = vmul.f32 %v5669, %v5719
  %v5736 = vmul.f32 %v5670, %v5719
  %v5737 = vmul.f32 %v5671, %v5719
  %v5738 = vmul.f32 %v5672, %v5719
  %v5739 = vmul.f32 %v5673, %v5719
  %v5740 = vmul.f32 %v5674, %v5719
  %v5741 = vmul.f32 %v5675, %v5719
  %v5742 = vmul.f32 %v5676, %v5719
  %v5743 = vmul.f32 %v5677, %v5719
  %v5744 = vmul.f32 %v5678, %v5719
  %v5745 = vmul.f32 %v5679, %v5719
  %v5746 = vmul.f32 %v5680, %v5719
  %v5747 = vmul.f32 %v5681, %v5719
  %v5748 = vmul.f32 %v5682, %v5719
  %v5749 = vmul.f32 %v5683, %v5719
  %v5750 = vmul.f32 %v5684, %v5719
  %v5751 = vmul.f32 %v5685, %v5719
  %v5752 = vmul.f32 %v5686, %v5719
  %v5753 = vmul.f32 %v5687, %v5719
  %v5754 = vmul.f32 %v5688, %v5719
  %v5755 = vmul.f32 %v5689, %v5719
  %v5756 = vmul.f32 %v5690, %v5719
  %v5757 = vmul.f32 %v5691, %v5719
  %v5758 = vmul.f32 %v5692, %v5719
  %v5759 = vmul.f32 %v5693, %v5719
  %v5760 = vmul.f32 %v5694, %v5719
  %v5761 = vmul.f32 %v5695, %v5719
  %v5762 = vmul.f32 %v5696, %v5719
  %v5763 = vmul.f32 %v5697, %v5719
  %v5764 = vmul.f32 %v5698, %v5719
  %v5765 = vmul.f32 %v5699, %v5719
  %v5766 = vmul.f32 %v5700, %v5719
  %v5767 = vmul.f32 %v5701, %v5719
  %v5768 = vmul.f32 %v5702, %v5719
  %v5769 = vmul.f32 %v5703, %v5719
  %v5770 = vmul.f32 %v5704, %v5719
  %v5771 = vmul.f32 %v5705, %v5719
  %v5772 = vmul.f32 %v5706, %v5719
  %v5773 = vmul.f32 %v5707, %v5719
  %v5774 = vmul.f32 %v5708, %v5719
  %v5775 = vmul.f32 %v5709, %v5719
  %v5776 = vmul.f32 %v5710, %v5719
  %v5777 = vmul.f32 %v5711, %v5719
  %v5778 = vmul.f32 %v5712, %v5719
  %v5779 = vmul.f32 %v5713, %v5719
  %v5780 = vmul.f32 %v5714, %v5719
  %v5781 = vmul.f32 %v5715, %v5719
  %v5782 = vmul.f32 %v5716, %v5719
  %v5783 = vmul.f32 %v5717, %v5719
  %v5784 = vsel %vm451, %v5720, 0.0
  %5785 = vadd.xlane.f32.xlu0 %v5784
  %v5786 = vpop.xlane.xlu0 %5785
  %v5787 = vsel %vm451, %v5721, 0.0
  %5788 = vadd.xlane.f32.xlu0 %v5787
  %v5789 = vpop.xlane.xlu0 %5788
  %v5790 = vsel %vm451, %v5722, 0.0
  %5791 = vadd.xlane.f32.xlu0 %v5790
  %v5792 = vpop.xlane.xlu0 %5791
  %v5793 = vsel %vm451, %v5723, 0.0
  %5794 = vadd.xlane.f32.xlu0 %v5793
  %v5795 = vpop.xlane.xlu0 %5794
  %v5796 = vsel %vm451, %v5724, 0.0
  %5797 = vadd.xlane.f32.xlu0 %v5796
  %v5798 = vpop.xlane.xlu0 %5797
  %v5799 = vsel %vm451, %v5725, 0.0
  %5800 = vadd.xlane.f32.xlu0 %v5799
  %v5801 = vpop.xlane.xlu0 %5800
  %v5802 = vsel %vm451, %v5726, 0.0
  %5803 = vadd.xlane.f32.xlu0 %v5802
  %v5804 = vpop.xlane.xlu0 %5803
  %v5805 = vsel %vm451, %v5727, 0.0
  %5806 = vadd.xlane.f32.xlu0 %v5805
  %v5807 = vpop.xlane.xlu0 %5806
  %v5808 = vsel %vm451, %v5728, 0.0
  %5809 = vadd.xlane.f32.xlu0 %v5808
  %v5810 = vpop.xlane.xlu0 %5809
  %v5811 = vsel %vm451, %v5729, 0.0
  %5812 = vadd.xlane.f32.xlu0 %v5811
  %v5813 = vpop.xlane.xlu0 %5812
  %v5814 = vsel %vm451, %v5730, 0.0
  %5815 = vadd.xlane.f32.xlu0 %v5814
  %v5816 = vpop.xlane.xlu0 %5815
  %v5817 = vsel %vm451, %v5731, 0.0
  %5818 = vadd.xlane.f32.xlu0 %v5817
  %v5819 = vpop.xlane.xlu0 %5818
  %v5820 = vsel %vm451, %v5732, 0.0
  %5821 = vadd.xlane.f32.xlu0 %v5820
  %v5822 = vpop.xlane.xlu0 %5821
  %v5823 = vsel %vm451, %v5733, 0.0
  %5824 = vadd.xlane.f32.xlu0 %v5823
  %v5825 = vpop.xlane.xlu0 %5824
  %v5826 = vsel %vm451, %v5734, 0.0
  %5827 = vadd.xlane.f32.xlu0 %v5826
  %v5828 = vpop.xlane.xlu0 %5827
  %v5829 = vsel %vm451, %v5735, 0.0
  %5830 = vadd.xlane.f32.xlu0 %v5829
  %v5831 = vpop.xlane.xlu0 %5830
  %v5832 = vsel %vm451, %v5736, 0.0
  %5833 = vadd.xlane.f32.xlu0 %v5832
  %v5834 = vpop.xlane.xlu0 %5833
  %v5835 = vsel %vm451, %v5737, 0.0
  %5836 = vadd.xlane.f32.xlu0 %v5835
  %v5837 = vpop.xlane.xlu0 %5836
  %v5838 = vsel %vm451, %v5738, 0.0
  %5839 = vadd.xlane.f32.xlu0 %v5838
  %v5840 = vpop.xlane.xlu0 %5839
  %v5841 = vsel %vm451, %v5739, 0.0
  %5842 = vadd.xlane.f32.xlu0 %v5841
  %v5843 = vpop.xlane.xlu0 %5842
  %v5844 = vsel %vm451, %v5740, 0.0
  %5845 = vadd.xlane.f32.xlu0 %v5844
  %v5846 = vpop.xlane.xlu0 %5845
  %v5847 = vsel %vm451, %v5741, 0.0
  %5848 = vadd.xlane.f32.xlu0 %v5847
  %v5849 = vpop.xlane.xlu0 %5848
  %v5850 = vsel %vm451, %v5742, 0.0
  %5851 = vadd.xlane.f32.xlu0 %v5850
  %v5852 = vpop.xlane.xlu0 %5851
  %v5853 = vsel %vm451, %v5743, 0.0
  %5854 = vadd.xlane.f32.xlu0 %v5853
  %v5855 = vpop.xlane.xlu0 %5854
  %v5856 = vsel %vm451, %v5744, 0.0
  %5857 = vadd.xlane.f32.xlu0 %v5856
  %v5858 = vpop.xlane.xlu0 %5857
  %v5859 = vsel %vm451, %v5745, 0.0
  %5860 = vadd.xlane.f32.xlu0 %v5859
  %v5861 = vpop.xlane.xlu0 %5860
  %v5862 = vsel %vm451, %v5746, 0.0
  %5863 = vadd.xlane.f32.xlu0 %v5862
  %v5864 = vpop.xlane.xlu0 %5863
  %v5865 = vsel %vm451, %v5747, 0.0
  %5866 = vadd.xlane.f32.xlu0 %v5865
  %v5867 = vpop.xlane.xlu0 %5866
  %v5868 = vsel %vm451, %v5748, 0.0
  %5869 = vadd.xlane.f32.xlu0 %v5868
  %v5870 = vpop.xlane.xlu0 %5869
  %v5871 = vsel %vm451, %v5749, 0.0
  %5872 = vadd.xlane.f32.xlu0 %v5871
  %v5873 = vpop.xlane.xlu0 %5872
  %v5874 = vsel %vm451, %v5750, 0.0
  %5875 = vadd.xlane.f32.xlu0 %v5874
  %v5876 = vpop.xlane.xlu0 %5875
  %v5877 = vsel %vm451, %v5751, 0.0
  %5878 = vadd.xlane.f32.xlu0 %v5877
  %v5879 = vpop.xlane.xlu0 %5878
  %v5880 = vsel %vm451, %v5752, 0.0
  %5881 = vadd.xlane.f32.xlu0 %v5880
  %v5882 = vpop.xlane.xlu0 %5881
  %v5883 = vsel %vm451, %v5753, 0.0
  %5884 = vadd.xlane.f32.xlu0 %v5883
  %v5885 = vpop.xlane.xlu0 %5884
  %v5886 = vsel %vm451, %v5754, 0.0
  %5887 = vadd.xlane.f32.xlu0 %v5886
  %v5888 = vpop.xlane.xlu0 %5887
  %v5889 = vsel %vm451, %v5755, 0.0
  %5890 = vadd.xlane.f32.xlu0 %v5889
  %v5891 = vpop.xlane.xlu0 %5890
  %v5892 = vsel %vm451, %v5756, 0.0
  %5893 = vadd.xlane.f32.xlu0 %v5892
  %v5894 = vpop.xlane.xlu0 %5893
  %v5895 = vsel %vm451, %v5757, 0.0
  %5896 = vadd.xlane.f32.xlu0 %v5895
  %v5897 = vpop.xlane.xlu0 %5896
  %v5898 = vsel %vm451, %v5758, 0.0
  %5899 = vadd.xlane.f32.xlu0 %v5898
  %v5900 = vpop.xlane.xlu0 %5899
  %v5901 = vsel %vm451, %v5759, 0.0
  %5902 = vadd.xlane.f32.xlu0 %v5901
  %v5903 = vpop.xlane.xlu0 %5902
  %v5904 = vsel %vm451, %v5760, 0.0
  %5905 = vadd.xlane.f32.xlu0 %v5904
  %v5906 = vpop.xlane.xlu0 %5905
  %v5907 = vsel %vm451, %v5761, 0.0
  %5908 = vadd.xlane.f32.xlu0 %v5907
  %v5909 = vpop.xlane.xlu0 %5908
  %v5910 = vsel %vm451, %v5762, 0.0
  %5911 = vadd.xlane.f32.xlu0 %v5910
  %v5912 = vpop.xlane.xlu0 %5911
  %v5913 = vsel %vm451, %v5763, 0.0
  %5914 = vadd.xlane.f32.xlu0 %v5913
  %v5915 = vpop.xlane.xlu0 %5914
  %v5916 = vsel %vm451, %v5764, 0.0
  %5917 = vadd.xlane.f32.xlu0 %v5916
  %v5918 = vpop.xlane.xlu0 %5917
  %v5919 = vsel %vm451, %v5765, 0.0
  %5920 = vadd.xlane.f32.xlu0 %v5919
  %v5921 = vpop.xlane.xlu0 %5920
  %v5922 = vsel %vm451, %v5766, 0.0
  %5923 = vadd.xlane.f32.xlu0 %v5922
  %v5924 = vpop.xlane.xlu0 %5923
  %v5925 = vsel %vm451, %v5767, 0.0
  %5926 = vadd.xlane.f32.xlu0 %v5925
  %v5927 = vpop.xlane.xlu0 %5926
  %v5928 = vsel %vm451, %v5768, 0.0
  %5929 = vadd.xlane.f32.xlu0 %v5928
  %v5930 = vpop.xlane.xlu0 %5929
  %v5931 = vsel %vm451, %v5769, 0.0
  %5932 = vadd.xlane.f32.xlu0 %v5931
  %v5933 = vpop.xlane.xlu0 %5932
  %v5934 = vsel %vm451, %v5770, 0.0
  %5935 = vadd.xlane.f32.xlu0 %v5934
  %v5936 = vpop.xlane.xlu0 %5935
  %v5937 = vsel %vm451, %v5771, 0.0
  %5938 = vadd.xlane.f32.xlu0 %v5937
  %v5939 = vpop.xlane.xlu0 %5938
  %v5940 = vsel %vm451, %v5772, 0.0
  %5941 = vadd.xlane.f32.xlu0 %v5940
  %v5942 = vpop.xlane.xlu0 %5941
  %v5943 = vsel %vm451, %v5773, 0.0
  %5944 = vadd.xlane.f32.xlu0 %v5943
  %v5945 = vpop.xlane.xlu0 %5944
  %v5946 = vsel %vm451, %v5774, 0.0
  %5947 = vadd.xlane.f32.xlu0 %v5946
  %v5948 = vpop.xlane.xlu0 %5947
  %v5949 = vsel %vm451, %v5775, 0.0
  %5950 = vadd.xlane.f32.xlu0 %v5949
  %v5951 = vpop.xlane.xlu0 %5950
  %v5952 = vsel %vm451, %v5776, 0.0
  %5953 = vadd.xlane.f32.xlu0 %v5952
  %v5954 = vpop.xlane.xlu0 %5953
  %v5955 = vsel %vm451, %v5777, 0.0
  %5956 = vadd.xlane.f32.xlu0 %v5955
  %v5957 = vpop.xlane.xlu0 %5956
  %v5958 = vsel %vm451, %v5778, 0.0
  %5959 = vadd.xlane.f32.xlu0 %v5958
  %v5960 = vpop.xlane.xlu0 %5959
  %v5961 = vsel %vm451, %v5779, 0.0
  %5962 = vadd.xlane.f32.xlu0 %v5961
  %v5963 = vpop.xlane.xlu0 %5962
  %v5964 = vsel %vm451, %v5780, 0.0
  %5965 = vadd.xlane.f32.xlu0 %v5964
  %v5966 = vpop.xlane.xlu0 %5965
  %v5967 = vsel %vm451, %v5781, 0.0
  %5968 = vadd.xlane.f32.xlu0 %v5967
  %v5969 = vpop.xlane.xlu0 %5968
  %v5970 = vsel %vm451, %v5782, 0.0
  %5971 = vadd.xlane.f32.xlu0 %v5970
  %v5972 = vpop.xlane.xlu0 %5971
  %v5973 = vsel %vm451, %v5783, 0.0
  %5974 = vadd.xlane.f32.xlu0 %v5973
  %v5975 = vpop.xlane.xlu0 %5974
  %v5976 = vld [vmem:[%s16 + $0x1] sm:$0x1]
  %v5977 = vperm.slane %v5976, 0
  %v5978 = vmul.f32 %v5654, %v5977
  %v5979 = vmul.f32 %v5655, %v5977
  %v5980 = vmul.f32 %v5656, %v5977
  %v5981 = vmul.f32 %v5657, %v5977
  %v5982 = vmul.f32 %v5658, %v5977
  %v5983 = vmul.f32 %v5659, %v5977
  %v5984 = vmul.f32 %v5660, %v5977
  %v5985 = vmul.f32 %v5661, %v5977
  %v5986 = vmul.f32 %v5662, %v5977
  %v5987 = vmul.f32 %v5663, %v5977
  %v5988 = vmul.f32 %v5664, %v5977
  %v5989 = vmul.f32 %v5665, %v5977
  %v5990 = vmul.f32 %v5666, %v5977
  %v5991 = vmul.f32 %v5667, %v5977
  %v5992 = vmul.f32 %v5668, %v5977
  %v5993 = vmul.f32 %v5669, %v5977
  %v5994 = vmul.f32 %v5670, %v5977
  %v5995 = vmul.f32 %v5671, %v5977
  %v5996 = vmul.f32 %v5672, %v5977
  %v5997 = vmul.f32 %v5673, %v5977
  %v5998 = vmul.f32 %v5674, %v5977
  %v5999 = vmul.f32 %v5675, %v5977
  %v6000 = vmul.f32 %v5676, %v5977
  %v6001 = vmul.f32 %v5677, %v5977
  %v6002 = vmul.f32 %v5678, %v5977
  %v6003 = vmul.f32 %v5679, %v5977
  %v6004 = vmul.f32 %v5680, %v5977
  %v6005 = vmul.f32 %v5681, %v5977
  %v6006 = vmul.f32 %v5682, %v5977
  %v6007 = vmul.f32 %v5683, %v5977
  %v6008 = vmul.f32 %v5684, %v5977
  %v6009 = vmul.f32 %v5685, %v5977
  %v6010 = vmul.f32 %v5686, %v5977
  %v6011 = vmul.f32 %v5687, %v5977
  %v6012 = vmul.f32 %v5688, %v5977
  %v6013 = vmul.f32 %v5689, %v5977
  %v6014 = vmul.f32 %v5690, %v5977
  %v6015 = vmul.f32 %v5691, %v5977
  %v6016 = vmul.f32 %v5692, %v5977
  %v6017 = vmul.f32 %v5693, %v5977
  %v6018 = vmul.f32 %v5694, %v5977
  %v6019 = vmul.f32 %v5695, %v5977
  %v6020 = vmul.f32 %v5696, %v5977
  %v6021 = vmul.f32 %v5697, %v5977
  %v6022 = vmul.f32 %v5698, %v5977
  %v6023 = vmul.f32 %v5699, %v5977
  %v6024 = vmul.f32 %v5700, %v5977
  %v6025 = vmul.f32 %v5701, %v5977
  %v6026 = vmul.f32 %v5702, %v5977
  %v6027 = vmul.f32 %v5703, %v5977
  %v6028 = vmul.f32 %v5704, %v5977
  %v6029 = vmul.f32 %v5705, %v5977
  %v6030 = vmul.f32 %v5706, %v5977
  %v6031 = vmul.f32 %v5707, %v5977
  %v6032 = vmul.f32 %v5708, %v5977
  %v6033 = vmul.f32 %v5709, %v5977
  %v6034 = vmul.f32 %v5710, %v5977
  %v6035 = vmul.f32 %v5711, %v5977
  %v6036 = vmul.f32 %v5712, %v5977
  %v6037 = vmul.f32 %v5713, %v5977
  %v6038 = vmul.f32 %v5714, %v5977
  %v6039 = vmul.f32 %v5715, %v5977
  %v6040 = vmul.f32 %v5716, %v5977
  %v6041 = vmul.f32 %v5717, %v5977
  %v6042 = vsel %vm451, %v5978, 0.0
  %6043 = vadd.xlane.f32.xlu0 %v6042
  %v6044 = vpop.xlane.xlu0 %6043
  %v6045 = vsel %vm451, %v5979, 0.0
  %6046 = vadd.xlane.f32.xlu0 %v6045
  %v6047 = vpop.xlane.xlu0 %6046
  %v6048 = vsel %vm451, %v5980, 0.0
  %6049 = vadd.xlane.f32.xlu0 %v6048
  %v6050 = vpop.xlane.xlu0 %6049
  %v6051 = vsel %vm451, %v5981, 0.0
  %6052 = vadd.xlane.f32.xlu0 %v6051
  %v6053 = vpop.xlane.xlu0 %6052
  %v6054 = vsel %vm451, %v5982, 0.0
  %6055 = vadd.xlane.f32.xlu0 %v6054
  %v6056 = vpop.xlane.xlu0 %6055
  %v6057 = vsel %vm451, %v5983, 0.0
  %6058 = vadd.xlane.f32.xlu0 %v6057
  %v6059 = vpop.xlane.xlu0 %6058
  %v6060 = vsel %vm451, %v5984, 0.0
  %6061 = vadd.xlane.f32.xlu0 %v6060
  %v6062 = vpop.xlane.xlu0 %6061
  %v6063 = vsel %vm451, %v5985, 0.0
  %6064 = vadd.xlane.f32.xlu0 %v6063
  %v6065 = vpop.xlane.xlu0 %6064
  %v6066 = vsel %vm451, %v5986, 0.0
  %6067 = vadd.xlane.f32.xlu0 %v6066
  %v6068 = vpop.xlane.xlu0 %6067
  %v6069 = vsel %vm451, %v5987, 0.0
  %6070 = vadd.xlane.f32.xlu0 %v6069
  %v6071 = vpop.xlane.xlu0 %6070
  %v6072 = vsel %vm451, %v5988, 0.0
  %6073 = vadd.xlane.f32.xlu0 %v6072
  %v6074 = vpop.xlane.xlu0 %6073
  %v6075 = vsel %vm451, %v5989, 0.0
  %6076 = vadd.xlane.f32.xlu0 %v6075
  %v6077 = vpop.xlane.xlu0 %6076
  %v6078 = vsel %vm451, %v5990, 0.0
  %6079 = vadd.xlane.f32.xlu0 %v6078
  %v6080 = vpop.xlane.xlu0 %6079
  %v6081 = vsel %vm451, %v5991, 0.0
  %6082 = vadd.xlane.f32.xlu0 %v6081
  %v6083 = vpop.xlane.xlu0 %6082
  %v6084 = vsel %vm451, %v5992, 0.0
  %6085 = vadd.xlane.f32.xlu0 %v6084
  %v6086 = vpop.xlane.xlu0 %6085
  %v6087 = vsel %vm451, %v5993, 0.0
  %6088 = vadd.xlane.f32.xlu0 %v6087
  %v6089 = vpop.xlane.xlu0 %6088
  %v6090 = vsel %vm451, %v5994, 0.0
  %6091 = vadd.xlane.f32.xlu0 %v6090
  %v6092 = vpop.xlane.xlu0 %6091
  %v6093 = vsel %vm451, %v5995, 0.0
  %6094 = vadd.xlane.f32.xlu0 %v6093
  %v6095 = vpop.xlane.xlu0 %6094
  %v6096 = vsel %vm451, %v5996, 0.0
  %6097 = vadd.xlane.f32.xlu0 %v6096
  %v6098 = vpop.xlane.xlu0 %6097
  %v6099 = vsel %vm451, %v5997, 0.0
  %6100 = vadd.xlane.f32.xlu0 %v6099
  %v6101 = vpop.xlane.xlu0 %6100
  %v6102 = vsel %vm451, %v5998, 0.0
  %6103 = vadd.xlane.f32.xlu0 %v6102
  %v6104 = vpop.xlane.xlu0 %6103
  %v6105 = vsel %vm451, %v5999, 0.0
  %6106 = vadd.xlane.f32.xlu0 %v6105
  %v6107 = vpop.xlane.xlu0 %6106
  %v6108 = vsel %vm451, %v6000, 0.0
  %6109 = vadd.xlane.f32.xlu0 %v6108
  %v6110 = vpop.xlane.xlu0 %6109
  %v6111 = vsel %vm451, %v6001, 0.0
  %6112 = vadd.xlane.f32.xlu0 %v6111
  %v6113 = vpop.xlane.xlu0 %6112
  %v6114 = vsel %vm451, %v6002, 0.0
  %6115 = vadd.xlane.f32.xlu0 %v6114
  %v6116 = vpop.xlane.xlu0 %6115
  %v6117 = vsel %vm451, %v6003, 0.0
  %6118 = vadd.xlane.f32.xlu0 %v6117
  %v6119 = vpop.xlane.xlu0 %6118
  %v6120 = vsel %vm451, %v6004, 0.0
  %6121 = vadd.xlane.f32.xlu0 %v6120
  %v6122 = vpop.xlane.xlu0 %6121
  %v6123 = vsel %vm451, %v6005, 0.0
  %6124 = vadd.xlane.f32.xlu0 %v6123
  %v6125 = vpop.xlane.xlu0 %6124
  %v6126 = vsel %vm451, %v6006, 0.0
  %6127 = vadd.xlane.f32.xlu0 %v6126
  %v6128 = vpop.xlane.xlu0 %6127
  %v6129 = vsel %vm451, %v6007, 0.0
  %6130 = vadd.xlane.f32.xlu0 %v6129
  %v6131 = vpop.xlane.xlu0 %6130
  %v6132 = vsel %vm451, %v6008, 0.0
  %6133 = vadd.xlane.f32.xlu0 %v6132
  %v6134 = vpop.xlane.xlu0 %6133
  %v6135 = vsel %vm451, %v6009, 0.0
  %6136 = vadd.xlane.f32.xlu0 %v6135
  %v6137 = vpop.xlane.xlu0 %6136
  %v6138 = vsel %vm451, %v6010, 0.0
  %6139 = vadd.xlane.f32.xlu0 %v6138
  %v6140 = vpop.xlane.xlu0 %6139
  %v6141 = vsel %vm451, %v6011, 0.0
  %6142 = vadd.xlane.f32.xlu0 %v6141
  %v6143 = vpop.xlane.xlu0 %6142
  %v6144 = vsel %vm451, %v6012, 0.0
  %6145 = vadd.xlane.f32.xlu0 %v6144
  %v6146 = vpop.xlane.xlu0 %6145
  %v6147 = vsel %vm451, %v6013, 0.0
  %6148 = vadd.xlane.f32.xlu0 %v6147
  %v6149 = vpop.xlane.xlu0 %6148
  %v6150 = vsel %vm451, %v6014, 0.0
  %6151 = vadd.xlane.f32.xlu0 %v6150
  %v6152 = vpop.xlane.xlu0 %6151
  %v6153 = vsel %vm451, %v6015, 0.0
  %6154 = vadd.xlane.f32.xlu0 %v6153
  %v6155 = vpop.xlane.xlu0 %6154
  %v6156 = vsel %vm451, %v6016, 0.0
  %6157 = vadd.xlane.f32.xlu0 %v6156
  %v6158 = vpop.xlane.xlu0 %6157
  %v6159 = vsel %vm451, %v6017, 0.0
  %6160 = vadd.xlane.f32.xlu0 %v6159
  %v6161 = vpop.xlane.xlu0 %6160
  %v6162 = vsel %vm451, %v6018, 0.0
  %6163 = vadd.xlane.f32.xlu0 %v6162
  %v6164 = vpop.xlane.xlu0 %6163
  %v6165 = vsel %vm451, %v6019, 0.0
  %6166 = vadd.xlane.f32.xlu0 %v6165
  %v6167 = vpop.xlane.xlu0 %6166
  %v6168 = vsel %vm451, %v6020, 0.0
  %6169 = vadd.xlane.f32.xlu0 %v6168
  %v6170 = vpop.xlane.xlu0 %6169
  %v6171 = vsel %vm451, %v6021, 0.0
  %6172 = vadd.xlane.f32.xlu0 %v6171
  %v6173 = vpop.xlane.xlu0 %6172
  %v6174 = vsel %vm451, %v6022, 0.0
  %6175 = vadd.xlane.f32.xlu0 %v6174
  %v6176 = vpop.xlane.xlu0 %6175
  %v6177 = vsel %vm451, %v6023, 0.0
  %6178 = vadd.xlane.f32.xlu0 %v6177
  %v6179 = vpop.xlane.xlu0 %6178
  %v6180 = vsel %vm451, %v6024, 0.0
  %6181 = vadd.xlane.f32.xlu0 %v6180
  %v6182 = vpop.xlane.xlu0 %6181
  %v6183 = vsel %vm451, %v6025, 0.0
  %6184 = vadd.xlane.f32.xlu0 %v6183
  %v6185 = vpop.xlane.xlu0 %6184
  %v6186 = vsel %vm451, %v6026, 0.0
  %6187 = vadd.xlane.f32.xlu0 %v6186
  %v6188 = vpop.xlane.xlu0 %6187
  %v6189 = vsel %vm451, %v6027, 0.0
  %6190 = vadd.xlane.f32.xlu0 %v6189
  %v6191 = vpop.xlane.xlu0 %6190
  %v6192 = vsel %vm451, %v6028, 0.0
  %6193 = vadd.xlane.f32.xlu0 %v6192
  %v6194 = vpop.xlane.xlu0 %6193
  %v6195 = vsel %vm451, %v6029, 0.0
  %6196 = vadd.xlane.f32.xlu0 %v6195
  %v6197 = vpop.xlane.xlu0 %6196
  %v6198 = vsel %vm451, %v6030, 0.0
  %6199 = vadd.xlane.f32.xlu0 %v6198
  %v6200 = vpop.xlane.xlu0 %6199
  %v6201 = vsel %vm451, %v6031, 0.0
  %6202 = vadd.xlane.f32.xlu0 %v6201
  %v6203 = vpop.xlane.xlu0 %6202
  %v6204 = vsel %vm451, %v6032, 0.0
  %6205 = vadd.xlane.f32.xlu0 %v6204
  %v6206 = vpop.xlane.xlu0 %6205
  %v6207 = vsel %vm451, %v6033, 0.0
  %6208 = vadd.xlane.f32.xlu0 %v6207
  %v6209 = vpop.xlane.xlu0 %6208
  %v6210 = vsel %vm451, %v6034, 0.0
  %6211 = vadd.xlane.f32.xlu0 %v6210
  %v6212 = vpop.xlane.xlu0 %6211
  %v6213 = vsel %vm451, %v6035, 0.0
  %6214 = vadd.xlane.f32.xlu0 %v6213
  %v6215 = vpop.xlane.xlu0 %6214
  %v6216 = vsel %vm451, %v6036, 0.0
  %6217 = vadd.xlane.f32.xlu0 %v6216
  %v6218 = vpop.xlane.xlu0 %6217
  %v6219 = vsel %vm451, %v6037, 0.0
  %6220 = vadd.xlane.f32.xlu0 %v6219
  %v6221 = vpop.xlane.xlu0 %6220
  %v6222 = vsel %vm451, %v6038, 0.0
  %6223 = vadd.xlane.f32.xlu0 %v6222
  %v6224 = vpop.xlane.xlu0 %6223
  %v6225 = vsel %vm451, %v6039, 0.0
  %6226 = vadd.xlane.f32.xlu0 %v6225
  %v6227 = vpop.xlane.xlu0 %6226
  %v6228 = vsel %vm451, %v6040, 0.0
  %6229 = vadd.xlane.f32.xlu0 %v6228
  %v6230 = vpop.xlane.xlu0 %6229
  %v6231 = vsel %vm451, %v6041, 0.0
  %6232 = vadd.xlane.f32.xlu0 %v6231
  %v6233 = vpop.xlane.xlu0 %6232
  %v6234 = vld [vmem:[%s16 + $0x2] sm:$0x1]
  %v6235 = vperm.slane %v6234, 0
  %v6236 = vmul.f32 %v5654, %v6235
  %v6237 = vmul.f32 %v5655, %v6235
  %v6238 = vmul.f32 %v5656, %v6235
  %v6239 = vmul.f32 %v5657, %v6235
  %v6240 = vmul.f32 %v5658, %v6235
  %v6241 = vmul.f32 %v5659, %v6235
  %v6242 = vmul.f32 %v5660, %v6235
  %v6243 = vmul.f32 %v5661, %v6235
  %v6244 = vmul.f32 %v5662, %v6235
  %v6245 = vmul.f32 %v5663, %v6235
  %v6246 = vmul.f32 %v5664, %v6235
  %v6247 = vmul.f32 %v5665, %v6235
  %v6248 = vmul.f32 %v5666, %v6235
  %v6249 = vmul.f32 %v5667, %v6235
  %v6250 = vmul.f32 %v5668, %v6235
  %v6251 = vmul.f32 %v5669, %v6235
  %v6252 = vmul.f32 %v5670, %v6235
  %v6253 = vmul.f32 %v5671, %v6235
  %v6254 = vmul.f32 %v5672, %v6235
  %v6255 = vmul.f32 %v5673, %v6235
  %v6256 = vmul.f32 %v5674, %v6235
  %v6257 = vmul.f32 %v5675, %v6235
  %v6258 = vmul.f32 %v5676, %v6235
  %v6259 = vmul.f32 %v5677, %v6235
  %v6260 = vmul.f32 %v5678, %v6235
  %v6261 = vmul.f32 %v5679, %v6235
  %v6262 = vmul.f32 %v5680, %v6235
  %v6263 = vmul.f32 %v5681, %v6235
  %v6264 = vmul.f32 %v5682, %v6235
  %v6265 = vmul.f32 %v5683, %v6235
  %v6266 = vmul.f32 %v5684, %v6235
  %v6267 = vmul.f32 %v5685, %v6235
  %v6268 = vmul.f32 %v5686, %v6235
  %v6269 = vmul.f32 %v5687, %v6235
  %v6270 = vmul.f32 %v5688, %v6235
  %v6271 = vmul.f32 %v5689, %v6235
  %v6272 = vmul.f32 %v5690, %v6235
  %v6273 = vmul.f32 %v5691, %v6235
  %v6274 = vmul.f32 %v5692, %v6235
  %v6275 = vmul.f32 %v5693, %v6235
  %v6276 = vmul.f32 %v5694, %v6235
  %v6277 = vmul.f32 %v5695, %v6235
  %v6278 = vmul.f32 %v5696, %v6235
  %v6279 = vmul.f32 %v5697, %v6235
  %v6280 = vmul.f32 %v5698, %v6235
  %v6281 = vmul.f32 %v5699, %v6235
  %v6282 = vmul.f32 %v5700, %v6235
  %v6283 = vmul.f32 %v5701, %v6235
  %v6284 = vmul.f32 %v5702, %v6235
  %v6285 = vmul.f32 %v5703, %v6235
  %v6286 = vmul.f32 %v5704, %v6235
  %v6287 = vmul.f32 %v5705, %v6235
  %v6288 = vmul.f32 %v5706, %v6235
  %v6289 = vmul.f32 %v5707, %v6235
  %v6290 = vmul.f32 %v5708, %v6235
  %v6291 = vmul.f32 %v5709, %v6235
  %v6292 = vmul.f32 %v5710, %v6235
  %v6293 = vmul.f32 %v5711, %v6235
  %v6294 = vmul.f32 %v5712, %v6235
  %v6295 = vmul.f32 %v5713, %v6235
  %v6296 = vmul.f32 %v5714, %v6235
  %v6297 = vmul.f32 %v5715, %v6235
  %v6298 = vmul.f32 %v5716, %v6235
  %v6299 = vmul.f32 %v5717, %v6235
  %v6300 = vsel %vm451, %v6236, 0.0
  %6301 = vadd.xlane.f32.xlu0 %v6300
  %v6302 = vpop.xlane.xlu0 %6301
  %v6303 = vsel %vm451, %v6237, 0.0
  %6304 = vadd.xlane.f32.xlu0 %v6303
  %v6305 = vpop.xlane.xlu0 %6304
  %v6306 = vsel %vm451, %v6238, 0.0
  %6307 = vadd.xlane.f32.xlu0 %v6306
  %v6308 = vpop.xlane.xlu0 %6307
  %v6309 = vsel %vm451, %v6239, 0.0
  %6310 = vadd.xlane.f32.xlu0 %v6309
  %v6311 = vpop.xlane.xlu0 %6310
  %v6312 = vsel %vm451, %v6240, 0.0
  %6313 = vadd.xlane.f32.xlu0 %v6312
  %v6314 = vpop.xlane.xlu0 %6313
  %v6315 = vsel %vm451, %v6241, 0.0
  %6316 = vadd.xlane.f32.xlu0 %v6315
  %v6317 = vpop.xlane.xlu0 %6316
  %v6318 = vsel %vm451, %v6242, 0.0
  %6319 = vadd.xlane.f32.xlu0 %v6318
  %v6320 = vpop.xlane.xlu0 %6319
  %v6321 = vsel %vm451, %v6243, 0.0
  %6322 = vadd.xlane.f32.xlu0 %v6321
  %v6323 = vpop.xlane.xlu0 %6322
  %v6324 = vsel %vm451, %v6244, 0.0
  %6325 = vadd.xlane.f32.xlu0 %v6324
  %v6326 = vpop.xlane.xlu0 %6325
  %v6327 = vsel %vm451, %v6245, 0.0
  %6328 = vadd.xlane.f32.xlu0 %v6327
  %v6329 = vpop.xlane.xlu0 %6328
  %v6330 = vsel %vm451, %v6246, 0.0
  %6331 = vadd.xlane.f32.xlu0 %v6330
  %v6332 = vpop.xlane.xlu0 %6331
  %v6333 = vsel %vm451, %v6247, 0.0
  %6334 = vadd.xlane.f32.xlu0 %v6333
  %v6335 = vpop.xlane.xlu0 %6334
  %v6336 = vsel %vm451, %v6248, 0.0
  %6337 = vadd.xlane.f32.xlu0 %v6336
  %v6338 = vpop.xlane.xlu0 %6337
  %v6339 = vsel %vm451, %v6249, 0.0
  %6340 = vadd.xlane.f32.xlu0 %v6339
  %v6341 = vpop.xlane.xlu0 %6340
  %v6342 = vsel %vm451, %v6250, 0.0
  %6343 = vadd.xlane.f32.xlu0 %v6342
  %v6344 = vpop.xlane.xlu0 %6343
  %v6345 = vsel %vm451, %v6251, 0.0
  %6346 = vadd.xlane.f32.xlu0 %v6345
  %v6347 = vpop.xlane.xlu0 %6346
  %v6348 = vsel %vm451, %v6252, 0.0
  %6349 = vadd.xlane.f32.xlu0 %v6348
  %v6350 = vpop.xlane.xlu0 %6349
  %v6351 = vsel %vm451, %v6253, 0.0
  %6352 = vadd.xlane.f32.xlu0 %v6351
  %v6353 = vpop.xlane.xlu0 %6352
  %v6354 = vsel %vm451, %v6254, 0.0
  %6355 = vadd.xlane.f32.xlu0 %v6354
  %v6356 = vpop.xlane.xlu0 %6355
  %v6357 = vsel %vm451, %v6255, 0.0
  %6358 = vadd.xlane.f32.xlu0 %v6357
  %v6359 = vpop.xlane.xlu0 %6358
  %v6360 = vsel %vm451, %v6256, 0.0
  %6361 = vadd.xlane.f32.xlu0 %v6360
  %v6362 = vpop.xlane.xlu0 %6361
  %v6363 = vsel %vm451, %v6257, 0.0
  %6364 = vadd.xlane.f32.xlu0 %v6363
  %v6365 = vpop.xlane.xlu0 %6364
  %v6366 = vsel %vm451, %v6258, 0.0
  %6367 = vadd.xlane.f32.xlu0 %v6366
  %v6368 = vpop.xlane.xlu0 %6367
  %v6369 = vsel %vm451, %v6259, 0.0
  %6370 = vadd.xlane.f32.xlu0 %v6369
  %v6371 = vpop.xlane.xlu0 %6370
  %v6372 = vsel %vm451, %v6260, 0.0
  %6373 = vadd.xlane.f32.xlu0 %v6372
  %v6374 = vpop.xlane.xlu0 %6373
  %v6375 = vsel %vm451, %v6261, 0.0
  %6376 = vadd.xlane.f32.xlu0 %v6375
  %v6377 = vpop.xlane.xlu0 %6376
  %v6378 = vsel %vm451, %v6262, 0.0
  %6379 = vadd.xlane.f32.xlu0 %v6378
  %v6380 = vpop.xlane.xlu0 %6379
  %v6381 = vsel %vm451, %v6263, 0.0
  %6382 = vadd.xlane.f32.xlu0 %v6381
  %v6383 = vpop.xlane.xlu0 %6382
  %v6384 = vsel %vm451, %v6264, 0.0
  %6385 = vadd.xlane.f32.xlu0 %v6384
  %v6386 = vpop.xlane.xlu0 %6385
  %v6387 = vsel %vm451, %v6265, 0.0
  %6388 = vadd.xlane.f32.xlu0 %v6387
  %v6389 = vpop.xlane.xlu0 %6388
  %v6390 = vsel %vm451, %v6266, 0.0
  %6391 = vadd.xlane.f32.xlu0 %v6390
  %v6392 = vpop.xlane.xlu0 %6391
  %v6393 = vsel %vm451, %v6267, 0.0
  %6394 = vadd.xlane.f32.xlu0 %v6393
  %v6395 = vpop.xlane.xlu0 %6394
  %v6396 = vsel %vm451, %v6268, 0.0
  %6397 = vadd.xlane.f32.xlu0 %v6396
  %v6398 = vpop.xlane.xlu0 %6397
  %v6399 = vsel %vm451, %v6269, 0.0
  %6400 = vadd.xlane.f32.xlu0 %v6399
  %v6401 = vpop.xlane.xlu0 %6400
  %v6402 = vsel %vm451, %v6270, 0.0
  %6403 = vadd.xlane.f32.xlu0 %v6402
  %v6404 = vpop.xlane.xlu0 %6403
  %v6405 = vsel %vm451, %v6271, 0.0
  %6406 = vadd.xlane.f32.xlu0 %v6405
  %v6407 = vpop.xlane.xlu0 %6406
  %v6408 = vsel %vm451, %v6272, 0.0
  %6409 = vadd.xlane.f32.xlu0 %v6408
  %v6410 = vpop.xlane.xlu0 %6409
  %v6411 = vsel %vm451, %v6273, 0.0
  %6412 = vadd.xlane.f32.xlu0 %v6411
  %v6413 = vpop.xlane.xlu0 %6412
  %v6414 = vsel %vm451, %v6274, 0.0
  %6415 = vadd.xlane.f32.xlu0 %v6414
  %v6416 = vpop.xlane.xlu0 %6415
  %v6417 = vsel %vm451, %v6275, 0.0
  %6418 = vadd.xlane.f32.xlu0 %v6417
  %v6419 = vpop.xlane.xlu0 %6418
  %v6420 = vsel %vm451, %v6276, 0.0
  %6421 = vadd.xlane.f32.xlu0 %v6420
  %v6422 = vpop.xlane.xlu0 %6421
  %v6423 = vsel %vm451, %v6277, 0.0
  %6424 = vadd.xlane.f32.xlu0 %v6423
  %v6425 = vpop.xlane.xlu0 %6424
  %v6426 = vsel %vm451, %v6278, 0.0
  %6427 = vadd.xlane.f32.xlu0 %v6426
  %v6428 = vpop.xlane.xlu0 %6427
  %v6429 = vsel %vm451, %v6279, 0.0
  %6430 = vadd.xlane.f32.xlu0 %v6429
  %v6431 = vpop.xlane.xlu0 %6430
  %v6432 = vsel %vm451, %v6280, 0.0
  %6433 = vadd.xlane.f32.xlu0 %v6432
  %v6434 = vpop.xlane.xlu0 %6433
  %v6435 = vsel %vm451, %v6281, 0.0
  %6436 = vadd.xlane.f32.xlu0 %v6435
  %v6437 = vpop.xlane.xlu0 %6436
  %v6438 = vsel %vm451, %v6282, 0.0
  %6439 = vadd.xlane.f32.xlu0 %v6438
  %v6440 = vpop.xlane.xlu0 %6439
  %v6441 = vsel %vm451, %v6283, 0.0
  %6442 = vadd.xlane.f32.xlu0 %v6441
  %v6443 = vpop.xlane.xlu0 %6442
  %v6444 = vsel %vm451, %v6284, 0.0
  %6445 = vadd.xlane.f32.xlu0 %v6444
  %v6446 = vpop.xlane.xlu0 %6445
  %v6447 = vsel %vm451, %v6285, 0.0
  %6448 = vadd.xlane.f32.xlu0 %v6447
  %v6449 = vpop.xlane.xlu0 %6448
  %v6450 = vsel %vm451, %v6286, 0.0
  %6451 = vadd.xlane.f32.xlu0 %v6450
  %v6452 = vpop.xlane.xlu0 %6451
  %v6453 = vsel %vm451, %v6287, 0.0
  %6454 = vadd.xlane.f32.xlu0 %v6453
  %v6455 = vpop.xlane.xlu0 %6454
  %v6456 = vsel %vm451, %v6288, 0.0
  %6457 = vadd.xlane.f32.xlu0 %v6456
  %v6458 = vpop.xlane.xlu0 %6457
  %v6459 = vsel %vm451, %v6289, 0.0
  %6460 = vadd.xlane.f32.xlu0 %v6459
  %v6461 = vpop.xlane.xlu0 %6460
  %v6462 = vsel %vm451, %v6290, 0.0
  %6463 = vadd.xlane.f32.xlu0 %v6462
  %v6464 = vpop.xlane.xlu0 %6463
  %v6465 = vsel %vm451, %v6291, 0.0
  %6466 = vadd.xlane.f32.xlu0 %v6465
  %v6467 = vpop.xlane.xlu0 %6466
  %v6468 = vsel %vm451, %v6292, 0.0
  %6469 = vadd.xlane.f32.xlu0 %v6468
  %v6470 = vpop.xlane.xlu0 %6469
  %v6471 = vsel %vm451, %v6293, 0.0
  %6472 = vadd.xlane.f32.xlu0 %v6471
  %v6473 = vpop.xlane.xlu0 %6472
  %v6474 = vsel %vm451, %v6294, 0.0
  %6475 = vadd.xlane.f32.xlu0 %v6474
  %v6476 = vpop.xlane.xlu0 %6475
  %v6477 = vsel %vm451, %v6295, 0.0
  %6478 = vadd.xlane.f32.xlu0 %v6477
  %v6479 = vpop.xlane.xlu0 %6478
  %v6480 = vsel %vm451, %v6296, 0.0
  %6481 = vadd.xlane.f32.xlu0 %v6480
  %v6482 = vpop.xlane.xlu0 %6481
  %v6483 = vsel %vm451, %v6297, 0.0
  %6484 = vadd.xlane.f32.xlu0 %v6483
  %v6485 = vpop.xlane.xlu0 %6484
  %v6486 = vsel %vm451, %v6298, 0.0
  %6487 = vadd.xlane.f32.xlu0 %v6486
  %v6488 = vpop.xlane.xlu0 %6487
  %v6489 = vsel %vm451, %v6299, 0.0
  %6490 = vadd.xlane.f32.xlu0 %v6489
  %v6491 = vpop.xlane.xlu0 %6490
  %v6492 = vld [vmem:[%s17] sm:$0x1]
  %v6494 = vperm.slane %v6492, 0
  %v6496 = vmul.f32 %v3642, %v6494
  %v6497 = vmul.f32 %v3643, %v6494
  %v6498 = vmul.f32 %v3644, %v6494
  %v6499 = vmul.f32 %v3645, %v6494
  %v6500 = vmul.f32 %v3646, %v6494
  %v6501 = vmul.f32 %v3647, %v6494
  %v6502 = vmul.f32 %v3648, %v6494
  %v6503 = vmul.f32 %v3649, %v6494
  %v6504 = vmul.f32 %v3650, %v6494
  %v6505 = vmul.f32 %v3651, %v6494
  %v6506 = vmul.f32 %v3652, %v6494
  %v6507 = vmul.f32 %v3653, %v6494
  %v6508 = vmul.f32 %v3654, %v6494
  %v6509 = vmul.f32 %v3655, %v6494
  %v6510 = vmul.f32 %v3656, %v6494
  %v6511 = vmul.f32 %v3657, %v6494
  %v6512 = vmul.f32 %v3658, %v6494
  %v6513 = vmul.f32 %v3659, %v6494
  %v6514 = vmul.f32 %v3660, %v6494
  %v6515 = vmul.f32 %v3661, %v6494
  %v6516 = vmul.f32 %v3662, %v6494
  %v6517 = vmul.f32 %v3663, %v6494
  %v6518 = vmul.f32 %v3664, %v6494
  %v6519 = vmul.f32 %v3665, %v6494
  %v6520 = vmul.f32 %v3666, %v6494
  %v6521 = vmul.f32 %v3667, %v6494
  %v6522 = vmul.f32 %v3668, %v6494
  %v6523 = vmul.f32 %v3669, %v6494
  %v6524 = vmul.f32 %v3670, %v6494
  %v6525 = vmul.f32 %v3671, %v6494
  %v6526 = vmul.f32 %v3672, %v6494
  %v6527 = vmul.f32 %v3673, %v6494
  %v6528 = vmul.f32 %v3674, %v6494
  %v6529 = vmul.f32 %v3675, %v6494
  %v6530 = vmul.f32 %v3676, %v6494
  %v6531 = vmul.f32 %v3677, %v6494
  %v6532 = vmul.f32 %v3678, %v6494
  %v6533 = vmul.f32 %v3679, %v6494
  %v6534 = vmul.f32 %v3680, %v6494
  %v6535 = vmul.f32 %v3681, %v6494
  %v6536 = vmul.f32 %v3682, %v6494
  %v6537 = vmul.f32 %v3683, %v6494
  %v6538 = vmul.f32 %v3684, %v6494
  %v6539 = vmul.f32 %v3685, %v6494
  %v6540 = vmul.f32 %v3686, %v6494
  %v6541 = vmul.f32 %v3687, %v6494
  %v6542 = vmul.f32 %v3688, %v6494
  %v6543 = vmul.f32 %v3689, %v6494
  %v6544 = vmul.f32 %v3690, %v6494
  %v6545 = vmul.f32 %v3691, %v6494
  %v6546 = vmul.f32 %v3692, %v6494
  %v6547 = vmul.f32 %v3693, %v6494
  %v6548 = vmul.f32 %v3694, %v6494
  %v6549 = vmul.f32 %v3695, %v6494
  %v6550 = vmul.f32 %v3696, %v6494
  %v6551 = vmul.f32 %v3697, %v6494
  %v6552 = vmul.f32 %v3698, %v6494
  %v6553 = vmul.f32 %v3699, %v6494
  %v6554 = vmul.f32 %v3700, %v6494
  %v6555 = vmul.f32 %v3701, %v6494
  %v6556 = vmul.f32 %v3702, %v6494
  %v6557 = vmul.f32 %v3703, %v6494
  %v6558 = vmul.f32 %v3704, %v6494
  %v6559 = vmul.f32 %v3705, %v6494
  %v6560 = vsel %vm451, %v6496, 0.0
  %6561 = vadd.xlane.f32.xlu0 %v6560
  %v6562 = vpop.xlane.xlu0 %6561
  %v6563 = vsel %vm451, %v6497, 0.0
  %6564 = vadd.xlane.f32.xlu0 %v6563
  %v6565 = vpop.xlane.xlu0 %6564
  %v6566 = vsel %vm451, %v6498, 0.0
  %6567 = vadd.xlane.f32.xlu0 %v6566
  %v6568 = vpop.xlane.xlu0 %6567
  %v6569 = vsel %vm451, %v6499, 0.0
  %6570 = vadd.xlane.f32.xlu0 %v6569
  %v6571 = vpop.xlane.xlu0 %6570
  %v6572 = vsel %vm451, %v6500, 0.0
  %6573 = vadd.xlane.f32.xlu0 %v6572
  %v6574 = vpop.xlane.xlu0 %6573
  %v6575 = vsel %vm451, %v6501, 0.0
  %6576 = vadd.xlane.f32.xlu0 %v6575
  %v6577 = vpop.xlane.xlu0 %6576
  %v6578 = vsel %vm451, %v6502, 0.0
  %6579 = vadd.xlane.f32.xlu0 %v6578
  %v6580 = vpop.xlane.xlu0 %6579
  %v6581 = vsel %vm451, %v6503, 0.0
  %6582 = vadd.xlane.f32.xlu0 %v6581
  %v6583 = vpop.xlane.xlu0 %6582
  %v6584 = vsel %vm451, %v6504, 0.0
  %6585 = vadd.xlane.f32.xlu0 %v6584
  %v6586 = vpop.xlane.xlu0 %6585
  %v6587 = vsel %vm451, %v6505, 0.0
  %6588 = vadd.xlane.f32.xlu0 %v6587
  %v6589 = vpop.xlane.xlu0 %6588
  %v6590 = vsel %vm451, %v6506, 0.0
  %6591 = vadd.xlane.f32.xlu0 %v6590
  %v6592 = vpop.xlane.xlu0 %6591
  %v6593 = vsel %vm451, %v6507, 0.0
  %6594 = vadd.xlane.f32.xlu0 %v6593
  %v6595 = vpop.xlane.xlu0 %6594
  %v6596 = vsel %vm451, %v6508, 0.0
  %6597 = vadd.xlane.f32.xlu0 %v6596
  %v6598 = vpop.xlane.xlu0 %6597
  %v6599 = vsel %vm451, %v6509, 0.0
  %6600 = vadd.xlane.f32.xlu0 %v6599
  %v6601 = vpop.xlane.xlu0 %6600
  %v6602 = vsel %vm451, %v6510, 0.0
  %6603 = vadd.xlane.f32.xlu0 %v6602
  %v6604 = vpop.xlane.xlu0 %6603
  %v6605 = vsel %vm451, %v6511, 0.0
  %6606 = vadd.xlane.f32.xlu0 %v6605
  %v6607 = vpop.xlane.xlu0 %6606
  %v6608 = vsel %vm451, %v6512, 0.0
  %6609 = vadd.xlane.f32.xlu0 %v6608
  %v6610 = vpop.xlane.xlu0 %6609
  %v6611 = vsel %vm451, %v6513, 0.0
  %6612 = vadd.xlane.f32.xlu0 %v6611
  %v6613 = vpop.xlane.xlu0 %6612
  %v6614 = vsel %vm451, %v6514, 0.0
  %6615 = vadd.xlane.f32.xlu0 %v6614
  %v6616 = vpop.xlane.xlu0 %6615
  %v6617 = vsel %vm451, %v6515, 0.0
  %6618 = vadd.xlane.f32.xlu0 %v6617
  %v6619 = vpop.xlane.xlu0 %6618
  %v6620 = vsel %vm451, %v6516, 0.0
  %6621 = vadd.xlane.f32.xlu0 %v6620
  %v6622 = vpop.xlane.xlu0 %6621
  %v6623 = vsel %vm451, %v6517, 0.0
  %6624 = vadd.xlane.f32.xlu0 %v6623
  %v6625 = vpop.xlane.xlu0 %6624
  %v6626 = vsel %vm451, %v6518, 0.0
  %6627 = vadd.xlane.f32.xlu0 %v6626
  %v6628 = vpop.xlane.xlu0 %6627
  %v6629 = vsel %vm451, %v6519, 0.0
  %6630 = vadd.xlane.f32.xlu0 %v6629
  %v6631 = vpop.xlane.xlu0 %6630
  %v6632 = vsel %vm451, %v6520, 0.0
  %6633 = vadd.xlane.f32.xlu0 %v6632
  %v6634 = vpop.xlane.xlu0 %6633
  %v6635 = vsel %vm451, %v6521, 0.0
  %6636 = vadd.xlane.f32.xlu0 %v6635
  %v6637 = vpop.xlane.xlu0 %6636
  %v6638 = vsel %vm451, %v6522, 0.0
  %6639 = vadd.xlane.f32.xlu0 %v6638
  %v6640 = vpop.xlane.xlu0 %6639
  %v6641 = vsel %vm451, %v6523, 0.0
  %6642 = vadd.xlane.f32.xlu0 %v6641
  %v6643 = vpop.xlane.xlu0 %6642
  %v6644 = vsel %vm451, %v6524, 0.0
  %6645 = vadd.xlane.f32.xlu0 %v6644
  %v6646 = vpop.xlane.xlu0 %6645
  %v6647 = vsel %vm451, %v6525, 0.0
  %6648 = vadd.xlane.f32.xlu0 %v6647
  %v6649 = vpop.xlane.xlu0 %6648
  %v6650 = vsel %vm451, %v6526, 0.0
  %6651 = vadd.xlane.f32.xlu0 %v6650
  %v6652 = vpop.xlane.xlu0 %6651
  %v6653 = vsel %vm451, %v6527, 0.0
  %6654 = vadd.xlane.f32.xlu0 %v6653
  %v6655 = vpop.xlane.xlu0 %6654
  %v6656 = vsel %vm451, %v6528, 0.0
  %6657 = vadd.xlane.f32.xlu0 %v6656
  %v6658 = vpop.xlane.xlu0 %6657
  %v6659 = vsel %vm451, %v6529, 0.0
  %6660 = vadd.xlane.f32.xlu0 %v6659
  %v6661 = vpop.xlane.xlu0 %6660
  %v6662 = vsel %vm451, %v6530, 0.0
  %6663 = vadd.xlane.f32.xlu0 %v6662
  %v6664 = vpop.xlane.xlu0 %6663
  %v6665 = vsel %vm451, %v6531, 0.0
  %6666 = vadd.xlane.f32.xlu0 %v6665
  %v6667 = vpop.xlane.xlu0 %6666
  %v6668 = vsel %vm451, %v6532, 0.0
  %6669 = vadd.xlane.f32.xlu0 %v6668
  %v6670 = vpop.xlane.xlu0 %6669
  %v6671 = vsel %vm451, %v6533, 0.0
  %6672 = vadd.xlane.f32.xlu0 %v6671
  %v6673 = vpop.xlane.xlu0 %6672
  %v6674 = vsel %vm451, %v6534, 0.0
  %6675 = vadd.xlane.f32.xlu0 %v6674
  %v6676 = vpop.xlane.xlu0 %6675
  %v6677 = vsel %vm451, %v6535, 0.0
  %6678 = vadd.xlane.f32.xlu0 %v6677
  %v6679 = vpop.xlane.xlu0 %6678
  %v6680 = vsel %vm451, %v6536, 0.0
  %6681 = vadd.xlane.f32.xlu0 %v6680
  %v6682 = vpop.xlane.xlu0 %6681
  %v6683 = vsel %vm451, %v6537, 0.0
  %6684 = vadd.xlane.f32.xlu0 %v6683
  %v6685 = vpop.xlane.xlu0 %6684
  %v6686 = vsel %vm451, %v6538, 0.0
  %6687 = vadd.xlane.f32.xlu0 %v6686
  %v6688 = vpop.xlane.xlu0 %6687
  %v6689 = vsel %vm451, %v6539, 0.0
  %6690 = vadd.xlane.f32.xlu0 %v6689
  %v6691 = vpop.xlane.xlu0 %6690
  %v6692 = vsel %vm451, %v6540, 0.0
  %6693 = vadd.xlane.f32.xlu0 %v6692
  %v6694 = vpop.xlane.xlu0 %6693
  %v6695 = vsel %vm451, %v6541, 0.0
  %6696 = vadd.xlane.f32.xlu0 %v6695
  %v6697 = vpop.xlane.xlu0 %6696
  %v6698 = vsel %vm451, %v6542, 0.0
  %6699 = vadd.xlane.f32.xlu0 %v6698
  %v6700 = vpop.xlane.xlu0 %6699
  %v6701 = vsel %vm451, %v6543, 0.0
  %6702 = vadd.xlane.f32.xlu0 %v6701
  %v6703 = vpop.xlane.xlu0 %6702
  %v6704 = vsel %vm451, %v6544, 0.0
  %6705 = vadd.xlane.f32.xlu0 %v6704
  %v6706 = vpop.xlane.xlu0 %6705
  %v6707 = vsel %vm451, %v6545, 0.0
  %6708 = vadd.xlane.f32.xlu0 %v6707
  %v6709 = vpop.xlane.xlu0 %6708
  %v6710 = vsel %vm451, %v6546, 0.0
  %6711 = vadd.xlane.f32.xlu0 %v6710
  %v6712 = vpop.xlane.xlu0 %6711
  %v6713 = vsel %vm451, %v6547, 0.0
  %6714 = vadd.xlane.f32.xlu0 %v6713
  %v6715 = vpop.xlane.xlu0 %6714
  %v6716 = vsel %vm451, %v6548, 0.0
  %6717 = vadd.xlane.f32.xlu0 %v6716
  %v6718 = vpop.xlane.xlu0 %6717
  %v6719 = vsel %vm451, %v6549, 0.0
  %6720 = vadd.xlane.f32.xlu0 %v6719
  %v6721 = vpop.xlane.xlu0 %6720
  %v6722 = vsel %vm451, %v6550, 0.0
  %6723 = vadd.xlane.f32.xlu0 %v6722
  %v6724 = vpop.xlane.xlu0 %6723
  %v6725 = vsel %vm451, %v6551, 0.0
  %6726 = vadd.xlane.f32.xlu0 %v6725
  %v6727 = vpop.xlane.xlu0 %6726
  %v6728 = vsel %vm451, %v6552, 0.0
  %6729 = vadd.xlane.f32.xlu0 %v6728
  %v6730 = vpop.xlane.xlu0 %6729
  %v6731 = vsel %vm451, %v6553, 0.0
  %6732 = vadd.xlane.f32.xlu0 %v6731
  %v6733 = vpop.xlane.xlu0 %6732
  %v6734 = vsel %vm451, %v6554, 0.0
  %6735 = vadd.xlane.f32.xlu0 %v6734
  %v6736 = vpop.xlane.xlu0 %6735
  %v6737 = vsel %vm451, %v6555, 0.0
  %6738 = vadd.xlane.f32.xlu0 %v6737
  %v6739 = vpop.xlane.xlu0 %6738
  %v6740 = vsel %vm451, %v6556, 0.0
  %6741 = vadd.xlane.f32.xlu0 %v6740
  %v6742 = vpop.xlane.xlu0 %6741
  %v6743 = vsel %vm451, %v6557, 0.0
  %6744 = vadd.xlane.f32.xlu0 %v6743
  %v6745 = vpop.xlane.xlu0 %6744
  %v6746 = vsel %vm451, %v6558, 0.0
  %6747 = vadd.xlane.f32.xlu0 %v6746
  %v6748 = vpop.xlane.xlu0 %6747
  %v6749 = vsel %vm451, %v6559, 0.0
  %6750 = vadd.xlane.f32.xlu0 %v6749
  %v6751 = vpop.xlane.xlu0 %6750
  %vm6752 = vcmask 7168
  %v6753 = vsel %vm6752, %v5786, %v6044
  %v6754 = vsel %vm6752, %v5789, %v6047
  %v6755 = vsel %vm6752, %v5792, %v6050
  %v6756 = vsel %vm6752, %v5795, %v6053
  %v6757 = vsel %vm6752, %v5798, %v6056
  %v6758 = vsel %vm6752, %v5801, %v6059
  %v6759 = vsel %vm6752, %v5804, %v6062
  %v6760 = vsel %vm6752, %v5807, %v6065
  %v6761 = vsel %vm6752, %v5810, %v6068
  %v6762 = vsel %vm6752, %v5813, %v6071
  %v6763 = vsel %vm6752, %v5816, %v6074
  %v6764 = vsel %vm6752, %v5819, %v6077
  %v6765 = vsel %vm6752, %v5822, %v6080
  %v6766 = vsel %vm6752, %v5825, %v6083
  %v6767 = vsel %vm6752, %v5828, %v6086
  %v6768 = vsel %vm6752, %v5831, %v6089
  %v6769 = vsel %vm6752, %v5834, %v6092
  %v6770 = vsel %vm6752, %v5837, %v6095
  %v6771 = vsel %vm6752, %v5840, %v6098
  %v6772 = vsel %vm6752, %v5843, %v6101
  %v6773 = vsel %vm6752, %v5846, %v6104
  %v6774 = vsel %vm6752, %v5849, %v6107
  %v6775 = vsel %vm6752, %v5852, %v6110
  %v6776 = vsel %vm6752, %v5855, %v6113
  %v6777 = vsel %vm6752, %v5858, %v6116
  %v6778 = vsel %vm6752, %v5861, %v6119
  %v6779 = vsel %vm6752, %v5864, %v6122
  %v6780 = vsel %vm6752, %v5867, %v6125
  %v6781 = vsel %vm6752, %v5870, %v6128
  %v6782 = vsel %vm6752, %v5873, %v6131
  %v6783 = vsel %vm6752, %v5876, %v6134
  %v6784 = vsel %vm6752, %v5879, %v6137
  %v6785 = vsel %vm6752, %v5882, %v6140
  %v6786 = vsel %vm6752, %v5885, %v6143
  %v6787 = vsel %vm6752, %v5888, %v6146
  %v6788 = vsel %vm6752, %v5891, %v6149
  %v6789 = vsel %vm6752, %v5894, %v6152
  %v6790 = vsel %vm6752, %v5897, %v6155
  %v6791 = vsel %vm6752, %v5900, %v6158
  %v6792 = vsel %vm6752, %v5903, %v6161
  %v6793 = vsel %vm6752, %v5906, %v6164
  %v6794 = vsel %vm6752, %v5909, %v6167
  %v6795 = vsel %vm6752, %v5912, %v6170
  %v6796 = vsel %vm6752, %v5915, %v6173
  %v6797 = vsel %vm6752, %v5918, %v6176
  %v6798 = vsel %vm6752, %v5921, %v6179
  %v6799 = vsel %vm6752, %v5924, %v6182
  %v6800 = vsel %vm6752, %v5927, %v6185
  %v6801 = vsel %vm6752, %v5930, %v6188
  %v6802 = vsel %vm6752, %v5933, %v6191
  %v6803 = vsel %vm6752, %v5936, %v6194
  %v6804 = vsel %vm6752, %v5939, %v6197
  %v6805 = vsel %vm6752, %v5942, %v6200
  %v6806 = vsel %vm6752, %v5945, %v6203
  %v6807 = vsel %vm6752, %v5948, %v6206
  %v6808 = vsel %vm6752, %v5951, %v6209
  %v6809 = vsel %vm6752, %v5954, %v6212
  %v6810 = vsel %vm6752, %v5957, %v6215
  %v6811 = vsel %vm6752, %v5960, %v6218
  %v6812 = vsel %vm6752, %v5963, %v6221
  %v6813 = vsel %vm6752, %v5966, %v6224
  %v6814 = vsel %vm6752, %v5969, %v6227
  %v6815 = vsel %vm6752, %v5972, %v6230
  %v6816 = vsel %vm6752, %v5975, %v6233
  %vm6817 = vcmask 15360
  %v6818 = vsel %vm6817, %v6753, %v6302
  %v6819 = vsel %vm6817, %v6754, %v6305
  %v6820 = vsel %vm6817, %v6755, %v6308
  %v6821 = vsel %vm6817, %v6756, %v6311
  %v6822 = vsel %vm6817, %v6757, %v6314
  %v6823 = vsel %vm6817, %v6758, %v6317
  %v6824 = vsel %vm6817, %v6759, %v6320
  %v6825 = vsel %vm6817, %v6760, %v6323
  %v6826 = vsel %vm6817, %v6761, %v6326
  %v6827 = vsel %vm6817, %v6762, %v6329
  %v6828 = vsel %vm6817, %v6763, %v6332
  %v6829 = vsel %vm6817, %v6764, %v6335
  %v6830 = vsel %vm6817, %v6765, %v6338
  %v6831 = vsel %vm6817, %v6766, %v6341
  %v6832 = vsel %vm6817, %v6767, %v6344
  %v6833 = vsel %vm6817, %v6768, %v6347
  %v6834 = vsel %vm6817, %v6769, %v6350
  %v6835 = vsel %vm6817, %v6770, %v6353
  %v6836 = vsel %vm6817, %v6771, %v6356
  %v6837 = vsel %vm6817, %v6772, %v6359
  %v6838 = vsel %vm6817, %v6773, %v6362
  %v6839 = vsel %vm6817, %v6774, %v6365
  %v6840 = vsel %vm6817, %v6775, %v6368
  %v6841 = vsel %vm6817, %v6776, %v6371
  %v6842 = vsel %vm6817, %v6777, %v6374
  %v6843 = vsel %vm6817, %v6778, %v6377
  %v6844 = vsel %vm6817, %v6779, %v6380
  %v6845 = vsel %vm6817, %v6780, %v6383
  %v6846 = vsel %vm6817, %v6781, %v6386
  %v6847 = vsel %vm6817, %v6782, %v6389
  %v6848 = vsel %vm6817, %v6783, %v6392
  %v6849 = vsel %vm6817, %v6784, %v6395
  %v6850 = vsel %vm6817, %v6785, %v6398
  %v6851 = vsel %vm6817, %v6786, %v6401
  %v6852 = vsel %vm6817, %v6787, %v6404
  %v6853 = vsel %vm6817, %v6788, %v6407
  %v6854 = vsel %vm6817, %v6789, %v6410
  %v6855 = vsel %vm6817, %v6790, %v6413
  %v6856 = vsel %vm6817, %v6791, %v6416
  %v6857 = vsel %vm6817, %v6792, %v6419
  %v6858 = vsel %vm6817, %v6793, %v6422
  %v6859 = vsel %vm6817, %v6794, %v6425
  %v6860 = vsel %vm6817, %v6795, %v6428
  %v6861 = vsel %vm6817, %v6796, %v6431
  %v6862 = vsel %vm6817, %v6797, %v6434
  %v6863 = vsel %vm6817, %v6798, %v6437
  %v6864 = vsel %vm6817, %v6799, %v6440
  %v6865 = vsel %vm6817, %v6800, %v6443
  %v6866 = vsel %vm6817, %v6801, %v6446
  %v6867 = vsel %vm6817, %v6802, %v6449
  %v6868 = vsel %vm6817, %v6803, %v6452
  %v6869 = vsel %vm6817, %v6804, %v6455
  %v6870 = vsel %vm6817, %v6805, %v6458
  %v6871 = vsel %vm6817, %v6806, %v6461
  %v6872 = vsel %vm6817, %v6807, %v6464
  %v6873 = vsel %vm6817, %v6808, %v6467
  %v6874 = vsel %vm6817, %v6809, %v6470
  %v6875 = vsel %vm6817, %v6810, %v6473
  %v6876 = vsel %vm6817, %v6811, %v6476
  %v6877 = vsel %vm6817, %v6812, %v6479
  %v6878 = vsel %vm6817, %v6813, %v6482
  %v6879 = vsel %vm6817, %v6814, %v6485
  %v6880 = vsel %vm6817, %v6815, %v6488
  %v6881 = vsel %vm6817, %v6816, %v6491
  %vm6882 = vcmask 23552
  %v6883 = vsel %vm6882, %v6818, %v6562
  %v6884 = vsel %vm6882, %v6819, %v6565
  %v6885 = vsel %vm6882, %v6820, %v6568
  %v6886 = vsel %vm6882, %v6821, %v6571
  %v6887 = vsel %vm6882, %v6822, %v6574
  %v6888 = vsel %vm6882, %v6823, %v6577
  %v6889 = vsel %vm6882, %v6824, %v6580
  %v6890 = vsel %vm6882, %v6825, %v6583
  %v6891 = vsel %vm6882, %v6826, %v6586
  %v6892 = vsel %vm6882, %v6827, %v6589
  %v6893 = vsel %vm6882, %v6828, %v6592
  %v6894 = vsel %vm6882, %v6829, %v6595
  %v6895 = vsel %vm6882, %v6830, %v6598
  %v6896 = vsel %vm6882, %v6831, %v6601
  %v6897 = vsel %vm6882, %v6832, %v6604
  %v6898 = vsel %vm6882, %v6833, %v6607
  %v6899 = vsel %vm6882, %v6834, %v6610
  %v6900 = vsel %vm6882, %v6835, %v6613
  %v6901 = vsel %vm6882, %v6836, %v6616
  %v6902 = vsel %vm6882, %v6837, %v6619
  %v6903 = vsel %vm6882, %v6838, %v6622
  %v6904 = vsel %vm6882, %v6839, %v6625
  %v6905 = vsel %vm6882, %v6840, %v6628
  %v6906 = vsel %vm6882, %v6841, %v6631
  %v6907 = vsel %vm6882, %v6842, %v6634
  %v6908 = vsel %vm6882, %v6843, %v6637
  %v6909 = vsel %vm6882, %v6844, %v6640
  %v6910 = vsel %vm6882, %v6845, %v6643
  %v6911 = vsel %vm6882, %v6846, %v6646
  %v6912 = vsel %vm6882, %v6847, %v6649
  %v6913 = vsel %vm6882, %v6848, %v6652
  %v6914 = vsel %vm6882, %v6849, %v6655
  %v6915 = vsel %vm6882, %v6850, %v6658
  %v6916 = vsel %vm6882, %v6851, %v6661
  %v6917 = vsel %vm6882, %v6852, %v6664
  %v6918 = vsel %vm6882, %v6853, %v6667
  %v6919 = vsel %vm6882, %v6854, %v6670
  %v6920 = vsel %vm6882, %v6855, %v6673
  %v6921 = vsel %vm6882, %v6856, %v6676
  %v6922 = vsel %vm6882, %v6857, %v6679
  %v6923 = vsel %vm6882, %v6858, %v6682
  %v6924 = vsel %vm6882, %v6859, %v6685
  %v6925 = vsel %vm6882, %v6860, %v6688
  %v6926 = vsel %vm6882, %v6861, %v6691
  %v6927 = vsel %vm6882, %v6862, %v6694
  %v6928 = vsel %vm6882, %v6863, %v6697
  %v6929 = vsel %vm6882, %v6864, %v6700
  %v6930 = vsel %vm6882, %v6865, %v6703
  %v6931 = vsel %vm6882, %v6866, %v6706
  %v6932 = vsel %vm6882, %v6867, %v6709
  %v6933 = vsel %vm6882, %v6868, %v6712
  %v6934 = vsel %vm6882, %v6869, %v6715
  %v6935 = vsel %vm6882, %v6870, %v6718
  %v6936 = vsel %vm6882, %v6871, %v6721
  %v6937 = vsel %vm6882, %v6872, %v6724
  %v6938 = vsel %vm6882, %v6873, %v6727
  %v6939 = vsel %vm6882, %v6874, %v6730
  %v6940 = vsel %vm6882, %v6875, %v6733
  %v6941 = vsel %vm6882, %v6876, %v6736
  %v6942 = vsel %vm6882, %v6877, %v6739
  %v6943 = vsel %vm6882, %v6878, %v6742
  %v6944 = vsel %vm6882, %v6879, %v6745
  %v6945 = vsel %vm6882, %v6880, %v6748
  %v6946 = vsel %vm6882, %v6881, %v6751
  %v6947 = vld [vmem:[%s18] sm:$0x1]
  %v6949 = vperm.slane %v6947, 0
  %v6951 = vadd.f32 %v6883, %v6949
  %v6952 = vadd.f32 %v6884, %v6949
  %v6953 = vadd.f32 %v6885, %v6949
  %v6954 = vadd.f32 %v6886, %v6949
  %v6955 = vadd.f32 %v6887, %v6949
  %v6956 = vadd.f32 %v6888, %v6949
  %v6957 = vadd.f32 %v6889, %v6949
  %v6958 = vadd.f32 %v6890, %v6949
  %v6959 = vadd.f32 %v6891, %v6949
  %v6960 = vadd.f32 %v6892, %v6949
  %v6961 = vadd.f32 %v6893, %v6949
  %v6962 = vadd.f32 %v6894, %v6949
  %v6963 = vadd.f32 %v6895, %v6949
  %v6964 = vadd.f32 %v6896, %v6949
  %v6965 = vadd.f32 %v6897, %v6949
  %v6966 = vadd.f32 %v6898, %v6949
  %v6967 = vadd.f32 %v6899, %v6949
  %v6968 = vadd.f32 %v6900, %v6949
  %v6969 = vadd.f32 %v6901, %v6949
  %v6970 = vadd.f32 %v6902, %v6949
  %v6971 = vadd.f32 %v6903, %v6949
  %v6972 = vadd.f32 %v6904, %v6949
  %v6973 = vadd.f32 %v6905, %v6949
  %v6974 = vadd.f32 %v6906, %v6949
  %v6975 = vadd.f32 %v6907, %v6949
  %v6976 = vadd.f32 %v6908, %v6949
  %v6977 = vadd.f32 %v6909, %v6949
  %v6978 = vadd.f32 %v6910, %v6949
  %v6979 = vadd.f32 %v6911, %v6949
  %v6980 = vadd.f32 %v6912, %v6949
  %v6981 = vadd.f32 %v6913, %v6949
  %v6982 = vadd.f32 %v6914, %v6949
  %v6983 = vadd.f32 %v6915, %v6949
  %v6984 = vadd.f32 %v6916, %v6949
  %v6985 = vadd.f32 %v6917, %v6949
  %v6986 = vadd.f32 %v6918, %v6949
  %v6987 = vadd.f32 %v6919, %v6949
  %v6988 = vadd.f32 %v6920, %v6949
  %v6989 = vadd.f32 %v6921, %v6949
  %v6990 = vadd.f32 %v6922, %v6949
  %v6991 = vadd.f32 %v6923, %v6949
  %v6992 = vadd.f32 %v6924, %v6949
  %v6993 = vadd.f32 %v6925, %v6949
  %v6994 = vadd.f32 %v6926, %v6949
  %v6995 = vadd.f32 %v6927, %v6949
  %v6996 = vadd.f32 %v6928, %v6949
  %v6997 = vadd.f32 %v6929, %v6949
  %v6998 = vadd.f32 %v6930, %v6949
  %v6999 = vadd.f32 %v6931, %v6949
  %v7000 = vadd.f32 %v6932, %v6949
  %v7001 = vadd.f32 %v6933, %v6949
  %v7002 = vadd.f32 %v6934, %v6949
  %v7003 = vadd.f32 %v6935, %v6949
  %v7004 = vadd.f32 %v6936, %v6949
  %v7005 = vadd.f32 %v6937, %v6949
  %v7006 = vadd.f32 %v6938, %v6949
  %v7007 = vadd.f32 %v6939, %v6949
  %v7008 = vadd.f32 %v6940, %v6949
  %v7009 = vadd.f32 %v6941, %v6949
  %v7010 = vadd.f32 %v6942, %v6949
  %v7011 = vadd.f32 %v6943, %v6949
  %v7012 = vadd.f32 %v6944, %v6949
  %v7013 = vadd.f32 %v6945, %v6949
  %v7014 = vadd.f32 %v6946, %v6949
  %7079 = vrot.lane.b32.xlu0 %v5654, 4
  %v7080 = vpop.permute.xlu0 %7079
  %7081 = vrot.lane.b32.xlu0 %v5655, 4
  %v7082 = vpop.permute.xlu0 %7081
  %7083 = vrot.lane.b32.xlu0 %v5656, 4
  %v7084 = vpop.permute.xlu0 %7083
  %7085 = vrot.lane.b32.xlu0 %v5657, 4
  %v7086 = vpop.permute.xlu0 %7085
  %7087 = vrot.lane.b32.xlu0 %v5658, 4
  %v7088 = vpop.permute.xlu0 %7087
  %7089 = vrot.lane.b32.xlu0 %v5659, 4
  %v7090 = vpop.permute.xlu0 %7089
  %7091 = vrot.lane.b32.xlu0 %v5660, 4
  %v7092 = vpop.permute.xlu0 %7091
  %7093 = vrot.lane.b32.xlu0 %v5661, 4
  %v7094 = vpop.permute.xlu0 %7093
  %7095 = vrot.lane.b32.xlu0 %v5662, 4
  %v7096 = vpop.permute.xlu0 %7095
  %7097 = vrot.lane.b32.xlu0 %v5663, 4
  %v7098 = vpop.permute.xlu0 %7097
  %7099 = vrot.lane.b32.xlu0 %v5664, 4
  %v7100 = vpop.permute.xlu0 %7099
  %7101 = vrot.lane.b32.xlu0 %v5665, 4
  %v7102 = vpop.permute.xlu0 %7101
  %7103 = vrot.lane.b32.xlu0 %v5666, 4
  %v7104 = vpop.permute.xlu0 %7103
  %7105 = vrot.lane.b32.xlu0 %v5667, 4
  %v7106 = vpop.permute.xlu0 %7105
  %7107 = vrot.lane.b32.xlu0 %v5668, 4
  %v7108 = vpop.permute.xlu0 %7107
  %7109 = vrot.lane.b32.xlu0 %v5669, 4
  %v7110 = vpop.permute.xlu0 %7109
  %7111 = vrot.lane.b32.xlu0 %v5670, 4
  %v7112 = vpop.permute.xlu0 %7111
  %7113 = vrot.lane.b32.xlu0 %v5671, 4
  %v7114 = vpop.permute.xlu0 %7113
  %7115 = vrot.lane.b32.xlu0 %v5672, 4
  %v7116 = vpop.permute.xlu0 %7115
  %7117 = vrot.lane.b32.xlu0 %v5673, 4
  %v7118 = vpop.permute.xlu0 %7117
  %7119 = vrot.lane.b32.xlu0 %v5674, 4
  %v7120 = vpop.permute.xlu0 %7119
  %7121 = vrot.lane.b32.xlu0 %v5675, 4
  %v7122 = vpop.permute.xlu0 %7121
  %7123 = vrot.lane.b32.xlu0 %v5676, 4
  %v7124 = vpop.permute.xlu0 %7123
  %7125 = vrot.lane.b32.xlu0 %v5677, 4
  %v7126 = vpop.permute.xlu0 %7125
  %7127 = vrot.lane.b32.xlu0 %v5678, 4
  %v7128 = vpop.permute.xlu0 %7127
  %7129 = vrot.lane.b32.xlu0 %v5679, 4
  %v7130 = vpop.permute.xlu0 %7129
  %7131 = vrot.lane.b32.xlu0 %v5680, 4
  %v7132 = vpop.permute.xlu0 %7131
  %7133 = vrot.lane.b32.xlu0 %v5681, 4
  %v7134 = vpop.permute.xlu0 %7133
  %7135 = vrot.lane.b32.xlu0 %v5682, 4
  %v7136 = vpop.permute.xlu0 %7135
  %7137 = vrot.lane.b32.xlu0 %v5683, 4
  %v7138 = vpop.permute.xlu0 %7137
  %7139 = vrot.lane.b32.xlu0 %v5684, 4
  %v7140 = vpop.permute.xlu0 %7139
  %7141 = vrot.lane.b32.xlu0 %v5685, 4
  %v7142 = vpop.permute.xlu0 %7141
  %7143 = vrot.lane.b32.xlu0 %v5686, 4
  %v7144 = vpop.permute.xlu0 %7143
  %7145 = vrot.lane.b32.xlu0 %v5687, 4
  %v7146 = vpop.permute.xlu0 %7145
  %7147 = vrot.lane.b32.xlu0 %v5688, 4
  %v7148 = vpop.permute.xlu0 %7147
  %7149 = vrot.lane.b32.xlu0 %v5689, 4
  %v7150 = vpop.permute.xlu0 %7149
  %7151 = vrot.lane.b32.xlu0 %v5690, 4
  %v7152 = vpop.permute.xlu0 %7151
  %7153 = vrot.lane.b32.xlu0 %v5691, 4
  %v7154 = vpop.permute.xlu0 %7153
  %7155 = vrot.lane.b32.xlu0 %v5692, 4
  %v7156 = vpop.permute.xlu0 %7155
  %7157 = vrot.lane.b32.xlu0 %v5693, 4
  %v7158 = vpop.permute.xlu0 %7157
  %7159 = vrot.lane.b32.xlu0 %v5694, 4
  %v7160 = vpop.permute.xlu0 %7159
  %7161 = vrot.lane.b32.xlu0 %v5695, 4
  %v7162 = vpop.permute.xlu0 %7161
  %7163 = vrot.lane.b32.xlu0 %v5696, 4
  %v7164 = vpop.permute.xlu0 %7163
  %7165 = vrot.lane.b32.xlu0 %v5697, 4
  %v7166 = vpop.permute.xlu0 %7165
  %7167 = vrot.lane.b32.xlu0 %v5698, 4
  %v7168 = vpop.permute.xlu0 %7167
  %7169 = vrot.lane.b32.xlu0 %v5699, 4
  %v7170 = vpop.permute.xlu0 %7169
  %7171 = vrot.lane.b32.xlu0 %v5700, 4
  %v7172 = vpop.permute.xlu0 %7171
  %7173 = vrot.lane.b32.xlu0 %v5701, 4
  %v7174 = vpop.permute.xlu0 %7173
  %7175 = vrot.lane.b32.xlu0 %v5702, 4
  %v7176 = vpop.permute.xlu0 %7175
  %7177 = vrot.lane.b32.xlu0 %v5703, 4
  %v7178 = vpop.permute.xlu0 %7177
  %7179 = vrot.lane.b32.xlu0 %v5704, 4
  %v7180 = vpop.permute.xlu0 %7179
  %7181 = vrot.lane.b32.xlu0 %v5705, 4
  %v7182 = vpop.permute.xlu0 %7181
  %7183 = vrot.lane.b32.xlu0 %v5706, 4
  %v7184 = vpop.permute.xlu0 %7183
  %7185 = vrot.lane.b32.xlu0 %v5707, 4
  %v7186 = vpop.permute.xlu0 %7185
  %7187 = vrot.lane.b32.xlu0 %v5708, 4
  %v7188 = vpop.permute.xlu0 %7187
  %7189 = vrot.lane.b32.xlu0 %v5709, 4
  %v7190 = vpop.permute.xlu0 %7189
  %7191 = vrot.lane.b32.xlu0 %v5710, 4
  %v7192 = vpop.permute.xlu0 %7191
  %7193 = vrot.lane.b32.xlu0 %v5711, 4
  %v7194 = vpop.permute.xlu0 %7193
  %7195 = vrot.lane.b32.xlu0 %v5712, 4
  %v7196 = vpop.permute.xlu0 %7195
  %7197 = vrot.lane.b32.xlu0 %v5713, 4
  %v7198 = vpop.permute.xlu0 %7197
  %7199 = vrot.lane.b32.xlu0 %v5714, 4
  %v7200 = vpop.permute.xlu0 %7199
  %7201 = vrot.lane.b32.xlu0 %v5715, 4
  %v7202 = vpop.permute.xlu0 %7201
  %7203 = vrot.lane.b32.xlu0 %v5716, 4
  %v7204 = vpop.permute.xlu0 %7203
  %7205 = vrot.lane.b32.xlu0 %v5717, 4
  %v7206 = vpop.permute.xlu0 %7205
  %vm7271 = vcmask 31744
  %v7272 = vsel %vm7271, %v6951, %v7080
  %v7273 = vsel %vm7271, %v6952, %v7082
  %v7274 = vsel %vm7271, %v6953, %v7084
  %v7275 = vsel %vm7271, %v6954, %v7086
  %v7276 = vsel %vm7271, %v6955, %v7088
  %v7277 = vsel %vm7271, %v6956, %v7090
  %v7278 = vsel %vm7271, %v6957, %v7092
  %v7279 = vsel %vm7271, %v6958, %v7094
  %v7280 = vsel %vm7271, %v6959, %v7096
  %v7281 = vsel %vm7271, %v6960, %v7098
  %v7282 = vsel %vm7271, %v6961, %v7100
  %v7283 = vsel %vm7271, %v6962, %v7102
  %v7284 = vsel %vm7271, %v6963, %v7104
  %v7285 = vsel %vm7271, %v6964, %v7106
  %v7286 = vsel %vm7271, %v6965, %v7108
  %v7287 = vsel %vm7271, %v6966, %v7110
  %v7288 = vsel %vm7271, %v6967, %v7112
  %v7289 = vsel %vm7271, %v6968, %v7114
  %v7290 = vsel %vm7271, %v6969, %v7116
  %v7291 = vsel %vm7271, %v6970, %v7118
  %v7292 = vsel %vm7271, %v6971, %v7120
  %v7293 = vsel %vm7271, %v6972, %v7122
  %v7294 = vsel %vm7271, %v6973, %v7124
  %v7295 = vsel %vm7271, %v6974, %v7126
  %v7296 = vsel %vm7271, %v6975, %v7128
  %v7297 = vsel %vm7271, %v6976, %v7130
  %v7298 = vsel %vm7271, %v6977, %v7132
  %v7299 = vsel %vm7271, %v6978, %v7134
  %v7300 = vsel %vm7271, %v6979, %v7136
  %v7301 = vsel %vm7271, %v6980, %v7138
  %v7302 = vsel %vm7271, %v6981, %v7140
  %v7303 = vsel %vm7271, %v6982, %v7142
  %v7304 = vsel %vm7271, %v6983, %v7144
  %v7305 = vsel %vm7271, %v6984, %v7146
  %v7306 = vsel %vm7271, %v6985, %v7148
  %v7307 = vsel %vm7271, %v6986, %v7150
  %v7308 = vsel %vm7271, %v6987, %v7152
  %v7309 = vsel %vm7271, %v6988, %v7154
  %v7310 = vsel %vm7271, %v6989, %v7156
  %v7311 = vsel %vm7271, %v6990, %v7158
  %v7312 = vsel %vm7271, %v6991, %v7160
  %v7313 = vsel %vm7271, %v6992, %v7162
  %v7314 = vsel %vm7271, %v6993, %v7164
  %v7315 = vsel %vm7271, %v6994, %v7166
  %v7316 = vsel %vm7271, %v6995, %v7168
  %v7317 = vsel %vm7271, %v6996, %v7170
  %v7318 = vsel %vm7271, %v6997, %v7172
  %v7319 = vsel %vm7271, %v6998, %v7174
  %v7320 = vsel %vm7271, %v6999, %v7176
  %v7321 = vsel %vm7271, %v7000, %v7178
  %v7322 = vsel %vm7271, %v7001, %v7180
  %v7323 = vsel %vm7271, %v7002, %v7182
  %v7324 = vsel %vm7271, %v7003, %v7184
  %v7325 = vsel %vm7271, %v7004, %v7186
  %v7326 = vsel %vm7271, %v7005, %v7188
  %v7327 = vsel %vm7271, %v7006, %v7190
  %v7328 = vsel %vm7271, %v7007, %v7192
  %v7329 = vsel %vm7271, %v7008, %v7194
  %v7330 = vsel %vm7271, %v7009, %v7196
  %v7331 = vsel %vm7271, %v7010, %v7198
  %v7332 = vsel %vm7271, %v7011, %v7200
  %v7333 = vsel %vm7271, %v7012, %v7202
  %v7334 = vsel %vm7271, %v7013, %v7204
  %v7335 = vsel %vm7271, %v7014, %v7206
  %vm7336 = vcmask 556032
  %7337 = vst.msk [vmem:[%s19] sm:$0xff] %vm7336, %v7272
  %7338 = vst.msk [vmem:[%s19 + $0x8] sm:$0xff] %vm7336, %v7273
  %7339 = vst.msk [vmem:[%s19 + $0x10] sm:$0xff] %vm7336, %v7274
  %7340 = vst.msk [vmem:[%s19 + $0x18] sm:$0xff] %vm7336, %v7275
  %7341 = vst.msk [vmem:[%s19 + $0x20] sm:$0xff] %vm7336, %v7276
  %7342 = vst.msk [vmem:[%s19 + $0x28] sm:$0xff] %vm7336, %v7277
  %7343 = vst.msk [vmem:[%s19 + $0x30] sm:$0xff] %vm7336, %v7278
  %7344 = vst.msk [vmem:[%s19 + $0x38] sm:$0xff] %vm7336, %v7279
  %7345 = vst.msk [vmem:[%s19 + $0x40] sm:$0xff] %vm7336, %v7280
  %7346 = vst.msk [vmem:[%s19 + $0x48] sm:$0xff] %vm7336, %v7281
  %7347 = vst.msk [vmem:[%s19 + $0x50] sm:$0xff] %vm7336, %v7282
  %7348 = vst.msk [vmem:[%s19 + $0x58] sm:$0xff] %vm7336, %v7283
  %7349 = vst.msk [vmem:[%s19 + $0x60] sm:$0xff] %vm7336, %v7284
  %7350 = vst.msk [vmem:[%s19 + $0x68] sm:$0xff] %vm7336, %v7285
  %7351 = vst.msk [vmem:[%s19 + $0x70] sm:$0xff] %vm7336, %v7286
  %7352 = vst.msk [vmem:[%s19 + $0x78] sm:$0xff] %vm7336, %v7287
  %7353 = vst.msk [vmem:[%s19 + $0x80] sm:$0xff] %vm7336, %v7288
  %7354 = vst.msk [vmem:[%s19 + $0x88] sm:$0xff] %vm7336, %v7289
  %7355 = vst.msk [vmem:[%s19 + $0x90] sm:$0xff] %vm7336, %v7290
  %7356 = vst.msk [vmem:[%s19 + $0x98] sm:$0xff] %vm7336, %v7291
  %7357 = vst.msk [vmem:[%s19 + $0xa0] sm:$0xff] %vm7336, %v7292
  %7358 = vst.msk [vmem:[%s19 + $0xa8] sm:$0xff] %vm7336, %v7293
  %7359 = vst.msk [vmem:[%s19 + $0xb0] sm:$0xff] %vm7336, %v7294
  %7360 = vst.msk [vmem:[%s19 + $0xb8] sm:$0xff] %vm7336, %v7295
  %7361 = vst.msk [vmem:[%s19 + $0xc0] sm:$0xff] %vm7336, %v7296
  %7362 = vst.msk [vmem:[%s19 + $0xc8] sm:$0xff] %vm7336, %v7297
  %7363 = vst.msk [vmem:[%s19 + $0xd0] sm:$0xff] %vm7336, %v7298
  %7364 = vst.msk [vmem:[%s19 + $0xd8] sm:$0xff] %vm7336, %v7299
  %7365 = vst.msk [vmem:[%s19 + $0xe0] sm:$0xff] %vm7336, %v7300
  %7366 = vst.msk [vmem:[%s19 + $0xe8] sm:$0xff] %vm7336, %v7301
  %7367 = vst.msk [vmem:[%s19 + $0xf0] sm:$0xff] %vm7336, %v7302
  %7368 = vst.msk [vmem:[%s19 + $0xf8] sm:$0xff] %vm7336, %v7303
  %7369 = vst.msk [vmem:[%s19 + $0x100] sm:$0xff] %vm7336, %v7304
  %7370 = vst.msk [vmem:[%s19 + $0x108] sm:$0xff] %vm7336, %v7305
  %7371 = vst.msk [vmem:[%s19 + $0x110] sm:$0xff] %vm7336, %v7306
  %7372 = vst.msk [vmem:[%s19 + $0x118] sm:$0xff] %vm7336, %v7307
  %7373 = vst.msk [vmem:[%s19 + $0x120] sm:$0xff] %vm7336, %v7308
  %7374 = vst.msk [vmem:[%s19 + $0x128] sm:$0xff] %vm7336, %v7309
  %7375 = vst.msk [vmem:[%s19 + $0x130] sm:$0xff] %vm7336, %v7310
  %7376 = vst.msk [vmem:[%s19 + $0x138] sm:$0xff] %vm7336, %v7311
  %7377 = vst.msk [vmem:[%s19 + $0x140] sm:$0xff] %vm7336, %v7312
  %7378 = vst.msk [vmem:[%s19 + $0x148] sm:$0xff] %vm7336, %v7313
  %7379 = vst.msk [vmem:[%s19 + $0x150] sm:$0xff] %vm7336, %v7314
  %7380 = vst.msk [vmem:[%s19 + $0x158] sm:$0xff] %vm7336, %v7315
  %7381 = vst.msk [vmem:[%s19 + $0x160] sm:$0xff] %vm7336, %v7316
  %7382 = vst.msk [vmem:[%s19 + $0x168] sm:$0xff] %vm7336, %v7317
  %7383 = vst.msk [vmem:[%s19 + $0x170] sm:$0xff] %vm7336, %v7318
  %7384 = vst.msk [vmem:[%s19 + $0x178] sm:$0xff] %vm7336, %v7319
  %7385 = vst.msk [vmem:[%s19 + $0x180] sm:$0xff] %vm7336, %v7320
  %7386 = vst.msk [vmem:[%s19 + $0x188] sm:$0xff] %vm7336, %v7321
  %7387 = vst.msk [vmem:[%s19 + $0x190] sm:$0xff] %vm7336, %v7322
  %7388 = vst.msk [vmem:[%s19 + $0x198] sm:$0xff] %vm7336, %v7323
  %7389 = vst.msk [vmem:[%s19 + $0x1a0] sm:$0xff] %vm7336, %v7324
  %7390 = vst.msk [vmem:[%s19 + $0x1a8] sm:$0xff] %vm7336, %v7325
  %7391 = vst.msk [vmem:[%s19 + $0x1b0] sm:$0xff] %vm7336, %v7326
  %7392 = vst.msk [vmem:[%s19 + $0x1b8] sm:$0xff] %vm7336, %v7327
  %7393 = vst.msk [vmem:[%s19 + $0x1c0] sm:$0xff] %vm7336, %v7328
  %7394 = vst.msk [vmem:[%s19 + $0x1c8] sm:$0xff] %vm7336, %v7329
  %7395 = vst.msk [vmem:[%s19 + $0x1d0] sm:$0xff] %vm7336, %v7330
  %7396 = vst.msk [vmem:[%s19 + $0x1d8] sm:$0xff] %vm7336, %v7331
  %7397 = vst.msk [vmem:[%s19 + $0x1e0] sm:$0xff] %vm7336, %v7332
  %7398 = vst.msk [vmem:[%s19 + $0x1e8] sm:$0xff] %vm7336, %v7333
  %7399 = vst.msk [vmem:[%s19 + $0x1f0] sm:$0xff] %vm7336, %v7334
  %7400 = vst.msk [vmem:[%s19 + $0x1f8] sm:$0xff] %vm7336, %v7335
  // Predicated region
  $region78: #{tpu_custom_call.1} parent=0 // pred_check
    _
  $region79: #{tpu_custom_call.1} parent=0 // pred_check_branch
    %7402 = sbr.rel (0) target = $region81
  $region80: #{tpu_custom_call.1} parent=0 // pred_region
    _
  $region81: #{tpu_custom_call.1} parent=0 // pred_fallthru
    _
  // Predicated region
  $region82: #{tpu_custom_call.1} parent=0 // pred_check
    _
  $region83: #{tpu_custom_call.1} parent=0 // pred_check_branch
    %7404 = sbr.rel (0) target = $region85
  $region84: #{tpu_custom_call.1} parent=0 // pred_region
    _
  $region85: #{tpu_custom_call.1} parent=0 // pred_fallthru
    _

</llo_original>
